<compile_context>
chip_gen: v7x
topology: tpu7x:2x2x1
jax: 0.10.0
libtpu: 0.0.40
codegen_flags: <defaults>
</compile_context>

<pallas_src>
import functools

import jax
import jax.numpy as jnp
import numpy as np
from jax.experimental import pallas as pl
from jax.experimental.pallas import tpu as pltpu


def _spatial_attention_kernel(w_ref, row_ref, col_ref, x_ref, o_ref,
                              sum_ref, max_ref, *, ks, H, W, C, c_chunk, nb):
    # w_ref   : SMEM (2*ks*ks,) f32   -- conv weights (avg path pre-scaled 1/C)
    # row_ref : VMEM (1, H*W) f32     -- pixel row index i per flat pixel
    # col_ref : VMEM (1, H*W) f32     -- pixel col index j per flat pixel
    # x_ref   : VMEM (nb, c_chunk, H*W) -- channel chunk of nb images
    # o_ref   : VMEM (nb, 1, H*W)     -- output attention maps (flat)
    # sum_ref / max_ref : VMEM (nb, 1, H*W) f32 -- running channel sum / max
    HW = H * W
    p = ks // 2
    c_idx = pl.program_id(1)
    nc = pl.num_programs(1)
    mask_tail = (C % c_chunk) != 0

    # ---- fused single-pass partial channel reduction (per folded image) ----
    part_sums, part_maxes = [], []
    for b in range(nb):
        xb = x_ref[b]                                        # (c_chunk, HW)
        if mask_tail:
            # Tail chunk may contain out-of-range (padded) channel rows.
            ch = jax.lax.broadcasted_iota(jnp.int32, xb.shape, 0) + c_idx * c_chunk
            valid = ch < C
            xf = xb.astype(jnp.float32)
            part_sums.append(
                jnp.sum(jnp.where(valid, xf, 0.0), axis=0, keepdims=True))
            part_maxes.append(
                jnp.max(jnp.where(valid, xf, -jnp.inf), axis=0, keepdims=True))
        else:
            # Sum accumulates in f32; max stays in the native dtype (exact).
            part_sums.append(
                jnp.sum(xb, axis=0, keepdims=True, dtype=jnp.float32))
            part_maxes.append(
                jnp.max(xb, axis=0, keepdims=True).astype(jnp.float32))

    @pl.when(c_idx == 0)
    def _init():
        for b in range(nb):
            sum_ref[b] = part_sums[b]
            max_ref[b] = part_maxes[b]

    @pl.when(c_idx > 0)
    def _accumulate():
        for b in range(nb):
            sum_ref[b] = sum_ref[b] + part_sums[b]
            max_ref[b] = jnp.maximum(max_ref[b], part_maxes[b])

    # ---- finalize: 2->1 "same" conv via lane rolls + edge masks, sigmoid ----
    @pl.when(c_idx == nc - 1)
    def _finalize():
        row = row_ref[...]                                   # (1, HW) f32
        col = col_ref[...]                                   # (1, HW) f32

        def edge_mask(idx, off, n):
            # 1.0 where 0 <= idx + off < n; None means "always valid".
            if off == 0:
                return None
            if off < 0:
                return (idx >= float(-off)).astype(jnp.float32)
            return (idx < float(n - off)).astype(jnp.float32)

        row_masks = [edge_mask(row, di - p, H) for di in range(ks)]
        col_masks = [edge_mask(col, dj - p, W) for dj in range(ks)]
        wvals = [w_ref[t] for t in range(2 * ks * ks)]       # SMEM scalars

        for b in range(nb):
            maps = (sum_ref[b], max_ref[b])                  # (1, HW) f32 each
            acc = jnp.zeros((1, HW), jnp.float32)
            for dj in range(ks):
                inner = jnp.zeros((1, HW), jnp.float32)
                for c in range(2):
                    m = maps[c]
                    for di in range(ks):
                        off = (di - p) * W + (dj - p)
                        shift = (-off) % HW
                        rolled = m if shift == 0 else pltpu.roll(m, shift, axis=1)
                        wv = wvals[c * ks * ks + di * ks + dj]
                        if row_masks[di] is None:
                            inner = inner + wv * rolled
                        else:
                            inner = inner + (wv * row_masks[di]) * rolled
                if col_masks[dj] is None:
                    acc = acc + inner
                else:
                    acc = acc + col_masks[dj] * inner
            o_ref[b] = jax.nn.sigmoid(acc).astype(o_ref.dtype)


def _choose_tiling(N, C, HW, itemsize, target_bytes=4 << 20, nb_cap=8):
    """Byte-targeted tiling: (batch fold nb, channel chunk, #channel chunks)."""
    per_channel = HW * itemsize
    per_image = C * per_channel
    if per_image <= target_bytes:
        # Whole channel axis fits: fold several batch images per grid step.
        c_chunk, nc = C, 1
        cap = min(nb_cap, max(1, target_bytes // per_image))
        nb = 1
        for d in range(1, N + 1):
            if N % d == 0 and d <= cap:
                nb = d
    else:
        nb = 1
        c_chunk = max(1, target_bytes // per_channel)
        if c_chunk >= C:
            c_chunk, nc = C, 1
        else:
            # second-to-last block dim must be a multiple of 8 (or == C)
            c_chunk = max(8, (c_chunk // 8) * 8)
            if c_chunk >= C:
                c_chunk = C
            nc = -(-C // c_chunk)                    # cdiv: tail masked in-kernel
    return nb, c_chunk, nc


def spatial_attention(x, weight, kernel_size):
    """x: (N, C, H, W); weight: (1, 2, k, k), no bias -> (N, 1, H, W)."""
    assert kernel_size % 2 == 1, "SpatialAttention requires odd kernel_size"
    N, C, H, W = x.shape
    HW = H * W
    itemsize = jnp.dtype(x.dtype).itemsize

    # Fold the channel-mean's 1/C into the avg-path conv weights (host-side).
    w = weight.astype(jnp.float32) * jnp.array(
        [1.0 / C, 1.0], jnp.float32).reshape(1, 2, 1, 1)
    w_flat = w.reshape(-1)                                   # (2*k*k,), (c,di,dj)

    # Precomputed per-flat-pixel row / col indices (f32) for the edge masks.
    fidx = jnp.arange(HW, dtype=jnp.int32)
    row_ids = (fidx // W).astype(jnp.float32).reshape(1, HW)
    col_ids = (fidx % W).astype(jnp.float32).reshape(1, HW)

    x_flat = x.reshape(N, C, HW)                             # lane-dense last dim

    nb, c_chunk, nc = _choose_tiling(N, C, HW, itemsize)

    blk_bytes = nb * c_chunk * HW * itemsize
    aux_bytes = (2 * nb * 8 * HW * 4        # sum/max scratch (sublane-padded)
                 + 2 * nb * 8 * HW * itemsize  # double-buffered output
                 + 2 * 8 * HW * 4)          # row/col index inputs
    vmem_limit = int(min(48 * 1024 * 1024,
                         max(16 * 1024 * 1024,
                             2 * blk_bytes + aux_bytes + (4 << 20))))

    cost = pl.CostEstimate(
        flops=int(2 * N * C * HW + 4 * kernel_size * kernel_size * N * HW),
        transcendentals=int(N * HW),
        bytes_accessed=int(N * C * HW * itemsize + N * HW * itemsize
                           + 2 * HW * 4 + w_flat.size * 4),
    )

    kern = functools.partial(_spatial_attention_kernel, ks=kernel_size,
                             H=H, W=W, C=C, c_chunk=c_chunk, nb=nb)
    out_flat = pl.pallas_call(
        kern,
        out_shape=jax.ShapeDtypeStruct((N, 1, HW), x.dtype),
        grid_spec=pltpu.PrefetchScalarGridSpec(
            num_scalar_prefetch=0,
            grid=(N // nb, nc),
            in_specs=[
                pl.BlockSpec(memory_space=pltpu.MemorySpace.SMEM),       # weights
                pl.BlockSpec((1, HW), lambda n, c: (0, 0)),              # row ids
                pl.BlockSpec((1, HW), lambda n, c: (0, 0)),              # col ids
                pl.BlockSpec((nb, c_chunk, HW), lambda n, c: (n, c, 0)),  # x chunk
            ],
            out_specs=pl.BlockSpec((nb, 1, HW), lambda n, c: (n, 0, 0)),
            scratch_shapes=[
                pltpu.VMEM((nb, 1, HW), jnp.float32),                    # run. sum
                pltpu.VMEM((nb, 1, HW), jnp.float32),                    # run. max
            ],
        ),
        compiler_params=pltpu.CompilerParams(
            dimension_semantics=("parallel", "arbitrary"),
            vmem_limit_bytes=vmem_limit),
        cost_estimate=cost,
    )(w_flat, row_ids, col_ids, x_flat)
    return out_flat.reshape(N, 1, H, W)


def spatial_attention_ref(x, weight, kernel_size):
    """Pure-JAX reference matching the PyTorch module."""
    p = kernel_size // 2
    avg = jnp.mean(x, axis=1, keepdims=True)
    mx = jnp.max(x, axis=1, keepdims=True)
    cat = jnp.concatenate([avg, mx], axis=1)
    y = jax.lax.conv_general_dilated(
        cat, weight, window_strides=(1, 1), padding=[(p, p), (p, p)],
        dimension_numbers=("NCHW", "OIHW", "NCHW"))
    return jax.nn.sigmoid(y)


if __name__ == "__main__":
    kernel_size = 7
    N, C, H, W = 2, 4, 16, 16

    key = jax.random.PRNGKey(0)
    kx, kw = jax.random.split(key)
    x = jax.random.normal(kx, (N, C, H, W), dtype=jnp.float32)
    # Deterministic synthetic conv weight, shape (out=1, in=2, k, k), no bias.
    weight = 0.1 * jax.random.normal(kw, (1, 2, kernel_size, kernel_size),
                                     dtype=jnp.float32)

    out = jax.block_until_ready(spatial_attention(x, weight, kernel_size))
    ref = jax.block_until_ready(spatial_attention_ref(x, weight, kernel_size))
    assert out.shape == (N, 1, H, W)
    np.testing.assert_allclose(np.asarray(out), np.asarray(ref),
                               rtol=1e-5, atol=1e-5)
    print("KERNEL_OK")
</pallas_src>

<mosaic_0001>
module attributes {stable_mosaic.version = 11 : i64} {
  func.func @_spatial_attention_kernel(%arg0: i32, %arg1: i32, %arg2: memref<98xf32, #tpu.memory_space<smem>>, %arg3: memref<1x256xf32, #tpu.memory_space<vmem>>, %arg4: memref<1x256xf32, #tpu.memory_space<vmem>>, %arg5: memref<2x4x256xf32, #tpu.memory_space<vmem>>, %arg6: memref<2x1x256xf32, #tpu.memory_space<vmem>>, %arg7: memref<2x1x256xf32, #tpu.memory_space<vmem>>, %arg8: memref<2x1x256xf32, #tpu.memory_space<vmem>>) attributes {dimension_semantics = [#tpu.dimension_semantics<parallel>, #tpu.dimension_semantics<arbitrary>], iteration_bounds = array<i64: 1, 1>, scalar_prefetch = 0 : i64, scratch_operands = 2 : i64, tpu.core_type = #tpu.core_type<tc>, window_params = [{transform_indices = @transform_0, window_bounds = array<i64: 98>}, {pipeline_mode = #tpu.pipeline_mode<synchronous>, transform_indices = @transform_1, window_bounds = array<i64: 1, 256>}, {pipeline_mode = #tpu.pipeline_mode<synchronous>, transform_indices = @transform_2, window_bounds = array<i64: 1, 256>}, {transform_indices = @transform_3, window_bounds = array<i64: 2, 4, 256>}, {transform_indices = @transform_4, window_bounds = array<i64: 2, 1, 256>}]} {
    %c0 = arith.constant 0 : index
    %c0_0 = arith.constant 0 : index
    %c0_1 = arith.constant 0 : index
    %0 = vector.load %arg5[%c0, %c0_0, %c0_1] : memref<2x4x256xf32, #tpu.memory_space<vmem>>, vector<1x4x256xf32>
    %1 = vector.shape_cast %0 : vector<1x4x256xf32> to vector<4x256xf32>
    %cst = arith.constant dense<0.000000e+00> : vector<256xf32>
    %2 = vector.multi_reduction <add>, %1, %cst [0] : vector<4x256xf32> to vector<256xf32>
    %3 = vector.shape_cast %2 : vector<256xf32> to vector<1x256xf32>
    %cst_2 = arith.constant dense<0xFF800000> : vector<256xf32>
    %4 = vector.multi_reduction <maximumf>, %1, %cst_2 [0] : vector<4x256xf32> to vector<256xf32>
    %5 = vector.shape_cast %4 : vector<256xf32> to vector<1x256xf32>
    %c1 = arith.constant 1 : index
    %c0_3 = arith.constant 0 : index
    %c0_4 = arith.constant 0 : index
    %6 = vector.load %arg5[%c1, %c0_3, %c0_4] : memref<2x4x256xf32, #tpu.memory_space<vmem>>, vector<1x4x256xf32>
    %7 = vector.shape_cast %6 : vector<1x4x256xf32> to vector<4x256xf32>
    %cst_5 = arith.constant dense<0.000000e+00> : vector<256xf32>
    %8 = vector.multi_reduction <add>, %7, %cst_5 [0] : vector<4x256xf32> to vector<256xf32>
    %9 = vector.shape_cast %8 : vector<256xf32> to vector<1x256xf32>
    %cst_6 = arith.constant dense<0xFF800000> : vector<256xf32>
    %10 = vector.multi_reduction <maximumf>, %7, %cst_6 [0] : vector<4x256xf32> to vector<256xf32>
    %11 = vector.shape_cast %10 : vector<256xf32> to vector<1x256xf32>
    %c0_i32 = arith.constant 0 : i32
    %12 = arith.cmpi eq, %arg1, %c0_i32 : i32
    %13 = arith.extui %12 : i1 to i32
    %c0_i32_7 = arith.constant 0 : i32
    %14 = arith.cmpi ne, %13, %c0_i32_7 : i32
    scf.if %14 {
      %c0_12 = arith.constant 0 : index
      %c0_13 = arith.constant 0 : index
      %c0_14 = arith.constant 0 : index
      %21 = vector.load %arg7[%c0_12, %c0_13, %c0_14] : memref<2x1x256xf32, #tpu.memory_space<vmem>>, vector<1x1x256xf32>
      %22 = vector.shape_cast %21 : vector<1x1x256xf32> to vector<1x256xf32>
      %23 = vector.shape_cast %3 : vector<1x256xf32> to vector<1x1x256xf32>
      tpu.vector_store %arg7[%c0_12, %c0_13, %c0_14], %23 {strides = array<i32>} : memref<2x1x256xf32, #tpu.memory_space<vmem>>, vector<1x1x256xf32>,
      %c0_15 = arith.constant 0 : index
      %c0_16 = arith.constant 0 : index
      %c0_17 = arith.constant 0 : index
      %24 = vector.load %arg8[%c0_15, %c0_16, %c0_17] : memref<2x1x256xf32, #tpu.memory_space<vmem>>, vector<1x1x256xf32>
      %25 = vector.shape_cast %24 : vector<1x1x256xf32> to vector<1x256xf32>
      %26 = vector.shape_cast %5 : vector<1x256xf32> to vector<1x1x256xf32>
      tpu.vector_store %arg8[%c0_15, %c0_16, %c0_17], %26 {strides = array<i32>} : memref<2x1x256xf32, #tpu.memory_space<vmem>>, vector<1x1x256xf32>,
      %c1_18 = arith.constant 1 : index
      %c0_19 = arith.constant 0 : index
      %c0_20 = arith.constant 0 : index
      %27 = vector.load %arg7[%c1_18, %c0_19, %c0_20] : memref<2x1x256xf32, #tpu.memory_space<vmem>>, vector<1x1x256xf32>
      %28 = vector.shape_cast %27 : vector<1x1x256xf32> to vector<1x256xf32>
      %29 = vector.shape_cast %9 : vector<1x256xf32> to vector<1x1x256xf32>
      tpu.vector_store %arg7[%c1_18, %c0_19, %c0_20], %29 {strides = array<i32>} : memref<2x1x256xf32, #tpu.memory_space<vmem>>, vector<1x1x256xf32>,
      %c1_21 = arith.constant 1 : index
      %c0_22 = arith.constant 0 : index
      %c0_23 = arith.constant 0 : index
      %30 = vector.load %arg8[%c1_21, %c0_22, %c0_23] : memref<2x1x256xf32, #tpu.memory_space<vmem>>, vector<1x1x256xf32>
      %31 = vector.shape_cast %30 : vector<1x1x256xf32> to vector<1x256xf32>
      %32 = vector.shape_cast %11 : vector<1x256xf32> to vector<1x1x256xf32>
      tpu.vector_store %arg8[%c1_21, %c0_22, %c0_23], %32 {strides = array<i32>} : memref<2x1x256xf32, #tpu.memory_space<vmem>>, vector<1x1x256xf32>,
    } else {
    }
    %c0_i32_8 = arith.constant 0 : i32
    %15 = arith.cmpi sgt, %arg1, %c0_i32_8 : i32
    %16 = arith.extui %15 : i1 to i32
    %c0_i32_9 = arith.constant 0 : i32
    %17 = arith.cmpi ne, %16, %c0_i32_9 : i32
    scf.if %17 {
      %c0_12 = arith.constant 0 : index
      %c0_13 = arith.constant 0 : index
      %c0_14 = arith.constant 0 : index
      %21 = vector.load %arg7[%c0_12, %c0_13, %c0_14] : memref<2x1x256xf32, #tpu.memory_space<vmem>>, vector<1x1x256xf32>
      %22 = vector.shape_cast %21 : vector<1x1x256xf32> to vector<1x256xf32>
      %23 = arith.addf %22, %3 : vector<1x256xf32>
      %c0_15 = arith.constant 0 : index
      %c0_16 = arith.constant 0 : index
      %c0_17 = arith.constant 0 : index
      %24 = vector.load %arg7[%c0_15, %c0_16, %c0_17] : memref<2x1x256xf32, #tpu.memory_space<vmem>>, vector<1x1x256xf32>
      %25 = vector.shape_cast %24 : vector<1x1x256xf32> to vector<1x256xf32>
      %26 = vector.shape_cast %23 : vector<1x256xf32> to vector<1x1x256xf32>
      tpu.vector_store %arg7[%c0_15, %c0_16, %c0_17], %26 {strides = array<i32>} : memref<2x1x256xf32, #tpu.memory_space<vmem>>, vector<1x1x256xf32>,
      %c0_18 = arith.constant 0 : index
      %c0_19 = arith.constant 0 : index
      %c0_20 = arith.constant 0 : index
      %27 = vector.load %arg8[%c0_18, %c0_19, %c0_20] : memref<2x1x256xf32, #tpu.memory_space<vmem>>, vector<1x1x256xf32>
      %28 = vector.shape_cast %27 : vector<1x1x256xf32> to vector<1x256xf32>
      %29 = arith.maximumf %28, %5 : vector<1x256xf32>
      %c0_21 = arith.constant 0 : index
      %c0_22 = arith.constant 0 : index
      %c0_23 = arith.constant 0 : index
      %30 = vector.load %arg8[%c0_21, %c0_22, %c0_23] : memref<2x1x256xf32, #tpu.memory_space<vmem>>, vector<1x1x256xf32>
      %31 = vector.shape_cast %30 : vector<1x1x256xf32> to vector<1x256xf32>
      %32 = vector.shape_cast %29 : vector<1x256xf32> to vector<1x1x256xf32>
      tpu.vector_store %arg8[%c0_21, %c0_22, %c0_23], %32 {strides = array<i32>} : memref<2x1x256xf32, #tpu.memory_space<vmem>>, vector<1x1x256xf32>,
      %c1_24 = arith.constant 1 : index
      %c0_25 = arith.constant 0 : index
      %c0_26 = arith.constant 0 : index
      %33 = vector.load %arg7[%c1_24, %c0_25, %c0_26] : memref<2x1x256xf32, #tpu.memory_space<vmem>>, vector<1x1x256xf32>
      %34 = vector.shape_cast %33 : vector<1x1x256xf32> to vector<1x256xf32>
      %35 = arith.addf %34, %9 : vector<1x256xf32>
      %c1_27 = arith.constant 1 : index
      %c0_28 = arith.constant 0 : index
      %c0_29 = arith.constant 0 : index
      %36 = vector.load %arg7[%c1_27, %c0_28, %c0_29] : memref<2x1x256xf32, #tpu.memory_space<vmem>>, vector<1x1x256xf32>
      %37 = vector.shape_cast %36 : vector<1x1x256xf32> to vector<1x256xf32>
      %38 = vector.shape_cast %35 : vector<1x256xf32> to vector<1x1x256xf32>
      tpu.vector_store %arg7[%c1_27, %c0_28, %c0_29], %38 {strides = array<i32>} : memref<2x1x256xf32, #tpu.memory_space<vmem>>, vector<1x1x256xf32>,
      %c1_30 = arith.constant 1 : index
      %c0_31 = arith.constant 0 : index
      %c0_32 = arith.constant 0 : index
      %39 = vector.load %arg8[%c1_30, %c0_31, %c0_32] : memref<2x1x256xf32, #tpu.memory_space<vmem>>, vector<1x1x256xf32>
      %40 = vector.shape_cast %39 : vector<1x1x256xf32> to vector<1x256xf32>
      %41 = arith.maximumf %40, %11 : vector<1x256xf32>
      %c1_33 = arith.constant 1 : index
      %c0_34 = arith.constant 0 : index
      %c0_35 = arith.constant 0 : index
      %42 = vector.load %arg8[%c1_33, %c0_34, %c0_35] : memref<2x1x256xf32, #tpu.memory_space<vmem>>, vector<1x1x256xf32>
      %43 = vector.shape_cast %42 : vector<1x1x256xf32> to vector<1x256xf32>
      %44 = vector.shape_cast %41 : vector<1x256xf32> to vector<1x1x256xf32>
      tpu.vector_store %arg8[%c1_33, %c0_34, %c0_35], %44 {strides = array<i32>} : memref<2x1x256xf32, #tpu.memory_space<vmem>>, vector<1x1x256xf32>,
    } else {
    }
    %c0_i32_10 = arith.constant 0 : i32
    %18 = arith.cmpi eq, %arg1, %c0_i32_10 : i32
    %19 = arith.extui %18 : i1 to i32
    %c0_i32_11 = arith.constant 0 : i32
    %20 = arith.cmpi ne, %19, %c0_i32_11 : i32
    scf.if %20 {
      %c0_12 = arith.constant 0 : index
      %c0_13 = arith.constant 0 : index
      %21 = vector.load %arg3[%c0_12, %c0_13] : memref<1x256xf32, #tpu.memory_space<vmem>>, vector<1x256xf32>
      %c0_14 = arith.constant 0 : index
      %c0_15 = arith.constant 0 : index
      %22 = vector.load %arg4[%c0_14, %c0_15] : memref<1x256xf32, #tpu.memory_space<vmem>>, vector<1x256xf32>
      %cst_16 = arith.constant 3.000000e+00 : f32
      %23 = vector.broadcast %cst_16 : f32 to vector<1x256xf32>
      %24 = arith.cmpf oge, %21, %23 : vector<1x256xf32>
      %25 = arith.extui %24 : vector<1x256xi1> to vector<1x256xi32>
      %26 = arith.sitofp %25 : vector<1x256xi32> to vector<1x256xf32>
      %cst_17 = arith.constant 2.000000e+00 : f32
      %27 = vector.broadcast %cst_17 : f32 to vector<1x256xf32>
      %28 = arith.cmpf oge, %21, %27 : vector<1x256xf32>
      %29 = arith.extui %28 : vector<1x256xi1> to vector<1x256xi32>
      %30 = arith.sitofp %29 : vector<1x256xi32> to vector<1x256xf32>
      %cst_18 = arith.constant 1.000000e+00 : f32
      %31 = vector.broadcast %cst_18 : f32 to vector<1x256xf32>
      %32 = arith.cmpf oge, %21, %31 : vector<1x256xf32>
      %33 = arith.extui %32 : vector<1x256xi1> to vector<1x256xi32>
      %34 = arith.sitofp %33 : vector<1x256xi32> to vector<1x256xf32>
      %cst_19 = arith.constant 1.500000e+01 : f32
      %35 = vector.broadcast %cst_19 : f32 to vector<1x256xf32>
      %36 = arith.cmpf olt, %21, %35 : vector<1x256xf32>
      %37 = arith.extui %36 : vector<1x256xi1> to vector<1x256xi32>
      %38 = arith.sitofp %37 : vector<1x256xi32> to vector<1x256xf32>
      %cst_20 = arith.constant 1.400000e+01 : f32
      %39 = vector.broadcast %cst_20 : f32 to vector<1x256xf32>
      %40 = arith.cmpf olt, %21, %39 : vector<1x256xf32>
      %41 = arith.extui %40 : vector<1x256xi1> to vector<1x256xi32>
      %42 = arith.sitofp %41 : vector<1x256xi32> to vector<1x256xf32>
      %cst_21 = arith.constant 1.300000e+01 : f32
      %43 = vector.broadcast %cst_21 : f32 to vector<1x256xf32>
      %44 = arith.cmpf olt, %21, %43 : vector<1x256xf32>
      %45 = arith.extui %44 : vector<1x256xi1> to vector<1x256xi32>
      %46 = arith.sitofp %45 : vector<1x256xi32> to vector<1x256xf32>
      %cst_22 = arith.constant 3.000000e+00 : f32
      %47 = vector.broadcast %cst_22 : f32 to vector<1x256xf32>
      %48 = arith.cmpf oge, %22, %47 : vector<1x256xf32>
      %49 = arith.extui %48 : vector<1x256xi1> to vector<1x256xi32>
      %50 = arith.sitofp %49 : vector<1x256xi32> to vector<1x256xf32>
      %cst_23 = arith.constant 2.000000e+00 : f32
      %51 = vector.broadcast %cst_23 : f32 to vector<1x256xf32>
      %52 = arith.cmpf oge, %22, %51 : vector<1x256xf32>
      %53 = arith.extui %52 : vector<1x256xi1> to vector<1x256xi32>
      %54 = arith.sitofp %53 : vector<1x256xi32> to vector<1x256xf32>
      %cst_24 = arith.constant 1.000000e+00 : f32
      %55 = vector.broadcast %cst_24 : f32 to vector<1x256xf32>
      %56 = arith.cmpf oge, %22, %55 : vector<1x256xf32>
      %57 = arith.extui %56 : vector<1x256xi1> to vector<1x256xi32>
      %58 = arith.sitofp %57 : vector<1x256xi32> to vector<1x256xf32>
      %cst_25 = arith.constant 1.500000e+01 : f32
      %59 = vector.broadcast %cst_25 : f32 to vector<1x256xf32>
      %60 = arith.cmpf olt, %22, %59 : vector<1x256xf32>
      %61 = arith.extui %60 : vector<1x256xi1> to vector<1x256xi32>
      %62 = arith.sitofp %61 : vector<1x256xi32> to vector<1x256xf32>
      %cst_26 = arith.constant 1.400000e+01 : f32
      %63 = vector.broadcast %cst_26 : f32 to vector<1x256xf32>
      %64 = arith.cmpf olt, %22, %63 : vector<1x256xf32>
      %65 = arith.extui %64 : vector<1x256xi1> to vector<1x256xi32>
      %66 = arith.sitofp %65 : vector<1x256xi32> to vector<1x256xf32>
      %cst_27 = arith.constant 1.300000e+01 : f32
      %67 = vector.broadcast %cst_27 : f32 to vector<1x256xf32>
      %68 = arith.cmpf olt, %22, %67 : vector<1x256xf32>
      %69 = arith.extui %68 : vector<1x256xi1> to vector<1x256xi32>
      %70 = arith.sitofp %69 : vector<1x256xi32> to vector<1x256xf32>
      %c0_28 = arith.constant 0 : index
      %71 = memref.load %arg2[%c0_28] : memref<98xf32, #tpu.memory_space<smem>>
      %c1_29 = arith.constant 1 : index
      %72 = memref.load %arg2[%c1_29] : memref<98xf32, #tpu.memory_space<smem>>
      %c2 = arith.constant 2 : index
      %73 = memref.load %arg2[%c2] : memref<98xf32, #tpu.memory_space<smem>>
      %c3 = arith.constant 3 : index
      %74 = memref.load %arg2[%c3] : memref<98xf32, #tpu.memory_space<smem>>
      %c4 = arith.constant 4 : index
      %75 = memref.load %arg2[%c4] : memref<98xf32, #tpu.memory_space<smem>>
      %c5 = arith.constant 5 : index
      %76 = memref.load %arg2[%c5] : memref<98xf32, #tpu.memory_space<smem>>
      %c6 = arith.constant 6 : index
      %77 = memref.load %arg2[%c6] : memref<98xf32, #tpu.memory_space<smem>>
      %c7 = arith.constant 7 : index
      %78 = memref.load %arg2[%c7] : memref<98xf32, #tpu.memory_space<smem>>
      %c8 = arith.constant 8 : index
      %79 = memref.load %arg2[%c8] : memref<98xf32, #tpu.memory_space<smem>>
      %c9 = arith.constant 9 : index
      %80 = memref.load %arg2[%c9] : memref<98xf32, #tpu.memory_space<smem>>
      %c10 = arith.constant 10 : index
      %81 = memref.load %arg2[%c10] : memref<98xf32, #tpu.memory_space<smem>>
      %c11 = arith.constant 11 : index
      %82 = memref.load %arg2[%c11] : memref<98xf32, #tpu.memory_space<smem>>
      %c12 = arith.constant 12 : index
      %83 = memref.load %arg2[%c12] : memref<98xf32, #tpu.memory_space<smem>>
      %c13 = arith.constant 13 : index
      %84 = memref.load %arg2[%c13] : memref<98xf32, #tpu.memory_space<smem>>
      %c14 = arith.constant 14 : index
      %85 = memref.load %arg2[%c14] : memref<98xf32, #tpu.memory_space<smem>>
      %c15 = arith.constant 15 : index
      %86 = memref.load %arg2[%c15] : memref<98xf32, #tpu.memory_space<smem>>
      %c16 = arith.constant 16 : index
      %87 = memref.load %arg2[%c16] : memref<98xf32, #tpu.memory_space<smem>>
      %c17 = arith.constant 17 : index
      %88 = memref.load %arg2[%c17] : memref<98xf32, #tpu.memory_space<smem>>
      %c18 = arith.constant 18 : index
      %89 = memref.load %arg2[%c18] : memref<98xf32, #tpu.memory_space<smem>>
      %c19 = arith.constant 19 : index
      %90 = memref.load %arg2[%c19] : memref<98xf32, #tpu.memory_space<smem>>
      %c20 = arith.constant 20 : index
      %91 = memref.load %arg2[%c20] : memref<98xf32, #tpu.memory_space<smem>>
      %c21 = arith.constant 21 : index
      %92 = memref.load %arg2[%c21] : memref<98xf32, #tpu.memory_space<smem>>
      %c22 = arith.constant 22 : index
      %93 = memref.load %arg2[%c22] : memref<98xf32, #tpu.memory_space<smem>>
      %c23 = arith.constant 23 : index
      %94 = memref.load %arg2[%c23] : memref<98xf32, #tpu.memory_space<smem>>
      %c24 = arith.constant 24 : index
      %95 = memref.load %arg2[%c24] : memref<98xf32, #tpu.memory_space<smem>>
      %c25 = arith.constant 25 : index
      %96 = memref.load %arg2[%c25] : memref<98xf32, #tpu.memory_space<smem>>
      %c26 = arith.constant 26 : index
      %97 = memref.load %arg2[%c26] : memref<98xf32, #tpu.memory_space<smem>>
      %c27 = arith.constant 27 : index
      %98 = memref.load %arg2[%c27] : memref<98xf32, #tpu.memory_space<smem>>
      %c28 = arith.constant 28 : index
      %99 = memref.load %arg2[%c28] : memref<98xf32, #tpu.memory_space<smem>>
      %c29 = arith.constant 29 : index
      %100 = memref.load %arg2[%c29] : memref<98xf32, #tpu.memory_space<smem>>
      %c30 = arith.constant 30 : index
      %101 = memref.load %arg2[%c30] : memref<98xf32, #tpu.memory_space<smem>>
      %c31 = arith.constant 31 : index
      %102 = memref.load %arg2[%c31] : memref<98xf32, #tpu.memory_space<smem>>
      %c32 = arith.constant 32 : index
      %103 = memref.load %arg2[%c32] : memref<98xf32, #tpu.memory_space<smem>>
      %c33 = arith.constant 33 : index
      %104 = memref.load %arg2[%c33] : memref<98xf32, #tpu.memory_space<smem>>
      %c34 = arith.constant 34 : index
      %105 = memref.load %arg2[%c34] : memref<98xf32, #tpu.memory_space<smem>>
      %c35 = arith.constant 35 : index
      %106 = memref.load %arg2[%c35] : memref<98xf32, #tpu.memory_space<smem>>
      %c36 = arith.constant 36 : index
      %107 = memref.load %arg2[%c36] : memref<98xf32, #tpu.memory_space<smem>>
      %c37 = arith.constant 37 : index
      %108 = memref.load %arg2[%c37] : memref<98xf32, #tpu.memory_space<smem>>
      %c38 = arith.constant 38 : index
      %109 = memref.load %arg2[%c38] : memref<98xf32, #tpu.memory_space<smem>>
      %c39 = arith.constant 39 : index
      %110 = memref.load %arg2[%c39] : memref<98xf32, #tpu.memory_space<smem>>
      %c40 = arith.constant 40 : index
      %111 = memref.load %arg2[%c40] : memref<98xf32, #tpu.memory_space<smem>>
      %c41 = arith.constant 41 : index
      %112 = memref.load %arg2[%c41] : memref<98xf32, #tpu.memory_space<smem>>
      %c42 = arith.constant 42 : index
      %113 = memref.load %arg2[%c42] : memref<98xf32, #tpu.memory_space<smem>>
      %c43 = arith.constant 43 : index
      %114 = memref.load %arg2[%c43] : memref<98xf32, #tpu.memory_space<smem>>
      %c44 = arith.constant 44 : index
      %115 = memref.load %arg2[%c44] : memref<98xf32, #tpu.memory_space<smem>>
      %c45 = arith.constant 45 : index
      %116 = memref.load %arg2[%c45] : memref<98xf32, #tpu.memory_space<smem>>
      %c46 = arith.constant 46 : index
      %117 = memref.load %arg2[%c46] : memref<98xf32, #tpu.memory_space<smem>>
      %c47 = arith.constant 47 : index
      %118 = memref.load %arg2[%c47] : memref<98xf32, #tpu.memory_space<smem>>
      %c48 = arith.constant 48 : index
      %119 = memref.load %arg2[%c48] : memref<98xf32, #tpu.memory_space<smem>>
      %c49 = arith.constant 49 : index
      %120 = memref.load %arg2[%c49] : memref<98xf32, #tpu.memory_space<smem>>
      %c50 = arith.constant 50 : index
      %121 = memref.load %arg2[%c50] : memref<98xf32, #tpu.memory_space<smem>>
      %c51 = arith.constant 51 : index
      %122 = memref.load %arg2[%c51] : memref<98xf32, #tpu.memory_space<smem>>
      %c52 = arith.constant 52 : index
      %123 = memref.load %arg2[%c52] : memref<98xf32, #tpu.memory_space<smem>>
      %c53 = arith.constant 53 : index
      %124 = memref.load %arg2[%c53] : memref<98xf32, #tpu.memory_space<smem>>
      %c54 = arith.constant 54 : index
      %125 = memref.load %arg2[%c54] : memref<98xf32, #tpu.memory_space<smem>>
      %c55 = arith.constant 55 : index
      %126 = memref.load %arg2[%c55] : memref<98xf32, #tpu.memory_space<smem>>
      %c56 = arith.constant 56 : index
      %127 = memref.load %arg2[%c56] : memref<98xf32, #tpu.memory_space<smem>>
      %c57 = arith.constant 57 : index
      %128 = memref.load %arg2[%c57] : memref<98xf32, #tpu.memory_space<smem>>
      %c58 = arith.constant 58 : index
      %129 = memref.load %arg2[%c58] : memref<98xf32, #tpu.memory_space<smem>>
      %c59 = arith.constant 59 : index
      %130 = memref.load %arg2[%c59] : memref<98xf32, #tpu.memory_space<smem>>
      %c60 = arith.constant 60 : index
      %131 = memref.load %arg2[%c60] : memref<98xf32, #tpu.memory_space<smem>>
      %c61 = arith.constant 61 : index
      %132 = memref.load %arg2[%c61] : memref<98xf32, #tpu.memory_space<smem>>
      %c62 = arith.constant 62 : index
      %133 = memref.load %arg2[%c62] : memref<98xf32, #tpu.memory_space<smem>>
      %c63 = arith.constant 63 : index
      %134 = memref.load %arg2[%c63] : memref<98xf32, #tpu.memory_space<smem>>
      %c64 = arith.constant 64 : index
      %135 = memref.load %arg2[%c64] : memref<98xf32, #tpu.memory_space<smem>>
      %c65 = arith.constant 65 : index
      %136 = memref.load %arg2[%c65] : memref<98xf32, #tpu.memory_space<smem>>
      %c66 = arith.constant 66 : index
      %137 = memref.load %arg2[%c66] : memref<98xf32, #tpu.memory_space<smem>>
      %c67 = arith.constant 67 : index
      %138 = memref.load %arg2[%c67] : memref<98xf32, #tpu.memory_space<smem>>
      %c68 = arith.constant 68 : index
      %139 = memref.load %arg2[%c68] : memref<98xf32, #tpu.memory_space<smem>>
      %c69 = arith.constant 69 : index
      %140 = memref.load %arg2[%c69] : memref<98xf32, #tpu.memory_space<smem>>
      %c70 = arith.constant 70 : index
      %141 = memref.load %arg2[%c70] : memref<98xf32, #tpu.memory_space<smem>>
      %c71 = arith.constant 71 : index
      %142 = memref.load %arg2[%c71] : memref<98xf32, #tpu.memory_space<smem>>
      %c72 = arith.constant 72 : index
      %143 = memref.load %arg2[%c72] : memref<98xf32, #tpu.memory_space<smem>>
      %c73 = arith.constant 73 : index
      %144 = memref.load %arg2[%c73] : memref<98xf32, #tpu.memory_space<smem>>
      %c74 = arith.constant 74 : index
      %145 = memref.load %arg2[%c74] : memref<98xf32, #tpu.memory_space<smem>>
      %c75 = arith.constant 75 : index
      %146 = memref.load %arg2[%c75] : memref<98xf32, #tpu.memory_space<smem>>
      %c76 = arith.constant 76 : index
      %147 = memref.load %arg2[%c76] : memref<98xf32, #tpu.memory_space<smem>>
      %c77 = arith.constant 77 : index
      %148 = memref.load %arg2[%c77] : memref<98xf32, #tpu.memory_space<smem>>
      %c78 = arith.constant 78 : index
      %149 = memref.load %arg2[%c78] : memref<98xf32, #tpu.memory_space<smem>>
      %c79 = arith.constant 79 : index
      %150 = memref.load %arg2[%c79] : memref<98xf32, #tpu.memory_space<smem>>
      %c80 = arith.constant 80 : index
      %151 = memref.load %arg2[%c80] : memref<98xf32, #tpu.memory_space<smem>>
      %c81 = arith.constant 81 : index
      %152 = memref.load %arg2[%c81] : memref<98xf32, #tpu.memory_space<smem>>
      %c82 = arith.constant 82 : index
      %153 = memref.load %arg2[%c82] : memref<98xf32, #tpu.memory_space<smem>>
      %c83 = arith.constant 83 : index
      %154 = memref.load %arg2[%c83] : memref<98xf32, #tpu.memory_space<smem>>
      %c84 = arith.constant 84 : index
      %155 = memref.load %arg2[%c84] : memref<98xf32, #tpu.memory_space<smem>>
      %c85 = arith.constant 85 : index
      %156 = memref.load %arg2[%c85] : memref<98xf32, #tpu.memory_space<smem>>
      %c86 = arith.constant 86 : index
      %157 = memref.load %arg2[%c86] : memref<98xf32, #tpu.memory_space<smem>>
      %c87 = arith.constant 87 : index
      %158 = memref.load %arg2[%c87] : memref<98xf32, #tpu.memory_space<smem>>
      %c88 = arith.constant 88 : index
      %159 = memref.load %arg2[%c88] : memref<98xf32, #tpu.memory_space<smem>>
      %c89 = arith.constant 89 : index
      %160 = memref.load %arg2[%c89] : memref<98xf32, #tpu.memory_space<smem>>
      %c90 = arith.constant 90 : index
      %161 = memref.load %arg2[%c90] : memref<98xf32, #tpu.memory_space<smem>>
      %c91 = arith.constant 91 : index
      %162 = memref.load %arg2[%c91] : memref<98xf32, #tpu.memory_space<smem>>
      %c92 = arith.constant 92 : index
      %163 = memref.load %arg2[%c92] : memref<98xf32, #tpu.memory_space<smem>>
      %c93 = arith.constant 93 : index
      %164 = memref.load %arg2[%c93] : memref<98xf32, #tpu.memory_space<smem>>
      %c94 = arith.constant 94 : index
      %165 = memref.load %arg2[%c94] : memref<98xf32, #tpu.memory_space<smem>>
      %c95 = arith.constant 95 : index
      %166 = memref.load %arg2[%c95] : memref<98xf32, #tpu.memory_space<smem>>
      %c96 = arith.constant 96 : index
      %167 = memref.load %arg2[%c96] : memref<98xf32, #tpu.memory_space<smem>>
      %c97 = arith.constant 97 : index
      %168 = memref.load %arg2[%c97] : memref<98xf32, #tpu.memory_space<smem>>
      %c0_30 = arith.constant 0 : index
      %c0_31 = arith.constant 0 : index
      %c0_32 = arith.constant 0 : index
      %169 = vector.load %arg7[%c0_30, %c0_31, %c0_32] : memref<2x1x256xf32, #tpu.memory_space<vmem>>, vector<1x1x256xf32>
      %170 = vector.shape_cast %169 : vector<1x1x256xf32> to vector<1x256xf32>
      %c0_33 = arith.constant 0 : index
      %c0_34 = arith.constant 0 : index
      %c0_35 = arith.constant 0 : index
      %171 = vector.load %arg8[%c0_33, %c0_34, %c0_35] : memref<2x1x256xf32, #tpu.memory_space<vmem>>, vector<1x1x256xf32>
      %172 = vector.shape_cast %171 : vector<1x1x256xf32> to vector<1x256xf32>
      %cst_36 = arith.constant 0.000000e+00 : f32
      %173 = vector.broadcast %cst_36 : f32 to vector<1x256xf32>
      %cst_37 = arith.constant 0.000000e+00 : f32
      %174 = vector.broadcast %cst_37 : f32 to vector<1x256xf32>
      %c51_i32 = arith.constant 51 : i32
      %175 = tpu.dynamic_rotate %170 by %c51_i32 dim 1 : vector<1x256xf32>, i32 -> vector<1x256xf32>
      %176 = vector.broadcast %71 : f32 to vector<1x256xf32>
      %177 = arith.mulf %176, %26 : vector<1x256xf32>
      %178 = arith.mulf %177, %175 : vector<1x256xf32>
      %179 = arith.addf %174, %178 : vector<1x256xf32>
      %c35_i32 = arith.constant 35 : i32
      %180 = tpu.dynamic_rotate %170 by %c35_i32 dim 1 : vector<1x256xf32>, i32 -> vector<1x256xf32>
      %181 = vector.broadcast %78 : f32 to vector<1x256xf32>
      %182 = arith.mulf %181, %30 : vector<1x256xf32>
      %183 = arith.mulf %182, %180 : vector<1x256xf32>
      %184 = arith.addf %179, %183 : vector<1x256xf32>
      %c19_i32 = arith.constant 19 : i32
      %185 = tpu.dynamic_rotate %170 by %c19_i32 dim 1 : vector<1x256xf32>, i32 -> vector<1x256xf32>
      %186 = vector.broadcast %85 : f32 to vector<1x256xf32>
      %187 = arith.mulf %186, %34 : vector<1x256xf32>
      %188 = arith.mulf %187, %185 : vector<1x256xf32>
      %189 = arith.addf %184, %188 : vector<1x256xf32>
      %c3_i32 = arith.constant 3 : i32
      %190 = tpu.dynamic_rotate %170 by %c3_i32 dim 1 : vector<1x256xf32>, i32 -> vector<1x256xf32>
      %191 = vector.broadcast %92 : f32 to vector<1x256xf32>
      %192 = arith.mulf %191, %190 : vector<1x256xf32>
      %193 = arith.addf %189, %192 : vector<1x256xf32>
      %c243_i32 = arith.constant 243 : i32
      %194 = tpu.dynamic_rotate %170 by %c243_i32 dim 1 : vector<1x256xf32>, i32 -> vector<1x256xf32>
      %195 = vector.broadcast %99 : f32 to vector<1x256xf32>
      %196 = arith.mulf %195, %38 : vector<1x256xf32>
      %197 = arith.mulf %196, %194 : vector<1x256xf32>
      %198 = arith.addf %193, %197 : vector<1x256xf32>
      %c227_i32 = arith.constant 227 : i32
      %199 = tpu.dynamic_rotate %170 by %c227_i32 dim 1 : vector<1x256xf32>, i32 -> vector<1x256xf32>
      %200 = vector.broadcast %106 : f32 to vector<1x256xf32>
      %201 = arith.mulf %200, %42 : vector<1x256xf32>
      %202 = arith.mulf %201, %199 : vector<1x256xf32>
      %203 = arith.addf %198, %202 : vector<1x256xf32>
      %c211_i32 = arith.constant 211 : i32
      %204 = tpu.dynamic_rotate %170 by %c211_i32 dim 1 : vector<1x256xf32>, i32 -> vector<1x256xf32>
      %205 = vector.broadcast %113 : f32 to vector<1x256xf32>
      %206 = arith.mulf %205, %46 : vector<1x256xf32>
      %207 = arith.mulf %206, %204 : vector<1x256xf32>
      %208 = arith.addf %203, %207 : vector<1x256xf32>
      %c51_i32_38 = arith.constant 51 : i32
      %209 = tpu.dynamic_rotate %172 by %c51_i32_38 dim 1 : vector<1x256xf32>, i32 -> vector<1x256xf32>
      %210 = vector.broadcast %120 : f32 to vector<1x256xf32>
      %211 = arith.mulf %210, %26 : vector<1x256xf32>
      %212 = arith.mulf %211, %209 : vector<1x256xf32>
      %213 = arith.addf %208, %212 : vector<1x256xf32>
      %c35_i32_39 = arith.constant 35 : i32
      %214 = tpu.dynamic_rotate %172 by %c35_i32_39 dim 1 : vector<1x256xf32>, i32 -> vector<1x256xf32>
      %215 = vector.broadcast %127 : f32 to vector<1x256xf32>
      %216 = arith.mulf %215, %30 : vector<1x256xf32>
      %217 = arith.mulf %216, %214 : vector<1x256xf32>
      %218 = arith.addf %213, %217 : vector<1x256xf32>
      %c19_i32_40 = arith.constant 19 : i32
      %219 = tpu.dynamic_rotate %172 by %c19_i32_40 dim 1 : vector<1x256xf32>, i32 -> vector<1x256xf32>
      %220 = vector.broadcast %134 : f32 to vector<1x256xf32>
      %221 = arith.mulf %220, %34 : vector<1x256xf32>
      %222 = arith.mulf %221, %219 : vector<1x256xf32>
      %223 = arith.addf %218, %222 : vector<1x256xf32>
      %c3_i32_41 = arith.constant 3 : i32
      %224 = tpu.dynamic_rotate %172 by %c3_i32_41 dim 1 : vector<1x256xf32>, i32 -> vector<1x256xf32>
      %225 = vector.broadcast %141 : f32 to vector<1x256xf32>
      %226 = arith.mulf %225, %224 : vector<1x256xf32>
      %227 = arith.addf %223, %226 : vector<1x256xf32>
      %c243_i32_42 = arith.constant 243 : i32
      %228 = tpu.dynamic_rotate %172 by %c243_i32_42 dim 1 : vector<1x256xf32>, i32 -> vector<1x256xf32>
      %229 = vector.broadcast %148 : f32 to vector<1x256xf32>
      %230 = arith.mulf %229, %38 : vector<1x256xf32>
      %231 = arith.mulf %230, %228 : vector<1x256xf32>
      %232 = arith.addf %227, %231 : vector<1x256xf32>
      %c227_i32_43 = arith.constant 227 : i32
      %233 = tpu.dynamic_rotate %172 by %c227_i32_43 dim 1 : vector<1x256xf32>, i32 -> vector<1x256xf32>
      %234 = vector.broadcast %155 : f32 to vector<1x256xf32>
      %235 = arith.mulf %234, %42 : vector<1x256xf32>
      %236 = arith.mulf %235, %233 : vector<1x256xf32>
      %237 = arith.addf %232, %236 : vector<1x256xf32>
      %c211_i32_44 = arith.constant 211 : i32
      %238 = tpu.dynamic_rotate %172 by %c211_i32_44 dim 1 : vector<1x256xf32>, i32 -> vector<1x256xf32>
      %239 = vector.broadcast %162 : f32 to vector<1x256xf32>
      %240 = arith.mulf %239, %46 : vector<1x256xf32>
      %241 = arith.mulf %240, %238 : vector<1x256xf32>
      %242 = arith.addf %237, %241 : vector<1x256xf32>
      %243 = arith.mulf %50, %242 : vector<1x256xf32>
      %244 = arith.addf %173, %243 : vector<1x256xf32>
      %cst_45 = arith.constant 0.000000e+00 : f32
      %245 = vector.broadcast %cst_45 : f32 to vector<1x256xf32>
      %c50_i32 = arith.constant 50 : i32
      %246 = tpu.dynamic_rotate %170 by %c50_i32 dim 1 : vector<1x256xf32>, i32 -> vector<1x256xf32>
      %247 = vector.broadcast %72 : f32 to vector<1x256xf32>
      %248 = arith.mulf %247, %26 : vector<1x256xf32>
      %249 = arith.mulf %248, %246 : vector<1x256xf32>
      %250 = arith.addf %245, %249 : vector<1x256xf32>
      %c34_i32 = arith.constant 34 : i32
      %251 = tpu.dynamic_rotate %170 by %c34_i32 dim 1 : vector<1x256xf32>, i32 -> vector<1x256xf32>
      %252 = vector.broadcast %79 : f32 to vector<1x256xf32>
      %253 = arith.mulf %252, %30 : vector<1x256xf32>
      %254 = arith.mulf %253, %251 : vector<1x256xf32>
      %255 = arith.addf %250, %254 : vector<1x256xf32>
      %c18_i32 = arith.constant 18 : i32
      %256 = tpu.dynamic_rotate %170 by %c18_i32 dim 1 : vector<1x256xf32>, i32 -> vector<1x256xf32>
      %257 = vector.broadcast %86 : f32 to vector<1x256xf32>
      %258 = arith.mulf %257, %34 : vector<1x256xf32>
      %259 = arith.mulf %258, %256 : vector<1x256xf32>
      %260 = arith.addf %255, %259 : vector<1x256xf32>
      %c2_i32 = arith.constant 2 : i32
      %261 = tpu.dynamic_rotate %170 by %c2_i32 dim 1 : vector<1x256xf32>, i32 -> vector<1x256xf32>
      %262 = vector.broadcast %93 : f32 to vector<1x256xf32>
      %263 = arith.mulf %262, %261 : vector<1x256xf32>
      %264 = arith.addf %260, %263 : vector<1x256xf32>
      %c242_i32 = arith.constant 242 : i32
      %265 = tpu.dynamic_rotate %170 by %c242_i32 dim 1 : vector<1x256xf32>, i32 -> vector<1x256xf32>
      %266 = vector.broadcast %100 : f32 to vector<1x256xf32>
      %267 = arith.mulf %266, %38 : vector<1x256xf32>
      %268 = arith.mulf %267, %265 : vector<1x256xf32>
      %269 = arith.addf %264, %268 : vector<1x256xf32>
      %c226_i32 = arith.constant 226 : i32
      %270 = tpu.dynamic_rotate %170 by %c226_i32 dim 1 : vector<1x256xf32>, i32 -> vector<1x256xf32>
      %271 = vector.broadcast %107 : f32 to vector<1x256xf32>
      %272 = arith.mulf %271, %42 : vector<1x256xf32>
      %273 = arith.mulf %272, %270 : vector<1x256xf32>
      %274 = arith.addf %269, %273 : vector<1x256xf32>
      %c210_i32 = arith.constant 210 : i32
      %275 = tpu.dynamic_rotate %170 by %c210_i32 dim 1 : vector<1x256xf32>, i32 -> vector<1x256xf32>
      %276 = vector.broadcast %114 : f32 to vector<1x256xf32>
      %277 = arith.mulf %276, %46 : vector<1x256xf32>
      %278 = arith.mulf %277, %275 : vector<1x256xf32>
      %279 = arith.addf %274, %278 : vector<1x256xf32>
      %c50_i32_46 = arith.constant 50 : i32
      %280 = tpu.dynamic_rotate %172 by %c50_i32_46 dim 1 : vector<1x256xf32>, i32 -> vector<1x256xf32>
      %281 = vector.broadcast %121 : f32 to vector<1x256xf32>
      %282 = arith.mulf %281, %26 : vector<1x256xf32>
      %283 = arith.mulf %282, %280 : vector<1x256xf32>
      %284 = arith.addf %279, %283 : vector<1x256xf32>
      %c34_i32_47 = arith.constant 34 : i32
      %285 = tpu.dynamic_rotate %172 by %c34_i32_47 dim 1 : vector<1x256xf32>, i32 -> vector<1x256xf32>
      %286 = vector.broadcast %128 : f32 to vector<1x256xf32>
      %287 = arith.mulf %286, %30 : vector<1x256xf32>
      %288 = arith.mulf %287, %285 : vector<1x256xf32>
      %289 = arith.addf %284, %288 : vector<1x256xf32>
      %c18_i32_48 = arith.constant 18 : i32
      %290 = tpu.dynamic_rotate %172 by %c18_i32_48 dim 1 : vector<1x256xf32>, i32 -> vector<1x256xf32>
      %291 = vector.broadcast %135 : f32 to vector<1x256xf32>
      %292 = arith.mulf %291, %34 : vector<1x256xf32>
      %293 = arith.mulf %292, %290 : vector<1x256xf32>
      %294 = arith.addf %289, %293 : vector<1x256xf32>
      %c2_i32_49 = arith.constant 2 : i32
      %295 = tpu.dynamic_rotate %172 by %c2_i32_49 dim 1 : vector<1x256xf32>, i32 -> vector<1x256xf32>
      %296 = vector.broadcast %142 : f32 to vector<1x256xf32>
      %297 = arith.mulf %296, %295 : vector<1x256xf32>
      %298 = arith.addf %294, %297 : vector<1x256xf32>
      %c242_i32_50 = arith.constant 242 : i32
      %299 = tpu.dynamic_rotate %172 by %c242_i32_50 dim 1 : vector<1x256xf32>, i32 -> vector<1x256xf32>
      %300 = vector.broadcast %149 : f32 to vector<1x256xf32>
      %301 = arith.mulf %300, %38 : vector<1x256xf32>
      %302 = arith.mulf %301, %299 : vector<1x256xf32>
      %303 = arith.addf %298, %302 : vector<1x256xf32>
      %c226_i32_51 = arith.constant 226 : i32
      %304 = tpu.dynamic_rotate %172 by %c226_i32_51 dim 1 : vector<1x256xf32>, i32 -> vector<1x256xf32>
      %305 = vector.broadcast %156 : f32 to vector<1x256xf32>
      %306 = arith.mulf %305, %42 : vector<1x256xf32>
      %307 = arith.mulf %306, %304 : vector<1x256xf32>
      %308 = arith.addf %303, %307 : vector<1x256xf32>
      %c210_i32_52 = arith.constant 210 : i32
      %309 = tpu.dynamic_rotate %172 by %c210_i32_52 dim 1 : vector<1x256xf32>, i32 -> vector<1x256xf32>
      %310 = vector.broadcast %163 : f32 to vector<1x256xf32>
      %311 = arith.mulf %310, %46 : vector<1x256xf32>
      %312 = arith.mulf %311, %309 : vector<1x256xf32>
      %313 = arith.addf %308, %312 : vector<1x256xf32>
      %314 = arith.mulf %54, %313 : vector<1x256xf32>
      %315 = arith.addf %244, %314 : vector<1x256xf32>
      %cst_53 = arith.constant 0.000000e+00 : f32
      %316 = vector.broadcast %cst_53 : f32 to vector<1x256xf32>
      %c49_i32 = arith.constant 49 : i32
      %317 = tpu.dynamic_rotate %170 by %c49_i32 dim 1 : vector<1x256xf32>, i32 -> vector<1x256xf32>
      %318 = vector.broadcast %73 : f32 to vector<1x256xf32>
      %319 = arith.mulf %318, %26 : vector<1x256xf32>
      %320 = arith.mulf %319, %317 : vector<1x256xf32>
      %321 = arith.addf %316, %320 : vector<1x256xf32>
      %c33_i32 = arith.constant 33 : i32
      %322 = tpu.dynamic_rotate %170 by %c33_i32 dim 1 : vector<1x256xf32>, i32 -> vector<1x256xf32>
      %323 = vector.broadcast %80 : f32 to vector<1x256xf32>
      %324 = arith.mulf %323, %30 : vector<1x256xf32>
      %325 = arith.mulf %324, %322 : vector<1x256xf32>
      %326 = arith.addf %321, %325 : vector<1x256xf32>
      %c17_i32 = arith.constant 17 : i32
      %327 = tpu.dynamic_rotate %170 by %c17_i32 dim 1 : vector<1x256xf32>, i32 -> vector<1x256xf32>
      %328 = vector.broadcast %87 : f32 to vector<1x256xf32>
      %329 = arith.mulf %328, %34 : vector<1x256xf32>
      %330 = arith.mulf %329, %327 : vector<1x256xf32>
      %331 = arith.addf %326, %330 : vector<1x256xf32>
      %c1_i32 = arith.constant 1 : i32
      %332 = tpu.dynamic_rotate %170 by %c1_i32 dim 1 : vector<1x256xf32>, i32 -> vector<1x256xf32>
      %333 = vector.broadcast %94 : f32 to vector<1x256xf32>
      %334 = arith.mulf %333, %332 : vector<1x256xf32>
      %335 = arith.addf %331, %334 : vector<1x256xf32>
      %c241_i32 = arith.constant 241 : i32
      %336 = tpu.dynamic_rotate %170 by %c241_i32 dim 1 : vector<1x256xf32>, i32 -> vector<1x256xf32>
      %337 = vector.broadcast %101 : f32 to vector<1x256xf32>
      %338 = arith.mulf %337, %38 : vector<1x256xf32>
      %339 = arith.mulf %338, %336 : vector<1x256xf32>
      %340 = arith.addf %335, %339 : vector<1x256xf32>
      %c225_i32 = arith.constant 225 : i32
      %341 = tpu.dynamic_rotate %170 by %c225_i32 dim 1 : vector<1x256xf32>, i32 -> vector<1x256xf32>
      %342 = vector.broadcast %108 : f32 to vector<1x256xf32>
      %343 = arith.mulf %342, %42 : vector<1x256xf32>
      %344 = arith.mulf %343, %341 : vector<1x256xf32>
      %345 = arith.addf %340, %344 : vector<1x256xf32>
      %c209_i32 = arith.constant 209 : i32
      %346 = tpu.dynamic_rotate %170 by %c209_i32 dim 1 : vector<1x256xf32>, i32 -> vector<1x256xf32>
      %347 = vector.broadcast %115 : f32 to vector<1x256xf32>
      %348 = arith.mulf %347, %46 : vector<1x256xf32>
      %349 = arith.mulf %348, %346 : vector<1x256xf32>
      %350 = arith.addf %345, %349 : vector<1x256xf32>
      %c49_i32_54 = arith.constant 49 : i32
      %351 = tpu.dynamic_rotate %172 by %c49_i32_54 dim 1 : vector<1x256xf32>, i32 -> vector<1x256xf32>
      %352 = vector.broadcast %122 : f32 to vector<1x256xf32>
      %353 = arith.mulf %352, %26 : vector<1x256xf32>
      %354 = arith.mulf %353, %351 : vector<1x256xf32>
      %355 = arith.addf %350, %354 : vector<1x256xf32>
      %c33_i32_55 = arith.constant 33 : i32
      %356 = tpu.dynamic_rotate %172 by %c33_i32_55 dim 1 : vector<1x256xf32>, i32 -> vector<1x256xf32>
      %357 = vector.broadcast %129 : f32 to vector<1x256xf32>
      %358 = arith.mulf %357, %30 : vector<1x256xf32>
      %359 = arith.mulf %358, %356 : vector<1x256xf32>
      %360 = arith.addf %355, %359 : vector<1x256xf32>
      %c17_i32_56 = arith.constant 17 : i32
      %361 = tpu.dynamic_rotate %172 by %c17_i32_56 dim 1 : vector<1x256xf32>, i32 -> vector<1x256xf32>
      %362 = vector.broadcast %136 : f32 to vector<1x256xf32>
      %363 = arith.mulf %362, %34 : vector<1x256xf32>
      %364 = arith.mulf %363, %361 : vector<1x256xf32>
      %365 = arith.addf %360, %364 : vector<1x256xf32>
      %c1_i32_57 = arith.constant 1 : i32
      %366 = tpu.dynamic_rotate %172 by %c1_i32_57 dim 1 : vector<1x256xf32>, i32 -> vector<1x256xf32>
      %367 = vector.broadcast %143 : f32 to vector<1x256xf32>
      %368 = arith.mulf %367, %366 : vector<1x256xf32>
      %369 = arith.addf %365, %368 : vector<1x256xf32>
      %c241_i32_58 = arith.constant 241 : i32
      %370 = tpu.dynamic_rotate %172 by %c241_i32_58 dim 1 : vector<1x256xf32>, i32 -> vector<1x256xf32>
      %371 = vector.broadcast %150 : f32 to vector<1x256xf32>
      %372 = arith.mulf %371, %38 : vector<1x256xf32>
      %373 = arith.mulf %372, %370 : vector<1x256xf32>
      %374 = arith.addf %369, %373 : vector<1x256xf32>
      %c225_i32_59 = arith.constant 225 : i32
      %375 = tpu.dynamic_rotate %172 by %c225_i32_59 dim 1 : vector<1x256xf32>, i32 -> vector<1x256xf32>
      %376 = vector.broadcast %157 : f32 to vector<1x256xf32>
      %377 = arith.mulf %376, %42 : vector<1x256xf32>
      %378 = arith.mulf %377, %375 : vector<1x256xf32>
      %379 = arith.addf %374, %378 : vector<1x256xf32>
      %c209_i32_60 = arith.constant 209 : i32
      %380 = tpu.dynamic_rotate %172 by %c209_i32_60 dim 1 : vector<1x256xf32>, i32 -> vector<1x256xf32>
      %381 = vector.broadcast %164 : f32 to vector<1x256xf32>
      %382 = arith.mulf %381, %46 : vector<1x256xf32>
      %383 = arith.mulf %382, %380 : vector<1x256xf32>
      %384 = arith.addf %379, %383 : vector<1x256xf32>
      %385 = arith.mulf %58, %384 : vector<1x256xf32>
      %386 = arith.addf %315, %385 : vector<1x256xf32>
      %cst_61 = arith.constant 0.000000e+00 : f32
      %387 = vector.broadcast %cst_61 : f32 to vector<1x256xf32>
      %c48_i32 = arith.constant 48 : i32
      %388 = tpu.dynamic_rotate %170 by %c48_i32 dim 1 : vector<1x256xf32>, i32 -> vector<1x256xf32>
      %389 = vector.broadcast %74 : f32 to vector<1x256xf32>
      %390 = arith.mulf %389, %26 : vector<1x256xf32>
      %391 = arith.mulf %390, %388 : vector<1x256xf32>
      %392 = arith.addf %387, %391 : vector<1x256xf32>
      %c32_i32 = arith.constant 32 : i32
      %393 = tpu.dynamic_rotate %170 by %c32_i32 dim 1 : vector<1x256xf32>, i32 -> vector<1x256xf32>
      %394 = vector.broadcast %81 : f32 to vector<1x256xf32>
      %395 = arith.mulf %394, %30 : vector<1x256xf32>
      %396 = arith.mulf %395, %393 : vector<1x256xf32>
      %397 = arith.addf %392, %396 : vector<1x256xf32>
      %c16_i32 = arith.constant 16 : i32
      %398 = tpu.dynamic_rotate %170 by %c16_i32 dim 1 : vector<1x256xf32>, i32 -> vector<1x256xf32>
      %399 = vector.broadcast %88 : f32 to vector<1x256xf32>
      %400 = arith.mulf %399, %34 : vector<1x256xf32>
      %401 = arith.mulf %400, %398 : vector<1x256xf32>
      %402 = arith.addf %397, %401 : vector<1x256xf32>
      %403 = vector.broadcast %95 : f32 to vector<1x256xf32>
      %404 = arith.mulf %403, %170 : vector<1x256xf32>
      %405 = arith.addf %402, %404 : vector<1x256xf32>
      %c240_i32 = arith.constant 240 : i32
      %406 = tpu.dynamic_rotate %170 by %c240_i32 dim 1 : vector<1x256xf32>, i32 -> vector<1x256xf32>
      %407 = vector.broadcast %102 : f32 to vector<1x256xf32>
      %408 = arith.mulf %407, %38 : vector<1x256xf32>
      %409 = arith.mulf %408, %406 : vector<1x256xf32>
      %410 = arith.addf %405, %409 : vector<1x256xf32>
      %c224_i32 = arith.constant 224 : i32
      %411 = tpu.dynamic_rotate %170 by %c224_i32 dim 1 : vector<1x256xf32>, i32 -> vector<1x256xf32>
      %412 = vector.broadcast %109 : f32 to vector<1x256xf32>
      %413 = arith.mulf %412, %42 : vector<1x256xf32>
      %414 = arith.mulf %413, %411 : vector<1x256xf32>
      %415 = arith.addf %410, %414 : vector<1x256xf32>
      %c208_i32 = arith.constant 208 : i32
      %416 = tpu.dynamic_rotate %170 by %c208_i32 dim 1 : vector<1x256xf32>, i32 -> vector<1x256xf32>
      %417 = vector.broadcast %116 : f32 to vector<1x256xf32>
      %418 = arith.mulf %417, %46 : vector<1x256xf32>
      %419 = arith.mulf %418, %416 : vector<1x256xf32>
      %420 = arith.addf %415, %419 : vector<1x256xf32>
      %c48_i32_62 = arith.constant 48 : i32
      %421 = tpu.dynamic_rotate %172 by %c48_i32_62 dim 1 : vector<1x256xf32>, i32 -> vector<1x256xf32>
      %422 = vector.broadcast %123 : f32 to vector<1x256xf32>
      %423 = arith.mulf %422, %26 : vector<1x256xf32>
      %424 = arith.mulf %423, %421 : vector<1x256xf32>
      %425 = arith.addf %420, %424 : vector<1x256xf32>
      %c32_i32_63 = arith.constant 32 : i32
      %426 = tpu.dynamic_rotate %172 by %c32_i32_63 dim 1 : vector<1x256xf32>, i32 -> vector<1x256xf32>
      %427 = vector.broadcast %130 : f32 to vector<1x256xf32>
      %428 = arith.mulf %427, %30 : vector<1x256xf32>
      %429 = arith.mulf %428, %426 : vector<1x256xf32>
      %430 = arith.addf %425, %429 : vector<1x256xf32>
      %c16_i32_64 = arith.constant 16 : i32
      %431 = tpu.dynamic_rotate %172 by %c16_i32_64 dim 1 : vector<1x256xf32>, i32 -> vector<1x256xf32>
      %432 = vector.broadcast %137 : f32 to vector<1x256xf32>
      %433 = arith.mulf %432, %34 : vector<1x256xf32>
      %434 = arith.mulf %433, %431 : vector<1x256xf32>
      %435 = arith.addf %430, %434 : vector<1x256xf32>
      %436 = vector.broadcast %144 : f32 to vector<1x256xf32>
      %437 = arith.mulf %436, %172 : vector<1x256xf32>
      %438 = arith.addf %435, %437 : vector<1x256xf32>
      %c240_i32_65 = arith.constant 240 : i32
      %439 = tpu.dynamic_rotate %172 by %c240_i32_65 dim 1 : vector<1x256xf32>, i32 -> vector<1x256xf32>
      %440 = vector.broadcast %151 : f32 to vector<1x256xf32>
      %441 = arith.mulf %440, %38 : vector<1x256xf32>
      %442 = arith.mulf %441, %439 : vector<1x256xf32>
      %443 = arith.addf %438, %442 : vector<1x256xf32>
      %c224_i32_66 = arith.constant 224 : i32
      %444 = tpu.dynamic_rotate %172 by %c224_i32_66 dim 1 : vector<1x256xf32>, i32 -> vector<1x256xf32>
      %445 = vector.broadcast %158 : f32 to vector<1x256xf32>
      %446 = arith.mulf %445, %42 : vector<1x256xf32>
      %447 = arith.mulf %446, %444 : vector<1x256xf32>
      %448 = arith.addf %443, %447 : vector<1x256xf32>
      %c208_i32_67 = arith.constant 208 : i32
      %449 = tpu.dynamic_rotate %172 by %c208_i32_67 dim 1 : vector<1x256xf32>, i32 -> vector<1x256xf32>
      %450 = vector.broadcast %165 : f32 to vector<1x256xf32>
      %451 = arith.mulf %450, %46 : vector<1x256xf32>
      %452 = arith.mulf %451, %449 : vector<1x256xf32>
      %453 = arith.addf %448, %452 : vector<1x256xf32>
      %454 = arith.addf %386, %453 : vector<1x256xf32>
      %cst_68 = arith.constant 0.000000e+00 : f32
      %455 = vector.broadcast %cst_68 : f32 to vector<1x256xf32>
      %c47_i32 = arith.constant 47 : i32
      %456 = tpu.dynamic_rotate %170 by %c47_i32 dim 1 : vector<1x256xf32>, i32 -> vector<1x256xf32>
      %457 = vector.broadcast %75 : f32 to vector<1x256xf32>
      %458 = arith.mulf %457, %26 : vector<1x256xf32>
      %459 = arith.mulf %458, %456 : vector<1x256xf32>
      %460 = arith.addf %455, %459 : vector<1x256xf32>
      %c31_i32 = arith.constant 31 : i32
      %461 = tpu.dynamic_rotate %170 by %c31_i32 dim 1 : vector<1x256xf32>, i32 -> vector<1x256xf32>
      %462 = vector.broadcast %82 : f32 to vector<1x256xf32>
      %463 = arith.mulf %462, %30 : vector<1x256xf32>
      %464 = arith.mulf %463, %461 : vector<1x256xf32>
      %465 = arith.addf %460, %464 : vector<1x256xf32>
      %c15_i32 = arith.constant 15 : i32
      %466 = tpu.dynamic_rotate %170 by %c15_i32 dim 1 : vector<1x256xf32>, i32 -> vector<1x256xf32>
      %467 = vector.broadcast %89 : f32 to vector<1x256xf32>
      %468 = arith.mulf %467, %34 : vector<1x256xf32>
      %469 = arith.mulf %468, %466 : vector<1x256xf32>
      %470 = arith.addf %465, %469 : vector<1x256xf32>
      %c255_i32 = arith.constant 255 : i32
      %471 = tpu.dynamic_rotate %170 by %c255_i32 dim 1 : vector<1x256xf32>, i32 -> vector<1x256xf32>
      %472 = vector.broadcast %96 : f32 to vector<1x256xf32>
      %473 = arith.mulf %472, %471 : vector<1x256xf32>
      %474 = arith.addf %470, %473 : vector<1x256xf32>
      %c239_i32 = arith.constant 239 : i32
      %475 = tpu.dynamic_rotate %170 by %c239_i32 dim 1 : vector<1x256xf32>, i32 -> vector<1x256xf32>
      %476 = vector.broadcast %103 : f32 to vector<1x256xf32>
      %477 = arith.mulf %476, %38 : vector<1x256xf32>
      %478 = arith.mulf %477, %475 : vector<1x256xf32>
      %479 = arith.addf %474, %478 : vector<1x256xf32>
      %c223_i32 = arith.constant 223 : i32
      %480 = tpu.dynamic_rotate %170 by %c223_i32 dim 1 : vector<1x256xf32>, i32 -> vector<1x256xf32>
      %481 = vector.broadcast %110 : f32 to vector<1x256xf32>
      %482 = arith.mulf %481, %42 : vector<1x256xf32>
      %483 = arith.mulf %482, %480 : vector<1x256xf32>
      %484 = arith.addf %479, %483 : vector<1x256xf32>
      %c207_i32 = arith.constant 207 : i32
      %485 = tpu.dynamic_rotate %170 by %c207_i32 dim 1 : vector<1x256xf32>, i32 -> vector<1x256xf32>
      %486 = vector.broadcast %117 : f32 to vector<1x256xf32>
      %487 = arith.mulf %486, %46 : vector<1x256xf32>
      %488 = arith.mulf %487, %485 : vector<1x256xf32>
      %489 = arith.addf %484, %488 : vector<1x256xf32>
      %c47_i32_69 = arith.constant 47 : i32
      %490 = tpu.dynamic_rotate %172 by %c47_i32_69 dim 1 : vector<1x256xf32>, i32 -> vector<1x256xf32>
      %491 = vector.broadcast %124 : f32 to vector<1x256xf32>
      %492 = arith.mulf %491, %26 : vector<1x256xf32>
      %493 = arith.mulf %492, %490 : vector<1x256xf32>
      %494 = arith.addf %489, %493 : vector<1x256xf32>
      %c31_i32_70 = arith.constant 31 : i32
      %495 = tpu.dynamic_rotate %172 by %c31_i32_70 dim 1 : vector<1x256xf32>, i32 -> vector<1x256xf32>
      %496 = vector.broadcast %131 : f32 to vector<1x256xf32>
      %497 = arith.mulf %496, %30 : vector<1x256xf32>
      %498 = arith.mulf %497, %495 : vector<1x256xf32>
      %499 = arith.addf %494, %498 : vector<1x256xf32>
      %c15_i32_71 = arith.constant 15 : i32
      %500 = tpu.dynamic_rotate %172 by %c15_i32_71 dim 1 : vector<1x256xf32>, i32 -> vector<1x256xf32>
      %501 = vector.broadcast %138 : f32 to vector<1x256xf32>
      %502 = arith.mulf %501, %34 : vector<1x256xf32>
      %503 = arith.mulf %502, %500 : vector<1x256xf32>
      %504 = arith.addf %499, %503 : vector<1x256xf32>
      %c255_i32_72 = arith.constant 255 : i32
      %505 = tpu.dynamic_rotate %172 by %c255_i32_72 dim 1 : vector<1x256xf32>, i32 -> vector<1x256xf32>
      %506 = vector.broadcast %145 : f32 to vector<1x256xf32>
      %507 = arith.mulf %506, %505 : vector<1x256xf32>
      %508 = arith.addf %504, %507 : vector<1x256xf32>
      %c239_i32_73 = arith.constant 239 : i32
      %509 = tpu.dynamic_rotate %172 by %c239_i32_73 dim 1 : vector<1x256xf32>, i32 -> vector<1x256xf32>
      %510 = vector.broadcast %152 : f32 to vector<1x256xf32>
      %511 = arith.mulf %510, %38 : vector<1x256xf32>
      %512 = arith.mulf %511, %509 : vector<1x256xf32>
      %513 = arith.addf %508, %512 : vector<1x256xf32>
      %c223_i32_74 = arith.constant 223 : i32
      %514 = tpu.dynamic_rotate %172 by %c223_i32_74 dim 1 : vector<1x256xf32>, i32 -> vector<1x256xf32>
      %515 = vector.broadcast %159 : f32 to vector<1x256xf32>
      %516 = arith.mulf %515, %42 : vector<1x256xf32>
      %517 = arith.mulf %516, %514 : vector<1x256xf32>
      %518 = arith.addf %513, %517 : vector<1x256xf32>
      %c207_i32_75 = arith.constant 207 : i32
      %519 = tpu.dynamic_rotate %172 by %c207_i32_75 dim 1 : vector<1x256xf32>, i32 -> vector<1x256xf32>
      %520 = vector.broadcast %166 : f32 to vector<1x256xf32>
      %521 = arith.mulf %520, %46 : vector<1x256xf32>
      %522 = arith.mulf %521, %519 : vector<1x256xf32>
      %523 = arith.addf %518, %522 : vector<1x256xf32>
      %524 = arith.mulf %62, %523 : vector<1x256xf32>
      %525 = arith.addf %454, %524 : vector<1x256xf32>
      %cst_76 = arith.constant 0.000000e+00 : f32
      %526 = vector.broadcast %cst_76 : f32 to vector<1x256xf32>
      %c46_i32 = arith.constant 46 : i32
      %527 = tpu.dynamic_rotate %170 by %c46_i32 dim 1 : vector<1x256xf32>, i32 -> vector<1x256xf32>
      %528 = vector.broadcast %76 : f32 to vector<1x256xf32>
      %529 = arith.mulf %528, %26 : vector<1x256xf32>
      %530 = arith.mulf %529, %527 : vector<1x256xf32>
      %531 = arith.addf %526, %530 : vector<1x256xf32>
      %c30_i32 = arith.constant 30 : i32
      %532 = tpu.dynamic_rotate %170 by %c30_i32 dim 1 : vector<1x256xf32>, i32 -> vector<1x256xf32>
      %533 = vector.broadcast %83 : f32 to vector<1x256xf32>
      %534 = arith.mulf %533, %30 : vector<1x256xf32>
      %535 = arith.mulf %534, %532 : vector<1x256xf32>
      %536 = arith.addf %531, %535 : vector<1x256xf32>
      %c14_i32 = arith.constant 14 : i32
      %537 = tpu.dynamic_rotate %170 by %c14_i32 dim 1 : vector<1x256xf32>, i32 -> vector<1x256xf32>
      %538 = vector.broadcast %90 : f32 to vector<1x256xf32>
      %539 = arith.mulf %538, %34 : vector<1x256xf32>
      %540 = arith.mulf %539, %537 : vector<1x256xf32>
      %541 = arith.addf %536, %540 : vector<1x256xf32>
      %c254_i32 = arith.constant 254 : i32
      %542 = tpu.dynamic_rotate %170 by %c254_i32 dim 1 : vector<1x256xf32>, i32 -> vector<1x256xf32>
      %543 = vector.broadcast %97 : f32 to vector<1x256xf32>
      %544 = arith.mulf %543, %542 : vector<1x256xf32>
      %545 = arith.addf %541, %544 : vector<1x256xf32>
      %c238_i32 = arith.constant 238 : i32
      %546 = tpu.dynamic_rotate %170 by %c238_i32 dim 1 : vector<1x256xf32>, i32 -> vector<1x256xf32>
      %547 = vector.broadcast %104 : f32 to vector<1x256xf32>
      %548 = arith.mulf %547, %38 : vector<1x256xf32>
      %549 = arith.mulf %548, %546 : vector<1x256xf32>
      %550 = arith.addf %545, %549 : vector<1x256xf32>
      %c222_i32 = arith.constant 222 : i32
      %551 = tpu.dynamic_rotate %170 by %c222_i32 dim 1 : vector<1x256xf32>, i32 -> vector<1x256xf32>
      %552 = vector.broadcast %111 : f32 to vector<1x256xf32>
      %553 = arith.mulf %552, %42 : vector<1x256xf32>
      %554 = arith.mulf %553, %551 : vector<1x256xf32>
      %555 = arith.addf %550, %554 : vector<1x256xf32>
      %c206_i32 = arith.constant 206 : i32
      %556 = tpu.dynamic_rotate %170 by %c206_i32 dim 1 : vector<1x256xf32>, i32 -> vector<1x256xf32>
      %557 = vector.broadcast %118 : f32 to vector<1x256xf32>
      %558 = arith.mulf %557, %46 : vector<1x256xf32>
      %559 = arith.mulf %558, %556 : vector<1x256xf32>
      %560 = arith.addf %555, %559 : vector<1x256xf32>
      %c46_i32_77 = arith.constant 46 : i32
      %561 = tpu.dynamic_rotate %172 by %c46_i32_77 dim 1 : vector<1x256xf32>, i32 -> vector<1x256xf32>
      %562 = vector.broadcast %125 : f32 to vector<1x256xf32>
      %563 = arith.mulf %562, %26 : vector<1x256xf32>
      %564 = arith.mulf %563, %561 : vector<1x256xf32>
      %565 = arith.addf %560, %564 : vector<1x256xf32>
      %c30_i32_78 = arith.constant 30 : i32
      %566 = tpu.dynamic_rotate %172 by %c30_i32_78 dim 1 : vector<1x256xf32>, i32 -> vector<1x256xf32>
      %567 = vector.broadcast %132 : f32 to vector<1x256xf32>
      %568 = arith.mulf %567, %30 : vector<1x256xf32>
      %569 = arith.mulf %568, %566 : vector<1x256xf32>
      %570 = arith.addf %565, %569 : vector<1x256xf32>
      %c14_i32_79 = arith.constant 14 : i32
      %571 = tpu.dynamic_rotate %172 by %c14_i32_79 dim 1 : vector<1x256xf32>, i32 -> vector<1x256xf32>
      %572 = vector.broadcast %139 : f32 to vector<1x256xf32>
      %573 = arith.mulf %572, %34 : vector<1x256xf32>
      %574 = arith.mulf %573, %571 : vector<1x256xf32>
      %575 = arith.addf %570, %574 : vector<1x256xf32>
      %c254_i32_80 = arith.constant 254 : i32
      %576 = tpu.dynamic_rotate %172 by %c254_i32_80 dim 1 : vector<1x256xf32>, i32 -> vector<1x256xf32>
      %577 = vector.broadcast %146 : f32 to vector<1x256xf32>
      %578 = arith.mulf %577, %576 : vector<1x256xf32>
      %579 = arith.addf %575, %578 : vector<1x256xf32>
      %c238_i32_81 = arith.constant 238 : i32
      %580 = tpu.dynamic_rotate %172 by %c238_i32_81 dim 1 : vector<1x256xf32>, i32 -> vector<1x256xf32>
      %581 = vector.broadcast %153 : f32 to vector<1x256xf32>
      %582 = arith.mulf %581, %38 : vector<1x256xf32>
      %583 = arith.mulf %582, %580 : vector<1x256xf32>
      %584 = arith.addf %579, %583 : vector<1x256xf32>
      %c222_i32_82 = arith.constant 222 : i32
      %585 = tpu.dynamic_rotate %172 by %c222_i32_82 dim 1 : vector<1x256xf32>, i32 -> vector<1x256xf32>
      %586 = vector.broadcast %160 : f32 to vector<1x256xf32>
      %587 = arith.mulf %586, %42 : vector<1x256xf32>
      %588 = arith.mulf %587, %585 : vector<1x256xf32>
      %589 = arith.addf %584, %588 : vector<1x256xf32>
      %c206_i32_83 = arith.constant 206 : i32
      %590 = tpu.dynamic_rotate %172 by %c206_i32_83 dim 1 : vector<1x256xf32>, i32 -> vector<1x256xf32>
      %591 = vector.broadcast %167 : f32 to vector<1x256xf32>
      %592 = arith.mulf %591, %46 : vector<1x256xf32>
      %593 = arith.mulf %592, %590 : vector<1x256xf32>
      %594 = arith.addf %589, %593 : vector<1x256xf32>
      %595 = arith.mulf %66, %594 : vector<1x256xf32>
      %596 = arith.addf %525, %595 : vector<1x256xf32>
      %cst_84 = arith.constant 0.000000e+00 : f32
      %597 = vector.broadcast %cst_84 : f32 to vector<1x256xf32>
      %c45_i32 = arith.constant 45 : i32
      %598 = tpu.dynamic_rotate %170 by %c45_i32 dim 1 : vector<1x256xf32>, i32 -> vector<1x256xf32>
      %599 = vector.broadcast %77 : f32 to vector<1x256xf32>
      %600 = arith.mulf %599, %26 : vector<1x256xf32>
      %601 = arith.mulf %600, %598 : vector<1x256xf32>
      %602 = arith.addf %597, %601 : vector<1x256xf32>
      %c29_i32 = arith.constant 29 : i32
      %603 = tpu.dynamic_rotate %170 by %c29_i32 dim 1 : vector<1x256xf32>, i32 -> vector<1x256xf32>
      %604 = vector.broadcast %84 : f32 to vector<1x256xf32>
      %605 = arith.mulf %604, %30 : vector<1x256xf32>
      %606 = arith.mulf %605, %603 : vector<1x256xf32>
      %607 = arith.addf %602, %606 : vector<1x256xf32>
      %c13_i32 = arith.constant 13 : i32
      %608 = tpu.dynamic_rotate %170 by %c13_i32 dim 1 : vector<1x256xf32>, i32 -> vector<1x256xf32>
      %609 = vector.broadcast %91 : f32 to vector<1x256xf32>
      %610 = arith.mulf %609, %34 : vector<1x256xf32>
      %611 = arith.mulf %610, %608 : vector<1x256xf32>
      %612 = arith.addf %607, %611 : vector<1x256xf32>
      %c253_i32 = arith.constant 253 : i32
      %613 = tpu.dynamic_rotate %170 by %c253_i32 dim 1 : vector<1x256xf32>, i32 -> vector<1x256xf32>
      %614 = vector.broadcast %98 : f32 to vector<1x256xf32>
      %615 = arith.mulf %614, %613 : vector<1x256xf32>
      %616 = arith.addf %612, %615 : vector<1x256xf32>
      %c237_i32 = arith.constant 237 : i32
      %617 = tpu.dynamic_rotate %170 by %c237_i32 dim 1 : vector<1x256xf32>, i32 -> vector<1x256xf32>
      %618 = vector.broadcast %105 : f32 to vector<1x256xf32>
      %619 = arith.mulf %618, %38 : vector<1x256xf32>
      %620 = arith.mulf %619, %617 : vector<1x256xf32>
      %621 = arith.addf %616, %620 : vector<1x256xf32>
      %c221_i32 = arith.constant 221 : i32
      %622 = tpu.dynamic_rotate %170 by %c221_i32 dim 1 : vector<1x256xf32>, i32 -> vector<1x256xf32>
      %623 = vector.broadcast %112 : f32 to vector<1x256xf32>
      %624 = arith.mulf %623, %42 : vector<1x256xf32>
      %625 = arith.mulf %624, %622 : vector<1x256xf32>
      %626 = arith.addf %621, %625 : vector<1x256xf32>
      %c205_i32 = arith.constant 205 : i32
      %627 = tpu.dynamic_rotate %170 by %c205_i32 dim 1 : vector<1x256xf32>, i32 -> vector<1x256xf32>
      %628 = vector.broadcast %119 : f32 to vector<1x256xf32>
      %629 = arith.mulf %628, %46 : vector<1x256xf32>
      %630 = arith.mulf %629, %627 : vector<1x256xf32>
      %631 = arith.addf %626, %630 : vector<1x256xf32>
      %c45_i32_85 = arith.constant 45 : i32
      %632 = tpu.dynamic_rotate %172 by %c45_i32_85 dim 1 : vector<1x256xf32>, i32 -> vector<1x256xf32>
      %633 = vector.broadcast %126 : f32 to vector<1x256xf32>
      %634 = arith.mulf %633, %26 : vector<1x256xf32>
      %635 = arith.mulf %634, %632 : vector<1x256xf32>
      %636 = arith.addf %631, %635 : vector<1x256xf32>
      %c29_i32_86 = arith.constant 29 : i32
      %637 = tpu.dynamic_rotate %172 by %c29_i32_86 dim 1 : vector<1x256xf32>, i32 -> vector<1x256xf32>
      %638 = vector.broadcast %133 : f32 to vector<1x256xf32>
      %639 = arith.mulf %638, %30 : vector<1x256xf32>
      %640 = arith.mulf %639, %637 : vector<1x256xf32>
      %641 = arith.addf %636, %640 : vector<1x256xf32>
      %c13_i32_87 = arith.constant 13 : i32
      %642 = tpu.dynamic_rotate %172 by %c13_i32_87 dim 1 : vector<1x256xf32>, i32 -> vector<1x256xf32>
      %643 = vector.broadcast %140 : f32 to vector<1x256xf32>
      %644 = arith.mulf %643, %34 : vector<1x256xf32>
      %645 = arith.mulf %644, %642 : vector<1x256xf32>
      %646 = arith.addf %641, %645 : vector<1x256xf32>
      %c253_i32_88 = arith.constant 253 : i32
      %647 = tpu.dynamic_rotate %172 by %c253_i32_88 dim 1 : vector<1x256xf32>, i32 -> vector<1x256xf32>
      %648 = vector.broadcast %147 : f32 to vector<1x256xf32>
      %649 = arith.mulf %648, %647 : vector<1x256xf32>
      %650 = arith.addf %646, %649 : vector<1x256xf32>
      %c237_i32_89 = arith.constant 237 : i32
      %651 = tpu.dynamic_rotate %172 by %c237_i32_89 dim 1 : vector<1x256xf32>, i32 -> vector<1x256xf32>
      %652 = vector.broadcast %154 : f32 to vector<1x256xf32>
      %653 = arith.mulf %652, %38 : vector<1x256xf32>
      %654 = arith.mulf %653, %651 : vector<1x256xf32>
      %655 = arith.addf %650, %654 : vector<1x256xf32>
      %c221_i32_90 = arith.constant 221 : i32
      %656 = tpu.dynamic_rotate %172 by %c221_i32_90 dim 1 : vector<1x256xf32>, i32 -> vector<1x256xf32>
      %657 = vector.broadcast %161 : f32 to vector<1x256xf32>
      %658 = arith.mulf %657, %42 : vector<1x256xf32>
      %659 = arith.mulf %658, %656 : vector<1x256xf32>
      %660 = arith.addf %655, %659 : vector<1x256xf32>
      %c205_i32_91 = arith.constant 205 : i32
      %661 = tpu.dynamic_rotate %172 by %c205_i32_91 dim 1 : vector<1x256xf32>, i32 -> vector<1x256xf32>
      %662 = vector.broadcast %168 : f32 to vector<1x256xf32>
      %663 = arith.mulf %662, %46 : vector<1x256xf32>
      %664 = arith.mulf %663, %661 : vector<1x256xf32>
      %665 = arith.addf %660, %664 : vector<1x256xf32>
      %666 = arith.mulf %70, %665 : vector<1x256xf32>
      %667 = arith.addf %596, %666 : vector<1x256xf32>
      %668 = arith.negf %667 : vector<1x256xf32>
      %669 = math.exp %668 : vector<1x256xf32>
      %cst_92 = arith.constant 1.000000e+00 : f32
      %670 = vector.broadcast %cst_92 : f32 to vector<1x256xf32>
      %671 = arith.addf %670, %669 : vector<1x256xf32>
      %672 = arith.divf %670, %671 : vector<1x256xf32>
      %c0_93 = arith.constant 0 : index
      %c0_94 = arith.constant 0 : index
      %c0_95 = arith.constant 0 : index
      %673 = vector.load %arg6[%c0_93, %c0_94, %c0_95] : memref<2x1x256xf32, #tpu.memory_space<vmem>>, vector<1x1x256xf32>
      %674 = vector.shape_cast %673 : vector<1x1x256xf32> to vector<1x256xf32>
      %675 = vector.shape_cast %672 : vector<1x256xf32> to vector<1x1x256xf32>
      tpu.vector_store %arg6[%c0_93, %c0_94, %c0_95], %675 {strides = array<i32>} : memref<2x1x256xf32, #tpu.memory_space<vmem>>, vector<1x1x256xf32>,
      %c1_96 = arith.constant 1 : index
      %c0_97 = arith.constant 0 : index
      %c0_98 = arith.constant 0 : index
      %676 = vector.load %arg7[%c1_96, %c0_97, %c0_98] : memref<2x1x256xf32, #tpu.memory_space<vmem>>, vector<1x1x256xf32>
      %677 = vector.shape_cast %676 : vector<1x1x256xf32> to vector<1x256xf32>
      %c1_99 = arith.constant 1 : index
      %c0_100 = arith.constant 0 : index
      %c0_101 = arith.constant 0 : index
      %678 = vector.load %arg8[%c1_99, %c0_100, %c0_101] : memref<2x1x256xf32, #tpu.memory_space<vmem>>, vector<1x1x256xf32>
      %679 = vector.shape_cast %678 : vector<1x1x256xf32> to vector<1x256xf32>
      %cst_102 = arith.constant 0.000000e+00 : f32
      %680 = vector.broadcast %cst_102 : f32 to vector<1x256xf32>
      %cst_103 = arith.constant 0.000000e+00 : f32
      %681 = vector.broadcast %cst_103 : f32 to vector<1x256xf32>
      %c51_i32_104 = arith.constant 51 : i32
      %682 = tpu.dynamic_rotate %677 by %c51_i32_104 dim 1 : vector<1x256xf32>, i32 -> vector<1x256xf32>
      %683 = vector.broadcast %71 : f32 to vector<1x256xf32>
      %684 = arith.mulf %683, %26 : vector<1x256xf32>
      %685 = arith.mulf %684, %682 : vector<1x256xf32>
      %686 = arith.addf %681, %685 : vector<1x256xf32>
      %c35_i32_105 = arith.constant 35 : i32
      %687 = tpu.dynamic_rotate %677 by %c35_i32_105 dim 1 : vector<1x256xf32>, i32 -> vector<1x256xf32>
      %688 = vector.broadcast %78 : f32 to vector<1x256xf32>
      %689 = arith.mulf %688, %30 : vector<1x256xf32>
      %690 = arith.mulf %689, %687 : vector<1x256xf32>
      %691 = arith.addf %686, %690 : vector<1x256xf32>
      %c19_i32_106 = arith.constant 19 : i32
      %692 = tpu.dynamic_rotate %677 by %c19_i32_106 dim 1 : vector<1x256xf32>, i32 -> vector<1x256xf32>
      %693 = vector.broadcast %85 : f32 to vector<1x256xf32>
      %694 = arith.mulf %693, %34 : vector<1x256xf32>
      %695 = arith.mulf %694, %692 : vector<1x256xf32>
      %696 = arith.addf %691, %695 : vector<1x256xf32>
      %c3_i32_107 = arith.constant 3 : i32
      %697 = tpu.dynamic_rotate %677 by %c3_i32_107 dim 1 : vector<1x256xf32>, i32 -> vector<1x256xf32>
      %698 = vector.broadcast %92 : f32 to vector<1x256xf32>
      %699 = arith.mulf %698, %697 : vector<1x256xf32>
      %700 = arith.addf %696, %699 : vector<1x256xf32>
      %c243_i32_108 = arith.constant 243 : i32
      %701 = tpu.dynamic_rotate %677 by %c243_i32_108 dim 1 : vector<1x256xf32>, i32 -> vector<1x256xf32>
      %702 = vector.broadcast %99 : f32 to vector<1x256xf32>
      %703 = arith.mulf %702, %38 : vector<1x256xf32>
      %704 = arith.mulf %703, %701 : vector<1x256xf32>
      %705 = arith.addf %700, %704 : vector<1x256xf32>
      %c227_i32_109 = arith.constant 227 : i32
      %706 = tpu.dynamic_rotate %677 by %c227_i32_109 dim 1 : vector<1x256xf32>, i32 -> vector<1x256xf32>
      %707 = vector.broadcast %106 : f32 to vector<1x256xf32>
      %708 = arith.mulf %707, %42 : vector<1x256xf32>
      %709 = arith.mulf %708, %706 : vector<1x256xf32>
      %710 = arith.addf %705, %709 : vector<1x256xf32>
      %c211_i32_110 = arith.constant 211 : i32
      %711 = tpu.dynamic_rotate %677 by %c211_i32_110 dim 1 : vector<1x256xf32>, i32 -> vector<1x256xf32>
      %712 = vector.broadcast %113 : f32 to vector<1x256xf32>
      %713 = arith.mulf %712, %46 : vector<1x256xf32>
      %714 = arith.mulf %713, %711 : vector<1x256xf32>
      %715 = arith.addf %710, %714 : vector<1x256xf32>
      %c51_i32_111 = arith.constant 51 : i32
      %716 = tpu.dynamic_rotate %679 by %c51_i32_111 dim 1 : vector<1x256xf32>, i32 -> vector<1x256xf32>
      %717 = vector.broadcast %120 : f32 to vector<1x256xf32>
      %718 = arith.mulf %717, %26 : vector<1x256xf32>
      %719 = arith.mulf %718, %716 : vector<1x256xf32>
      %720 = arith.addf %715, %719 : vector<1x256xf32>
      %c35_i32_112 = arith.constant 35 : i32
      %721 = tpu.dynamic_rotate %679 by %c35_i32_112 dim 1 : vector<1x256xf32>, i32 -> vector<1x256xf32>
      %722 = vector.broadcast %127 : f32 to vector<1x256xf32>
      %723 = arith.mulf %722, %30 : vector<1x256xf32>
      %724 = arith.mulf %723, %721 : vector<1x256xf32>
      %725 = arith.addf %720, %724 : vector<1x256xf32>
      %c19_i32_113 = arith.constant 19 : i32
      %726 = tpu.dynamic_rotate %679 by %c19_i32_113 dim 1 : vector<1x256xf32>, i32 -> vector<1x256xf32>
      %727 = vector.broadcast %134 : f32 to vector<1x256xf32>
      %728 = arith.mulf %727, %34 : vector<1x256xf32>
      %729 = arith.mulf %728, %726 : vector<1x256xf32>
      %730 = arith.addf %725, %729 : vector<1x256xf32>
      %c3_i32_114 = arith.constant 3 : i32
      %731 = tpu.dynamic_rotate %679 by %c3_i32_114 dim 1 : vector<1x256xf32>, i32 -> vector<1x256xf32>
      %732 = vector.broadcast %141 : f32 to vector<1x256xf32>
      %733 = arith.mulf %732, %731 : vector<1x256xf32>
      %734 = arith.addf %730, %733 : vector<1x256xf32>
      %c243_i32_115 = arith.constant 243 : i32
      %735 = tpu.dynamic_rotate %679 by %c243_i32_115 dim 1 : vector<1x256xf32>, i32 -> vector<1x256xf32>
      %736 = vector.broadcast %148 : f32 to vector<1x256xf32>
      %737 = arith.mulf %736, %38 : vector<1x256xf32>
      %738 = arith.mulf %737, %735 : vector<1x256xf32>
      %739 = arith.addf %734, %738 : vector<1x256xf32>
      %c227_i32_116 = arith.constant 227 : i32
      %740 = tpu.dynamic_rotate %679 by %c227_i32_116 dim 1 : vector<1x256xf32>, i32 -> vector<1x256xf32>
      %741 = vector.broadcast %155 : f32 to vector<1x256xf32>
      %742 = arith.mulf %741, %42 : vector<1x256xf32>
      %743 = arith.mulf %742, %740 : vector<1x256xf32>
      %744 = arith.addf %739, %743 : vector<1x256xf32>
      %c211_i32_117 = arith.constant 211 : i32
      %745 = tpu.dynamic_rotate %679 by %c211_i32_117 dim 1 : vector<1x256xf32>, i32 -> vector<1x256xf32>
      %746 = vector.broadcast %162 : f32 to vector<1x256xf32>
      %747 = arith.mulf %746, %46 : vector<1x256xf32>
      %748 = arith.mulf %747, %745 : vector<1x256xf32>
      %749 = arith.addf %744, %748 : vector<1x256xf32>
      %750 = arith.mulf %50, %749 : vector<1x256xf32>
      %751 = arith.addf %680, %750 : vector<1x256xf32>
      %cst_118 = arith.constant 0.000000e+00 : f32
      %752 = vector.broadcast %cst_118 : f32 to vector<1x256xf32>
      %c50_i32_119 = arith.constant 50 : i32
      %753 = tpu.dynamic_rotate %677 by %c50_i32_119 dim 1 : vector<1x256xf32>, i32 -> vector<1x256xf32>
      %754 = vector.broadcast %72 : f32 to vector<1x256xf32>
      %755 = arith.mulf %754, %26 : vector<1x256xf32>
      %756 = arith.mulf %755, %753 : vector<1x256xf32>
      %757 = arith.addf %752, %756 : vector<1x256xf32>
      %c34_i32_120 = arith.constant 34 : i32
      %758 = tpu.dynamic_rotate %677 by %c34_i32_120 dim 1 : vector<1x256xf32>, i32 -> vector<1x256xf32>
      %759 = vector.broadcast %79 : f32 to vector<1x256xf32>
      %760 = arith.mulf %759, %30 : vector<1x256xf32>
      %761 = arith.mulf %760, %758 : vector<1x256xf32>
      %762 = arith.addf %757, %761 : vector<1x256xf32>
      %c18_i32_121 = arith.constant 18 : i32
      %763 = tpu.dynamic_rotate %677 by %c18_i32_121 dim 1 : vector<1x256xf32>, i32 -> vector<1x256xf32>
      %764 = vector.broadcast %86 : f32 to vector<1x256xf32>
      %765 = arith.mulf %764, %34 : vector<1x256xf32>
      %766 = arith.mulf %765, %763 : vector<1x256xf32>
      %767 = arith.addf %762, %766 : vector<1x256xf32>
      %c2_i32_122 = arith.constant 2 : i32
      %768 = tpu.dynamic_rotate %677 by %c2_i32_122 dim 1 : vector<1x256xf32>, i32 -> vector<1x256xf32>
      %769 = vector.broadcast %93 : f32 to vector<1x256xf32>
      %770 = arith.mulf %769, %768 : vector<1x256xf32>
      %771 = arith.addf %767, %770 : vector<1x256xf32>
      %c242_i32_123 = arith.constant 242 : i32
      %772 = tpu.dynamic_rotate %677 by %c242_i32_123 dim 1 : vector<1x256xf32>, i32 -> vector<1x256xf32>
      %773 = vector.broadcast %100 : f32 to vector<1x256xf32>
      %774 = arith.mulf %773, %38 : vector<1x256xf32>
      %775 = arith.mulf %774, %772 : vector<1x256xf32>
      %776 = arith.addf %771, %775 : vector<1x256xf32>
      %c226_i32_124 = arith.constant 226 : i32
      %777 = tpu.dynamic_rotate %677 by %c226_i32_124 dim 1 : vector<1x256xf32>, i32 -> vector<1x256xf32>
      %778 = vector.broadcast %107 : f32 to vector<1x256xf32>
      %779 = arith.mulf %778, %42 : vector<1x256xf32>
      %780 = arith.mulf %779, %777 : vector<1x256xf32>
      %781 = arith.addf %776, %780 : vector<1x256xf32>
      %c210_i32_125 = arith.constant 210 : i32
      %782 = tpu.dynamic_rotate %677 by %c210_i32_125 dim 1 : vector<1x256xf32>, i32 -> vector<1x256xf32>
      %783 = vector.broadcast %114 : f32 to vector<1x256xf32>
      %784 = arith.mulf %783, %46 : vector<1x256xf32>
      %785 = arith.mulf %784, %782 : vector<1x256xf32>
      %786 = arith.addf %781, %785 : vector<1x256xf32>
      %c50_i32_126 = arith.constant 50 : i32
      %787 = tpu.dynamic_rotate %679 by %c50_i32_126 dim 1 : vector<1x256xf32>, i32 -> vector<1x256xf32>
      %788 = vector.broadcast %121 : f32 to vector<1x256xf32>
      %789 = arith.mulf %788, %26 : vector<1x256xf32>
      %790 = arith.mulf %789, %787 : vector<1x256xf32>
      %791 = arith.addf %786, %790 : vector<1x256xf32>
      %c34_i32_127 = arith.constant 34 : i32
      %792 = tpu.dynamic_rotate %679 by %c34_i32_127 dim 1 : vector<1x256xf32>, i32 -> vector<1x256xf32>
      %793 = vector.broadcast %128 : f32 to vector<1x256xf32>
      %794 = arith.mulf %793, %30 : vector<1x256xf32>
      %795 = arith.mulf %794, %792 : vector<1x256xf32>
      %796 = arith.addf %791, %795 : vector<1x256xf32>
      %c18_i32_128 = arith.constant 18 : i32
      %797 = tpu.dynamic_rotate %679 by %c18_i32_128 dim 1 : vector<1x256xf32>, i32 -> vector<1x256xf32>
      %798 = vector.broadcast %135 : f32 to vector<1x256xf32>
      %799 = arith.mulf %798, %34 : vector<1x256xf32>
      %800 = arith.mulf %799, %797 : vector<1x256xf32>
      %801 = arith.addf %796, %800 : vector<1x256xf32>
      %c2_i32_129 = arith.constant 2 : i32
      %802 = tpu.dynamic_rotate %679 by %c2_i32_129 dim 1 : vector<1x256xf32>, i32 -> vector<1x256xf32>
      %803 = vector.broadcast %142 : f32 to vector<1x256xf32>
      %804 = arith.mulf %803, %802 : vector<1x256xf32>
      %805 = arith.addf %801, %804 : vector<1x256xf32>
      %c242_i32_130 = arith.constant 242 : i32
      %806 = tpu.dynamic_rotate %679 by %c242_i32_130 dim 1 : vector<1x256xf32>, i32 -> vector<1x256xf32>
      %807 = vector.broadcast %149 : f32 to vector<1x256xf32>
      %808 = arith.mulf %807, %38 : vector<1x256xf32>
      %809 = arith.mulf %808, %806 : vector<1x256xf32>
      %810 = arith.addf %805, %809 : vector<1x256xf32>
      %c226_i32_131 = arith.constant 226 : i32
      %811 = tpu.dynamic_rotate %679 by %c226_i32_131 dim 1 : vector<1x256xf32>, i32 -> vector<1x256xf32>
      %812 = vector.broadcast %156 : f32 to vector<1x256xf32>
      %813 = arith.mulf %812, %42 : vector<1x256xf32>
      %814 = arith.mulf %813, %811 : vector<1x256xf32>
      %815 = arith.addf %810, %814 : vector<1x256xf32>
      %c210_i32_132 = arith.constant 210 : i32
      %816 = tpu.dynamic_rotate %679 by %c210_i32_132 dim 1 : vector<1x256xf32>, i32 -> vector<1x256xf32>
      %817 = vector.broadcast %163 : f32 to vector<1x256xf32>
      %818 = arith.mulf %817, %46 : vector<1x256xf32>
      %819 = arith.mulf %818, %816 : vector<1x256xf32>
      %820 = arith.addf %815, %819 : vector<1x256xf32>
      %821 = arith.mulf %54, %820 : vector<1x256xf32>
      %822 = arith.addf %751, %821 : vector<1x256xf32>
      %cst_133 = arith.constant 0.000000e+00 : f32
      %823 = vector.broadcast %cst_133 : f32 to vector<1x256xf32>
      %c49_i32_134 = arith.constant 49 : i32
      %824 = tpu.dynamic_rotate %677 by %c49_i32_134 dim 1 : vector<1x256xf32>, i32 -> vector<1x256xf32>
      %825 = vector.broadcast %73 : f32 to vector<1x256xf32>
      %826 = arith.mulf %825, %26 : vector<1x256xf32>
      %827 = arith.mulf %826, %824 : vector<1x256xf32>
      %828 = arith.addf %823, %827 : vector<1x256xf32>
      %c33_i32_135 = arith.constant 33 : i32
      %829 = tpu.dynamic_rotate %677 by %c33_i32_135 dim 1 : vector<1x256xf32>, i32 -> vector<1x256xf32>
      %830 = vector.broadcast %80 : f32 to vector<1x256xf32>
      %831 = arith.mulf %830, %30 : vector<1x256xf32>
      %832 = arith.mulf %831, %829 : vector<1x256xf32>
      %833 = arith.addf %828, %832 : vector<1x256xf32>
      %c17_i32_136 = arith.constant 17 : i32
      %834 = tpu.dynamic_rotate %677 by %c17_i32_136 dim 1 : vector<1x256xf32>, i32 -> vector<1x256xf32>
      %835 = vector.broadcast %87 : f32 to vector<1x256xf32>
      %836 = arith.mulf %835, %34 : vector<1x256xf32>
      %837 = arith.mulf %836, %834 : vector<1x256xf32>
      %838 = arith.addf %833, %837 : vector<1x256xf32>
      %c1_i32_137 = arith.constant 1 : i32
      %839 = tpu.dynamic_rotate %677 by %c1_i32_137 dim 1 : vector<1x256xf32>, i32 -> vector<1x256xf32>
      %840 = vector.broadcast %94 : f32 to vector<1x256xf32>
      %841 = arith.mulf %840, %839 : vector<1x256xf32>
      %842 = arith.addf %838, %841 : vector<1x256xf32>
      %c241_i32_138 = arith.constant 241 : i32
      %843 = tpu.dynamic_rotate %677 by %c241_i32_138 dim 1 : vector<1x256xf32>, i32 -> vector<1x256xf32>
      %844 = vector.broadcast %101 : f32 to vector<1x256xf32>
      %845 = arith.mulf %844, %38 : vector<1x256xf32>
      %846 = arith.mulf %845, %843 : vector<1x256xf32>
      %847 = arith.addf %842, %846 : vector<1x256xf32>
      %c225_i32_139 = arith.constant 225 : i32
      %848 = tpu.dynamic_rotate %677 by %c225_i32_139 dim 1 : vector<1x256xf32>, i32 -> vector<1x256xf32>
      %849 = vector.broadcast %108 : f32 to vector<1x256xf32>
      %850 = arith.mulf %849, %42 : vector<1x256xf32>
      %851 = arith.mulf %850, %848 : vector<1x256xf32>
      %852 = arith.addf %847, %851 : vector<1x256xf32>
      %c209_i32_140 = arith.constant 209 : i32
      %853 = tpu.dynamic_rotate %677 by %c209_i32_140 dim 1 : vector<1x256xf32>, i32 -> vector<1x256xf32>
      %854 = vector.broadcast %115 : f32 to vector<1x256xf32>
      %855 = arith.mulf %854, %46 : vector<1x256xf32>
      %856 = arith.mulf %855, %853 : vector<1x256xf32>
      %857 = arith.addf %852, %856 : vector<1x256xf32>
      %c49_i32_141 = arith.constant 49 : i32
      %858 = tpu.dynamic_rotate %679 by %c49_i32_141 dim 1 : vector<1x256xf32>, i32 -> vector<1x256xf32>
      %859 = vector.broadcast %122 : f32 to vector<1x256xf32>
      %860 = arith.mulf %859, %26 : vector<1x256xf32>
      %861 = arith.mulf %860, %858 : vector<1x256xf32>
      %862 = arith.addf %857, %861 : vector<1x256xf32>
      %c33_i32_142 = arith.constant 33 : i32
      %863 = tpu.dynamic_rotate %679 by %c33_i32_142 dim 1 : vector<1x256xf32>, i32 -> vector<1x256xf32>
      %864 = vector.broadcast %129 : f32 to vector<1x256xf32>
      %865 = arith.mulf %864, %30 : vector<1x256xf32>
      %866 = arith.mulf %865, %863 : vector<1x256xf32>
      %867 = arith.addf %862, %866 : vector<1x256xf32>
      %c17_i32_143 = arith.constant 17 : i32
      %868 = tpu.dynamic_rotate %679 by %c17_i32_143 dim 1 : vector<1x256xf32>, i32 -> vector<1x256xf32>
      %869 = vector.broadcast %136 : f32 to vector<1x256xf32>
      %870 = arith.mulf %869, %34 : vector<1x256xf32>
      %871 = arith.mulf %870, %868 : vector<1x256xf32>
      %872 = arith.addf %867, %871 : vector<1x256xf32>
      %c1_i32_144 = arith.constant 1 : i32
      %873 = tpu.dynamic_rotate %679 by %c1_i32_144 dim 1 : vector<1x256xf32>, i32 -> vector<1x256xf32>
      %874 = vector.broadcast %143 : f32 to vector<1x256xf32>
      %875 = arith.mulf %874, %873 : vector<1x256xf32>
      %876 = arith.addf %872, %875 : vector<1x256xf32>
      %c241_i32_145 = arith.constant 241 : i32
      %877 = tpu.dynamic_rotate %679 by %c241_i32_145 dim 1 : vector<1x256xf32>, i32 -> vector<1x256xf32>
      %878 = vector.broadcast %150 : f32 to vector<1x256xf32>
      %879 = arith.mulf %878, %38 : vector<1x256xf32>
      %880 = arith.mulf %879, %877 : vector<1x256xf32>
      %881 = arith.addf %876, %880 : vector<1x256xf32>
      %c225_i32_146 = arith.constant 225 : i32
      %882 = tpu.dynamic_rotate %679 by %c225_i32_146 dim 1 : vector<1x256xf32>, i32 -> vector<1x256xf32>
      %883 = vector.broadcast %157 : f32 to vector<1x256xf32>
      %884 = arith.mulf %883, %42 : vector<1x256xf32>
      %885 = arith.mulf %884, %882 : vector<1x256xf32>
      %886 = arith.addf %881, %885 : vector<1x256xf32>
      %c209_i32_147 = arith.constant 209 : i32
      %887 = tpu.dynamic_rotate %679 by %c209_i32_147 dim 1 : vector<1x256xf32>, i32 -> vector<1x256xf32>
      %888 = vector.broadcast %164 : f32 to vector<1x256xf32>
      %889 = arith.mulf %888, %46 : vector<1x256xf32>
      %890 = arith.mulf %889, %887 : vector<1x256xf32>
      %891 = arith.addf %886, %890 : vector<1x256xf32>
      %892 = arith.mulf %58, %891 : vector<1x256xf32>
      %893 = arith.addf %822, %892 : vector<1x256xf32>
      %cst_148 = arith.constant 0.000000e+00 : f32
      %894 = vector.broadcast %cst_148 : f32 to vector<1x256xf32>
      %c48_i32_149 = arith.constant 48 : i32
      %895 = tpu.dynamic_rotate %677 by %c48_i32_149 dim 1 : vector<1x256xf32>, i32 -> vector<1x256xf32>
      %896 = vector.broadcast %74 : f32 to vector<1x256xf32>
      %897 = arith.mulf %896, %26 : vector<1x256xf32>
      %898 = arith.mulf %897, %895 : vector<1x256xf32>
      %899 = arith.addf %894, %898 : vector<1x256xf32>
      %c32_i32_150 = arith.constant 32 : i32
      %900 = tpu.dynamic_rotate %677 by %c32_i32_150 dim 1 : vector<1x256xf32>, i32 -> vector<1x256xf32>
      %901 = vector.broadcast %81 : f32 to vector<1x256xf32>
      %902 = arith.mulf %901, %30 : vector<1x256xf32>
      %903 = arith.mulf %902, %900 : vector<1x256xf32>
      %904 = arith.addf %899, %903 : vector<1x256xf32>
      %c16_i32_151 = arith.constant 16 : i32
      %905 = tpu.dynamic_rotate %677 by %c16_i32_151 dim 1 : vector<1x256xf32>, i32 -> vector<1x256xf32>
      %906 = vector.broadcast %88 : f32 to vector<1x256xf32>
      %907 = arith.mulf %906, %34 : vector<1x256xf32>
      %908 = arith.mulf %907, %905 : vector<1x256xf32>
      %909 = arith.addf %904, %908 : vector<1x256xf32>
      %910 = vector.broadcast %95 : f32 to vector<1x256xf32>
      %911 = arith.mulf %910, %677 : vector<1x256xf32>
      %912 = arith.addf %909, %911 : vector<1x256xf32>
      %c240_i32_152 = arith.constant 240 : i32
      %913 = tpu.dynamic_rotate %677 by %c240_i32_152 dim 1 : vector<1x256xf32>, i32 -> vector<1x256xf32>
      %914 = vector.broadcast %102 : f32 to vector<1x256xf32>
      %915 = arith.mulf %914, %38 : vector<1x256xf32>
      %916 = arith.mulf %915, %913 : vector<1x256xf32>
      %917 = arith.addf %912, %916 : vector<1x256xf32>
      %c224_i32_153 = arith.constant 224 : i32
      %918 = tpu.dynamic_rotate %677 by %c224_i32_153 dim 1 : vector<1x256xf32>, i32 -> vector<1x256xf32>
      %919 = vector.broadcast %109 : f32 to vector<1x256xf32>
      %920 = arith.mulf %919, %42 : vector<1x256xf32>
      %921 = arith.mulf %920, %918 : vector<1x256xf32>
      %922 = arith.addf %917, %921 : vector<1x256xf32>
      %c208_i32_154 = arith.constant 208 : i32
      %923 = tpu.dynamic_rotate %677 by %c208_i32_154 dim 1 : vector<1x256xf32>, i32 -> vector<1x256xf32>
      %924 = vector.broadcast %116 : f32 to vector<1x256xf32>
      %925 = arith.mulf %924, %46 : vector<1x256xf32>
      %926 = arith.mulf %925, %923 : vector<1x256xf32>
      %927 = arith.addf %922, %926 : vector<1x256xf32>
      %c48_i32_155 = arith.constant 48 : i32
      %928 = tpu.dynamic_rotate %679 by %c48_i32_155 dim 1 : vector<1x256xf32>, i32 -> vector<1x256xf32>
      %929 = vector.broadcast %123 : f32 to vector<1x256xf32>
      %930 = arith.mulf %929, %26 : vector<1x256xf32>
      %931 = arith.mulf %930, %928 : vector<1x256xf32>
      %932 = arith.addf %927, %931 : vector<1x256xf32>
      %c32_i32_156 = arith.constant 32 : i32
      %933 = tpu.dynamic_rotate %679 by %c32_i32_156 dim 1 : vector<1x256xf32>, i32 -> vector<1x256xf32>
      %934 = vector.broadcast %130 : f32 to vector<1x256xf32>
      %935 = arith.mulf %934, %30 : vector<1x256xf32>
      %936 = arith.mulf %935, %933 : vector<1x256xf32>
      %937 = arith.addf %932, %936 : vector<1x256xf32>
      %c16_i32_157 = arith.constant 16 : i32
      %938 = tpu.dynamic_rotate %679 by %c16_i32_157 dim 1 : vector<1x256xf32>, i32 -> vector<1x256xf32>
      %939 = vector.broadcast %137 : f32 to vector<1x256xf32>
      %940 = arith.mulf %939, %34 : vector<1x256xf32>
      %941 = arith.mulf %940, %938 : vector<1x256xf32>
      %942 = arith.addf %937, %941 : vector<1x256xf32>
      %943 = vector.broadcast %144 : f32 to vector<1x256xf32>
      %944 = arith.mulf %943, %679 : vector<1x256xf32>
      %945 = arith.addf %942, %944 : vector<1x256xf32>
      %c240_i32_158 = arith.constant 240 : i32
      %946 = tpu.dynamic_rotate %679 by %c240_i32_158 dim 1 : vector<1x256xf32>, i32 -> vector<1x256xf32>
      %947 = vector.broadcast %151 : f32 to vector<1x256xf32>
      %948 = arith.mulf %947, %38 : vector<1x256xf32>
      %949 = arith.mulf %948, %946 : vector<1x256xf32>
      %950 = arith.addf %945, %949 : vector<1x256xf32>
      %c224_i32_159 = arith.constant 224 : i32
      %951 = tpu.dynamic_rotate %679 by %c224_i32_159 dim 1 : vector<1x256xf32>, i32 -> vector<1x256xf32>
      %952 = vector.broadcast %158 : f32 to vector<1x256xf32>
      %953 = arith.mulf %952, %42 : vector<1x256xf32>
      %954 = arith.mulf %953, %951 : vector<1x256xf32>
      %955 = arith.addf %950, %954 : vector<1x256xf32>
      %c208_i32_160 = arith.constant 208 : i32
      %956 = tpu.dynamic_rotate %679 by %c208_i32_160 dim 1 : vector<1x256xf32>, i32 -> vector<1x256xf32>
      %957 = vector.broadcast %165 : f32 to vector<1x256xf32>
      %958 = arith.mulf %957, %46 : vector<1x256xf32>
      %959 = arith.mulf %958, %956 : vector<1x256xf32>
      %960 = arith.addf %955, %959 : vector<1x256xf32>
      %961 = arith.addf %893, %960 : vector<1x256xf32>
      %cst_161 = arith.constant 0.000000e+00 : f32
      %962 = vector.broadcast %cst_161 : f32 to vector<1x256xf32>
      %c47_i32_162 = arith.constant 47 : i32
      %963 = tpu.dynamic_rotate %677 by %c47_i32_162 dim 1 : vector<1x256xf32>, i32 -> vector<1x256xf32>
      %964 = vector.broadcast %75 : f32 to vector<1x256xf32>
      %965 = arith.mulf %964, %26 : vector<1x256xf32>
      %966 = arith.mulf %965, %963 : vector<1x256xf32>
      %967 = arith.addf %962, %966 : vector<1x256xf32>
      %c31_i32_163 = arith.constant 31 : i32
      %968 = tpu.dynamic_rotate %677 by %c31_i32_163 dim 1 : vector<1x256xf32>, i32 -> vector<1x256xf32>
      %969 = vector.broadcast %82 : f32 to vector<1x256xf32>
      %970 = arith.mulf %969, %30 : vector<1x256xf32>
      %971 = arith.mulf %970, %968 : vector<1x256xf32>
      %972 = arith.addf %967, %971 : vector<1x256xf32>
      %c15_i32_164 = arith.constant 15 : i32
      %973 = tpu.dynamic_rotate %677 by %c15_i32_164 dim 1 : vector<1x256xf32>, i32 -> vector<1x256xf32>
      %974 = vector.broadcast %89 : f32 to vector<1x256xf32>
      %975 = arith.mulf %974, %34 : vector<1x256xf32>
      %976 = arith.mulf %975, %973 : vector<1x256xf32>
      %977 = arith.addf %972, %976 : vector<1x256xf32>
      %c255_i32_165 = arith.constant 255 : i32
      %978 = tpu.dynamic_rotate %677 by %c255_i32_165 dim 1 : vector<1x256xf32>, i32 -> vector<1x256xf32>
      %979 = vector.broadcast %96 : f32 to vector<1x256xf32>
      %980 = arith.mulf %979, %978 : vector<1x256xf32>
      %981 = arith.addf %977, %980 : vector<1x256xf32>
      %c239_i32_166 = arith.constant 239 : i32
      %982 = tpu.dynamic_rotate %677 by %c239_i32_166 dim 1 : vector<1x256xf32>, i32 -> vector<1x256xf32>
      %983 = vector.broadcast %103 : f32 to vector<1x256xf32>
      %984 = arith.mulf %983, %38 : vector<1x256xf32>
      %985 = arith.mulf %984, %982 : vector<1x256xf32>
      %986 = arith.addf %981, %985 : vector<1x256xf32>
      %c223_i32_167 = arith.constant 223 : i32
      %987 = tpu.dynamic_rotate %677 by %c223_i32_167 dim 1 : vector<1x256xf32>, i32 -> vector<1x256xf32>
      %988 = vector.broadcast %110 : f32 to vector<1x256xf32>
      %989 = arith.mulf %988, %42 : vector<1x256xf32>
      %990 = arith.mulf %989, %987 : vector<1x256xf32>
      %991 = arith.addf %986, %990 : vector<1x256xf32>
      %c207_i32_168 = arith.constant 207 : i32
      %992 = tpu.dynamic_rotate %677 by %c207_i32_168 dim 1 : vector<1x256xf32>, i32 -> vector<1x256xf32>
      %993 = vector.broadcast %117 : f32 to vector<1x256xf32>
      %994 = arith.mulf %993, %46 : vector<1x256xf32>
      %995 = arith.mulf %994, %992 : vector<1x256xf32>
      %996 = arith.addf %991, %995 : vector<1x256xf32>
      %c47_i32_169 = arith.constant 47 : i32
      %997 = tpu.dynamic_rotate %679 by %c47_i32_169 dim 1 : vector<1x256xf32>, i32 -> vector<1x256xf32>
      %998 = vector.broadcast %124 : f32 to vector<1x256xf32>
      %999 = arith.mulf %998, %26 : vector<1x256xf32>
      %1000 = arith.mulf %999, %997 : vector<1x256xf32>
      %1001 = arith.addf %996, %1000 : vector<1x256xf32>
      %c31_i32_170 = arith.constant 31 : i32
      %1002 = tpu.dynamic_rotate %679 by %c31_i32_170 dim 1 : vector<1x256xf32>, i32 -> vector<1x256xf32>
      %1003 = vector.broadcast %131 : f32 to vector<1x256xf32>
      %1004 = arith.mulf %1003, %30 : vector<1x256xf32>
      %1005 = arith.mulf %1004, %1002 : vector<1x256xf32>
      %1006 = arith.addf %1001, %1005 : vector<1x256xf32>
      %c15_i32_171 = arith.constant 15 : i32
      %1007 = tpu.dynamic_rotate %679 by %c15_i32_171 dim 1 : vector<1x256xf32>, i32 -> vector<1x256xf32>
      %1008 = vector.broadcast %138 : f32 to vector<1x256xf32>
      %1009 = arith.mulf %1008, %34 : vector<1x256xf32>
      %1010 = arith.mulf %1009, %1007 : vector<1x256xf32>
      %1011 = arith.addf %1006, %1010 : vector<1x256xf32>
      %c255_i32_172 = arith.constant 255 : i32
      %1012 = tpu.dynamic_rotate %679 by %c255_i32_172 dim 1 : vector<1x256xf32>, i32 -> vector<1x256xf32>
      %1013 = vector.broadcast %145 : f32 to vector<1x256xf32>
      %1014 = arith.mulf %1013, %1012 : vector<1x256xf32>
      %1015 = arith.addf %1011, %1014 : vector<1x256xf32>
      %c239_i32_173 = arith.constant 239 : i32
      %1016 = tpu.dynamic_rotate %679 by %c239_i32_173 dim 1 : vector<1x256xf32>, i32 -> vector<1x256xf32>
      %1017 = vector.broadcast %152 : f32 to vector<1x256xf32>
      %1018 = arith.mulf %1017, %38 : vector<1x256xf32>
      %1019 = arith.mulf %1018, %1016 : vector<1x256xf32>
      %1020 = arith.addf %1015, %1019 : vector<1x256xf32>
      %c223_i32_174 = arith.constant 223 : i32
      %1021 = tpu.dynamic_rotate %679 by %c223_i32_174 dim 1 : vector<1x256xf32>, i32 -> vector<1x256xf32>
      %1022 = vector.broadcast %159 : f32 to vector<1x256xf32>
      %1023 = arith.mulf %1022, %42 : vector<1x256xf32>
      %1024 = arith.mulf %1023, %1021 : vector<1x256xf32>
      %1025 = arith.addf %1020, %1024 : vector<1x256xf32>
      %c207_i32_175 = arith.constant 207 : i32
      %1026 = tpu.dynamic_rotate %679 by %c207_i32_175 dim 1 : vector<1x256xf32>, i32 -> vector<1x256xf32>
      %1027 = vector.broadcast %166 : f32 to vector<1x256xf32>
      %1028 = arith.mulf %1027, %46 : vector<1x256xf32>
      %1029 = arith.mulf %1028, %1026 : vector<1x256xf32>
      %1030 = arith.addf %1025, %1029 : vector<1x256xf32>
      %1031 = arith.mulf %62, %1030 : vector<1x256xf32>
      %1032 = arith.addf %961, %1031 : vector<1x256xf32>
      %cst_176 = arith.constant 0.000000e+00 : f32
      %1033 = vector.broadcast %cst_176 : f32 to vector<1x256xf32>
      %c46_i32_177 = arith.constant 46 : i32
      %1034 = tpu.dynamic_rotate %677 by %c46_i32_177 dim 1 : vector<1x256xf32>, i32 -> vector<1x256xf32>
      %1035 = vector.broadcast %76 : f32 to vector<1x256xf32>
      %1036 = arith.mulf %1035, %26 : vector<1x256xf32>
      %1037 = arith.mulf %1036, %1034 : vector<1x256xf32>
      %1038 = arith.addf %1033, %1037 : vector<1x256xf32>
      %c30_i32_178 = arith.constant 30 : i32
      %1039 = tpu.dynamic_rotate %677 by %c30_i32_178 dim 1 : vector<1x256xf32>, i32 -> vector<1x256xf32>
      %1040 = vector.broadcast %83 : f32 to vector<1x256xf32>
      %1041 = arith.mulf %1040, %30 : vector<1x256xf32>
      %1042 = arith.mulf %1041, %1039 : vector<1x256xf32>
      %1043 = arith.addf %1038, %1042 : vector<1x256xf32>
      %c14_i32_179 = arith.constant 14 : i32
      %1044 = tpu.dynamic_rotate %677 by %c14_i32_179 dim 1 : vector<1x256xf32>, i32 -> vector<1x256xf32>
      %1045 = vector.broadcast %90 : f32 to vector<1x256xf32>
      %1046 = arith.mulf %1045, %34 : vector<1x256xf32>
      %1047 = arith.mulf %1046, %1044 : vector<1x256xf32>
      %1048 = arith.addf %1043, %1047 : vector<1x256xf32>
      %c254_i32_180 = arith.constant 254 : i32
      %1049 = tpu.dynamic_rotate %677 by %c254_i32_180 dim 1 : vector<1x256xf32>, i32 -> vector<1x256xf32>
      %1050 = vector.broadcast %97 : f32 to vector<1x256xf32>
      %1051 = arith.mulf %1050, %1049 : vector<1x256xf32>
      %1052 = arith.addf %1048, %1051 : vector<1x256xf32>
      %c238_i32_181 = arith.constant 238 : i32
      %1053 = tpu.dynamic_rotate %677 by %c238_i32_181 dim 1 : vector<1x256xf32>, i32 -> vector<1x256xf32>
      %1054 = vector.broadcast %104 : f32 to vector<1x256xf32>
      %1055 = arith.mulf %1054, %38 : vector<1x256xf32>
      %1056 = arith.mulf %1055, %1053 : vector<1x256xf32>
      %1057 = arith.addf %1052, %1056 : vector<1x256xf32>
      %c222_i32_182 = arith.constant 222 : i32
      %1058 = tpu.dynamic_rotate %677 by %c222_i32_182 dim 1 : vector<1x256xf32>, i32 -> vector<1x256xf32>
      %1059 = vector.broadcast %111 : f32 to vector<1x256xf32>
      %1060 = arith.mulf %1059, %42 : vector<1x256xf32>
      %1061 = arith.mulf %1060, %1058 : vector<1x256xf32>
      %1062 = arith.addf %1057, %1061 : vector<1x256xf32>
      %c206_i32_183 = arith.constant 206 : i32
      %1063 = tpu.dynamic_rotate %677 by %c206_i32_183 dim 1 : vector<1x256xf32>, i32 -> vector<1x256xf32>
      %1064 = vector.broadcast %118 : f32 to vector<1x256xf32>
      %1065 = arith.mulf %1064, %46 : vector<1x256xf32>
      %1066 = arith.mulf %1065, %1063 : vector<1x256xf32>
      %1067 = arith.addf %1062, %1066 : vector<1x256xf32>
      %c46_i32_184 = arith.constant 46 : i32
      %1068 = tpu.dynamic_rotate %679 by %c46_i32_184 dim 1 : vector<1x256xf32>, i32 -> vector<1x256xf32>
      %1069 = vector.broadcast %125 : f32 to vector<1x256xf32>
      %1070 = arith.mulf %1069, %26 : vector<1x256xf32>
      %1071 = arith.mulf %1070, %1068 : vector<1x256xf32>
      %1072 = arith.addf %1067, %1071 : vector<1x256xf32>
      %c30_i32_185 = arith.constant 30 : i32
      %1073 = tpu.dynamic_rotate %679 by %c30_i32_185 dim 1 : vector<1x256xf32>, i32 -> vector<1x256xf32>
      %1074 = vector.broadcast %132 : f32 to vector<1x256xf32>
      %1075 = arith.mulf %1074, %30 : vector<1x256xf32>
      %1076 = arith.mulf %1075, %1073 : vector<1x256xf32>
      %1077 = arith.addf %1072, %1076 : vector<1x256xf32>
      %c14_i32_186 = arith.constant 14 : i32
      %1078 = tpu.dynamic_rotate %679 by %c14_i32_186 dim 1 : vector<1x256xf32>, i32 -> vector<1x256xf32>
      %1079 = vector.broadcast %139 : f32 to vector<1x256xf32>
      %1080 = arith.mulf %1079, %34 : vector<1x256xf32>
      %1081 = arith.mulf %1080, %1078 : vector<1x256xf32>
      %1082 = arith.addf %1077, %1081 : vector<1x256xf32>
      %c254_i32_187 = arith.constant 254 : i32
      %1083 = tpu.dynamic_rotate %679 by %c254_i32_187 dim 1 : vector<1x256xf32>, i32 -> vector<1x256xf32>
      %1084 = vector.broadcast %146 : f32 to vector<1x256xf32>
      %1085 = arith.mulf %1084, %1083 : vector<1x256xf32>
      %1086 = arith.addf %1082, %1085 : vector<1x256xf32>
      %c238_i32_188 = arith.constant 238 : i32
      %1087 = tpu.dynamic_rotate %679 by %c238_i32_188 dim 1 : vector<1x256xf32>, i32 -> vector<1x256xf32>
      %1088 = vector.broadcast %153 : f32 to vector<1x256xf32>
      %1089 = arith.mulf %1088, %38 : vector<1x256xf32>
      %1090 = arith.mulf %1089, %1087 : vector<1x256xf32>
      %1091 = arith.addf %1086, %1090 : vector<1x256xf32>
      %c222_i32_189 = arith.constant 222 : i32
      %1092 = tpu.dynamic_rotate %679 by %c222_i32_189 dim 1 : vector<1x256xf32>, i32 -> vector<1x256xf32>
      %1093 = vector.broadcast %160 : f32 to vector<1x256xf32>
      %1094 = arith.mulf %1093, %42 : vector<1x256xf32>
      %1095 = arith.mulf %1094, %1092 : vector<1x256xf32>
      %1096 = arith.addf %1091, %1095 : vector<1x256xf32>
      %c206_i32_190 = arith.constant 206 : i32
      %1097 = tpu.dynamic_rotate %679 by %c206_i32_190 dim 1 : vector<1x256xf32>, i32 -> vector<1x256xf32>
      %1098 = vector.broadcast %167 : f32 to vector<1x256xf32>
      %1099 = arith.mulf %1098, %46 : vector<1x256xf32>
      %1100 = arith.mulf %1099, %1097 : vector<1x256xf32>
      %1101 = arith.addf %1096, %1100 : vector<1x256xf32>
      %1102 = arith.mulf %66, %1101 : vector<1x256xf32>
      %1103 = arith.addf %1032, %1102 : vector<1x256xf32>
      %cst_191 = arith.constant 0.000000e+00 : f32
      %1104 = vector.broadcast %cst_191 : f32 to vector<1x256xf32>
      %c45_i32_192 = arith.constant 45 : i32
      %1105 = tpu.dynamic_rotate %677 by %c45_i32_192 dim 1 : vector<1x256xf32>, i32 -> vector<1x256xf32>
      %1106 = vector.broadcast %77 : f32 to vector<1x256xf32>
      %1107 = arith.mulf %1106, %26 : vector<1x256xf32>
      %1108 = arith.mulf %1107, %1105 : vector<1x256xf32>
      %1109 = arith.addf %1104, %1108 : vector<1x256xf32>
      %c29_i32_193 = arith.constant 29 : i32
      %1110 = tpu.dynamic_rotate %677 by %c29_i32_193 dim 1 : vector<1x256xf32>, i32 -> vector<1x256xf32>
      %1111 = vector.broadcast %84 : f32 to vector<1x256xf32>
      %1112 = arith.mulf %1111, %30 : vector<1x256xf32>
      %1113 = arith.mulf %1112, %1110 : vector<1x256xf32>
      %1114 = arith.addf %1109, %1113 : vector<1x256xf32>
      %c13_i32_194 = arith.constant 13 : i32
      %1115 = tpu.dynamic_rotate %677 by %c13_i32_194 dim 1 : vector<1x256xf32>, i32 -> vector<1x256xf32>
      %1116 = vector.broadcast %91 : f32 to vector<1x256xf32>
      %1117 = arith.mulf %1116, %34 : vector<1x256xf32>
      %1118 = arith.mulf %1117, %1115 : vector<1x256xf32>
      %1119 = arith.addf %1114, %1118 : vector<1x256xf32>
      %c253_i32_195 = arith.constant 253 : i32
      %1120 = tpu.dynamic_rotate %677 by %c253_i32_195 dim 1 : vector<1x256xf32>, i32 -> vector<1x256xf32>
      %1121 = vector.broadcast %98 : f32 to vector<1x256xf32>
      %1122 = arith.mulf %1121, %1120 : vector<1x256xf32>
      %1123 = arith.addf %1119, %1122 : vector<1x256xf32>
      %c237_i32_196 = arith.constant 237 : i32
      %1124 = tpu.dynamic_rotate %677 by %c237_i32_196 dim 1 : vector<1x256xf32>, i32 -> vector<1x256xf32>
      %1125 = vector.broadcast %105 : f32 to vector<1x256xf32>
      %1126 = arith.mulf %1125, %38 : vector<1x256xf32>
      %1127 = arith.mulf %1126, %1124 : vector<1x256xf32>
      %1128 = arith.addf %1123, %1127 : vector<1x256xf32>
      %c221_i32_197 = arith.constant 221 : i32
      %1129 = tpu.dynamic_rotate %677 by %c221_i32_197 dim 1 : vector<1x256xf32>, i32 -> vector<1x256xf32>
      %1130 = vector.broadcast %112 : f32 to vector<1x256xf32>
      %1131 = arith.mulf %1130, %42 : vector<1x256xf32>
      %1132 = arith.mulf %1131, %1129 : vector<1x256xf32>
      %1133 = arith.addf %1128, %1132 : vector<1x256xf32>
      %c205_i32_198 = arith.constant 205 : i32
      %1134 = tpu.dynamic_rotate %677 by %c205_i32_198 dim 1 : vector<1x256xf32>, i32 -> vector<1x256xf32>
      %1135 = vector.broadcast %119 : f32 to vector<1x256xf32>
      %1136 = arith.mulf %1135, %46 : vector<1x256xf32>
      %1137 = arith.mulf %1136, %1134 : vector<1x256xf32>
      %1138 = arith.addf %1133, %1137 : vector<1x256xf32>
      %c45_i32_199 = arith.constant 45 : i32
      %1139 = tpu.dynamic_rotate %679 by %c45_i32_199 dim 1 : vector<1x256xf32>, i32 -> vector<1x256xf32>
      %1140 = vector.broadcast %126 : f32 to vector<1x256xf32>
      %1141 = arith.mulf %1140, %26 : vector<1x256xf32>
      %1142 = arith.mulf %1141, %1139 : vector<1x256xf32>
      %1143 = arith.addf %1138, %1142 : vector<1x256xf32>
      %c29_i32_200 = arith.constant 29 : i32
      %1144 = tpu.dynamic_rotate %679 by %c29_i32_200 dim 1 : vector<1x256xf32>, i32 -> vector<1x256xf32>
      %1145 = vector.broadcast %133 : f32 to vector<1x256xf32>
      %1146 = arith.mulf %1145, %30 : vector<1x256xf32>
      %1147 = arith.mulf %1146, %1144 : vector<1x256xf32>
      %1148 = arith.addf %1143, %1147 : vector<1x256xf32>
      %c13_i32_201 = arith.constant 13 : i32
      %1149 = tpu.dynamic_rotate %679 by %c13_i32_201 dim 1 : vector<1x256xf32>, i32 -> vector<1x256xf32>
      %1150 = vector.broadcast %140 : f32 to vector<1x256xf32>
      %1151 = arith.mulf %1150, %34 : vector<1x256xf32>
      %1152 = arith.mulf %1151, %1149 : vector<1x256xf32>
      %1153 = arith.addf %1148, %1152 : vector<1x256xf32>
      %c253_i32_202 = arith.constant 253 : i32
      %1154 = tpu.dynamic_rotate %679 by %c253_i32_202 dim 1 : vector<1x256xf32>, i32 -> vector<1x256xf32>
      %1155 = vector.broadcast %147 : f32 to vector<1x256xf32>
      %1156 = arith.mulf %1155, %1154 : vector<1x256xf32>
      %1157 = arith.addf %1153, %1156 : vector<1x256xf32>
      %c237_i32_203 = arith.constant 237 : i32
      %1158 = tpu.dynamic_rotate %679 by %c237_i32_203 dim 1 : vector<1x256xf32>, i32 -> vector<1x256xf32>
      %1159 = vector.broadcast %154 : f32 to vector<1x256xf32>
      %1160 = arith.mulf %1159, %38 : vector<1x256xf32>
      %1161 = arith.mulf %1160, %1158 : vector<1x256xf32>
      %1162 = arith.addf %1157, %1161 : vector<1x256xf32>
      %c221_i32_204 = arith.constant 221 : i32
      %1163 = tpu.dynamic_rotate %679 by %c221_i32_204 dim 1 : vector<1x256xf32>, i32 -> vector<1x256xf32>
      %1164 = vector.broadcast %161 : f32 to vector<1x256xf32>
      %1165 = arith.mulf %1164, %42 : vector<1x256xf32>
      %1166 = arith.mulf %1165, %1163 : vector<1x256xf32>
      %1167 = arith.addf %1162, %1166 : vector<1x256xf32>
      %c205_i32_205 = arith.constant 205 : i32
      %1168 = tpu.dynamic_rotate %679 by %c205_i32_205 dim 1 : vector<1x256xf32>, i32 -> vector<1x256xf32>
      %1169 = vector.broadcast %168 : f32 to vector<1x256xf32>
      %1170 = arith.mulf %1169, %46 : vector<1x256xf32>
      %1171 = arith.mulf %1170, %1168 : vector<1x256xf32>
      %1172 = arith.addf %1167, %1171 : vector<1x256xf32>
      %1173 = arith.mulf %70, %1172 : vector<1x256xf32>
      %1174 = arith.addf %1103, %1173 : vector<1x256xf32>
      %1175 = arith.negf %1174 : vector<1x256xf32>
      %1176 = math.exp %1175 : vector<1x256xf32>
      %cst_206 = arith.constant 1.000000e+00 : f32
      %1177 = vector.broadcast %cst_206 : f32 to vector<1x256xf32>
      %1178 = arith.addf %1177, %1176 : vector<1x256xf32>
      %1179 = arith.divf %1177, %1178 : vector<1x256xf32>
      %c1_207 = arith.constant 1 : index
      %c0_208 = arith.constant 0 : index
      %c0_209 = arith.constant 0 : index
      %1180 = vector.load %arg6[%c1_207, %c0_208, %c0_209] : memref<2x1x256xf32, #tpu.memory_space<vmem>>, vector<1x1x256xf32>
      %1181 = vector.shape_cast %1180 : vector<1x1x256xf32> to vector<1x256xf32>
      %1182 = vector.shape_cast %1179 : vector<1x256xf32> to vector<1x1x256xf32>
      tpu.vector_store %arg6[%c1_207, %c0_208, %c0_209], %1182 {strides = array<i32>} : memref<2x1x256xf32, #tpu.memory_space<vmem>>, vector<1x1x256xf32>,
    } else {
    }
    return
  }
  func.func @transform_0(%arg0: i32, %arg1: i32) -> i32 {
    %c0_i32 = arith.constant 0 : i32
    %c0_i32_0 = arith.constant 0 : i32
    return %c0_i32 : i32
  }
  func.func @transform_1(%arg0: i32, %arg1: i32) -> (i32, i32) {
    %c0_i32 = arith.constant 0 : i32
    %c0_i32_0 = arith.constant 0 : i32
    %c0_i32_1 = arith.constant 0 : i32
    return %c0_i32, %c0_i32_0 : i32, i32
  }
  func.func @transform_2(%arg0: i32, %arg1: i32) -> (i32, i32) {
    %c0_i32 = arith.constant 0 : i32
    %c0_i32_0 = arith.constant 0 : i32
    %c0_i32_1 = arith.constant 0 : i32
    return %c0_i32, %c0_i32_0 : i32, i32
  }
  func.func @transform_3(%arg0: i32, %arg1: i32) -> (i32, i32, i32) {
    %c0_i32 = arith.constant 0 : i32
    %c0_i32_0 = arith.constant 0 : i32
    return %arg0, %arg1, %c0_i32 : i32, i32, i32
  }
  func.func @transform_4(%arg0: i32, %arg1: i32) -> (i32, i32, i32) {
    %c0_i32 = arith.constant 0 : i32
    %c0_i32_0 = arith.constant 0 : i32
    %c0_i32_1 = arith.constant 0 : i32
    return %arg0, %c0_i32, %c0_i32_0 : i32, i32, i32
  }
}

</mosaic_0001>

<llo_original>
// kernel: tpu_custom_call.1
$region0: #{tpu_custom_call.1}
  #allocation0 [shape = 'u32[]', space=smem, size = 0x4, offset = 0x4, fixed_abs, tag = 'smem constant byte address 0x4 - core index']
  #allocation1 [shape = 'u32[144,128]{1,0:T(1,128)}', space=vmem, size = 0x12000, scoped, tag = 'internal scratch']
  #allocation2 [shape = 'f32[2,1,256]{2,1,0:T(1,128)}', space=vmem, size = 0x800, scoped, tag = 'scratch operand']
  #allocation3 [shape = 'f32[2,1,256]{2,1,0:T(1,128)}', space=vmem, size = 0x800, scoped, tag = 'scratch operand']
  %s0 = inlined_call_operand.hbm [shape: f32[98], index: 0, kind: input, shape index: {}]
  %s1 = inlined_call_operand.vmem [shape: f32[1,256], index: 1, kind: input, shape index: {}]
  %s2 = inlined_call_operand.vmem [shape: f32[1,256], index: 2, kind: input, shape index: {}]
  %s3 = inlined_call_operand.hbm [shape: f32[2,4,256], index: 3, kind: input, shape index: {}]
  %s4 = inlined_call_operand.hbm [shape: f32[2,1,256], index: 4, kind: output, shape index: {}]
  %s5 = sld [smem:[#allocation0]]
  $region46: #{tpu_custom_call.1} parent=0
    _
  %s7 = ssub.s32 1, %s5
  %s8 = scalar_select 0, %s7, %s5
  $region1: #{tpu_custom_call.1} parent=0
    #allocation4 [shape = 'u8[512]{0}', space=smem, size = 0x200, scoped, tag = 'input window, operand 0, single buffered']
    #allocation5 [shape = 's32[1]{0}', space=sflag, size = 0x4, scoped, tag = 'scoped memory for tpu_custom_call.1']
    #allocation6 [shape = 's32[1]{0}', space=sflag, size = 0x4, scoped, tag = 'scoped memory for tpu_custom_call.1']
    #allocation7 [shape = 's32[1]{0}', space=sflag, size = 0x4, scoped, tag = 'scoped memory for tpu_custom_call.1']
    #allocation8 [shape = 'u8[8192]{0}', space=vmem, size = 0x2000, scoped, tag = 'input window, operand 3, single buffered']
    #allocation9 [shape = 'u8[2048]{0}', space=vmem, size = 0x800, scoped, tag = 'output window, operand 0, single buffered']
    %9 = vsyncpa [#allocation7], 0
    %10 = vsyncpa [#allocation5], 0
    %11 = vsyncpa [#allocation6], 0
    // Predicated region
    $region2: #{tpu_custom_call.1} parent=1 // pred_check
      _
    $region3: #{tpu_custom_call.1} parent=1 // pred_check_branch
      %13 = sbr.rel (0) target = $region5
    $region4: #{tpu_custom_call.1} parent=1 // pred_region
      %s15 = ssub.s32 16, 16
      %16 = vsyncadd [#allocation7], %s15
      %19 = dma.hbm_to_smem %s0, 16, [#allocation4], [#allocation7]
    $region5: #{tpu_custom_call.1} parent=1 // pred_fallthru
      _
    // Predicated region
    $region6: #{tpu_custom_call.1} parent=1 // pred_check
      _
    $region7: #{tpu_custom_call.1} parent=1 // pred_check_branch
      %21 = sbr.rel (0) target = $region9
    $region8: #{tpu_custom_call.1} parent=1 // pred_region
      _
    $region9: #{tpu_custom_call.1} parent=1 // pred_fallthru
      _
    // Predicated region
    $region10: #{tpu_custom_call.1} parent=1 // pred_check
      _
    $region11: #{tpu_custom_call.1} parent=1 // pred_check_branch
      %23 = sbr.rel (0) target = $region13
    $region12: #{tpu_custom_call.1} parent=1 // pred_region
      _
    $region13: #{tpu_custom_call.1} parent=1 // pred_fallthru
      _
    // Predicated region
    $region14: #{tpu_custom_call.1} parent=1 // pred_check
      _
    $region15: #{tpu_custom_call.1} parent=1 // pred_check_branch
      %25 = sbr.rel (0) target = $region17
    $region16: #{tpu_custom_call.1} parent=1 // pred_region
      %s27 = ssub.s32 256, 256
      %28 = vsyncadd [#allocation5], %s27
      %s29 = sshll.u32 [#allocation8], 4
      %s30 = int_to_ptr.vmem [resolvable:$true] %s29
      %35 = dma.hbm_to_vmem [thread:$0]  %s3, 256, %s30, [#allocation5], 128, 128, 8
    $region17: #{tpu_custom_call.1} parent=1 // pred_fallthru
      _
    // Predicated region
    $region18: #{tpu_custom_call.1} parent=1 // pred_check
      _
    $region19: #{tpu_custom_call.1} parent=1 // pred_check_branch
      %37 = sbr.rel (0) target = $region21
    $region20: #{tpu_custom_call.1} parent=1 // pred_region
      %38 = dma.done [#allocation7], 16
    $region21: #{tpu_custom_call.1} parent=1 // pred_fallthru
      _
    // Predicated region
    $region22: #{tpu_custom_call.1} parent=1 // pred_check
      _
    $region23: #{tpu_custom_call.1} parent=1 // pred_check_branch
      %40 = sbr.rel (0) target = $region25
    $region24: #{tpu_custom_call.1} parent=1 // pred_region
      %41 = dma.done [#allocation5], 256
    $region25: #{tpu_custom_call.1} parent=1 // pred_fallthru
      _
    %42 = sfence
    %v43 = vld [vmem:[#allocation8] sm:$0xff]
    %v45 = vcombine.high %v43, %v43
    %vm47 = vcmask 1043456
    %v48 = vsel %vm47, %v43, 0.0
    %v49 = vrot.slane %v48, 4
    %v50 = vadd.f32 %v48, %v49
    %v51 = vrot.slane %v50, 2
    %v52 = vadd.f32 %v50, %v51
    %v53 = vrot.slane %v52, 1
    %v54 = vadd.f32 %v52, %v53
    %v55 = vsel %vm47, %v45, 0.0
    %v56 = vrot.slane %v55, 4
    %v57 = vadd.f32 %v55, %v56
    %v58 = vrot.slane %v57, 2
    %v59 = vadd.f32 %v57, %v58
    %v60 = vrot.slane %v59, 1
    %v61 = vadd.f32 %v59, %v60
    %v62 = vsel %vm47, %v43, -inf
    %v63 = vrot.slane %v62, 4
    %v64 = vmax.f32 %v62, %v63
    %v65 = vrot.slane %v64, 2
    %v66 = vmax.f32 %v64, %v65
    %v67 = vrot.slane %v66, 1
    %v68 = vmax.f32 %v66, %v67
    %v69 = vsel %vm47, %v45, -inf
    %v70 = vrot.slane %v69, 4
    %v71 = vmax.f32 %v69, %v70
    %v72 = vrot.slane %v71, 2
    %v73 = vmax.f32 %v71, %v72
    %v74 = vrot.slane %v73, 1
    %v75 = vmax.f32 %v73, %v74
    %s76 = scalar_lea.vmem [#allocation8], 8
    %v77 = vld [vmem:[%s76] sm:$0xff]
    %v79 = vcombine.high %v77, %v77
    %v81 = vsel %vm47, %v77, 0.0
    %v82 = vrot.slane %v81, 4
    %v83 = vadd.f32 %v81, %v82
    %v84 = vrot.slane %v83, 2
    %v85 = vadd.f32 %v83, %v84
    %v86 = vrot.slane %v85, 1
    %v87 = vadd.f32 %v85, %v86
    %v88 = vsel %vm47, %v79, 0.0
    %v89 = vrot.slane %v88, 4
    %v90 = vadd.f32 %v88, %v89
    %v91 = vrot.slane %v90, 2
    %v92 = vadd.f32 %v90, %v91
    %v93 = vrot.slane %v92, 1
    %v94 = vadd.f32 %v92, %v93
    %v95 = vsel %vm47, %v77, -inf
    %v96 = vrot.slane %v95, 4
    %v97 = vmax.f32 %v95, %v96
    %v98 = vrot.slane %v97, 2
    %v99 = vmax.f32 %v97, %v98
    %v100 = vrot.slane %v99, 1
    %v101 = vmax.f32 %v99, %v100
    %v102 = vsel %vm47, %v79, -inf
    %v103 = vrot.slane %v102, 4
    %v104 = vmax.f32 %v102, %v103
    %v105 = vrot.slane %v104, 2
    %v106 = vmax.f32 %v104, %v105
    %v107 = vrot.slane %v106, 1
    %v108 = vmax.f32 %v106, %v107
    %p109 = scmp.eq.s32.totalorder 0, 0
    // Predicated region
    $region26: #{tpu_custom_call.1} parent=1 // pred_check
      %p110 = pneg %p109
    $region27: #{tpu_custom_call.1} parent=1 // pred_check_branch
      %112 = sbr.rel (%p110) target = $region29
    $region28: #{tpu_custom_call.1} parent=1 // pred_region
      %v115 = vcombine.low %v54, %v61
      %v117 = vunpack.c.l.s4 1966171168
      %v118 = vunpack.c.0.s8 %v117
      %v119 = vlaneseq
      %v120 = vshrl.u32 %v119, 7
      %v121 = vsub.s32 %v118, %v120
      %v122 = vrot.slane %v115, %v121
      %v124 = vunpack.c.l.s4 1966171168
      %v125 = vunpack.c.0.s8 %v124
      %v126 = vlaneseq
      %v127 = vshrl.u32 %v126, 7
      %v128 = vsub.s32 %v125, %v127
      %v129 = vrot.slane %v122, %v128
      %v131 = vlaneseq
      %vm132 = vcmp.ge.s32.totalorder %v131, 0
      %vm133 = vcmp.lt.s32.totalorder %v131, 256
      %vm134 = vmand %vm132, %vm133
      %135 = vst.msk [vmem:[#allocation2] sm:$0x3] %vm134, %v129
      %v138 = vcombine.low %v68, %v75
      %v140 = vunpack.c.l.s4 1966171168
      %v141 = vunpack.c.0.s8 %v140
      %v142 = vlaneseq
      %v143 = vshrl.u32 %v142, 7
      %v144 = vsub.s32 %v141, %v143
      %v145 = vrot.slane %v138, %v144
      %v147 = vunpack.c.l.s4 1966171168
      %v148 = vunpack.c.0.s8 %v147
      %v149 = vlaneseq
      %v150 = vshrl.u32 %v149, 7
      %v151 = vsub.s32 %v148, %v150
      %v152 = vrot.slane %v145, %v151
      %154 = vst.msk [vmem:[#allocation3] sm:$0x3] %vm134, %v152
      %v157 = vcombine.low %v87, %v94
      %v159 = vunpack.c.l.s4 1966171168
      %v160 = vunpack.c.0.s8 %v159
      %v161 = vlaneseq
      %v162 = vshrl.u32 %v161, 7
      %v163 = vsub.s32 %v160, %v162
      %v164 = vrot.slane %v157, %v163
      %v166 = vunpack.c.l.s4 1966171168
      %v167 = vunpack.c.0.s8 %v166
      %v168 = vlaneseq
      %v169 = vshrl.u32 %v168, 7
      %v170 = vsub.s32 %v167, %v169
      %v171 = vrot.slane %v164, %v170
      %s173 = scalar_lea.vmem [#allocation2], 2
      %174 = vst.msk [vmem:[%s173] sm:$0x3] %vm134, %v171
      %v177 = vcombine.low %v101, %v108
      %v179 = vunpack.c.l.s4 1966171168
      %v180 = vunpack.c.0.s8 %v179
      %v181 = vlaneseq
      %v182 = vshrl.u32 %v181, 7
      %v183 = vsub.s32 %v180, %v182
      %v184 = vrot.slane %v177, %v183
      %v186 = vunpack.c.l.s4 1966171168
      %v187 = vunpack.c.0.s8 %v186
      %v188 = vlaneseq
      %v189 = vshrl.u32 %v188, 7
      %v190 = vsub.s32 %v187, %v189
      %v191 = vrot.slane %v184, %v190
      %s193 = scalar_lea.vmem [#allocation3], 2
      %194 = vst.msk [vmem:[%s193] sm:$0x3] %vm134, %v191
    $region29: #{tpu_custom_call.1} parent=1 // pred_fallthru
      _
    %p195 = scmp.gt.s32.totalorder 0, 0
    // Predicated region
    $region30: #{tpu_custom_call.1} parent=1 // pred_check
      %p196 = pneg %p195
    $region31: #{tpu_custom_call.1} parent=1 // pred_check_branch
      %198 = sbr.rel (%p196) target = $region33
    $region32: #{tpu_custom_call.1} parent=1 // pred_region
      %v199 = vld [vmem:[#allocation2] sm:$0x3]
      %v202 = vcombine.low %v54, %v61
      %v204 = vunpack.c.l.s4 1966171168
      %v205 = vunpack.c.0.s8 %v204
      %v206 = vlaneseq
      %v207 = vshrl.u32 %v206, 7
      %v208 = vsub.s32 %v205, %v207
      %v209 = vrot.slane %v202, %v208
      %v211 = vunpack.c.l.s4 1966171168
      %v212 = vunpack.c.0.s8 %v211
      %v213 = vlaneseq
      %v214 = vshrl.u32 %v213, 7
      %v215 = vsub.s32 %v212, %v214
      %v216 = vrot.slane %v209, %v215
      %v218 = vadd.f32 %v199, %v216
      %v219 = vlaneseq
      %vm220 = vcmp.ge.s32.totalorder %v219, 0
      %vm221 = vcmp.lt.s32.totalorder %v219, 256
      %vm222 = vmand %vm220, %vm221
      %223 = vst.msk [vmem:[#allocation2] sm:$0x3] %vm222, %v218
      %v224 = vld [vmem:[#allocation3] sm:$0x3]
      %v227 = vcombine.low %v68, %v75
      %v229 = vunpack.c.l.s4 1966171168
      %v230 = vunpack.c.0.s8 %v229
      %v231 = vlaneseq
      %v232 = vshrl.u32 %v231, 7
      %v233 = vsub.s32 %v230, %v232
      %v234 = vrot.slane %v227, %v233
      %v236 = vunpack.c.l.s4 1966171168
      %v237 = vunpack.c.0.s8 %v236
      %v238 = vlaneseq
      %v239 = vshrl.u32 %v238, 7
      %v240 = vsub.s32 %v237, %v239
      %v241 = vrot.slane %v234, %v240
      %v243 = vmax.f32 %v224, %v241
      %244 = vst.msk [vmem:[#allocation3] sm:$0x3] %vm222, %v243
      %s245 = scalar_lea.vmem [#allocation2], 2
      %v246 = vld [vmem:[%s245] sm:$0x3]
      %v249 = vcombine.low %v87, %v94
      %v251 = vunpack.c.l.s4 1966171168
      %v252 = vunpack.c.0.s8 %v251
      %v253 = vlaneseq
      %v254 = vshrl.u32 %v253, 7
      %v255 = vsub.s32 %v252, %v254
      %v256 = vrot.slane %v249, %v255
      %v258 = vunpack.c.l.s4 1966171168
      %v259 = vunpack.c.0.s8 %v258
      %v260 = vlaneseq
      %v261 = vshrl.u32 %v260, 7
      %v262 = vsub.s32 %v259, %v261
      %v263 = vrot.slane %v256, %v262
      %v265 = vadd.f32 %v246, %v263
      %266 = vst.msk [vmem:[%s245] sm:$0x3] %vm222, %v265
      %s267 = scalar_lea.vmem [#allocation3], 2
      %v268 = vld [vmem:[%s267] sm:$0x3]
      %v271 = vcombine.low %v101, %v108
      %v273 = vunpack.c.l.s4 1966171168
      %v274 = vunpack.c.0.s8 %v273
      %v275 = vlaneseq
      %v276 = vshrl.u32 %v275, 7
      %v277 = vsub.s32 %v274, %v276
      %v278 = vrot.slane %v271, %v277
      %v280 = vunpack.c.l.s4 1966171168
      %v281 = vunpack.c.0.s8 %v280
      %v282 = vlaneseq
      %v283 = vshrl.u32 %v282, 7
      %v284 = vsub.s32 %v281, %v283
      %v285 = vrot.slane %v278, %v284
      %v287 = vmax.f32 %v268, %v285
      %288 = vst.msk [vmem:[%s267] sm:$0x3] %vm222, %v287
    $region33: #{tpu_custom_call.1} parent=1 // pred_fallthru
      _
    // Predicated region
    $region34: #{tpu_custom_call.1} parent=1 // pred_check
      %p289 = pneg %p109
    $region35: #{tpu_custom_call.1} parent=1 // pred_check_branch
      %291 = sbr.rel (%p289) target = $region37
    $region36: #{tpu_custom_call.1} parent=1 // pred_region
      %v292 = vld [vmem:[%s1] sm:$0x3]
      %v293 = vld [vmem:[%s2] sm:$0x3]
      %vm294 = vcmp.ge.f32.partialorder %v292, 3.0
      %v295 = vsel %vm294, 1, 0
      %v296 = vcvt.s32.f32 %v295
      %vm297 = vcmp.ge.f32.partialorder %v292, 2.0
      %v298 = vsel %vm297, 1, 0
      %v299 = vcvt.s32.f32 %v298
      %vm300 = vcmp.ge.f32.partialorder %v292, 1.0
      %v301 = vsel %vm300, 1, 0
      %v302 = vcvt.s32.f32 %v301
      %vm303 = vcmp.lt.f32.partialorder %v292, 15.0
      %v304 = vsel %vm303, 1, 0
      %v305 = vcvt.s32.f32 %v304
      %vm306 = vcmp.lt.f32.partialorder %v292, 14.0
      %v307 = vsel %vm306, 1, 0
      %v308 = vcvt.s32.f32 %v307
      %vm309 = vcmp.lt.f32.partialorder %v292, 13.0
      %v310 = vsel %vm309, 1, 0
      %v311 = vcvt.s32.f32 %v310
      %vm312 = vcmp.ge.f32.partialorder %v293, 3.0
      %v313 = vsel %vm312, 1, 0
      %v314 = vcvt.s32.f32 %v313
      %vm315 = vcmp.ge.f32.partialorder %v293, 2.0
      %v316 = vsel %vm315, 1, 0
      %v317 = vcvt.s32.f32 %v316
      %vm318 = vcmp.ge.f32.partialorder %v293, 1.0
      %v319 = vsel %vm318, 1, 0
      %v320 = vcvt.s32.f32 %v319
      %vm321 = vcmp.lt.f32.partialorder %v293, 15.0
      %v322 = vsel %vm321, 1, 0
      %v323 = vcvt.s32.f32 %v322
      %vm324 = vcmp.lt.f32.partialorder %v293, 14.0
      %v325 = vsel %vm324, 1, 0
      %v326 = vcvt.s32.f32 %v325
      %vm327 = vcmp.lt.f32.partialorder %v293, 13.0
      %v328 = vsel %vm327, 1, 0
      %v329 = vcvt.s32.f32 %v328
      %s330 = sld [smem:[#allocation4]]
      %s331 = sld [smem:[#allocation4 + $0x1]]
      %s332 = sld [smem:[#allocation4 + $0x2]]
      %s333 = sld [smem:[#allocation4 + $0x3]]
      %s334 = sld [smem:[#allocation4 + $0x4]]
      %s335 = sld [smem:[#allocation4 + $0x5]]
      %s336 = sld [smem:[#allocation4 + $0x6]]
      %s337 = sld [smem:[#allocation4 + $0x7]]
      %s338 = sld [smem:[#allocation4 + $0x8]]
      %s339 = sld [smem:[#allocation4 + $0x9]]
      %s340 = sld [smem:[#allocation4 + $0xa]]
      %s341 = sld [smem:[#allocation4 + $0xb]]
      %s342 = sld [smem:[#allocation4 + $0xc]]
      %s343 = sld [smem:[#allocation4 + $0xd]]
      %s344 = sld [smem:[#allocation4 + $0xe]]
      %s345 = sld [smem:[#allocation4 + $0xf]]
      %s346 = sld [smem:[#allocation4 + $0x10]]
      %s347 = sld [smem:[#allocation4 + $0x11]]
      %s348 = sld [smem:[#allocation4 + $0x12]]
      %s349 = sld [smem:[#allocation4 + $0x13]]
      %s350 = sld [smem:[#allocation4 + $0x14]]
      %s351 = sld [smem:[#allocation4 + $0x15]]
      %s352 = sld [smem:[#allocation4 + $0x16]]
      %s353 = sld [smem:[#allocation4 + $0x17]]
      %s354 = sld [smem:[#allocation4 + $0x18]]
      %s355 = sld [smem:[#allocation4 + $0x19]]
      %s356 = sld [smem:[#allocation4 + $0x1a]]
      %s357 = sld [smem:[#allocation4 + $0x1b]]
      %s358 = sld [smem:[#allocation4 + $0x1c]]
      %s359 = sld [smem:[#allocation4 + $0x1d]]
      %s360 = sld [smem:[#allocation4 + $0x1e]]
      %s361 = sld [smem:[#allocation4 + $0x1f]]
      %s362 = sld [smem:[#allocation4 + $0x20]]
      %s363 = sld [smem:[#allocation4 + $0x21]]
      %s364 = sld [smem:[#allocation4 + $0x22]]
      %s365 = sld [smem:[#allocation4 + $0x23]]
      %s366 = sld [smem:[#allocation4 + $0x24]]
      %s367 = sld [smem:[#allocation4 + $0x25]]
      %s368 = sld [smem:[#allocation4 + $0x26]]
      %s369 = sld [smem:[#allocation4 + $0x27]]
      %s370 = sld [smem:[#allocation4 + $0x28]]
      %s371 = sld [smem:[#allocation4 + $0x29]]
      %s372 = sld [smem:[#allocation4 + $0x2a]]
      %s373 = sld [smem:[#allocation4 + $0x2b]]
      %s374 = sld [smem:[#allocation4 + $0x2c]]
      %s375 = sld [smem:[#allocation4 + $0x2d]]
      %s376 = sld [smem:[#allocation4 + $0x2e]]
      %s377 = sld [smem:[#allocation4 + $0x2f]]
      %s378 = sld [smem:[#allocation4 + $0x30]]
      %s379 = sld [smem:[#allocation4 + $0x31]]
      %s380 = sld [smem:[#allocation4 + $0x32]]
      %s381 = sld [smem:[#allocation4 + $0x33]]
      %s382 = sld [smem:[#allocation4 + $0x34]]
      %s383 = sld [smem:[#allocation4 + $0x35]]
      %s384 = sld [smem:[#allocation4 + $0x36]]
      %s385 = sld [smem:[#allocation4 + $0x37]]
      %s386 = sld [smem:[#allocation4 + $0x38]]
      %s387 = sld [smem:[#allocation4 + $0x39]]
      %s388 = sld [smem:[#allocation4 + $0x3a]]
      %s389 = sld [smem:[#allocation4 + $0x3b]]
      %s390 = sld [smem:[#allocation4 + $0x3c]]
      %s391 = sld [smem:[#allocation4 + $0x3d]]
      %s392 = sld [smem:[#allocation4 + $0x3e]]
      %s393 = sld [smem:[#allocation4 + $0x3f]]
      %s394 = sld [smem:[#allocation4 + $0x40]]
      %s395 = sld [smem:[#allocation4 + $0x41]]
      %s396 = sld [smem:[#allocation4 + $0x42]]
      %s397 = sld [smem:[#allocation4 + $0x43]]
      %s398 = sld [smem:[#allocation4 + $0x44]]
      %s399 = sld [smem:[#allocation4 + $0x45]]
      %s400 = sld [smem:[#allocation4 + $0x46]]
      %s401 = sld [smem:[#allocation4 + $0x47]]
      %s402 = sld [smem:[#allocation4 + $0x48]]
      %s403 = sld [smem:[#allocation4 + $0x49]]
      %s404 = sld [smem:[#allocation4 + $0x4a]]
      %s405 = sld [smem:[#allocation4 + $0x4b]]
      %s406 = sld [smem:[#allocation4 + $0x4c]]
      %s407 = sld [smem:[#allocation4 + $0x4d]]
      %s408 = sld [smem:[#allocation4 + $0x4e]]
      %s409 = sld [smem:[#allocation4 + $0x4f]]
      %s410 = sld [smem:[#allocation4 + $0x50]]
      %s411 = sld [smem:[#allocation4 + $0x51]]
      %s412 = sld [smem:[#allocation4 + $0x52]]
      %s413 = sld [smem:[#allocation4 + $0x53]]
      %s414 = sld [smem:[#allocation4 + $0x54]]
      %s415 = sld [smem:[#allocation4 + $0x55]]
      %s416 = sld [smem:[#allocation4 + $0x56]]
      %s417 = sld [smem:[#allocation4 + $0x57]]
      %s418 = sld [smem:[#allocation4 + $0x58]]
      %s419 = sld [smem:[#allocation4 + $0x59]]
      %s420 = sld [smem:[#allocation4 + $0x5a]]
      %s421 = sld [smem:[#allocation4 + $0x5b]]
      %s422 = sld [smem:[#allocation4 + $0x5c]]
      %s423 = sld [smem:[#allocation4 + $0x5d]]
      %s424 = sld [smem:[#allocation4 + $0x5e]]
      %s425 = sld [smem:[#allocation4 + $0x5f]]
      %s426 = sld [smem:[#allocation4 + $0x60]]
      %s427 = sld [smem:[#allocation4 + $0x61]]
      %v428 = vld [vmem:[#allocation2] sm:$0x3]
      %v429 = vld [vmem:[#allocation3] sm:$0x3]
      %v431 = vlaneseq
      %v432 = vshrl.u32 %v431, 7
      %v433 = vsub.s32 0, %v432
      %v434 = vrot.slane %v428, %v433
      %v435 = vlaneseq
      %v436 = vshrl.u32 %v435, 7
      %v437 = vsub.s32 1, %v436
      %v438 = vrot.slane %v428, %v437
      %441 = vrot.lane.b32.xlu0 %v434, 51
      %v442 = vpop.permute.xlu0 %441
      %443 = vrot.lane.b32.xlu0 %v438, 51
      %v444 = vpop.permute.xlu0 %443
      %v445 = vlaneseq
      %v446 = vand.u32 %v445, 127
      %vm447 = vcmp.lt.s32.totalorder %v446, 51
      %v448 = vsel %vm447, %v442, %v444
      %v449 = vsel %vm447, %v444, %v442
      %v450 = vstv %s330
      %v451 = vmul.f32 %v450, %v296
      %v454 = vcombine.low %v449, %v448
      %v456 = vunpack.c.l.s4 1966171168
      %v457 = vunpack.c.0.s8 %v456
      %v458 = vlaneseq
      %v459 = vshrl.u32 %v458, 7
      %v460 = vsub.s32 %v457, %v459
      %v461 = vrot.slane %v454, %v460
      %v463 = vunpack.c.l.s4 1966171168
      %v464 = vunpack.c.0.s8 %v463
      %v465 = vlaneseq
      %v466 = vshrl.u32 %v465, 7
      %v467 = vsub.s32 %v464, %v466
      %v468 = vrot.slane %v461, %v467
      %v470 = vmul.f32 %v451, %v468
      %v471 = vadd.f32 %v470, 0.0
      %472 = vrot.lane.b32.xlu0 %v434, 35
      %v473 = vpop.permute.xlu0 %472
      %474 = vrot.lane.b32.xlu0 %v438, 35
      %v475 = vpop.permute.xlu0 %474
      %vm476 = vcmp.lt.s32.totalorder %v446, 35
      %v477 = vsel %vm476, %v473, %v475
      %v478 = vsel %vm476, %v475, %v473
      %v479 = vstv %s337
      %v480 = vmul.f32 %v479, %v299
      %v483 = vcombine.low %v478, %v477
      %v485 = vunpack.c.l.s4 1966171168
      %v486 = vunpack.c.0.s8 %v485
      %v487 = vlaneseq
      %v488 = vshrl.u32 %v487, 7
      %v489 = vsub.s32 %v486, %v488
      %v490 = vrot.slane %v483, %v489
      %v492 = vunpack.c.l.s4 1966171168
      %v493 = vunpack.c.0.s8 %v492
      %v494 = vlaneseq
      %v495 = vshrl.u32 %v494, 7
      %v496 = vsub.s32 %v493, %v495
      %v497 = vrot.slane %v490, %v496
      %v499 = vmul.f32 %v480, %v497
      %v500 = vadd.f32 %v471, %v499
      %501 = vrot.lane.b32.xlu0 %v434, 19
      %v502 = vpop.permute.xlu0 %501
      %503 = vrot.lane.b32.xlu0 %v438, 19
      %v504 = vpop.permute.xlu0 %503
      %vm505 = vcmp.lt.s32.totalorder %v446, 19
      %v506 = vsel %vm505, %v502, %v504
      %v507 = vsel %vm505, %v504, %v502
      %v508 = vstv %s344
      %v509 = vmul.f32 %v508, %v302
      %v512 = vcombine.low %v507, %v506
      %v514 = vunpack.c.l.s4 1966171168
      %v515 = vunpack.c.0.s8 %v514
      %v516 = vlaneseq
      %v517 = vshrl.u32 %v516, 7
      %v518 = vsub.s32 %v515, %v517
      %v519 = vrot.slane %v512, %v518
      %v521 = vunpack.c.l.s4 1966171168
      %v522 = vunpack.c.0.s8 %v521
      %v523 = vlaneseq
      %v524 = vshrl.u32 %v523, 7
      %v525 = vsub.s32 %v522, %v524
      %v526 = vrot.slane %v519, %v525
      %v528 = vmul.f32 %v509, %v526
      %v529 = vadd.f32 %v500, %v528
      %530 = vrot.lane.b32.xlu0 %v434, 3
      %v531 = vpop.permute.xlu0 %530
      %532 = vrot.lane.b32.xlu0 %v438, 3
      %v533 = vpop.permute.xlu0 %532
      %vm534 = vcmp.lt.s32.totalorder %v446, 3
      %v535 = vsel %vm534, %v531, %v533
      %v536 = vsel %vm534, %v533, %v531
      %v537 = vstv %s351
      %v538 = vmul.f32 %v537, %v536
      %v539 = vmul.f32 %v537, %v535
      %v542 = vcombine.low %v538, %v539
      %v544 = vunpack.c.l.s4 1966171168
      %v545 = vunpack.c.0.s8 %v544
      %v546 = vlaneseq
      %v547 = vshrl.u32 %v546, 7
      %v548 = vsub.s32 %v545, %v547
      %v549 = vrot.slane %v542, %v548
      %v551 = vunpack.c.l.s4 1966171168
      %v552 = vunpack.c.0.s8 %v551
      %v553 = vlaneseq
      %v554 = vshrl.u32 %v553, 7
      %v555 = vsub.s32 %v552, %v554
      %v556 = vrot.slane %v549, %v555
      %v558 = vadd.f32 %v529, %v556
      %559 = vrot.lane.b32.xlu0 %v434, 115
      %v560 = vpop.permute.xlu0 %559
      %561 = vrot.lane.b32.xlu0 %v438, 115
      %v562 = vpop.permute.xlu0 %561
      %vm563 = vcmp.lt.s32.totalorder %v446, 115
      %v564 = vsel %vm563, %v560, %v562
      %v565 = vsel %vm563, %v562, %v560
      %v566 = vstv %s358
      %v567 = vmul.f32 %v566, %v305
      %v570 = vcombine.low %v564, %v565
      %v572 = vunpack.c.l.s4 1966171168
      %v573 = vunpack.c.0.s8 %v572
      %v574 = vlaneseq
      %v575 = vshrl.u32 %v574, 7
      %v576 = vsub.s32 %v573, %v575
      %v577 = vrot.slane %v570, %v576
      %v579 = vunpack.c.l.s4 1966171168
      %v580 = vunpack.c.0.s8 %v579
      %v581 = vlaneseq
      %v582 = vshrl.u32 %v581, 7
      %v583 = vsub.s32 %v580, %v582
      %v584 = vrot.slane %v577, %v583
      %v586 = vmul.f32 %v567, %v584
      %v587 = vadd.f32 %v558, %v586
      %588 = vrot.lane.b32.xlu0 %v434, 99
      %v589 = vpop.permute.xlu0 %588
      %590 = vrot.lane.b32.xlu0 %v438, 99
      %v591 = vpop.permute.xlu0 %590
      %vm592 = vcmp.lt.s32.totalorder %v446, 99
      %v593 = vsel %vm592, %v589, %v591
      %v594 = vsel %vm592, %v591, %v589
      %v595 = vstv %s365
      %v596 = vmul.f32 %v595, %v308
      %v599 = vcombine.low %v593, %v594
      %v601 = vunpack.c.l.s4 1966171168
      %v602 = vunpack.c.0.s8 %v601
      %v603 = vlaneseq
      %v604 = vshrl.u32 %v603, 7
      %v605 = vsub.s32 %v602, %v604
      %v606 = vrot.slane %v599, %v605
      %v608 = vunpack.c.l.s4 1966171168
      %v609 = vunpack.c.0.s8 %v608
      %v610 = vlaneseq
      %v611 = vshrl.u32 %v610, 7
      %v612 = vsub.s32 %v609, %v611
      %v613 = vrot.slane %v606, %v612
      %v615 = vmul.f32 %v596, %v613
      %v616 = vadd.f32 %v587, %v615
      %617 = vrot.lane.b32.xlu0 %v434, 83
      %v618 = vpop.permute.xlu0 %617
      %619 = vrot.lane.b32.xlu0 %v438, 83
      %v620 = vpop.permute.xlu0 %619
      %vm621 = vcmp.lt.s32.totalorder %v446, 83
      %v622 = vsel %vm621, %v618, %v620
      %v623 = vsel %vm621, %v620, %v618
      %v624 = vstv %s372
      %v625 = vmul.f32 %v624, %v311
      %v628 = vcombine.low %v622, %v623
      %v630 = vunpack.c.l.s4 1966171168
      %v631 = vunpack.c.0.s8 %v630
      %v632 = vlaneseq
      %v633 = vshrl.u32 %v632, 7
      %v634 = vsub.s32 %v631, %v633
      %v635 = vrot.slane %v628, %v634
      %v637 = vunpack.c.l.s4 1966171168
      %v638 = vunpack.c.0.s8 %v637
      %v639 = vlaneseq
      %v640 = vshrl.u32 %v639, 7
      %v641 = vsub.s32 %v638, %v640
      %v642 = vrot.slane %v635, %v641
      %v644 = vmul.f32 %v625, %v642
      %v645 = vadd.f32 %v616, %v644
      %v647 = vlaneseq
      %v648 = vshrl.u32 %v647, 7
      %v649 = vsub.s32 0, %v648
      %v650 = vrot.slane %v429, %v649
      %v651 = vlaneseq
      %v652 = vshrl.u32 %v651, 7
      %v653 = vsub.s32 1, %v652
      %v654 = vrot.slane %v429, %v653
      %657 = vrot.lane.b32.xlu0 %v650, 51
      %v658 = vpop.permute.xlu0 %657
      %659 = vrot.lane.b32.xlu0 %v654, 51
      %v660 = vpop.permute.xlu0 %659
      %v661 = vsel %vm447, %v658, %v660
      %v662 = vsel %vm447, %v660, %v658
      %v663 = vstv %s379
      %v664 = vmul.f32 %v663, %v296
      %v667 = vcombine.low %v662, %v661
      %v669 = vunpack.c.l.s4 1966171168
      %v670 = vunpack.c.0.s8 %v669
      %v671 = vlaneseq
      %v672 = vshrl.u32 %v671, 7
      %v673 = vsub.s32 %v670, %v672
      %v674 = vrot.slane %v667, %v673
      %v676 = vunpack.c.l.s4 1966171168
      %v677 = vunpack.c.0.s8 %v676
      %v678 = vlaneseq
      %v679 = vshrl.u32 %v678, 7
      %v680 = vsub.s32 %v677, %v679
      %v681 = vrot.slane %v674, %v680
      %v683 = vmul.f32 %v664, %v681
      %v684 = vadd.f32 %v645, %v683
      %685 = vrot.lane.b32.xlu0 %v650, 35
      %v686 = vpop.permute.xlu0 %685
      %687 = vrot.lane.b32.xlu0 %v654, 35
      %v688 = vpop.permute.xlu0 %687
      %v689 = vsel %vm476, %v686, %v688
      %v690 = vsel %vm476, %v688, %v686
      %v691 = vstv %s386
      %v692 = vmul.f32 %v691, %v299
      %v695 = vcombine.low %v690, %v689
      %v697 = vunpack.c.l.s4 1966171168
      %v698 = vunpack.c.0.s8 %v697
      %v699 = vlaneseq
      %v700 = vshrl.u32 %v699, 7
      %v701 = vsub.s32 %v698, %v700
      %v702 = vrot.slane %v695, %v701
      %v704 = vunpack.c.l.s4 1966171168
      %v705 = vunpack.c.0.s8 %v704
      %v706 = vlaneseq
      %v707 = vshrl.u32 %v706, 7
      %v708 = vsub.s32 %v705, %v707
      %v709 = vrot.slane %v702, %v708
      %v711 = vmul.f32 %v692, %v709
      %v712 = vadd.f32 %v684, %v711
      %713 = vrot.lane.b32.xlu0 %v650, 19
      %v714 = vpop.permute.xlu0 %713
      %715 = vrot.lane.b32.xlu0 %v654, 19
      %v716 = vpop.permute.xlu0 %715
      %v717 = vsel %vm505, %v714, %v716
      %v718 = vsel %vm505, %v716, %v714
      %v719 = vstv %s393
      %v720 = vmul.f32 %v719, %v302
      %v723 = vcombine.low %v718, %v717
      %v725 = vunpack.c.l.s4 1966171168
      %v726 = vunpack.c.0.s8 %v725
      %v727 = vlaneseq
      %v728 = vshrl.u32 %v727, 7
      %v729 = vsub.s32 %v726, %v728
      %v730 = vrot.slane %v723, %v729
      %v732 = vunpack.c.l.s4 1966171168
      %v733 = vunpack.c.0.s8 %v732
      %v734 = vlaneseq
      %v735 = vshrl.u32 %v734, 7
      %v736 = vsub.s32 %v733, %v735
      %v737 = vrot.slane %v730, %v736
      %v739 = vmul.f32 %v720, %v737
      %v740 = vadd.f32 %v712, %v739
      %741 = vrot.lane.b32.xlu0 %v650, 3
      %v742 = vpop.permute.xlu0 %741
      %743 = vrot.lane.b32.xlu0 %v654, 3
      %v744 = vpop.permute.xlu0 %743
      %v745 = vsel %vm534, %v742, %v744
      %v746 = vsel %vm534, %v744, %v742
      %v747 = vstv %s400
      %v748 = vmul.f32 %v747, %v746
      %v749 = vmul.f32 %v747, %v745
      %v752 = vcombine.low %v748, %v749
      %v754 = vunpack.c.l.s4 1966171168
      %v755 = vunpack.c.0.s8 %v754
      %v756 = vlaneseq
      %v757 = vshrl.u32 %v756, 7
      %v758 = vsub.s32 %v755, %v757
      %v759 = vrot.slane %v752, %v758
      %v761 = vunpack.c.l.s4 1966171168
      %v762 = vunpack.c.0.s8 %v761
      %v763 = vlaneseq
      %v764 = vshrl.u32 %v763, 7
      %v765 = vsub.s32 %v762, %v764
      %v766 = vrot.slane %v759, %v765
      %v768 = vadd.f32 %v740, %v766
      %769 = vrot.lane.b32.xlu0 %v650, 115
      %v770 = vpop.permute.xlu0 %769
      %771 = vrot.lane.b32.xlu0 %v654, 115
      %v772 = vpop.permute.xlu0 %771
      %v773 = vsel %vm563, %v770, %v772
      %v774 = vsel %vm563, %v772, %v770
      %v775 = vstv %s407
      %v776 = vmul.f32 %v775, %v305
      %v779 = vcombine.low %v773, %v774
      %v781 = vunpack.c.l.s4 1966171168
      %v782 = vunpack.c.0.s8 %v781
      %v783 = vlaneseq
      %v784 = vshrl.u32 %v783, 7
      %v785 = vsub.s32 %v782, %v784
      %v786 = vrot.slane %v779, %v785
      %v788 = vunpack.c.l.s4 1966171168
      %v789 = vunpack.c.0.s8 %v788
      %v790 = vlaneseq
      %v791 = vshrl.u32 %v790, 7
      %v792 = vsub.s32 %v789, %v791
      %v793 = vrot.slane %v786, %v792
      %v795 = vmul.f32 %v776, %v793
      %v796 = vadd.f32 %v768, %v795
      %797 = vrot.lane.b32.xlu0 %v650, 99
      %v798 = vpop.permute.xlu0 %797
      %799 = vrot.lane.b32.xlu0 %v654, 99
      %v800 = vpop.permute.xlu0 %799
      %v801 = vsel %vm592, %v798, %v800
      %v802 = vsel %vm592, %v800, %v798
      %v803 = vstv %s414
      %v804 = vmul.f32 %v803, %v308
      %v807 = vcombine.low %v801, %v802
      %v809 = vunpack.c.l.s4 1966171168
      %v810 = vunpack.c.0.s8 %v809
      %v811 = vlaneseq
      %v812 = vshrl.u32 %v811, 7
      %v813 = vsub.s32 %v810, %v812
      %v814 = vrot.slane %v807, %v813
      %v816 = vunpack.c.l.s4 1966171168
      %v817 = vunpack.c.0.s8 %v816
      %v818 = vlaneseq
      %v819 = vshrl.u32 %v818, 7
      %v820 = vsub.s32 %v817, %v819
      %v821 = vrot.slane %v814, %v820
      %v823 = vmul.f32 %v804, %v821
      %v824 = vadd.f32 %v796, %v823
      %825 = vrot.lane.b32.xlu0 %v650, 83
      %v826 = vpop.permute.xlu0 %825
      %827 = vrot.lane.b32.xlu0 %v654, 83
      %v828 = vpop.permute.xlu0 %827
      %v829 = vsel %vm621, %v826, %v828
      %v830 = vsel %vm621, %v828, %v826
      %v831 = vstv %s421
      %v832 = vmul.f32 %v831, %v311
      %v835 = vcombine.low %v829, %v830
      %v837 = vunpack.c.l.s4 1966171168
      %v838 = vunpack.c.0.s8 %v837
      %v839 = vlaneseq
      %v840 = vshrl.u32 %v839, 7
      %v841 = vsub.s32 %v838, %v840
      %v842 = vrot.slane %v835, %v841
      %v844 = vunpack.c.l.s4 1966171168
      %v845 = vunpack.c.0.s8 %v844
      %v846 = vlaneseq
      %v847 = vshrl.u32 %v846, 7
      %v848 = vsub.s32 %v845, %v847
      %v849 = vrot.slane %v842, %v848
      %v851 = vmul.f32 %v832, %v849
      %v852 = vadd.f32 %v824, %v851
      %v853 = vmul.f32 %v314, %v852
      %v854 = vadd.f32 %v853, 0.0
      %855 = vrot.lane.b32.xlu0 %v434, 50
      %v856 = vpop.permute.xlu0 %855
      %857 = vrot.lane.b32.xlu0 %v438, 50
      %v858 = vpop.permute.xlu0 %857
      %vm859 = vcmp.lt.s32.totalorder %v446, 50
      %v860 = vsel %vm859, %v856, %v858
      %v861 = vsel %vm859, %v858, %v856
      %v862 = vstv %s331
      %v863 = vmul.f32 %v862, %v296
      %v866 = vcombine.low %v861, %v860
      %v868 = vunpack.c.l.s4 1966171168
      %v869 = vunpack.c.0.s8 %v868
      %v870 = vlaneseq
      %v871 = vshrl.u32 %v870, 7
      %v872 = vsub.s32 %v869, %v871
      %v873 = vrot.slane %v866, %v872
      %v875 = vunpack.c.l.s4 1966171168
      %v876 = vunpack.c.0.s8 %v875
      %v877 = vlaneseq
      %v878 = vshrl.u32 %v877, 7
      %v879 = vsub.s32 %v876, %v878
      %v880 = vrot.slane %v873, %v879
      %v882 = vmul.f32 %v863, %v880
      %v883 = vadd.f32 %v882, 0.0
      %884 = vrot.lane.b32.xlu0 %v434, 34
      %v885 = vpop.permute.xlu0 %884
      %886 = vrot.lane.b32.xlu0 %v438, 34
      %v887 = vpop.permute.xlu0 %886
      %vm888 = vcmp.lt.s32.totalorder %v446, 34
      %v889 = vsel %vm888, %v885, %v887
      %v890 = vsel %vm888, %v887, %v885
      %v891 = vstv %s338
      %v892 = vmul.f32 %v891, %v299
      %v895 = vcombine.low %v890, %v889
      %v897 = vunpack.c.l.s4 1966171168
      %v898 = vunpack.c.0.s8 %v897
      %v899 = vlaneseq
      %v900 = vshrl.u32 %v899, 7
      %v901 = vsub.s32 %v898, %v900
      %v902 = vrot.slane %v895, %v901
      %v904 = vunpack.c.l.s4 1966171168
      %v905 = vunpack.c.0.s8 %v904
      %v906 = vlaneseq
      %v907 = vshrl.u32 %v906, 7
      %v908 = vsub.s32 %v905, %v907
      %v909 = vrot.slane %v902, %v908
      %v911 = vmul.f32 %v892, %v909
      %v912 = vadd.f32 %v883, %v911
      %913 = vrot.lane.b32.xlu0 %v434, 18
      %v914 = vpop.permute.xlu0 %913
      %915 = vrot.lane.b32.xlu0 %v438, 18
      %v916 = vpop.permute.xlu0 %915
      %vm917 = vcmp.lt.s32.totalorder %v446, 18
      %v918 = vsel %vm917, %v914, %v916
      %v919 = vsel %vm917, %v916, %v914
      %v920 = vstv %s345
      %v921 = vmul.f32 %v920, %v302
      %v924 = vcombine.low %v919, %v918
      %v926 = vunpack.c.l.s4 1966171168
      %v927 = vunpack.c.0.s8 %v926
      %v928 = vlaneseq
      %v929 = vshrl.u32 %v928, 7
      %v930 = vsub.s32 %v927, %v929
      %v931 = vrot.slane %v924, %v930
      %v933 = vunpack.c.l.s4 1966171168
      %v934 = vunpack.c.0.s8 %v933
      %v935 = vlaneseq
      %v936 = vshrl.u32 %v935, 7
      %v937 = vsub.s32 %v934, %v936
      %v938 = vrot.slane %v931, %v937
      %v940 = vmul.f32 %v921, %v938
      %v941 = vadd.f32 %v912, %v940
      %942 = vrot.lane.b32.xlu0 %v434, 2
      %v943 = vpop.permute.xlu0 %942
      %944 = vrot.lane.b32.xlu0 %v438, 2
      %v945 = vpop.permute.xlu0 %944
      %vm946 = vcmp.lt.s32.totalorder %v446, 2
      %v947 = vsel %vm946, %v943, %v945
      %v948 = vsel %vm946, %v945, %v943
      %v949 = vstv %s352
      %v950 = vmul.f32 %v949, %v948
      %v951 = vmul.f32 %v949, %v947
      %v954 = vcombine.low %v950, %v951
      %v956 = vunpack.c.l.s4 1966171168
      %v957 = vunpack.c.0.s8 %v956
      %v958 = vlaneseq
      %v959 = vshrl.u32 %v958, 7
      %v960 = vsub.s32 %v957, %v959
      %v961 = vrot.slane %v954, %v960
      %v963 = vunpack.c.l.s4 1966171168
      %v964 = vunpack.c.0.s8 %v963
      %v965 = vlaneseq
      %v966 = vshrl.u32 %v965, 7
      %v967 = vsub.s32 %v964, %v966
      %v968 = vrot.slane %v961, %v967
      %v970 = vadd.f32 %v941, %v968
      %971 = vrot.lane.b32.xlu0 %v434, 114
      %v972 = vpop.permute.xlu0 %971
      %973 = vrot.lane.b32.xlu0 %v438, 114
      %v974 = vpop.permute.xlu0 %973
      %vm975 = vcmp.lt.s32.totalorder %v446, 114
      %v976 = vsel %vm975, %v972, %v974
      %v977 = vsel %vm975, %v974, %v972
      %v978 = vstv %s359
      %v979 = vmul.f32 %v978, %v305
      %v982 = vcombine.low %v976, %v977
      %v984 = vunpack.c.l.s4 1966171168
      %v985 = vunpack.c.0.s8 %v984
      %v986 = vlaneseq
      %v987 = vshrl.u32 %v986, 7
      %v988 = vsub.s32 %v985, %v987
      %v989 = vrot.slane %v982, %v988
      %v991 = vunpack.c.l.s4 1966171168
      %v992 = vunpack.c.0.s8 %v991
      %v993 = vlaneseq
      %v994 = vshrl.u32 %v993, 7
      %v995 = vsub.s32 %v992, %v994
      %v996 = vrot.slane %v989, %v995
      %v998 = vmul.f32 %v979, %v996
      %v999 = vadd.f32 %v970, %v998
      %1000 = vrot.lane.b32.xlu0 %v434, 98
      %v1001 = vpop.permute.xlu0 %1000
      %1002 = vrot.lane.b32.xlu0 %v438, 98
      %v1003 = vpop.permute.xlu0 %1002
      %vm1004 = vcmp.lt.s32.totalorder %v446, 98
      %v1005 = vsel %vm1004, %v1001, %v1003
      %v1006 = vsel %vm1004, %v1003, %v1001
      %v1007 = vstv %s366
      %v1008 = vmul.f32 %v1007, %v308
      %v1011 = vcombine.low %v1005, %v1006
      %v1013 = vunpack.c.l.s4 1966171168
      %v1014 = vunpack.c.0.s8 %v1013
      %v1015 = vlaneseq
      %v1016 = vshrl.u32 %v1015, 7
      %v1017 = vsub.s32 %v1014, %v1016
      %v1018 = vrot.slane %v1011, %v1017
      %v1020 = vunpack.c.l.s4 1966171168
      %v1021 = vunpack.c.0.s8 %v1020
      %v1022 = vlaneseq
      %v1023 = vshrl.u32 %v1022, 7
      %v1024 = vsub.s32 %v1021, %v1023
      %v1025 = vrot.slane %v1018, %v1024
      %v1027 = vmul.f32 %v1008, %v1025
      %v1028 = vadd.f32 %v999, %v1027
      %1029 = vrot.lane.b32.xlu0 %v434, 82
      %v1030 = vpop.permute.xlu0 %1029
      %1031 = vrot.lane.b32.xlu0 %v438, 82
      %v1032 = vpop.permute.xlu0 %1031
      %vm1033 = vcmp.lt.s32.totalorder %v446, 82
      %v1034 = vsel %vm1033, %v1030, %v1032
      %v1035 = vsel %vm1033, %v1032, %v1030
      %v1036 = vstv %s373
      %v1037 = vmul.f32 %v1036, %v311
      %v1040 = vcombine.low %v1034, %v1035
      %v1042 = vunpack.c.l.s4 1966171168
      %v1043 = vunpack.c.0.s8 %v1042
      %v1044 = vlaneseq
      %v1045 = vshrl.u32 %v1044, 7
      %v1046 = vsub.s32 %v1043, %v1045
      %v1047 = vrot.slane %v1040, %v1046
      %v1049 = vunpack.c.l.s4 1966171168
      %v1050 = vunpack.c.0.s8 %v1049
      %v1051 = vlaneseq
      %v1052 = vshrl.u32 %v1051, 7
      %v1053 = vsub.s32 %v1050, %v1052
      %v1054 = vrot.slane %v1047, %v1053
      %v1056 = vmul.f32 %v1037, %v1054
      %v1057 = vadd.f32 %v1028, %v1056
      %1058 = vrot.lane.b32.xlu0 %v650, 50
      %v1059 = vpop.permute.xlu0 %1058
      %1060 = vrot.lane.b32.xlu0 %v654, 50
      %v1061 = vpop.permute.xlu0 %1060
      %v1062 = vsel %vm859, %v1059, %v1061
      %v1063 = vsel %vm859, %v1061, %v1059
      %v1064 = vstv %s380
      %v1065 = vmul.f32 %v1064, %v296
      %v1068 = vcombine.low %v1063, %v1062
      %v1070 = vunpack.c.l.s4 1966171168
      %v1071 = vunpack.c.0.s8 %v1070
      %v1072 = vlaneseq
      %v1073 = vshrl.u32 %v1072, 7
      %v1074 = vsub.s32 %v1071, %v1073
      %v1075 = vrot.slane %v1068, %v1074
      %v1077 = vunpack.c.l.s4 1966171168
      %v1078 = vunpack.c.0.s8 %v1077
      %v1079 = vlaneseq
      %v1080 = vshrl.u32 %v1079, 7
      %v1081 = vsub.s32 %v1078, %v1080
      %v1082 = vrot.slane %v1075, %v1081
      %v1084 = vmul.f32 %v1065, %v1082
      %v1085 = vadd.f32 %v1057, %v1084
      %1086 = vrot.lane.b32.xlu0 %v650, 34
      %v1087 = vpop.permute.xlu0 %1086
      %1088 = vrot.lane.b32.xlu0 %v654, 34
      %v1089 = vpop.permute.xlu0 %1088
      %v1090 = vsel %vm888, %v1087, %v1089
      %v1091 = vsel %vm888, %v1089, %v1087
      %v1092 = vstv %s387
      %v1093 = vmul.f32 %v1092, %v299
      %v1096 = vcombine.low %v1091, %v1090
      %v1098 = vunpack.c.l.s4 1966171168
      %v1099 = vunpack.c.0.s8 %v1098
      %v1100 = vlaneseq
      %v1101 = vshrl.u32 %v1100, 7
      %v1102 = vsub.s32 %v1099, %v1101
      %v1103 = vrot.slane %v1096, %v1102
      %v1105 = vunpack.c.l.s4 1966171168
      %v1106 = vunpack.c.0.s8 %v1105
      %v1107 = vlaneseq
      %v1108 = vshrl.u32 %v1107, 7
      %v1109 = vsub.s32 %v1106, %v1108
      %v1110 = vrot.slane %v1103, %v1109
      %v1112 = vmul.f32 %v1093, %v1110
      %v1113 = vadd.f32 %v1085, %v1112
      %1114 = vrot.lane.b32.xlu0 %v650, 18
      %v1115 = vpop.permute.xlu0 %1114
      %1116 = vrot.lane.b32.xlu0 %v654, 18
      %v1117 = vpop.permute.xlu0 %1116
      %v1118 = vsel %vm917, %v1115, %v1117
      %v1119 = vsel %vm917, %v1117, %v1115
      %v1120 = vstv %s394
      %v1121 = vmul.f32 %v1120, %v302
      %v1124 = vcombine.low %v1119, %v1118
      %v1126 = vunpack.c.l.s4 1966171168
      %v1127 = vunpack.c.0.s8 %v1126
      %v1128 = vlaneseq
      %v1129 = vshrl.u32 %v1128, 7
      %v1130 = vsub.s32 %v1127, %v1129
      %v1131 = vrot.slane %v1124, %v1130
      %v1133 = vunpack.c.l.s4 1966171168
      %v1134 = vunpack.c.0.s8 %v1133
      %v1135 = vlaneseq
      %v1136 = vshrl.u32 %v1135, 7
      %v1137 = vsub.s32 %v1134, %v1136
      %v1138 = vrot.slane %v1131, %v1137
      %v1140 = vmul.f32 %v1121, %v1138
      %v1141 = vadd.f32 %v1113, %v1140
      %1142 = vrot.lane.b32.xlu0 %v650, 2
      %v1143 = vpop.permute.xlu0 %1142
      %1144 = vrot.lane.b32.xlu0 %v654, 2
      %v1145 = vpop.permute.xlu0 %1144
      %v1146 = vsel %vm946, %v1143, %v1145
      %v1147 = vsel %vm946, %v1145, %v1143
      %v1148 = vstv %s401
      %v1149 = vmul.f32 %v1148, %v1147
      %v1150 = vmul.f32 %v1148, %v1146
      %v1153 = vcombine.low %v1149, %v1150
      %v1155 = vunpack.c.l.s4 1966171168
      %v1156 = vunpack.c.0.s8 %v1155
      %v1157 = vlaneseq
      %v1158 = vshrl.u32 %v1157, 7
      %v1159 = vsub.s32 %v1156, %v1158
      %v1160 = vrot.slane %v1153, %v1159
      %v1162 = vunpack.c.l.s4 1966171168
      %v1163 = vunpack.c.0.s8 %v1162
      %v1164 = vlaneseq
      %v1165 = vshrl.u32 %v1164, 7
      %v1166 = vsub.s32 %v1163, %v1165
      %v1167 = vrot.slane %v1160, %v1166
      %v1169 = vadd.f32 %v1141, %v1167
      %1170 = vrot.lane.b32.xlu0 %v650, 114
      %v1171 = vpop.permute.xlu0 %1170
      %1172 = vrot.lane.b32.xlu0 %v654, 114
      %v1173 = vpop.permute.xlu0 %1172
      %v1174 = vsel %vm975, %v1171, %v1173
      %v1175 = vsel %vm975, %v1173, %v1171
      %v1176 = vstv %s408
      %v1177 = vmul.f32 %v1176, %v305
      %v1180 = vcombine.low %v1174, %v1175
      %v1182 = vunpack.c.l.s4 1966171168
      %v1183 = vunpack.c.0.s8 %v1182
      %v1184 = vlaneseq
      %v1185 = vshrl.u32 %v1184, 7
      %v1186 = vsub.s32 %v1183, %v1185
      %v1187 = vrot.slane %v1180, %v1186
      %v1189 = vunpack.c.l.s4 1966171168
      %v1190 = vunpack.c.0.s8 %v1189
      %v1191 = vlaneseq
      %v1192 = vshrl.u32 %v1191, 7
      %v1193 = vsub.s32 %v1190, %v1192
      %v1194 = vrot.slane %v1187, %v1193
      %v1196 = vmul.f32 %v1177, %v1194
      %v1197 = vadd.f32 %v1169, %v1196
      %1198 = vrot.lane.b32.xlu0 %v650, 98
      %v1199 = vpop.permute.xlu0 %1198
      %1200 = vrot.lane.b32.xlu0 %v654, 98
      %v1201 = vpop.permute.xlu0 %1200
      %v1202 = vsel %vm1004, %v1199, %v1201
      %v1203 = vsel %vm1004, %v1201, %v1199
      %v1204 = vstv %s415
      %v1205 = vmul.f32 %v1204, %v308
      %v1208 = vcombine.low %v1202, %v1203
      %v1210 = vunpack.c.l.s4 1966171168
      %v1211 = vunpack.c.0.s8 %v1210
      %v1212 = vlaneseq
      %v1213 = vshrl.u32 %v1212, 7
      %v1214 = vsub.s32 %v1211, %v1213
      %v1215 = vrot.slane %v1208, %v1214
      %v1217 = vunpack.c.l.s4 1966171168
      %v1218 = vunpack.c.0.s8 %v1217
      %v1219 = vlaneseq
      %v1220 = vshrl.u32 %v1219, 7
      %v1221 = vsub.s32 %v1218, %v1220
      %v1222 = vrot.slane %v1215, %v1221
      %v1224 = vmul.f32 %v1205, %v1222
      %v1225 = vadd.f32 %v1197, %v1224
      %1226 = vrot.lane.b32.xlu0 %v650, 82
      %v1227 = vpop.permute.xlu0 %1226
      %1228 = vrot.lane.b32.xlu0 %v654, 82
      %v1229 = vpop.permute.xlu0 %1228
      %v1230 = vsel %vm1033, %v1227, %v1229
      %v1231 = vsel %vm1033, %v1229, %v1227
      %v1232 = vstv %s422
      %v1233 = vmul.f32 %v1232, %v311
      %v1236 = vcombine.low %v1230, %v1231
      %v1238 = vunpack.c.l.s4 1966171168
      %v1239 = vunpack.c.0.s8 %v1238
      %v1240 = vlaneseq
      %v1241 = vshrl.u32 %v1240, 7
      %v1242 = vsub.s32 %v1239, %v1241
      %v1243 = vrot.slane %v1236, %v1242
      %v1245 = vunpack.c.l.s4 1966171168
      %v1246 = vunpack.c.0.s8 %v1245
      %v1247 = vlaneseq
      %v1248 = vshrl.u32 %v1247, 7
      %v1249 = vsub.s32 %v1246, %v1248
      %v1250 = vrot.slane %v1243, %v1249
      %v1252 = vmul.f32 %v1233, %v1250
      %v1253 = vadd.f32 %v1225, %v1252
      %v1254 = vmul.f32 %v317, %v1253
      %v1255 = vadd.f32 %v854, %v1254
      %1256 = vrot.lane.b32.xlu0 %v434, 49
      %v1257 = vpop.permute.xlu0 %1256
      %1258 = vrot.lane.b32.xlu0 %v438, 49
      %v1259 = vpop.permute.xlu0 %1258
      %vm1260 = vcmp.lt.s32.totalorder %v446, 49
      %v1261 = vsel %vm1260, %v1257, %v1259
      %v1262 = vsel %vm1260, %v1259, %v1257
      %v1263 = vstv %s332
      %v1264 = vmul.f32 %v1263, %v296
      %v1267 = vcombine.low %v1262, %v1261
      %v1269 = vunpack.c.l.s4 1966171168
      %v1270 = vunpack.c.0.s8 %v1269
      %v1271 = vlaneseq
      %v1272 = vshrl.u32 %v1271, 7
      %v1273 = vsub.s32 %v1270, %v1272
      %v1274 = vrot.slane %v1267, %v1273
      %v1276 = vunpack.c.l.s4 1966171168
      %v1277 = vunpack.c.0.s8 %v1276
      %v1278 = vlaneseq
      %v1279 = vshrl.u32 %v1278, 7
      %v1280 = vsub.s32 %v1277, %v1279
      %v1281 = vrot.slane %v1274, %v1280
      %v1283 = vmul.f32 %v1264, %v1281
      %v1284 = vadd.f32 %v1283, 0.0
      %1285 = vrot.lane.b32.xlu0 %v434, 33
      %v1286 = vpop.permute.xlu0 %1285
      %1287 = vrot.lane.b32.xlu0 %v438, 33
      %v1288 = vpop.permute.xlu0 %1287
      %vm1289 = vcmp.lt.s32.totalorder %v446, 33
      %v1290 = vsel %vm1289, %v1286, %v1288
      %v1291 = vsel %vm1289, %v1288, %v1286
      %v1292 = vstv %s339
      %v1293 = vmul.f32 %v1292, %v299
      %v1296 = vcombine.low %v1291, %v1290
      %v1298 = vunpack.c.l.s4 1966171168
      %v1299 = vunpack.c.0.s8 %v1298
      %v1300 = vlaneseq
      %v1301 = vshrl.u32 %v1300, 7
      %v1302 = vsub.s32 %v1299, %v1301
      %v1303 = vrot.slane %v1296, %v1302
      %v1305 = vunpack.c.l.s4 1966171168
      %v1306 = vunpack.c.0.s8 %v1305
      %v1307 = vlaneseq
      %v1308 = vshrl.u32 %v1307, 7
      %v1309 = vsub.s32 %v1306, %v1308
      %v1310 = vrot.slane %v1303, %v1309
      %v1312 = vmul.f32 %v1293, %v1310
      %v1313 = vadd.f32 %v1284, %v1312
      %1314 = vrot.lane.b32.xlu0 %v434, 17
      %v1315 = vpop.permute.xlu0 %1314
      %1316 = vrot.lane.b32.xlu0 %v438, 17
      %v1317 = vpop.permute.xlu0 %1316
      %vm1318 = vcmp.lt.s32.totalorder %v446, 17
      %v1319 = vsel %vm1318, %v1315, %v1317
      %v1320 = vsel %vm1318, %v1317, %v1315
      %v1321 = vstv %s346
      %v1322 = vmul.f32 %v1321, %v302
      %v1325 = vcombine.low %v1320, %v1319
      %v1327 = vunpack.c.l.s4 1966171168
      %v1328 = vunpack.c.0.s8 %v1327
      %v1329 = vlaneseq
      %v1330 = vshrl.u32 %v1329, 7
      %v1331 = vsub.s32 %v1328, %v1330
      %v1332 = vrot.slane %v1325, %v1331
      %v1334 = vunpack.c.l.s4 1966171168
      %v1335 = vunpack.c.0.s8 %v1334
      %v1336 = vlaneseq
      %v1337 = vshrl.u32 %v1336, 7
      %v1338 = vsub.s32 %v1335, %v1337
      %v1339 = vrot.slane %v1332, %v1338
      %v1341 = vmul.f32 %v1322, %v1339
      %v1342 = vadd.f32 %v1313, %v1341
      %1343 = vrot.lane.b32.xlu0 %v434, 1
      %v1344 = vpop.permute.xlu0 %1343
      %1345 = vrot.lane.b32.xlu0 %v438, 1
      %v1346 = vpop.permute.xlu0 %1345
      %vm1347 = vcmp.lt.s32.totalorder %v446, 1
      %v1348 = vsel %vm1347, %v1344, %v1346
      %v1349 = vsel %vm1347, %v1346, %v1344
      %v1350 = vstv %s353
      %v1351 = vmul.f32 %v1350, %v1349
      %v1352 = vmul.f32 %v1350, %v1348
      %v1355 = vcombine.low %v1351, %v1352
      %v1357 = vunpack.c.l.s4 1966171168
      %v1358 = vunpack.c.0.s8 %v1357
      %v1359 = vlaneseq
      %v1360 = vshrl.u32 %v1359, 7
      %v1361 = vsub.s32 %v1358, %v1360
      %v1362 = vrot.slane %v1355, %v1361
      %v1364 = vunpack.c.l.s4 1966171168
      %v1365 = vunpack.c.0.s8 %v1364
      %v1366 = vlaneseq
      %v1367 = vshrl.u32 %v1366, 7
      %v1368 = vsub.s32 %v1365, %v1367
      %v1369 = vrot.slane %v1362, %v1368
      %v1371 = vadd.f32 %v1342, %v1369
      %1372 = vrot.lane.b32.xlu0 %v434, 113
      %v1373 = vpop.permute.xlu0 %1372
      %1374 = vrot.lane.b32.xlu0 %v438, 113
      %v1375 = vpop.permute.xlu0 %1374
      %vm1376 = vcmp.lt.s32.totalorder %v446, 113
      %v1377 = vsel %vm1376, %v1373, %v1375
      %v1378 = vsel %vm1376, %v1375, %v1373
      %v1379 = vstv %s360
      %v1380 = vmul.f32 %v1379, %v305
      %v1383 = vcombine.low %v1377, %v1378
      %v1385 = vunpack.c.l.s4 1966171168
      %v1386 = vunpack.c.0.s8 %v1385
      %v1387 = vlaneseq
      %v1388 = vshrl.u32 %v1387, 7
      %v1389 = vsub.s32 %v1386, %v1388
      %v1390 = vrot.slane %v1383, %v1389
      %v1392 = vunpack.c.l.s4 1966171168
      %v1393 = vunpack.c.0.s8 %v1392
      %v1394 = vlaneseq
      %v1395 = vshrl.u32 %v1394, 7
      %v1396 = vsub.s32 %v1393, %v1395
      %v1397 = vrot.slane %v1390, %v1396
      %v1399 = vmul.f32 %v1380, %v1397
      %v1400 = vadd.f32 %v1371, %v1399
      %1401 = vrot.lane.b32.xlu0 %v434, 97
      %v1402 = vpop.permute.xlu0 %1401
      %1403 = vrot.lane.b32.xlu0 %v438, 97
      %v1404 = vpop.permute.xlu0 %1403
      %vm1405 = vcmp.lt.s32.totalorder %v446, 97
      %v1406 = vsel %vm1405, %v1402, %v1404
      %v1407 = vsel %vm1405, %v1404, %v1402
      %v1408 = vstv %s367
      %v1409 = vmul.f32 %v1408, %v308
      %v1412 = vcombine.low %v1406, %v1407
      %v1414 = vunpack.c.l.s4 1966171168
      %v1415 = vunpack.c.0.s8 %v1414
      %v1416 = vlaneseq
      %v1417 = vshrl.u32 %v1416, 7
      %v1418 = vsub.s32 %v1415, %v1417
      %v1419 = vrot.slane %v1412, %v1418
      %v1421 = vunpack.c.l.s4 1966171168
      %v1422 = vunpack.c.0.s8 %v1421
      %v1423 = vlaneseq
      %v1424 = vshrl.u32 %v1423, 7
      %v1425 = vsub.s32 %v1422, %v1424
      %v1426 = vrot.slane %v1419, %v1425
      %v1428 = vmul.f32 %v1409, %v1426
      %v1429 = vadd.f32 %v1400, %v1428
      %1430 = vrot.lane.b32.xlu0 %v434, 81
      %v1431 = vpop.permute.xlu0 %1430
      %1432 = vrot.lane.b32.xlu0 %v438, 81
      %v1433 = vpop.permute.xlu0 %1432
      %vm1434 = vcmp.lt.s32.totalorder %v446, 81
      %v1435 = vsel %vm1434, %v1431, %v1433
      %v1436 = vsel %vm1434, %v1433, %v1431
      %v1437 = vstv %s374
      %v1438 = vmul.f32 %v1437, %v311
      %v1441 = vcombine.low %v1435, %v1436
      %v1443 = vunpack.c.l.s4 1966171168
      %v1444 = vunpack.c.0.s8 %v1443
      %v1445 = vlaneseq
      %v1446 = vshrl.u32 %v1445, 7
      %v1447 = vsub.s32 %v1444, %v1446
      %v1448 = vrot.slane %v1441, %v1447
      %v1450 = vunpack.c.l.s4 1966171168
      %v1451 = vunpack.c.0.s8 %v1450
      %v1452 = vlaneseq
      %v1453 = vshrl.u32 %v1452, 7
      %v1454 = vsub.s32 %v1451, %v1453
      %v1455 = vrot.slane %v1448, %v1454
      %v1457 = vmul.f32 %v1438, %v1455
      %v1458 = vadd.f32 %v1429, %v1457
      %1459 = vrot.lane.b32.xlu0 %v650, 49
      %v1460 = vpop.permute.xlu0 %1459
      %1461 = vrot.lane.b32.xlu0 %v654, 49
      %v1462 = vpop.permute.xlu0 %1461
      %v1463 = vsel %vm1260, %v1460, %v1462
      %v1464 = vsel %vm1260, %v1462, %v1460
      %v1465 = vstv %s381
      %v1466 = vmul.f32 %v1465, %v296
      %v1469 = vcombine.low %v1464, %v1463
      %v1471 = vunpack.c.l.s4 1966171168
      %v1472 = vunpack.c.0.s8 %v1471
      %v1473 = vlaneseq
      %v1474 = vshrl.u32 %v1473, 7
      %v1475 = vsub.s32 %v1472, %v1474
      %v1476 = vrot.slane %v1469, %v1475
      %v1478 = vunpack.c.l.s4 1966171168
      %v1479 = vunpack.c.0.s8 %v1478
      %v1480 = vlaneseq
      %v1481 = vshrl.u32 %v1480, 7
      %v1482 = vsub.s32 %v1479, %v1481
      %v1483 = vrot.slane %v1476, %v1482
      %v1485 = vmul.f32 %v1466, %v1483
      %v1486 = vadd.f32 %v1458, %v1485
      %1487 = vrot.lane.b32.xlu0 %v650, 33
      %v1488 = vpop.permute.xlu0 %1487
      %1489 = vrot.lane.b32.xlu0 %v654, 33
      %v1490 = vpop.permute.xlu0 %1489
      %v1491 = vsel %vm1289, %v1488, %v1490
      %v1492 = vsel %vm1289, %v1490, %v1488
      %v1493 = vstv %s388
      %v1494 = vmul.f32 %v1493, %v299
      %v1497 = vcombine.low %v1492, %v1491
      %v1499 = vunpack.c.l.s4 1966171168
      %v1500 = vunpack.c.0.s8 %v1499
      %v1501 = vlaneseq
      %v1502 = vshrl.u32 %v1501, 7
      %v1503 = vsub.s32 %v1500, %v1502
      %v1504 = vrot.slane %v1497, %v1503
      %v1506 = vunpack.c.l.s4 1966171168
      %v1507 = vunpack.c.0.s8 %v1506
      %v1508 = vlaneseq
      %v1509 = vshrl.u32 %v1508, 7
      %v1510 = vsub.s32 %v1507, %v1509
      %v1511 = vrot.slane %v1504, %v1510
      %v1513 = vmul.f32 %v1494, %v1511
      %v1514 = vadd.f32 %v1486, %v1513
      %1515 = vrot.lane.b32.xlu0 %v650, 17
      %v1516 = vpop.permute.xlu0 %1515
      %1517 = vrot.lane.b32.xlu0 %v654, 17
      %v1518 = vpop.permute.xlu0 %1517
      %v1519 = vsel %vm1318, %v1516, %v1518
      %v1520 = vsel %vm1318, %v1518, %v1516
      %v1521 = vstv %s395
      %v1522 = vmul.f32 %v1521, %v302
      %v1525 = vcombine.low %v1520, %v1519
      %v1527 = vunpack.c.l.s4 1966171168
      %v1528 = vunpack.c.0.s8 %v1527
      %v1529 = vlaneseq
      %v1530 = vshrl.u32 %v1529, 7
      %v1531 = vsub.s32 %v1528, %v1530
      %v1532 = vrot.slane %v1525, %v1531
      %v1534 = vunpack.c.l.s4 1966171168
      %v1535 = vunpack.c.0.s8 %v1534
      %v1536 = vlaneseq
      %v1537 = vshrl.u32 %v1536, 7
      %v1538 = vsub.s32 %v1535, %v1537
      %v1539 = vrot.slane %v1532, %v1538
      %v1541 = vmul.f32 %v1522, %v1539
      %v1542 = vadd.f32 %v1514, %v1541
      %1543 = vrot.lane.b32.xlu0 %v650, 1
      %v1544 = vpop.permute.xlu0 %1543
      %1545 = vrot.lane.b32.xlu0 %v654, 1
      %v1546 = vpop.permute.xlu0 %1545
      %v1547 = vsel %vm1347, %v1544, %v1546
      %v1548 = vsel %vm1347, %v1546, %v1544
      %v1549 = vstv %s402
      %v1550 = vmul.f32 %v1549, %v1548
      %v1551 = vmul.f32 %v1549, %v1547
      %v1554 = vcombine.low %v1550, %v1551
      %v1556 = vunpack.c.l.s4 1966171168
      %v1557 = vunpack.c.0.s8 %v1556
      %v1558 = vlaneseq
      %v1559 = vshrl.u32 %v1558, 7
      %v1560 = vsub.s32 %v1557, %v1559
      %v1561 = vrot.slane %v1554, %v1560
      %v1563 = vunpack.c.l.s4 1966171168
      %v1564 = vunpack.c.0.s8 %v1563
      %v1565 = vlaneseq
      %v1566 = vshrl.u32 %v1565, 7
      %v1567 = vsub.s32 %v1564, %v1566
      %v1568 = vrot.slane %v1561, %v1567
      %v1570 = vadd.f32 %v1542, %v1568
      %1571 = vrot.lane.b32.xlu0 %v650, 113
      %v1572 = vpop.permute.xlu0 %1571
      %1573 = vrot.lane.b32.xlu0 %v654, 113
      %v1574 = vpop.permute.xlu0 %1573
      %v1575 = vsel %vm1376, %v1572, %v1574
      %v1576 = vsel %vm1376, %v1574, %v1572
      %v1577 = vstv %s409
      %v1578 = vmul.f32 %v1577, %v305
      %v1581 = vcombine.low %v1575, %v1576
      %v1583 = vunpack.c.l.s4 1966171168
      %v1584 = vunpack.c.0.s8 %v1583
      %v1585 = vlaneseq
      %v1586 = vshrl.u32 %v1585, 7
      %v1587 = vsub.s32 %v1584, %v1586
      %v1588 = vrot.slane %v1581, %v1587
      %v1590 = vunpack.c.l.s4 1966171168
      %v1591 = vunpack.c.0.s8 %v1590
      %v1592 = vlaneseq
      %v1593 = vshrl.u32 %v1592, 7
      %v1594 = vsub.s32 %v1591, %v1593
      %v1595 = vrot.slane %v1588, %v1594
      %v1597 = vmul.f32 %v1578, %v1595
      %v1598 = vadd.f32 %v1570, %v1597
      %1599 = vrot.lane.b32.xlu0 %v650, 97
      %v1600 = vpop.permute.xlu0 %1599
      %1601 = vrot.lane.b32.xlu0 %v654, 97
      %v1602 = vpop.permute.xlu0 %1601
      %v1603 = vsel %vm1405, %v1600, %v1602
      %v1604 = vsel %vm1405, %v1602, %v1600
      %v1605 = vstv %s416
      %v1606 = vmul.f32 %v1605, %v308
      %v1609 = vcombine.low %v1603, %v1604
      %v1611 = vunpack.c.l.s4 1966171168
      %v1612 = vunpack.c.0.s8 %v1611
      %v1613 = vlaneseq
      %v1614 = vshrl.u32 %v1613, 7
      %v1615 = vsub.s32 %v1612, %v1614
      %v1616 = vrot.slane %v1609, %v1615
      %v1618 = vunpack.c.l.s4 1966171168
      %v1619 = vunpack.c.0.s8 %v1618
      %v1620 = vlaneseq
      %v1621 = vshrl.u32 %v1620, 7
      %v1622 = vsub.s32 %v1619, %v1621
      %v1623 = vrot.slane %v1616, %v1622
      %v1625 = vmul.f32 %v1606, %v1623
      %v1626 = vadd.f32 %v1598, %v1625
      %1627 = vrot.lane.b32.xlu0 %v650, 81
      %v1628 = vpop.permute.xlu0 %1627
      %1629 = vrot.lane.b32.xlu0 %v654, 81
      %v1630 = vpop.permute.xlu0 %1629
      %v1631 = vsel %vm1434, %v1628, %v1630
      %v1632 = vsel %vm1434, %v1630, %v1628
      %v1633 = vstv %s423
      %v1634 = vmul.f32 %v1633, %v311
      %v1637 = vcombine.low %v1631, %v1632
      %v1639 = vunpack.c.l.s4 1966171168
      %v1640 = vunpack.c.0.s8 %v1639
      %v1641 = vlaneseq
      %v1642 = vshrl.u32 %v1641, 7
      %v1643 = vsub.s32 %v1640, %v1642
      %v1644 = vrot.slane %v1637, %v1643
      %v1646 = vunpack.c.l.s4 1966171168
      %v1647 = vunpack.c.0.s8 %v1646
      %v1648 = vlaneseq
      %v1649 = vshrl.u32 %v1648, 7
      %v1650 = vsub.s32 %v1647, %v1649
      %v1651 = vrot.slane %v1644, %v1650
      %v1653 = vmul.f32 %v1634, %v1651
      %v1654 = vadd.f32 %v1626, %v1653
      %v1655 = vmul.f32 %v320, %v1654
      %v1656 = vadd.f32 %v1255, %v1655
      %1657 = vrot.lane.b32.xlu0 %v434, 48
      %v1658 = vpop.permute.xlu0 %1657
      %1659 = vrot.lane.b32.xlu0 %v438, 48
      %v1660 = vpop.permute.xlu0 %1659
      %vm1661 = vcmp.lt.s32.totalorder %v446, 48
      %v1662 = vsel %vm1661, %v1658, %v1660
      %v1663 = vsel %vm1661, %v1660, %v1658
      %v1664 = vstv %s333
      %v1665 = vmul.f32 %v1664, %v296
      %v1668 = vcombine.low %v1663, %v1662
      %v1670 = vunpack.c.l.s4 1966171168
      %v1671 = vunpack.c.0.s8 %v1670
      %v1672 = vlaneseq
      %v1673 = vshrl.u32 %v1672, 7
      %v1674 = vsub.s32 %v1671, %v1673
      %v1675 = vrot.slane %v1668, %v1674
      %v1677 = vunpack.c.l.s4 1966171168
      %v1678 = vunpack.c.0.s8 %v1677
      %v1679 = vlaneseq
      %v1680 = vshrl.u32 %v1679, 7
      %v1681 = vsub.s32 %v1678, %v1680
      %v1682 = vrot.slane %v1675, %v1681
      %v1684 = vmul.f32 %v1665, %v1682
      %v1685 = vadd.f32 %v1684, 0.0
      %1686 = vrot.lane.b32.xlu0 %v434, 32
      %v1687 = vpop.permute.xlu0 %1686
      %1688 = vrot.lane.b32.xlu0 %v438, 32
      %v1689 = vpop.permute.xlu0 %1688
      %vm1690 = vcmp.lt.s32.totalorder %v446, 32
      %v1691 = vsel %vm1690, %v1687, %v1689
      %v1692 = vsel %vm1690, %v1689, %v1687
      %v1693 = vstv %s340
      %v1694 = vmul.f32 %v1693, %v299
      %v1697 = vcombine.low %v1692, %v1691
      %v1699 = vunpack.c.l.s4 1966171168
      %v1700 = vunpack.c.0.s8 %v1699
      %v1701 = vlaneseq
      %v1702 = vshrl.u32 %v1701, 7
      %v1703 = vsub.s32 %v1700, %v1702
      %v1704 = vrot.slane %v1697, %v1703
      %v1706 = vunpack.c.l.s4 1966171168
      %v1707 = vunpack.c.0.s8 %v1706
      %v1708 = vlaneseq
      %v1709 = vshrl.u32 %v1708, 7
      %v1710 = vsub.s32 %v1707, %v1709
      %v1711 = vrot.slane %v1704, %v1710
      %v1713 = vmul.f32 %v1694, %v1711
      %v1714 = vadd.f32 %v1685, %v1713
      %1715 = vrot.lane.b32.xlu0 %v434, 16
      %v1716 = vpop.permute.xlu0 %1715
      %1717 = vrot.lane.b32.xlu0 %v438, 16
      %v1718 = vpop.permute.xlu0 %1717
      %vm1719 = vcmp.lt.s32.totalorder %v446, 16
      %v1720 = vsel %vm1719, %v1716, %v1718
      %v1721 = vsel %vm1719, %v1718, %v1716
      %v1722 = vstv %s347
      %v1723 = vmul.f32 %v1722, %v302
      %v1726 = vcombine.low %v1721, %v1720
      %v1728 = vunpack.c.l.s4 1966171168
      %v1729 = vunpack.c.0.s8 %v1728
      %v1730 = vlaneseq
      %v1731 = vshrl.u32 %v1730, 7
      %v1732 = vsub.s32 %v1729, %v1731
      %v1733 = vrot.slane %v1726, %v1732
      %v1735 = vunpack.c.l.s4 1966171168
      %v1736 = vunpack.c.0.s8 %v1735
      %v1737 = vlaneseq
      %v1738 = vshrl.u32 %v1737, 7
      %v1739 = vsub.s32 %v1736, %v1738
      %v1740 = vrot.slane %v1733, %v1739
      %v1742 = vmul.f32 %v1723, %v1740
      %v1743 = vadd.f32 %v1714, %v1742
      %v1744 = vstv %s354
      %v1745 = vmul.f32 %v1744, %v428
      %v1746 = vadd.f32 %v1743, %v1745
      %1747 = vrot.lane.b32.xlu0 %v434, 112
      %v1748 = vpop.permute.xlu0 %1747
      %1749 = vrot.lane.b32.xlu0 %v438, 112
      %v1750 = vpop.permute.xlu0 %1749
      %vm1751 = vcmp.lt.s32.totalorder %v446, 112
      %v1752 = vsel %vm1751, %v1748, %v1750
      %v1753 = vsel %vm1751, %v1750, %v1748
      %v1754 = vstv %s361
      %v1755 = vmul.f32 %v1754, %v305
      %v1758 = vcombine.low %v1752, %v1753
      %v1760 = vunpack.c.l.s4 1966171168
      %v1761 = vunpack.c.0.s8 %v1760
      %v1762 = vlaneseq
      %v1763 = vshrl.u32 %v1762, 7
      %v1764 = vsub.s32 %v1761, %v1763
      %v1765 = vrot.slane %v1758, %v1764
      %v1767 = vunpack.c.l.s4 1966171168
      %v1768 = vunpack.c.0.s8 %v1767
      %v1769 = vlaneseq
      %v1770 = vshrl.u32 %v1769, 7
      %v1771 = vsub.s32 %v1768, %v1770
      %v1772 = vrot.slane %v1765, %v1771
      %v1774 = vmul.f32 %v1755, %v1772
      %v1775 = vadd.f32 %v1746, %v1774
      %1776 = vrot.lane.b32.xlu0 %v434, 96
      %v1777 = vpop.permute.xlu0 %1776
      %1778 = vrot.lane.b32.xlu0 %v438, 96
      %v1779 = vpop.permute.xlu0 %1778
      %vm1780 = vcmp.lt.s32.totalorder %v446, 96
      %v1781 = vsel %vm1780, %v1777, %v1779
      %v1782 = vsel %vm1780, %v1779, %v1777
      %v1783 = vstv %s368
      %v1784 = vmul.f32 %v1783, %v308
      %v1787 = vcombine.low %v1781, %v1782
      %v1789 = vunpack.c.l.s4 1966171168
      %v1790 = vunpack.c.0.s8 %v1789
      %v1791 = vlaneseq
      %v1792 = vshrl.u32 %v1791, 7
      %v1793 = vsub.s32 %v1790, %v1792
      %v1794 = vrot.slane %v1787, %v1793
      %v1796 = vunpack.c.l.s4 1966171168
      %v1797 = vunpack.c.0.s8 %v1796
      %v1798 = vlaneseq
      %v1799 = vshrl.u32 %v1798, 7
      %v1800 = vsub.s32 %v1797, %v1799
      %v1801 = vrot.slane %v1794, %v1800
      %v1803 = vmul.f32 %v1784, %v1801
      %v1804 = vadd.f32 %v1775, %v1803
      %1805 = vrot.lane.b32.xlu0 %v434, 80
      %v1806 = vpop.permute.xlu0 %1805
      %1807 = vrot.lane.b32.xlu0 %v438, 80
      %v1808 = vpop.permute.xlu0 %1807
      %vm1809 = vcmp.lt.s32.totalorder %v446, 80
      %v1810 = vsel %vm1809, %v1806, %v1808
      %v1811 = vsel %vm1809, %v1808, %v1806
      %v1812 = vstv %s375
      %v1813 = vmul.f32 %v1812, %v311
      %v1816 = vcombine.low %v1810, %v1811
      %v1818 = vunpack.c.l.s4 1966171168
      %v1819 = vunpack.c.0.s8 %v1818
      %v1820 = vlaneseq
      %v1821 = vshrl.u32 %v1820, 7
      %v1822 = vsub.s32 %v1819, %v1821
      %v1823 = vrot.slane %v1816, %v1822
      %v1825 = vunpack.c.l.s4 1966171168
      %v1826 = vunpack.c.0.s8 %v1825
      %v1827 = vlaneseq
      %v1828 = vshrl.u32 %v1827, 7
      %v1829 = vsub.s32 %v1826, %v1828
      %v1830 = vrot.slane %v1823, %v1829
      %v1832 = vmul.f32 %v1813, %v1830
      %v1833 = vadd.f32 %v1804, %v1832
      %1834 = vrot.lane.b32.xlu0 %v650, 48
      %v1835 = vpop.permute.xlu0 %1834
      %1836 = vrot.lane.b32.xlu0 %v654, 48
      %v1837 = vpop.permute.xlu0 %1836
      %v1838 = vsel %vm1661, %v1835, %v1837
      %v1839 = vsel %vm1661, %v1837, %v1835
      %v1840 = vstv %s382
      %v1841 = vmul.f32 %v1840, %v296
      %v1844 = vcombine.low %v1839, %v1838
      %v1846 = vunpack.c.l.s4 1966171168
      %v1847 = vunpack.c.0.s8 %v1846
      %v1848 = vlaneseq
      %v1849 = vshrl.u32 %v1848, 7
      %v1850 = vsub.s32 %v1847, %v1849
      %v1851 = vrot.slane %v1844, %v1850
      %v1853 = vunpack.c.l.s4 1966171168
      %v1854 = vunpack.c.0.s8 %v1853
      %v1855 = vlaneseq
      %v1856 = vshrl.u32 %v1855, 7
      %v1857 = vsub.s32 %v1854, %v1856
      %v1858 = vrot.slane %v1851, %v1857
      %v1860 = vmul.f32 %v1841, %v1858
      %v1861 = vadd.f32 %v1833, %v1860
      %1862 = vrot.lane.b32.xlu0 %v650, 32
      %v1863 = vpop.permute.xlu0 %1862
      %1864 = vrot.lane.b32.xlu0 %v654, 32
      %v1865 = vpop.permute.xlu0 %1864
      %v1866 = vsel %vm1690, %v1863, %v1865
      %v1867 = vsel %vm1690, %v1865, %v1863
      %v1868 = vstv %s389
      %v1869 = vmul.f32 %v1868, %v299
      %v1872 = vcombine.low %v1867, %v1866
      %v1874 = vunpack.c.l.s4 1966171168
      %v1875 = vunpack.c.0.s8 %v1874
      %v1876 = vlaneseq
      %v1877 = vshrl.u32 %v1876, 7
      %v1878 = vsub.s32 %v1875, %v1877
      %v1879 = vrot.slane %v1872, %v1878
      %v1881 = vunpack.c.l.s4 1966171168
      %v1882 = vunpack.c.0.s8 %v1881
      %v1883 = vlaneseq
      %v1884 = vshrl.u32 %v1883, 7
      %v1885 = vsub.s32 %v1882, %v1884
      %v1886 = vrot.slane %v1879, %v1885
      %v1888 = vmul.f32 %v1869, %v1886
      %v1889 = vadd.f32 %v1861, %v1888
      %1890 = vrot.lane.b32.xlu0 %v650, 16
      %v1891 = vpop.permute.xlu0 %1890
      %1892 = vrot.lane.b32.xlu0 %v654, 16
      %v1893 = vpop.permute.xlu0 %1892
      %v1894 = vsel %vm1719, %v1891, %v1893
      %v1895 = vsel %vm1719, %v1893, %v1891
      %v1896 = vstv %s396
      %v1897 = vmul.f32 %v1896, %v302
      %v1900 = vcombine.low %v1895, %v1894
      %v1902 = vunpack.c.l.s4 1966171168
      %v1903 = vunpack.c.0.s8 %v1902
      %v1904 = vlaneseq
      %v1905 = vshrl.u32 %v1904, 7
      %v1906 = vsub.s32 %v1903, %v1905
      %v1907 = vrot.slane %v1900, %v1906
      %v1909 = vunpack.c.l.s4 1966171168
      %v1910 = vunpack.c.0.s8 %v1909
      %v1911 = vlaneseq
      %v1912 = vshrl.u32 %v1911, 7
      %v1913 = vsub.s32 %v1910, %v1912
      %v1914 = vrot.slane %v1907, %v1913
      %v1916 = vmul.f32 %v1897, %v1914
      %v1917 = vadd.f32 %v1889, %v1916
      %v1918 = vstv %s403
      %v1919 = vmul.f32 %v1918, %v429
      %v1920 = vadd.f32 %v1917, %v1919
      %1921 = vrot.lane.b32.xlu0 %v650, 112
      %v1922 = vpop.permute.xlu0 %1921
      %1923 = vrot.lane.b32.xlu0 %v654, 112
      %v1924 = vpop.permute.xlu0 %1923
      %v1925 = vsel %vm1751, %v1922, %v1924
      %v1926 = vsel %vm1751, %v1924, %v1922
      %v1927 = vstv %s410
      %v1928 = vmul.f32 %v1927, %v305
      %v1931 = vcombine.low %v1925, %v1926
      %v1933 = vunpack.c.l.s4 1966171168
      %v1934 = vunpack.c.0.s8 %v1933
      %v1935 = vlaneseq
      %v1936 = vshrl.u32 %v1935, 7
      %v1937 = vsub.s32 %v1934, %v1936
      %v1938 = vrot.slane %v1931, %v1937
      %v1940 = vunpack.c.l.s4 1966171168
      %v1941 = vunpack.c.0.s8 %v1940
      %v1942 = vlaneseq
      %v1943 = vshrl.u32 %v1942, 7
      %v1944 = vsub.s32 %v1941, %v1943
      %v1945 = vrot.slane %v1938, %v1944
      %v1947 = vmul.f32 %v1928, %v1945
      %v1948 = vadd.f32 %v1920, %v1947
      %1949 = vrot.lane.b32.xlu0 %v650, 96
      %v1950 = vpop.permute.xlu0 %1949
      %1951 = vrot.lane.b32.xlu0 %v654, 96
      %v1952 = vpop.permute.xlu0 %1951
      %v1953 = vsel %vm1780, %v1950, %v1952
      %v1954 = vsel %vm1780, %v1952, %v1950
      %v1955 = vstv %s417
      %v1956 = vmul.f32 %v1955, %v308
      %v1959 = vcombine.low %v1953, %v1954
      %v1961 = vunpack.c.l.s4 1966171168
      %v1962 = vunpack.c.0.s8 %v1961
      %v1963 = vlaneseq
      %v1964 = vshrl.u32 %v1963, 7
      %v1965 = vsub.s32 %v1962, %v1964
      %v1966 = vrot.slane %v1959, %v1965
      %v1968 = vunpack.c.l.s4 1966171168
      %v1969 = vunpack.c.0.s8 %v1968
      %v1970 = vlaneseq
      %v1971 = vshrl.u32 %v1970, 7
      %v1972 = vsub.s32 %v1969, %v1971
      %v1973 = vrot.slane %v1966, %v1972
      %v1975 = vmul.f32 %v1956, %v1973
      %v1976 = vadd.f32 %v1948, %v1975
      %1977 = vrot.lane.b32.xlu0 %v650, 80
      %v1978 = vpop.permute.xlu0 %1977
      %1979 = vrot.lane.b32.xlu0 %v654, 80
      %v1980 = vpop.permute.xlu0 %1979
      %v1981 = vsel %vm1809, %v1978, %v1980
      %v1982 = vsel %vm1809, %v1980, %v1978
      %v1983 = vstv %s424
      %v1984 = vmul.f32 %v1983, %v311
      %v1987 = vcombine.low %v1981, %v1982
      %v1989 = vunpack.c.l.s4 1966171168
      %v1990 = vunpack.c.0.s8 %v1989
      %v1991 = vlaneseq
      %v1992 = vshrl.u32 %v1991, 7
      %v1993 = vsub.s32 %v1990, %v1992
      %v1994 = vrot.slane %v1987, %v1993
      %v1996 = vunpack.c.l.s4 1966171168
      %v1997 = vunpack.c.0.s8 %v1996
      %v1998 = vlaneseq
      %v1999 = vshrl.u32 %v1998, 7
      %v2000 = vsub.s32 %v1997, %v1999
      %v2001 = vrot.slane %v1994, %v2000
      %v2003 = vmul.f32 %v1984, %v2001
      %v2004 = vadd.f32 %v1976, %v2003
      %v2005 = vadd.f32 %v1656, %v2004
      %2006 = vrot.lane.b32.xlu0 %v434, 47
      %v2007 = vpop.permute.xlu0 %2006
      %2008 = vrot.lane.b32.xlu0 %v438, 47
      %v2009 = vpop.permute.xlu0 %2008
      %vm2010 = vcmp.lt.s32.totalorder %v446, 47
      %v2011 = vsel %vm2010, %v2007, %v2009
      %v2012 = vsel %vm2010, %v2009, %v2007
      %v2013 = vstv %s334
      %v2014 = vmul.f32 %v2013, %v296
      %v2017 = vcombine.low %v2012, %v2011
      %v2019 = vunpack.c.l.s4 1966171168
      %v2020 = vunpack.c.0.s8 %v2019
      %v2021 = vlaneseq
      %v2022 = vshrl.u32 %v2021, 7
      %v2023 = vsub.s32 %v2020, %v2022
      %v2024 = vrot.slane %v2017, %v2023
      %v2026 = vunpack.c.l.s4 1966171168
      %v2027 = vunpack.c.0.s8 %v2026
      %v2028 = vlaneseq
      %v2029 = vshrl.u32 %v2028, 7
      %v2030 = vsub.s32 %v2027, %v2029
      %v2031 = vrot.slane %v2024, %v2030
      %v2033 = vmul.f32 %v2014, %v2031
      %v2034 = vadd.f32 %v2033, 0.0
      %2035 = vrot.lane.b32.xlu0 %v434, 31
      %v2036 = vpop.permute.xlu0 %2035
      %2037 = vrot.lane.b32.xlu0 %v438, 31
      %v2038 = vpop.permute.xlu0 %2037
      %vm2039 = vcmp.lt.s32.totalorder %v446, 31
      %v2040 = vsel %vm2039, %v2036, %v2038
      %v2041 = vsel %vm2039, %v2038, %v2036
      %v2042 = vstv %s341
      %v2043 = vmul.f32 %v2042, %v299
      %v2046 = vcombine.low %v2041, %v2040
      %v2048 = vunpack.c.l.s4 1966171168
      %v2049 = vunpack.c.0.s8 %v2048
      %v2050 = vlaneseq
      %v2051 = vshrl.u32 %v2050, 7
      %v2052 = vsub.s32 %v2049, %v2051
      %v2053 = vrot.slane %v2046, %v2052
      %v2055 = vunpack.c.l.s4 1966171168
      %v2056 = vunpack.c.0.s8 %v2055
      %v2057 = vlaneseq
      %v2058 = vshrl.u32 %v2057, 7
      %v2059 = vsub.s32 %v2056, %v2058
      %v2060 = vrot.slane %v2053, %v2059
      %v2062 = vmul.f32 %v2043, %v2060
      %v2063 = vadd.f32 %v2034, %v2062
      %2064 = vrot.lane.b32.xlu0 %v434, 15
      %v2065 = vpop.permute.xlu0 %2064
      %2066 = vrot.lane.b32.xlu0 %v438, 15
      %v2067 = vpop.permute.xlu0 %2066
      %vm2068 = vcmp.lt.s32.totalorder %v446, 15
      %v2069 = vsel %vm2068, %v2065, %v2067
      %v2070 = vsel %vm2068, %v2067, %v2065
      %v2071 = vstv %s348
      %v2072 = vmul.f32 %v2071, %v302
      %v2075 = vcombine.low %v2070, %v2069
      %v2077 = vunpack.c.l.s4 1966171168
      %v2078 = vunpack.c.0.s8 %v2077
      %v2079 = vlaneseq
      %v2080 = vshrl.u32 %v2079, 7
      %v2081 = vsub.s32 %v2078, %v2080
      %v2082 = vrot.slane %v2075, %v2081
      %v2084 = vunpack.c.l.s4 1966171168
      %v2085 = vunpack.c.0.s8 %v2084
      %v2086 = vlaneseq
      %v2087 = vshrl.u32 %v2086, 7
      %v2088 = vsub.s32 %v2085, %v2087
      %v2089 = vrot.slane %v2082, %v2088
      %v2091 = vmul.f32 %v2072, %v2089
      %v2092 = vadd.f32 %v2063, %v2091
      %2093 = vrot.lane.b32.xlu0 %v434, 127
      %v2094 = vpop.permute.xlu0 %2093
      %2095 = vrot.lane.b32.xlu0 %v438, 127
      %v2096 = vpop.permute.xlu0 %2095
      %vm2097 = vcmp.lt.s32.totalorder %v446, 127
      %v2098 = vsel %vm2097, %v2094, %v2096
      %v2099 = vsel %vm2097, %v2096, %v2094
      %v2100 = vstv %s355
      %v2101 = vmul.f32 %v2100, %v2098
      %v2102 = vmul.f32 %v2100, %v2099
      %v2105 = vcombine.low %v2101, %v2102
      %v2107 = vunpack.c.l.s4 1966171168
      %v2108 = vunpack.c.0.s8 %v2107
      %v2109 = vlaneseq
      %v2110 = vshrl.u32 %v2109, 7
      %v2111 = vsub.s32 %v2108, %v2110
      %v2112 = vrot.slane %v2105, %v2111
      %v2114 = vunpack.c.l.s4 1966171168
      %v2115 = vunpack.c.0.s8 %v2114
      %v2116 = vlaneseq
      %v2117 = vshrl.u32 %v2116, 7
      %v2118 = vsub.s32 %v2115, %v2117
      %v2119 = vrot.slane %v2112, %v2118
      %v2121 = vadd.f32 %v2092, %v2119
      %2122 = vrot.lane.b32.xlu0 %v434, 111
      %v2123 = vpop.permute.xlu0 %2122
      %2124 = vrot.lane.b32.xlu0 %v438, 111
      %v2125 = vpop.permute.xlu0 %2124
      %vm2126 = vcmp.lt.s32.totalorder %v446, 111
      %v2127 = vsel %vm2126, %v2123, %v2125
      %v2128 = vsel %vm2126, %v2125, %v2123
      %v2129 = vstv %s362
      %v2130 = vmul.f32 %v2129, %v305
      %v2133 = vcombine.low %v2127, %v2128
      %v2135 = vunpack.c.l.s4 1966171168
      %v2136 = vunpack.c.0.s8 %v2135
      %v2137 = vlaneseq
      %v2138 = vshrl.u32 %v2137, 7
      %v2139 = vsub.s32 %v2136, %v2138
      %v2140 = vrot.slane %v2133, %v2139
      %v2142 = vunpack.c.l.s4 1966171168
      %v2143 = vunpack.c.0.s8 %v2142
      %v2144 = vlaneseq
      %v2145 = vshrl.u32 %v2144, 7
      %v2146 = vsub.s32 %v2143, %v2145
      %v2147 = vrot.slane %v2140, %v2146
      %v2149 = vmul.f32 %v2130, %v2147
      %v2150 = vadd.f32 %v2121, %v2149
      %2151 = vrot.lane.b32.xlu0 %v434, 95
      %v2152 = vpop.permute.xlu0 %2151
      %2153 = vrot.lane.b32.xlu0 %v438, 95
      %v2154 = vpop.permute.xlu0 %2153
      %vm2155 = vcmp.lt.s32.totalorder %v446, 95
      %v2156 = vsel %vm2155, %v2152, %v2154
      %v2157 = vsel %vm2155, %v2154, %v2152
      %v2158 = vstv %s369
      %v2159 = vmul.f32 %v2158, %v308
      %v2162 = vcombine.low %v2156, %v2157
      %v2164 = vunpack.c.l.s4 1966171168
      %v2165 = vunpack.c.0.s8 %v2164
      %v2166 = vlaneseq
      %v2167 = vshrl.u32 %v2166, 7
      %v2168 = vsub.s32 %v2165, %v2167
      %v2169 = vrot.slane %v2162, %v2168
      %v2171 = vunpack.c.l.s4 1966171168
      %v2172 = vunpack.c.0.s8 %v2171
      %v2173 = vlaneseq
      %v2174 = vshrl.u32 %v2173, 7
      %v2175 = vsub.s32 %v2172, %v2174
      %v2176 = vrot.slane %v2169, %v2175
      %v2178 = vmul.f32 %v2159, %v2176
      %v2179 = vadd.f32 %v2150, %v2178
      %2180 = vrot.lane.b32.xlu0 %v434, 79
      %v2181 = vpop.permute.xlu0 %2180
      %2182 = vrot.lane.b32.xlu0 %v438, 79
      %v2183 = vpop.permute.xlu0 %2182
      %vm2184 = vcmp.lt.s32.totalorder %v446, 79
      %v2185 = vsel %vm2184, %v2181, %v2183
      %v2186 = vsel %vm2184, %v2183, %v2181
      %v2187 = vstv %s376
      %v2188 = vmul.f32 %v2187, %v311
      %v2191 = vcombine.low %v2185, %v2186
      %v2193 = vunpack.c.l.s4 1966171168
      %v2194 = vunpack.c.0.s8 %v2193
      %v2195 = vlaneseq
      %v2196 = vshrl.u32 %v2195, 7
      %v2197 = vsub.s32 %v2194, %v2196
      %v2198 = vrot.slane %v2191, %v2197
      %v2200 = vunpack.c.l.s4 1966171168
      %v2201 = vunpack.c.0.s8 %v2200
      %v2202 = vlaneseq
      %v2203 = vshrl.u32 %v2202, 7
      %v2204 = vsub.s32 %v2201, %v2203
      %v2205 = vrot.slane %v2198, %v2204
      %v2207 = vmul.f32 %v2188, %v2205
      %v2208 = vadd.f32 %v2179, %v2207
      %2209 = vrot.lane.b32.xlu0 %v650, 47
      %v2210 = vpop.permute.xlu0 %2209
      %2211 = vrot.lane.b32.xlu0 %v654, 47
      %v2212 = vpop.permute.xlu0 %2211
      %v2213 = vsel %vm2010, %v2210, %v2212
      %v2214 = vsel %vm2010, %v2212, %v2210
      %v2215 = vstv %s383
      %v2216 = vmul.f32 %v2215, %v296
      %v2219 = vcombine.low %v2214, %v2213
      %v2221 = vunpack.c.l.s4 1966171168
      %v2222 = vunpack.c.0.s8 %v2221
      %v2223 = vlaneseq
      %v2224 = vshrl.u32 %v2223, 7
      %v2225 = vsub.s32 %v2222, %v2224
      %v2226 = vrot.slane %v2219, %v2225
      %v2228 = vunpack.c.l.s4 1966171168
      %v2229 = vunpack.c.0.s8 %v2228
      %v2230 = vlaneseq
      %v2231 = vshrl.u32 %v2230, 7
      %v2232 = vsub.s32 %v2229, %v2231
      %v2233 = vrot.slane %v2226, %v2232
      %v2235 = vmul.f32 %v2216, %v2233
      %v2236 = vadd.f32 %v2208, %v2235
      %2237 = vrot.lane.b32.xlu0 %v650, 31
      %v2238 = vpop.permute.xlu0 %2237
      %2239 = vrot.lane.b32.xlu0 %v654, 31
      %v2240 = vpop.permute.xlu0 %2239
      %v2241 = vsel %vm2039, %v2238, %v2240
      %v2242 = vsel %vm2039, %v2240, %v2238
      %v2243 = vstv %s390
      %v2244 = vmul.f32 %v2243, %v299
      %v2247 = vcombine.low %v2242, %v2241
      %v2249 = vunpack.c.l.s4 1966171168
      %v2250 = vunpack.c.0.s8 %v2249
      %v2251 = vlaneseq
      %v2252 = vshrl.u32 %v2251, 7
      %v2253 = vsub.s32 %v2250, %v2252
      %v2254 = vrot.slane %v2247, %v2253
      %v2256 = vunpack.c.l.s4 1966171168
      %v2257 = vunpack.c.0.s8 %v2256
      %v2258 = vlaneseq
      %v2259 = vshrl.u32 %v2258, 7
      %v2260 = vsub.s32 %v2257, %v2259
      %v2261 = vrot.slane %v2254, %v2260
      %v2263 = vmul.f32 %v2244, %v2261
      %v2264 = vadd.f32 %v2236, %v2263
      %2265 = vrot.lane.b32.xlu0 %v650, 15
      %v2266 = vpop.permute.xlu0 %2265
      %2267 = vrot.lane.b32.xlu0 %v654, 15
      %v2268 = vpop.permute.xlu0 %2267
      %v2269 = vsel %vm2068, %v2266, %v2268
      %v2270 = vsel %vm2068, %v2268, %v2266
      %v2271 = vstv %s397
      %v2272 = vmul.f32 %v2271, %v302
      %v2275 = vcombine.low %v2270, %v2269
      %v2277 = vunpack.c.l.s4 1966171168
      %v2278 = vunpack.c.0.s8 %v2277
      %v2279 = vlaneseq
      %v2280 = vshrl.u32 %v2279, 7
      %v2281 = vsub.s32 %v2278, %v2280
      %v2282 = vrot.slane %v2275, %v2281
      %v2284 = vunpack.c.l.s4 1966171168
      %v2285 = vunpack.c.0.s8 %v2284
      %v2286 = vlaneseq
      %v2287 = vshrl.u32 %v2286, 7
      %v2288 = vsub.s32 %v2285, %v2287
      %v2289 = vrot.slane %v2282, %v2288
      %v2291 = vmul.f32 %v2272, %v2289
      %v2292 = vadd.f32 %v2264, %v2291
      %2293 = vrot.lane.b32.xlu0 %v650, 127
      %v2294 = vpop.permute.xlu0 %2293
      %2295 = vrot.lane.b32.xlu0 %v654, 127
      %v2296 = vpop.permute.xlu0 %2295
      %v2297 = vsel %vm2097, %v2294, %v2296
      %v2298 = vsel %vm2097, %v2296, %v2294
      %v2299 = vstv %s404
      %v2300 = vmul.f32 %v2299, %v2297
      %v2301 = vmul.f32 %v2299, %v2298
      %v2304 = vcombine.low %v2300, %v2301
      %v2306 = vunpack.c.l.s4 1966171168
      %v2307 = vunpack.c.0.s8 %v2306
      %v2308 = vlaneseq
      %v2309 = vshrl.u32 %v2308, 7
      %v2310 = vsub.s32 %v2307, %v2309
      %v2311 = vrot.slane %v2304, %v2310
      %v2313 = vunpack.c.l.s4 1966171168
      %v2314 = vunpack.c.0.s8 %v2313
      %v2315 = vlaneseq
      %v2316 = vshrl.u32 %v2315, 7
      %v2317 = vsub.s32 %v2314, %v2316
      %v2318 = vrot.slane %v2311, %v2317
      %v2320 = vadd.f32 %v2292, %v2318
      %2321 = vrot.lane.b32.xlu0 %v650, 111
      %v2322 = vpop.permute.xlu0 %2321
      %2323 = vrot.lane.b32.xlu0 %v654, 111
      %v2324 = vpop.permute.xlu0 %2323
      %v2325 = vsel %vm2126, %v2322, %v2324
      %v2326 = vsel %vm2126, %v2324, %v2322
      %v2327 = vstv %s411
      %v2328 = vmul.f32 %v2327, %v305
      %v2331 = vcombine.low %v2325, %v2326
      %v2333 = vunpack.c.l.s4 1966171168
      %v2334 = vunpack.c.0.s8 %v2333
      %v2335 = vlaneseq
      %v2336 = vshrl.u32 %v2335, 7
      %v2337 = vsub.s32 %v2334, %v2336
      %v2338 = vrot.slane %v2331, %v2337
      %v2340 = vunpack.c.l.s4 1966171168
      %v2341 = vunpack.c.0.s8 %v2340
      %v2342 = vlaneseq
      %v2343 = vshrl.u32 %v2342, 7
      %v2344 = vsub.s32 %v2341, %v2343
      %v2345 = vrot.slane %v2338, %v2344
      %v2347 = vmul.f32 %v2328, %v2345
      %v2348 = vadd.f32 %v2320, %v2347
      %2349 = vrot.lane.b32.xlu0 %v650, 95
      %v2350 = vpop.permute.xlu0 %2349
      %2351 = vrot.lane.b32.xlu0 %v654, 95
      %v2352 = vpop.permute.xlu0 %2351
      %v2353 = vsel %vm2155, %v2350, %v2352
      %v2354 = vsel %vm2155, %v2352, %v2350
      %v2355 = vstv %s418
      %v2356 = vmul.f32 %v2355, %v308
      %v2359 = vcombine.low %v2353, %v2354
      %v2361 = vunpack.c.l.s4 1966171168
      %v2362 = vunpack.c.0.s8 %v2361
      %v2363 = vlaneseq
      %v2364 = vshrl.u32 %v2363, 7
      %v2365 = vsub.s32 %v2362, %v2364
      %v2366 = vrot.slane %v2359, %v2365
      %v2368 = vunpack.c.l.s4 1966171168
      %v2369 = vunpack.c.0.s8 %v2368
      %v2370 = vlaneseq
      %v2371 = vshrl.u32 %v2370, 7
      %v2372 = vsub.s32 %v2369, %v2371
      %v2373 = vrot.slane %v2366, %v2372
      %v2375 = vmul.f32 %v2356, %v2373
      %v2376 = vadd.f32 %v2348, %v2375
      %2377 = vrot.lane.b32.xlu0 %v650, 79
      %v2378 = vpop.permute.xlu0 %2377
      %2379 = vrot.lane.b32.xlu0 %v654, 79
      %v2380 = vpop.permute.xlu0 %2379
      %v2381 = vsel %vm2184, %v2378, %v2380
      %v2382 = vsel %vm2184, %v2380, %v2378
      %v2383 = vstv %s425
      %v2384 = vmul.f32 %v2383, %v311
      %v2387 = vcombine.low %v2381, %v2382
      %v2389 = vunpack.c.l.s4 1966171168
      %v2390 = vunpack.c.0.s8 %v2389
      %v2391 = vlaneseq
      %v2392 = vshrl.u32 %v2391, 7
      %v2393 = vsub.s32 %v2390, %v2392
      %v2394 = vrot.slane %v2387, %v2393
      %v2396 = vunpack.c.l.s4 1966171168
      %v2397 = vunpack.c.0.s8 %v2396
      %v2398 = vlaneseq
      %v2399 = vshrl.u32 %v2398, 7
      %v2400 = vsub.s32 %v2397, %v2399
      %v2401 = vrot.slane %v2394, %v2400
      %v2403 = vmul.f32 %v2384, %v2401
      %v2404 = vadd.f32 %v2376, %v2403
      %v2405 = vmul.f32 %v323, %v2404
      %v2406 = vadd.f32 %v2005, %v2405
      %2407 = vrot.lane.b32.xlu0 %v434, 46
      %v2408 = vpop.permute.xlu0 %2407
      %2409 = vrot.lane.b32.xlu0 %v438, 46
      %v2410 = vpop.permute.xlu0 %2409
      %vm2411 = vcmp.lt.s32.totalorder %v446, 46
      %v2412 = vsel %vm2411, %v2408, %v2410
      %v2413 = vsel %vm2411, %v2410, %v2408
      %v2414 = vstv %s335
      %v2415 = vmul.f32 %v2414, %v296
      %v2418 = vcombine.low %v2413, %v2412
      %v2420 = vunpack.c.l.s4 1966171168
      %v2421 = vunpack.c.0.s8 %v2420
      %v2422 = vlaneseq
      %v2423 = vshrl.u32 %v2422, 7
      %v2424 = vsub.s32 %v2421, %v2423
      %v2425 = vrot.slane %v2418, %v2424
      %v2427 = vunpack.c.l.s4 1966171168
      %v2428 = vunpack.c.0.s8 %v2427
      %v2429 = vlaneseq
      %v2430 = vshrl.u32 %v2429, 7
      %v2431 = vsub.s32 %v2428, %v2430
      %v2432 = vrot.slane %v2425, %v2431
      %v2434 = vmul.f32 %v2415, %v2432
      %v2435 = vadd.f32 %v2434, 0.0
      %2436 = vrot.lane.b32.xlu0 %v434, 30
      %v2437 = vpop.permute.xlu0 %2436
      %2438 = vrot.lane.b32.xlu0 %v438, 30
      %v2439 = vpop.permute.xlu0 %2438
      %vm2440 = vcmp.lt.s32.totalorder %v446, 30
      %v2441 = vsel %vm2440, %v2437, %v2439
      %v2442 = vsel %vm2440, %v2439, %v2437
      %v2443 = vstv %s342
      %v2444 = vmul.f32 %v2443, %v299
      %v2447 = vcombine.low %v2442, %v2441
      %v2449 = vunpack.c.l.s4 1966171168
      %v2450 = vunpack.c.0.s8 %v2449
      %v2451 = vlaneseq
      %v2452 = vshrl.u32 %v2451, 7
      %v2453 = vsub.s32 %v2450, %v2452
      %v2454 = vrot.slane %v2447, %v2453
      %v2456 = vunpack.c.l.s4 1966171168
      %v2457 = vunpack.c.0.s8 %v2456
      %v2458 = vlaneseq
      %v2459 = vshrl.u32 %v2458, 7
      %v2460 = vsub.s32 %v2457, %v2459
      %v2461 = vrot.slane %v2454, %v2460
      %v2463 = vmul.f32 %v2444, %v2461
      %v2464 = vadd.f32 %v2435, %v2463
      %2465 = vrot.lane.b32.xlu0 %v434, 14
      %v2466 = vpop.permute.xlu0 %2465
      %2467 = vrot.lane.b32.xlu0 %v438, 14
      %v2468 = vpop.permute.xlu0 %2467
      %vm2469 = vcmp.lt.s32.totalorder %v446, 14
      %v2470 = vsel %vm2469, %v2466, %v2468
      %v2471 = vsel %vm2469, %v2468, %v2466
      %v2472 = vstv %s349
      %v2473 = vmul.f32 %v2472, %v302
      %v2476 = vcombine.low %v2471, %v2470
      %v2478 = vunpack.c.l.s4 1966171168
      %v2479 = vunpack.c.0.s8 %v2478
      %v2480 = vlaneseq
      %v2481 = vshrl.u32 %v2480, 7
      %v2482 = vsub.s32 %v2479, %v2481
      %v2483 = vrot.slane %v2476, %v2482
      %v2485 = vunpack.c.l.s4 1966171168
      %v2486 = vunpack.c.0.s8 %v2485
      %v2487 = vlaneseq
      %v2488 = vshrl.u32 %v2487, 7
      %v2489 = vsub.s32 %v2486, %v2488
      %v2490 = vrot.slane %v2483, %v2489
      %v2492 = vmul.f32 %v2473, %v2490
      %v2493 = vadd.f32 %v2464, %v2492
      %2494 = vrot.lane.b32.xlu0 %v434, 126
      %v2495 = vpop.permute.xlu0 %2494
      %2496 = vrot.lane.b32.xlu0 %v438, 126
      %v2497 = vpop.permute.xlu0 %2496
      %vm2498 = vcmp.lt.s32.totalorder %v446, 126
      %v2499 = vsel %vm2498, %v2495, %v2497
      %v2500 = vsel %vm2498, %v2497, %v2495
      %v2501 = vstv %s356
      %v2502 = vmul.f32 %v2501, %v2499
      %v2503 = vmul.f32 %v2501, %v2500
      %v2506 = vcombine.low %v2502, %v2503
      %v2508 = vunpack.c.l.s4 1966171168
      %v2509 = vunpack.c.0.s8 %v2508
      %v2510 = vlaneseq
      %v2511 = vshrl.u32 %v2510, 7
      %v2512 = vsub.s32 %v2509, %v2511
      %v2513 = vrot.slane %v2506, %v2512
      %v2515 = vunpack.c.l.s4 1966171168
      %v2516 = vunpack.c.0.s8 %v2515
      %v2517 = vlaneseq
      %v2518 = vshrl.u32 %v2517, 7
      %v2519 = vsub.s32 %v2516, %v2518
      %v2520 = vrot.slane %v2513, %v2519
      %v2522 = vadd.f32 %v2493, %v2520
      %2523 = vrot.lane.b32.xlu0 %v434, 110
      %v2524 = vpop.permute.xlu0 %2523
      %2525 = vrot.lane.b32.xlu0 %v438, 110
      %v2526 = vpop.permute.xlu0 %2525
      %vm2527 = vcmp.lt.s32.totalorder %v446, 110
      %v2528 = vsel %vm2527, %v2524, %v2526
      %v2529 = vsel %vm2527, %v2526, %v2524
      %v2530 = vstv %s363
      %v2531 = vmul.f32 %v2530, %v305
      %v2534 = vcombine.low %v2528, %v2529
      %v2536 = vunpack.c.l.s4 1966171168
      %v2537 = vunpack.c.0.s8 %v2536
      %v2538 = vlaneseq
      %v2539 = vshrl.u32 %v2538, 7
      %v2540 = vsub.s32 %v2537, %v2539
      %v2541 = vrot.slane %v2534, %v2540
      %v2543 = vunpack.c.l.s4 1966171168
      %v2544 = vunpack.c.0.s8 %v2543
      %v2545 = vlaneseq
      %v2546 = vshrl.u32 %v2545, 7
      %v2547 = vsub.s32 %v2544, %v2546
      %v2548 = vrot.slane %v2541, %v2547
      %v2550 = vmul.f32 %v2531, %v2548
      %v2551 = vadd.f32 %v2522, %v2550
      %2552 = vrot.lane.b32.xlu0 %v434, 94
      %v2553 = vpop.permute.xlu0 %2552
      %2554 = vrot.lane.b32.xlu0 %v438, 94
      %v2555 = vpop.permute.xlu0 %2554
      %vm2556 = vcmp.lt.s32.totalorder %v446, 94
      %v2557 = vsel %vm2556, %v2553, %v2555
      %v2558 = vsel %vm2556, %v2555, %v2553
      %v2559 = vstv %s370
      %v2560 = vmul.f32 %v2559, %v308
      %v2563 = vcombine.low %v2557, %v2558
      %v2565 = vunpack.c.l.s4 1966171168
      %v2566 = vunpack.c.0.s8 %v2565
      %v2567 = vlaneseq
      %v2568 = vshrl.u32 %v2567, 7
      %v2569 = vsub.s32 %v2566, %v2568
      %v2570 = vrot.slane %v2563, %v2569
      %v2572 = vunpack.c.l.s4 1966171168
      %v2573 = vunpack.c.0.s8 %v2572
      %v2574 = vlaneseq
      %v2575 = vshrl.u32 %v2574, 7
      %v2576 = vsub.s32 %v2573, %v2575
      %v2577 = vrot.slane %v2570, %v2576
      %v2579 = vmul.f32 %v2560, %v2577
      %v2580 = vadd.f32 %v2551, %v2579
      %2581 = vrot.lane.b32.xlu0 %v434, 78
      %v2582 = vpop.permute.xlu0 %2581
      %2583 = vrot.lane.b32.xlu0 %v438, 78
      %v2584 = vpop.permute.xlu0 %2583
      %vm2585 = vcmp.lt.s32.totalorder %v446, 78
      %v2586 = vsel %vm2585, %v2582, %v2584
      %v2587 = vsel %vm2585, %v2584, %v2582
      %v2588 = vstv %s377
      %v2589 = vmul.f32 %v2588, %v311
      %v2592 = vcombine.low %v2586, %v2587
      %v2594 = vunpack.c.l.s4 1966171168
      %v2595 = vunpack.c.0.s8 %v2594
      %v2596 = vlaneseq
      %v2597 = vshrl.u32 %v2596, 7
      %v2598 = vsub.s32 %v2595, %v2597
      %v2599 = vrot.slane %v2592, %v2598
      %v2601 = vunpack.c.l.s4 1966171168
      %v2602 = vunpack.c.0.s8 %v2601
      %v2603 = vlaneseq
      %v2604 = vshrl.u32 %v2603, 7
      %v2605 = vsub.s32 %v2602, %v2604
      %v2606 = vrot.slane %v2599, %v2605
      %v2608 = vmul.f32 %v2589, %v2606
      %v2609 = vadd.f32 %v2580, %v2608
      %2610 = vrot.lane.b32.xlu0 %v650, 46
      %v2611 = vpop.permute.xlu0 %2610
      %2612 = vrot.lane.b32.xlu0 %v654, 46
      %v2613 = vpop.permute.xlu0 %2612
      %v2614 = vsel %vm2411, %v2611, %v2613
      %v2615 = vsel %vm2411, %v2613, %v2611
      %v2616 = vstv %s384
      %v2617 = vmul.f32 %v2616, %v296
      %v2620 = vcombine.low %v2615, %v2614
      %v2622 = vunpack.c.l.s4 1966171168
      %v2623 = vunpack.c.0.s8 %v2622
      %v2624 = vlaneseq
      %v2625 = vshrl.u32 %v2624, 7
      %v2626 = vsub.s32 %v2623, %v2625
      %v2627 = vrot.slane %v2620, %v2626
      %v2629 = vunpack.c.l.s4 1966171168
      %v2630 = vunpack.c.0.s8 %v2629
      %v2631 = vlaneseq
      %v2632 = vshrl.u32 %v2631, 7
      %v2633 = vsub.s32 %v2630, %v2632
      %v2634 = vrot.slane %v2627, %v2633
      %v2636 = vmul.f32 %v2617, %v2634
      %v2637 = vadd.f32 %v2609, %v2636
      %2638 = vrot.lane.b32.xlu0 %v650, 30
      %v2639 = vpop.permute.xlu0 %2638
      %2640 = vrot.lane.b32.xlu0 %v654, 30
      %v2641 = vpop.permute.xlu0 %2640
      %v2642 = vsel %vm2440, %v2639, %v2641
      %v2643 = vsel %vm2440, %v2641, %v2639
      %v2644 = vstv %s391
      %v2645 = vmul.f32 %v2644, %v299
      %v2648 = vcombine.low %v2643, %v2642
      %v2650 = vunpack.c.l.s4 1966171168
      %v2651 = vunpack.c.0.s8 %v2650
      %v2652 = vlaneseq
      %v2653 = vshrl.u32 %v2652, 7
      %v2654 = vsub.s32 %v2651, %v2653
      %v2655 = vrot.slane %v2648, %v2654
      %v2657 = vunpack.c.l.s4 1966171168
      %v2658 = vunpack.c.0.s8 %v2657
      %v2659 = vlaneseq
      %v2660 = vshrl.u32 %v2659, 7
      %v2661 = vsub.s32 %v2658, %v2660
      %v2662 = vrot.slane %v2655, %v2661
      %v2664 = vmul.f32 %v2645, %v2662
      %v2665 = vadd.f32 %v2637, %v2664
      %2666 = vrot.lane.b32.xlu0 %v650, 14
      %v2667 = vpop.permute.xlu0 %2666
      %2668 = vrot.lane.b32.xlu0 %v654, 14
      %v2669 = vpop.permute.xlu0 %2668
      %v2670 = vsel %vm2469, %v2667, %v2669
      %v2671 = vsel %vm2469, %v2669, %v2667
      %v2672 = vstv %s398
      %v2673 = vmul.f32 %v2672, %v302
      %v2676 = vcombine.low %v2671, %v2670
      %v2678 = vunpack.c.l.s4 1966171168
      %v2679 = vunpack.c.0.s8 %v2678
      %v2680 = vlaneseq
      %v2681 = vshrl.u32 %v2680, 7
      %v2682 = vsub.s32 %v2679, %v2681
      %v2683 = vrot.slane %v2676, %v2682
      %v2685 = vunpack.c.l.s4 1966171168
      %v2686 = vunpack.c.0.s8 %v2685
      %v2687 = vlaneseq
      %v2688 = vshrl.u32 %v2687, 7
      %v2689 = vsub.s32 %v2686, %v2688
      %v2690 = vrot.slane %v2683, %v2689
      %v2692 = vmul.f32 %v2673, %v2690
      %v2693 = vadd.f32 %v2665, %v2692
      %2694 = vrot.lane.b32.xlu0 %v650, 126
      %v2695 = vpop.permute.xlu0 %2694
      %2696 = vrot.lane.b32.xlu0 %v654, 126
      %v2697 = vpop.permute.xlu0 %2696
      %v2698 = vsel %vm2498, %v2695, %v2697
      %v2699 = vsel %vm2498, %v2697, %v2695
      %v2700 = vstv %s405
      %v2701 = vmul.f32 %v2700, %v2698
      %v2702 = vmul.f32 %v2700, %v2699
      %v2705 = vcombine.low %v2701, %v2702
      %v2707 = vunpack.c.l.s4 1966171168
      %v2708 = vunpack.c.0.s8 %v2707
      %v2709 = vlaneseq
      %v2710 = vshrl.u32 %v2709, 7
      %v2711 = vsub.s32 %v2708, %v2710
      %v2712 = vrot.slane %v2705, %v2711
      %v2714 = vunpack.c.l.s4 1966171168
      %v2715 = vunpack.c.0.s8 %v2714
      %v2716 = vlaneseq
      %v2717 = vshrl.u32 %v2716, 7
      %v2718 = vsub.s32 %v2715, %v2717
      %v2719 = vrot.slane %v2712, %v2718
      %v2721 = vadd.f32 %v2693, %v2719
      %2722 = vrot.lane.b32.xlu0 %v650, 110
      %v2723 = vpop.permute.xlu0 %2722
      %2724 = vrot.lane.b32.xlu0 %v654, 110
      %v2725 = vpop.permute.xlu0 %2724
      %v2726 = vsel %vm2527, %v2723, %v2725
      %v2727 = vsel %vm2527, %v2725, %v2723
      %v2728 = vstv %s412
      %v2729 = vmul.f32 %v2728, %v305
      %v2732 = vcombine.low %v2726, %v2727
      %v2734 = vunpack.c.l.s4 1966171168
      %v2735 = vunpack.c.0.s8 %v2734
      %v2736 = vlaneseq
      %v2737 = vshrl.u32 %v2736, 7
      %v2738 = vsub.s32 %v2735, %v2737
      %v2739 = vrot.slane %v2732, %v2738
      %v2741 = vunpack.c.l.s4 1966171168
      %v2742 = vunpack.c.0.s8 %v2741
      %v2743 = vlaneseq
      %v2744 = vshrl.u32 %v2743, 7
      %v2745 = vsub.s32 %v2742, %v2744
      %v2746 = vrot.slane %v2739, %v2745
      %v2748 = vmul.f32 %v2729, %v2746
      %v2749 = vadd.f32 %v2721, %v2748
      %2750 = vrot.lane.b32.xlu0 %v650, 94
      %v2751 = vpop.permute.xlu0 %2750
      %2752 = vrot.lane.b32.xlu0 %v654, 94
      %v2753 = vpop.permute.xlu0 %2752
      %v2754 = vsel %vm2556, %v2751, %v2753
      %v2755 = vsel %vm2556, %v2753, %v2751
      %v2756 = vstv %s419
      %v2757 = vmul.f32 %v2756, %v308
      %v2760 = vcombine.low %v2754, %v2755
      %v2762 = vunpack.c.l.s4 1966171168
      %v2763 = vunpack.c.0.s8 %v2762
      %v2764 = vlaneseq
      %v2765 = vshrl.u32 %v2764, 7
      %v2766 = vsub.s32 %v2763, %v2765
      %v2767 = vrot.slane %v2760, %v2766
      %v2769 = vunpack.c.l.s4 1966171168
      %v2770 = vunpack.c.0.s8 %v2769
      %v2771 = vlaneseq
      %v2772 = vshrl.u32 %v2771, 7
      %v2773 = vsub.s32 %v2770, %v2772
      %v2774 = vrot.slane %v2767, %v2773
      %v2776 = vmul.f32 %v2757, %v2774
      %v2777 = vadd.f32 %v2749, %v2776
      %2778 = vrot.lane.b32.xlu0 %v650, 78
      %v2779 = vpop.permute.xlu0 %2778
      %2780 = vrot.lane.b32.xlu0 %v654, 78
      %v2781 = vpop.permute.xlu0 %2780
      %v2782 = vsel %vm2585, %v2779, %v2781
      %v2783 = vsel %vm2585, %v2781, %v2779
      %v2784 = vstv %s426
      %v2785 = vmul.f32 %v2784, %v311
      %v2788 = vcombine.low %v2782, %v2783
      %v2790 = vunpack.c.l.s4 1966171168
      %v2791 = vunpack.c.0.s8 %v2790
      %v2792 = vlaneseq
      %v2793 = vshrl.u32 %v2792, 7
      %v2794 = vsub.s32 %v2791, %v2793
      %v2795 = vrot.slane %v2788, %v2794
      %v2797 = vunpack.c.l.s4 1966171168
      %v2798 = vunpack.c.0.s8 %v2797
      %v2799 = vlaneseq
      %v2800 = vshrl.u32 %v2799, 7
      %v2801 = vsub.s32 %v2798, %v2800
      %v2802 = vrot.slane %v2795, %v2801
      %v2804 = vmul.f32 %v2785, %v2802
      %v2805 = vadd.f32 %v2777, %v2804
      %v2806 = vmul.f32 %v326, %v2805
      %v2807 = vadd.f32 %v2406, %v2806
      %2808 = vrot.lane.b32.xlu0 %v434, 45
      %v2809 = vpop.permute.xlu0 %2808
      %2810 = vrot.lane.b32.xlu0 %v438, 45
      %v2811 = vpop.permute.xlu0 %2810
      %vm2812 = vcmp.lt.s32.totalorder %v446, 45
      %v2813 = vsel %vm2812, %v2809, %v2811
      %v2814 = vsel %vm2812, %v2811, %v2809
      %v2815 = vstv %s336
      %v2816 = vmul.f32 %v2815, %v296
      %v2819 = vcombine.low %v2814, %v2813
      %v2821 = vunpack.c.l.s4 1966171168
      %v2822 = vunpack.c.0.s8 %v2821
      %v2823 = vlaneseq
      %v2824 = vshrl.u32 %v2823, 7
      %v2825 = vsub.s32 %v2822, %v2824
      %v2826 = vrot.slane %v2819, %v2825
      %v2828 = vunpack.c.l.s4 1966171168
      %v2829 = vunpack.c.0.s8 %v2828
      %v2830 = vlaneseq
      %v2831 = vshrl.u32 %v2830, 7
      %v2832 = vsub.s32 %v2829, %v2831
      %v2833 = vrot.slane %v2826, %v2832
      %v2835 = vmul.f32 %v2816, %v2833
      %v2836 = vadd.f32 %v2835, 0.0
      %2837 = vrot.lane.b32.xlu0 %v434, 29
      %v2838 = vpop.permute.xlu0 %2837
      %2839 = vrot.lane.b32.xlu0 %v438, 29
      %v2840 = vpop.permute.xlu0 %2839
      %vm2841 = vcmp.lt.s32.totalorder %v446, 29
      %v2842 = vsel %vm2841, %v2838, %v2840
      %v2843 = vsel %vm2841, %v2840, %v2838
      %v2844 = vstv %s343
      %v2845 = vmul.f32 %v2844, %v299
      %v2848 = vcombine.low %v2843, %v2842
      %v2850 = vunpack.c.l.s4 1966171168
      %v2851 = vunpack.c.0.s8 %v2850
      %v2852 = vlaneseq
      %v2853 = vshrl.u32 %v2852, 7
      %v2854 = vsub.s32 %v2851, %v2853
      %v2855 = vrot.slane %v2848, %v2854
      %v2857 = vunpack.c.l.s4 1966171168
      %v2858 = vunpack.c.0.s8 %v2857
      %v2859 = vlaneseq
      %v2860 = vshrl.u32 %v2859, 7
      %v2861 = vsub.s32 %v2858, %v2860
      %v2862 = vrot.slane %v2855, %v2861
      %v2864 = vmul.f32 %v2845, %v2862
      %v2865 = vadd.f32 %v2836, %v2864
      %2866 = vrot.lane.b32.xlu0 %v434, 13
      %v2867 = vpop.permute.xlu0 %2866
      %2868 = vrot.lane.b32.xlu0 %v438, 13
      %v2869 = vpop.permute.xlu0 %2868
      %vm2870 = vcmp.lt.s32.totalorder %v446, 13
      %v2871 = vsel %vm2870, %v2867, %v2869
      %v2872 = vsel %vm2870, %v2869, %v2867
      %v2873 = vstv %s350
      %v2874 = vmul.f32 %v2873, %v302
      %v2877 = vcombine.low %v2872, %v2871
      %v2879 = vunpack.c.l.s4 1966171168
      %v2880 = vunpack.c.0.s8 %v2879
      %v2881 = vlaneseq
      %v2882 = vshrl.u32 %v2881, 7
      %v2883 = vsub.s32 %v2880, %v2882
      %v2884 = vrot.slane %v2877, %v2883
      %v2886 = vunpack.c.l.s4 1966171168
      %v2887 = vunpack.c.0.s8 %v2886
      %v2888 = vlaneseq
      %v2889 = vshrl.u32 %v2888, 7
      %v2890 = vsub.s32 %v2887, %v2889
      %v2891 = vrot.slane %v2884, %v2890
      %v2893 = vmul.f32 %v2874, %v2891
      %v2894 = vadd.f32 %v2865, %v2893
      %2895 = vrot.lane.b32.xlu0 %v434, 125
      %v2896 = vpop.permute.xlu0 %2895
      %2897 = vrot.lane.b32.xlu0 %v438, 125
      %v2898 = vpop.permute.xlu0 %2897
      %vm2899 = vcmp.lt.s32.totalorder %v446, 125
      %v2900 = vsel %vm2899, %v2896, %v2898
      %v2901 = vsel %vm2899, %v2898, %v2896
      %v2902 = vstv %s357
      %v2903 = vmul.f32 %v2902, %v2900
      %v2904 = vmul.f32 %v2902, %v2901
      %v2907 = vcombine.low %v2903, %v2904
      %v2909 = vunpack.c.l.s4 1966171168
      %v2910 = vunpack.c.0.s8 %v2909
      %v2911 = vlaneseq
      %v2912 = vshrl.u32 %v2911, 7
      %v2913 = vsub.s32 %v2910, %v2912
      %v2914 = vrot.slane %v2907, %v2913
      %v2916 = vunpack.c.l.s4 1966171168
      %v2917 = vunpack.c.0.s8 %v2916
      %v2918 = vlaneseq
      %v2919 = vshrl.u32 %v2918, 7
      %v2920 = vsub.s32 %v2917, %v2919
      %v2921 = vrot.slane %v2914, %v2920
      %v2923 = vadd.f32 %v2894, %v2921
      %2924 = vrot.lane.b32.xlu0 %v434, 109
      %v2925 = vpop.permute.xlu0 %2924
      %2926 = vrot.lane.b32.xlu0 %v438, 109
      %v2927 = vpop.permute.xlu0 %2926
      %vm2928 = vcmp.lt.s32.totalorder %v446, 109
      %v2929 = vsel %vm2928, %v2925, %v2927
      %v2930 = vsel %vm2928, %v2927, %v2925
      %v2931 = vstv %s364
      %v2932 = vmul.f32 %v2931, %v305
      %v2935 = vcombine.low %v2929, %v2930
      %v2937 = vunpack.c.l.s4 1966171168
      %v2938 = vunpack.c.0.s8 %v2937
      %v2939 = vlaneseq
      %v2940 = vshrl.u32 %v2939, 7
      %v2941 = vsub.s32 %v2938, %v2940
      %v2942 = vrot.slane %v2935, %v2941
      %v2944 = vunpack.c.l.s4 1966171168
      %v2945 = vunpack.c.0.s8 %v2944
      %v2946 = vlaneseq
      %v2947 = vshrl.u32 %v2946, 7
      %v2948 = vsub.s32 %v2945, %v2947
      %v2949 = vrot.slane %v2942, %v2948
      %v2951 = vmul.f32 %v2932, %v2949
      %v2952 = vadd.f32 %v2923, %v2951
      %2953 = vrot.lane.b32.xlu0 %v434, 93
      %v2954 = vpop.permute.xlu0 %2953
      %2955 = vrot.lane.b32.xlu0 %v438, 93
      %v2956 = vpop.permute.xlu0 %2955
      %vm2957 = vcmp.lt.s32.totalorder %v446, 93
      %v2958 = vsel %vm2957, %v2954, %v2956
      %v2959 = vsel %vm2957, %v2956, %v2954
      %v2960 = vstv %s371
      %v2961 = vmul.f32 %v2960, %v308
      %v2964 = vcombine.low %v2958, %v2959
      %v2966 = vunpack.c.l.s4 1966171168
      %v2967 = vunpack.c.0.s8 %v2966
      %v2968 = vlaneseq
      %v2969 = vshrl.u32 %v2968, 7
      %v2970 = vsub.s32 %v2967, %v2969
      %v2971 = vrot.slane %v2964, %v2970
      %v2973 = vunpack.c.l.s4 1966171168
      %v2974 = vunpack.c.0.s8 %v2973
      %v2975 = vlaneseq
      %v2976 = vshrl.u32 %v2975, 7
      %v2977 = vsub.s32 %v2974, %v2976
      %v2978 = vrot.slane %v2971, %v2977
      %v2980 = vmul.f32 %v2961, %v2978
      %v2981 = vadd.f32 %v2952, %v2980
      %2982 = vrot.lane.b32.xlu0 %v434, 77
      %v2983 = vpop.permute.xlu0 %2982
      %2984 = vrot.lane.b32.xlu0 %v438, 77
      %v2985 = vpop.permute.xlu0 %2984
      %vm2986 = vcmp.lt.s32.totalorder %v446, 77
      %v2987 = vsel %vm2986, %v2983, %v2985
      %v2988 = vsel %vm2986, %v2985, %v2983
      %v2989 = vstv %s378
      %v2990 = vmul.f32 %v2989, %v311
      %v2993 = vcombine.low %v2987, %v2988
      %v2995 = vunpack.c.l.s4 1966171168
      %v2996 = vunpack.c.0.s8 %v2995
      %v2997 = vlaneseq
      %v2998 = vshrl.u32 %v2997, 7
      %v2999 = vsub.s32 %v2996, %v2998
      %v3000 = vrot.slane %v2993, %v2999
      %v3002 = vunpack.c.l.s4 1966171168
      %v3003 = vunpack.c.0.s8 %v3002
      %v3004 = vlaneseq
      %v3005 = vshrl.u32 %v3004, 7
      %v3006 = vsub.s32 %v3003, %v3005
      %v3007 = vrot.slane %v3000, %v3006
      %v3009 = vmul.f32 %v2990, %v3007
      %v3010 = vadd.f32 %v2981, %v3009
      %3011 = vrot.lane.b32.xlu0 %v650, 45
      %v3012 = vpop.permute.xlu0 %3011
      %3013 = vrot.lane.b32.xlu0 %v654, 45
      %v3014 = vpop.permute.xlu0 %3013
      %v3015 = vsel %vm2812, %v3012, %v3014
      %v3016 = vsel %vm2812, %v3014, %v3012
      %v3017 = vstv %s385
      %v3018 = vmul.f32 %v3017, %v296
      %v3021 = vcombine.low %v3016, %v3015
      %v3023 = vunpack.c.l.s4 1966171168
      %v3024 = vunpack.c.0.s8 %v3023
      %v3025 = vlaneseq
      %v3026 = vshrl.u32 %v3025, 7
      %v3027 = vsub.s32 %v3024, %v3026
      %v3028 = vrot.slane %v3021, %v3027
      %v3030 = vunpack.c.l.s4 1966171168
      %v3031 = vunpack.c.0.s8 %v3030
      %v3032 = vlaneseq
      %v3033 = vshrl.u32 %v3032, 7
      %v3034 = vsub.s32 %v3031, %v3033
      %v3035 = vrot.slane %v3028, %v3034
      %v3037 = vmul.f32 %v3018, %v3035
      %v3038 = vadd.f32 %v3010, %v3037
      %3039 = vrot.lane.b32.xlu0 %v650, 29
      %v3040 = vpop.permute.xlu0 %3039
      %3041 = vrot.lane.b32.xlu0 %v654, 29
      %v3042 = vpop.permute.xlu0 %3041
      %v3043 = vsel %vm2841, %v3040, %v3042
      %v3044 = vsel %vm2841, %v3042, %v3040
      %v3045 = vstv %s392
      %v3046 = vmul.f32 %v3045, %v299
      %v3049 = vcombine.low %v3044, %v3043
      %v3051 = vunpack.c.l.s4 1966171168
      %v3052 = vunpack.c.0.s8 %v3051
      %v3053 = vlaneseq
      %v3054 = vshrl.u32 %v3053, 7
      %v3055 = vsub.s32 %v3052, %v3054
      %v3056 = vrot.slane %v3049, %v3055
      %v3058 = vunpack.c.l.s4 1966171168
      %v3059 = vunpack.c.0.s8 %v3058
      %v3060 = vlaneseq
      %v3061 = vshrl.u32 %v3060, 7
      %v3062 = vsub.s32 %v3059, %v3061
      %v3063 = vrot.slane %v3056, %v3062
      %v3065 = vmul.f32 %v3046, %v3063
      %v3066 = vadd.f32 %v3038, %v3065
      %3067 = vrot.lane.b32.xlu0 %v650, 13
      %v3068 = vpop.permute.xlu0 %3067
      %3069 = vrot.lane.b32.xlu0 %v654, 13
      %v3070 = vpop.permute.xlu0 %3069
      %v3071 = vsel %vm2870, %v3068, %v3070
      %v3072 = vsel %vm2870, %v3070, %v3068
      %v3073 = vstv %s399
      %v3074 = vmul.f32 %v3073, %v302
      %v3077 = vcombine.low %v3072, %v3071
      %v3079 = vunpack.c.l.s4 1966171168
      %v3080 = vunpack.c.0.s8 %v3079
      %v3081 = vlaneseq
      %v3082 = vshrl.u32 %v3081, 7
      %v3083 = vsub.s32 %v3080, %v3082
      %v3084 = vrot.slane %v3077, %v3083
      %v3086 = vunpack.c.l.s4 1966171168
      %v3087 = vunpack.c.0.s8 %v3086
      %v3088 = vlaneseq
      %v3089 = vshrl.u32 %v3088, 7
      %v3090 = vsub.s32 %v3087, %v3089
      %v3091 = vrot.slane %v3084, %v3090
      %v3093 = vmul.f32 %v3074, %v3091
      %v3094 = vadd.f32 %v3066, %v3093
      %3095 = vrot.lane.b32.xlu0 %v650, 125
      %v3096 = vpop.permute.xlu0 %3095
      %3097 = vrot.lane.b32.xlu0 %v654, 125
      %v3098 = vpop.permute.xlu0 %3097
      %v3099 = vsel %vm2899, %v3096, %v3098
      %v3100 = vsel %vm2899, %v3098, %v3096
      %v3101 = vstv %s406
      %v3102 = vmul.f32 %v3101, %v3099
      %v3103 = vmul.f32 %v3101, %v3100
      %v3106 = vcombine.low %v3102, %v3103
      %v3108 = vunpack.c.l.s4 1966171168
      %v3109 = vunpack.c.0.s8 %v3108
      %v3110 = vlaneseq
      %v3111 = vshrl.u32 %v3110, 7
      %v3112 = vsub.s32 %v3109, %v3111
      %v3113 = vrot.slane %v3106, %v3112
      %v3115 = vunpack.c.l.s4 1966171168
      %v3116 = vunpack.c.0.s8 %v3115
      %v3117 = vlaneseq
      %v3118 = vshrl.u32 %v3117, 7
      %v3119 = vsub.s32 %v3116, %v3118
      %v3120 = vrot.slane %v3113, %v3119
      %v3122 = vadd.f32 %v3094, %v3120
      %3123 = vrot.lane.b32.xlu0 %v650, 109
      %v3124 = vpop.permute.xlu0 %3123
      %3125 = vrot.lane.b32.xlu0 %v654, 109
      %v3126 = vpop.permute.xlu0 %3125
      %v3127 = vsel %vm2928, %v3124, %v3126
      %v3128 = vsel %vm2928, %v3126, %v3124
      %v3129 = vstv %s413
      %v3130 = vmul.f32 %v3129, %v305
      %v3133 = vcombine.low %v3127, %v3128
      %v3135 = vunpack.c.l.s4 1966171168
      %v3136 = vunpack.c.0.s8 %v3135
      %v3137 = vlaneseq
      %v3138 = vshrl.u32 %v3137, 7
      %v3139 = vsub.s32 %v3136, %v3138
      %v3140 = vrot.slane %v3133, %v3139
      %v3142 = vunpack.c.l.s4 1966171168
      %v3143 = vunpack.c.0.s8 %v3142
      %v3144 = vlaneseq
      %v3145 = vshrl.u32 %v3144, 7
      %v3146 = vsub.s32 %v3143, %v3145
      %v3147 = vrot.slane %v3140, %v3146
      %v3149 = vmul.f32 %v3130, %v3147
      %v3150 = vadd.f32 %v3122, %v3149
      %3151 = vrot.lane.b32.xlu0 %v650, 93
      %v3152 = vpop.permute.xlu0 %3151
      %3153 = vrot.lane.b32.xlu0 %v654, 93
      %v3154 = vpop.permute.xlu0 %3153
      %v3155 = vsel %vm2957, %v3152, %v3154
      %v3156 = vsel %vm2957, %v3154, %v3152
      %v3157 = vstv %s420
      %v3158 = vmul.f32 %v3157, %v308
      %v3161 = vcombine.low %v3155, %v3156
      %v3163 = vunpack.c.l.s4 1966171168
      %v3164 = vunpack.c.0.s8 %v3163
      %v3165 = vlaneseq
      %v3166 = vshrl.u32 %v3165, 7
      %v3167 = vsub.s32 %v3164, %v3166
      %v3168 = vrot.slane %v3161, %v3167
      %v3170 = vunpack.c.l.s4 1966171168
      %v3171 = vunpack.c.0.s8 %v3170
      %v3172 = vlaneseq
      %v3173 = vshrl.u32 %v3172, 7
      %v3174 = vsub.s32 %v3171, %v3173
      %v3175 = vrot.slane %v3168, %v3174
      %v3177 = vmul.f32 %v3158, %v3175
      %v3178 = vadd.f32 %v3150, %v3177
      %3179 = vrot.lane.b32.xlu0 %v650, 77
      %v3180 = vpop.permute.xlu0 %3179
      %3181 = vrot.lane.b32.xlu0 %v654, 77
      %v3182 = vpop.permute.xlu0 %3181
      %v3183 = vsel %vm2986, %v3180, %v3182
      %v3184 = vsel %vm2986, %v3182, %v3180
      %v3185 = vstv %s427
      %v3186 = vmul.f32 %v3185, %v311
      %v3189 = vcombine.low %v3183, %v3184
      %v3191 = vunpack.c.l.s4 1966171168
      %v3192 = vunpack.c.0.s8 %v3191
      %v3193 = vlaneseq
      %v3194 = vshrl.u32 %v3193, 7
      %v3195 = vsub.s32 %v3192, %v3194
      %v3196 = vrot.slane %v3189, %v3195
      %v3198 = vunpack.c.l.s4 1966171168
      %v3199 = vunpack.c.0.s8 %v3198
      %v3200 = vlaneseq
      %v3201 = vshrl.u32 %v3200, 7
      %v3202 = vsub.s32 %v3199, %v3201
      %v3203 = vrot.slane %v3196, %v3202
      %v3205 = vmul.f32 %v3186, %v3203
      %v3206 = vadd.f32 %v3178, %v3205
      %v3207 = vmul.f32 %v329, %v3206
      %v3208 = vadd.f32 %v2807, %v3207
      %v3209 = vxor.u32 %v3208, 2147483648
      %v3210 = vmul.f32 %v3209, 1.442695
      %v3211 = vpow.pop %v3210
      %v3212 = vadd.f32 %v3211, 1.0
      %v3213 = vrcp.pop %v3212
      %v3214 = vmul.f32 1.0, %v3213
      %v3215 = vlaneseq
      %vm3216 = vcmp.ge.s32.totalorder %v3215, 0
      %vm3217 = vcmp.lt.s32.totalorder %v3215, 256
      %vm3218 = vmand %vm3216, %vm3217
      %3219 = vst.msk [vmem:[#allocation9] sm:$0x3] %vm3218, %v3214
      %s3220 = scalar_lea.vmem [#allocation2], 2
      %v3221 = vld [vmem:[%s3220] sm:$0x3]
      %s3222 = scalar_lea.vmem [#allocation3], 2
      %v3223 = vld [vmem:[%s3222] sm:$0x3]
      %v3225 = vlaneseq
      %v3226 = vshrl.u32 %v3225, 7
      %v3227 = vsub.s32 0, %v3226
      %v3228 = vrot.slane %v3221, %v3227
      %v3229 = vlaneseq
      %v3230 = vshrl.u32 %v3229, 7
      %v3231 = vsub.s32 1, %v3230
      %v3232 = vrot.slane %v3221, %v3231
      %3235 = vrot.lane.b32.xlu0 %v3228, 51
      %v3236 = vpop.permute.xlu0 %3235
      %3237 = vrot.lane.b32.xlu0 %v3232, 51
      %v3238 = vpop.permute.xlu0 %3237
      %v3239 = vsel %vm447, %v3236, %v3238
      %v3240 = vsel %vm447, %v3238, %v3236
      %v3243 = vcombine.low %v3240, %v3239
      %v3245 = vunpack.c.l.s4 1966171168
      %v3246 = vunpack.c.0.s8 %v3245
      %v3247 = vlaneseq
      %v3248 = vshrl.u32 %v3247, 7
      %v3249 = vsub.s32 %v3246, %v3248
      %v3250 = vrot.slane %v3243, %v3249
      %v3252 = vunpack.c.l.s4 1966171168
      %v3253 = vunpack.c.0.s8 %v3252
      %v3254 = vlaneseq
      %v3255 = vshrl.u32 %v3254, 7
      %v3256 = vsub.s32 %v3253, %v3255
      %v3257 = vrot.slane %v3250, %v3256
      %v3259 = vmul.f32 %v451, %v3257
      %v3260 = vadd.f32 %v3259, 0.0
      %3261 = vrot.lane.b32.xlu0 %v3228, 35
      %v3262 = vpop.permute.xlu0 %3261
      %3263 = vrot.lane.b32.xlu0 %v3232, 35
      %v3264 = vpop.permute.xlu0 %3263
      %v3265 = vsel %vm476, %v3262, %v3264
      %v3266 = vsel %vm476, %v3264, %v3262
      %v3269 = vcombine.low %v3266, %v3265
      %v3271 = vunpack.c.l.s4 1966171168
      %v3272 = vunpack.c.0.s8 %v3271
      %v3273 = vlaneseq
      %v3274 = vshrl.u32 %v3273, 7
      %v3275 = vsub.s32 %v3272, %v3274
      %v3276 = vrot.slane %v3269, %v3275
      %v3278 = vunpack.c.l.s4 1966171168
      %v3279 = vunpack.c.0.s8 %v3278
      %v3280 = vlaneseq
      %v3281 = vshrl.u32 %v3280, 7
      %v3282 = vsub.s32 %v3279, %v3281
      %v3283 = vrot.slane %v3276, %v3282
      %v3285 = vmul.f32 %v480, %v3283
      %v3286 = vadd.f32 %v3260, %v3285
      %3287 = vrot.lane.b32.xlu0 %v3228, 19
      %v3288 = vpop.permute.xlu0 %3287
      %3289 = vrot.lane.b32.xlu0 %v3232, 19
      %v3290 = vpop.permute.xlu0 %3289
      %v3291 = vsel %vm505, %v3288, %v3290
      %v3292 = vsel %vm505, %v3290, %v3288
      %v3295 = vcombine.low %v3292, %v3291
      %v3297 = vunpack.c.l.s4 1966171168
      %v3298 = vunpack.c.0.s8 %v3297
      %v3299 = vlaneseq
      %v3300 = vshrl.u32 %v3299, 7
      %v3301 = vsub.s32 %v3298, %v3300
      %v3302 = vrot.slane %v3295, %v3301
      %v3304 = vunpack.c.l.s4 1966171168
      %v3305 = vunpack.c.0.s8 %v3304
      %v3306 = vlaneseq
      %v3307 = vshrl.u32 %v3306, 7
      %v3308 = vsub.s32 %v3305, %v3307
      %v3309 = vrot.slane %v3302, %v3308
      %v3311 = vmul.f32 %v509, %v3309
      %v3312 = vadd.f32 %v3286, %v3311
      %3313 = vrot.lane.b32.xlu0 %v3228, 3
      %v3314 = vpop.permute.xlu0 %3313
      %3315 = vrot.lane.b32.xlu0 %v3232, 3
      %v3316 = vpop.permute.xlu0 %3315
      %v3317 = vsel %vm534, %v3314, %v3316
      %v3318 = vsel %vm534, %v3316, %v3314
      %v3319 = vmul.f32 %v537, %v3318
      %v3320 = vmul.f32 %v537, %v3317
      %v3323 = vcombine.low %v3319, %v3320
      %v3325 = vunpack.c.l.s4 1966171168
      %v3326 = vunpack.c.0.s8 %v3325
      %v3327 = vlaneseq
      %v3328 = vshrl.u32 %v3327, 7
      %v3329 = vsub.s32 %v3326, %v3328
      %v3330 = vrot.slane %v3323, %v3329
      %v3332 = vunpack.c.l.s4 1966171168
      %v3333 = vunpack.c.0.s8 %v3332
      %v3334 = vlaneseq
      %v3335 = vshrl.u32 %v3334, 7
      %v3336 = vsub.s32 %v3333, %v3335
      %v3337 = vrot.slane %v3330, %v3336
      %v3339 = vadd.f32 %v3312, %v3337
      %3340 = vrot.lane.b32.xlu0 %v3228, 115
      %v3341 = vpop.permute.xlu0 %3340
      %3342 = vrot.lane.b32.xlu0 %v3232, 115
      %v3343 = vpop.permute.xlu0 %3342
      %v3344 = vsel %vm563, %v3341, %v3343
      %v3345 = vsel %vm563, %v3343, %v3341
      %v3348 = vcombine.low %v3344, %v3345
      %v3350 = vunpack.c.l.s4 1966171168
      %v3351 = vunpack.c.0.s8 %v3350
      %v3352 = vlaneseq
      %v3353 = vshrl.u32 %v3352, 7
      %v3354 = vsub.s32 %v3351, %v3353
      %v3355 = vrot.slane %v3348, %v3354
      %v3357 = vunpack.c.l.s4 1966171168
      %v3358 = vunpack.c.0.s8 %v3357
      %v3359 = vlaneseq
      %v3360 = vshrl.u32 %v3359, 7
      %v3361 = vsub.s32 %v3358, %v3360
      %v3362 = vrot.slane %v3355, %v3361
      %v3364 = vmul.f32 %v567, %v3362
      %v3365 = vadd.f32 %v3339, %v3364
      %3366 = vrot.lane.b32.xlu0 %v3228, 99
      %v3367 = vpop.permute.xlu0 %3366
      %3368 = vrot.lane.b32.xlu0 %v3232, 99
      %v3369 = vpop.permute.xlu0 %3368
      %v3370 = vsel %vm592, %v3367, %v3369
      %v3371 = vsel %vm592, %v3369, %v3367
      %v3374 = vcombine.low %v3370, %v3371
      %v3376 = vunpack.c.l.s4 1966171168
      %v3377 = vunpack.c.0.s8 %v3376
      %v3378 = vlaneseq
      %v3379 = vshrl.u32 %v3378, 7
      %v3380 = vsub.s32 %v3377, %v3379
      %v3381 = vrot.slane %v3374, %v3380
      %v3383 = vunpack.c.l.s4 1966171168
      %v3384 = vunpack.c.0.s8 %v3383
      %v3385 = vlaneseq
      %v3386 = vshrl.u32 %v3385, 7
      %v3387 = vsub.s32 %v3384, %v3386
      %v3388 = vrot.slane %v3381, %v3387
      %v3390 = vmul.f32 %v596, %v3388
      %v3391 = vadd.f32 %v3365, %v3390
      %3392 = vrot.lane.b32.xlu0 %v3228, 83
      %v3393 = vpop.permute.xlu0 %3392
      %3394 = vrot.lane.b32.xlu0 %v3232, 83
      %v3395 = vpop.permute.xlu0 %3394
      %v3396 = vsel %vm621, %v3393, %v3395
      %v3397 = vsel %vm621, %v3395, %v3393
      %v3400 = vcombine.low %v3396, %v3397
      %v3402 = vunpack.c.l.s4 1966171168
      %v3403 = vunpack.c.0.s8 %v3402
      %v3404 = vlaneseq
      %v3405 = vshrl.u32 %v3404, 7
      %v3406 = vsub.s32 %v3403, %v3405
      %v3407 = vrot.slane %v3400, %v3406
      %v3409 = vunpack.c.l.s4 1966171168
      %v3410 = vunpack.c.0.s8 %v3409
      %v3411 = vlaneseq
      %v3412 = vshrl.u32 %v3411, 7
      %v3413 = vsub.s32 %v3410, %v3412
      %v3414 = vrot.slane %v3407, %v3413
      %v3416 = vmul.f32 %v625, %v3414
      %v3417 = vadd.f32 %v3391, %v3416
      %v3419 = vlaneseq
      %v3420 = vshrl.u32 %v3419, 7
      %v3421 = vsub.s32 0, %v3420
      %v3422 = vrot.slane %v3223, %v3421
      %v3423 = vlaneseq
      %v3424 = vshrl.u32 %v3423, 7
      %v3425 = vsub.s32 1, %v3424
      %v3426 = vrot.slane %v3223, %v3425
      %3429 = vrot.lane.b32.xlu0 %v3422, 51
      %v3430 = vpop.permute.xlu0 %3429
      %3431 = vrot.lane.b32.xlu0 %v3426, 51
      %v3432 = vpop.permute.xlu0 %3431
      %v3433 = vsel %vm447, %v3430, %v3432
      %v3434 = vsel %vm447, %v3432, %v3430
      %v3437 = vcombine.low %v3434, %v3433
      %v3439 = vunpack.c.l.s4 1966171168
      %v3440 = vunpack.c.0.s8 %v3439
      %v3441 = vlaneseq
      %v3442 = vshrl.u32 %v3441, 7
      %v3443 = vsub.s32 %v3440, %v3442
      %v3444 = vrot.slane %v3437, %v3443
      %v3446 = vunpack.c.l.s4 1966171168
      %v3447 = vunpack.c.0.s8 %v3446
      %v3448 = vlaneseq
      %v3449 = vshrl.u32 %v3448, 7
      %v3450 = vsub.s32 %v3447, %v3449
      %v3451 = vrot.slane %v3444, %v3450
      %v3453 = vmul.f32 %v664, %v3451
      %v3454 = vadd.f32 %v3417, %v3453
      %3455 = vrot.lane.b32.xlu0 %v3422, 35
      %v3456 = vpop.permute.xlu0 %3455
      %3457 = vrot.lane.b32.xlu0 %v3426, 35
      %v3458 = vpop.permute.xlu0 %3457
      %v3459 = vsel %vm476, %v3456, %v3458
      %v3460 = vsel %vm476, %v3458, %v3456
      %v3463 = vcombine.low %v3460, %v3459
      %v3465 = vunpack.c.l.s4 1966171168
      %v3466 = vunpack.c.0.s8 %v3465
      %v3467 = vlaneseq
      %v3468 = vshrl.u32 %v3467, 7
      %v3469 = vsub.s32 %v3466, %v3468
      %v3470 = vrot.slane %v3463, %v3469
      %v3472 = vunpack.c.l.s4 1966171168
      %v3473 = vunpack.c.0.s8 %v3472
      %v3474 = vlaneseq
      %v3475 = vshrl.u32 %v3474, 7
      %v3476 = vsub.s32 %v3473, %v3475
      %v3477 = vrot.slane %v3470, %v3476
      %v3479 = vmul.f32 %v692, %v3477
      %v3480 = vadd.f32 %v3454, %v3479
      %3481 = vrot.lane.b32.xlu0 %v3422, 19
      %v3482 = vpop.permute.xlu0 %3481
      %3483 = vrot.lane.b32.xlu0 %v3426, 19
      %v3484 = vpop.permute.xlu0 %3483
      %v3485 = vsel %vm505, %v3482, %v3484
      %v3486 = vsel %vm505, %v3484, %v3482
      %v3489 = vcombine.low %v3486, %v3485
      %v3491 = vunpack.c.l.s4 1966171168
      %v3492 = vunpack.c.0.s8 %v3491
      %v3493 = vlaneseq
      %v3494 = vshrl.u32 %v3493, 7
      %v3495 = vsub.s32 %v3492, %v3494
      %v3496 = vrot.slane %v3489, %v3495
      %v3498 = vunpack.c.l.s4 1966171168
      %v3499 = vunpack.c.0.s8 %v3498
      %v3500 = vlaneseq
      %v3501 = vshrl.u32 %v3500, 7
      %v3502 = vsub.s32 %v3499, %v3501
      %v3503 = vrot.slane %v3496, %v3502
      %v3505 = vmul.f32 %v720, %v3503
      %v3506 = vadd.f32 %v3480, %v3505
      %3507 = vrot.lane.b32.xlu0 %v3422, 3
      %v3508 = vpop.permute.xlu0 %3507
      %3509 = vrot.lane.b32.xlu0 %v3426, 3
      %v3510 = vpop.permute.xlu0 %3509
      %v3511 = vsel %vm534, %v3508, %v3510
      %v3512 = vsel %vm534, %v3510, %v3508
      %v3513 = vmul.f32 %v747, %v3512
      %v3514 = vmul.f32 %v747, %v3511
      %v3517 = vcombine.low %v3513, %v3514
      %v3519 = vunpack.c.l.s4 1966171168
      %v3520 = vunpack.c.0.s8 %v3519
      %v3521 = vlaneseq
      %v3522 = vshrl.u32 %v3521, 7
      %v3523 = vsub.s32 %v3520, %v3522
      %v3524 = vrot.slane %v3517, %v3523
      %v3526 = vunpack.c.l.s4 1966171168
      %v3527 = vunpack.c.0.s8 %v3526
      %v3528 = vlaneseq
      %v3529 = vshrl.u32 %v3528, 7
      %v3530 = vsub.s32 %v3527, %v3529
      %v3531 = vrot.slane %v3524, %v3530
      %v3533 = vadd.f32 %v3506, %v3531
      %3534 = vrot.lane.b32.xlu0 %v3422, 115
      %v3535 = vpop.permute.xlu0 %3534
      %3536 = vrot.lane.b32.xlu0 %v3426, 115
      %v3537 = vpop.permute.xlu0 %3536
      %v3538 = vsel %vm563, %v3535, %v3537
      %v3539 = vsel %vm563, %v3537, %v3535
      %v3542 = vcombine.low %v3538, %v3539
      %v3544 = vunpack.c.l.s4 1966171168
      %v3545 = vunpack.c.0.s8 %v3544
      %v3546 = vlaneseq
      %v3547 = vshrl.u32 %v3546, 7
      %v3548 = vsub.s32 %v3545, %v3547
      %v3549 = vrot.slane %v3542, %v3548
      %v3551 = vunpack.c.l.s4 1966171168
      %v3552 = vunpack.c.0.s8 %v3551
      %v3553 = vlaneseq
      %v3554 = vshrl.u32 %v3553, 7
      %v3555 = vsub.s32 %v3552, %v3554
      %v3556 = vrot.slane %v3549, %v3555
      %v3558 = vmul.f32 %v776, %v3556
      %v3559 = vadd.f32 %v3533, %v3558
      %3560 = vrot.lane.b32.xlu0 %v3422, 99
      %v3561 = vpop.permute.xlu0 %3560
      %3562 = vrot.lane.b32.xlu0 %v3426, 99
      %v3563 = vpop.permute.xlu0 %3562
      %v3564 = vsel %vm592, %v3561, %v3563
      %v3565 = vsel %vm592, %v3563, %v3561
      %v3568 = vcombine.low %v3564, %v3565
      %v3570 = vunpack.c.l.s4 1966171168
      %v3571 = vunpack.c.0.s8 %v3570
      %v3572 = vlaneseq
      %v3573 = vshrl.u32 %v3572, 7
      %v3574 = vsub.s32 %v3571, %v3573
      %v3575 = vrot.slane %v3568, %v3574
      %v3577 = vunpack.c.l.s4 1966171168
      %v3578 = vunpack.c.0.s8 %v3577
      %v3579 = vlaneseq
      %v3580 = vshrl.u32 %v3579, 7
      %v3581 = vsub.s32 %v3578, %v3580
      %v3582 = vrot.slane %v3575, %v3581
      %v3584 = vmul.f32 %v804, %v3582
      %v3585 = vadd.f32 %v3559, %v3584
      %3586 = vrot.lane.b32.xlu0 %v3422, 83
      %v3587 = vpop.permute.xlu0 %3586
      %3588 = vrot.lane.b32.xlu0 %v3426, 83
      %v3589 = vpop.permute.xlu0 %3588
      %v3590 = vsel %vm621, %v3587, %v3589
      %v3591 = vsel %vm621, %v3589, %v3587
      %v3594 = vcombine.low %v3590, %v3591
      %v3596 = vunpack.c.l.s4 1966171168
      %v3597 = vunpack.c.0.s8 %v3596
      %v3598 = vlaneseq
      %v3599 = vshrl.u32 %v3598, 7
      %v3600 = vsub.s32 %v3597, %v3599
      %v3601 = vrot.slane %v3594, %v3600
      %v3603 = vunpack.c.l.s4 1966171168
      %v3604 = vunpack.c.0.s8 %v3603
      %v3605 = vlaneseq
      %v3606 = vshrl.u32 %v3605, 7
      %v3607 = vsub.s32 %v3604, %v3606
      %v3608 = vrot.slane %v3601, %v3607
      %v3610 = vmul.f32 %v832, %v3608
      %v3611 = vadd.f32 %v3585, %v3610
      %v3612 = vmul.f32 %v314, %v3611
      %v3613 = vadd.f32 %v3612, 0.0
      %3614 = vrot.lane.b32.xlu0 %v3228, 50
      %v3615 = vpop.permute.xlu0 %3614
      %3616 = vrot.lane.b32.xlu0 %v3232, 50
      %v3617 = vpop.permute.xlu0 %3616
      %v3618 = vsel %vm859, %v3615, %v3617
      %v3619 = vsel %vm859, %v3617, %v3615
      %v3622 = vcombine.low %v3619, %v3618
      %v3624 = vunpack.c.l.s4 1966171168
      %v3625 = vunpack.c.0.s8 %v3624
      %v3626 = vlaneseq
      %v3627 = vshrl.u32 %v3626, 7
      %v3628 = vsub.s32 %v3625, %v3627
      %v3629 = vrot.slane %v3622, %v3628
      %v3631 = vunpack.c.l.s4 1966171168
      %v3632 = vunpack.c.0.s8 %v3631
      %v3633 = vlaneseq
      %v3634 = vshrl.u32 %v3633, 7
      %v3635 = vsub.s32 %v3632, %v3634
      %v3636 = vrot.slane %v3629, %v3635
      %v3638 = vmul.f32 %v863, %v3636
      %v3639 = vadd.f32 %v3638, 0.0
      %3640 = vrot.lane.b32.xlu0 %v3228, 34
      %v3641 = vpop.permute.xlu0 %3640
      %3642 = vrot.lane.b32.xlu0 %v3232, 34
      %v3643 = vpop.permute.xlu0 %3642
      %v3644 = vsel %vm888, %v3641, %v3643
      %v3645 = vsel %vm888, %v3643, %v3641
      %v3648 = vcombine.low %v3645, %v3644
      %v3650 = vunpack.c.l.s4 1966171168
      %v3651 = vunpack.c.0.s8 %v3650
      %v3652 = vlaneseq
      %v3653 = vshrl.u32 %v3652, 7
      %v3654 = vsub.s32 %v3651, %v3653
      %v3655 = vrot.slane %v3648, %v3654
      %v3657 = vunpack.c.l.s4 1966171168
      %v3658 = vunpack.c.0.s8 %v3657
      %v3659 = vlaneseq
      %v3660 = vshrl.u32 %v3659, 7
      %v3661 = vsub.s32 %v3658, %v3660
      %v3662 = vrot.slane %v3655, %v3661
      %v3664 = vmul.f32 %v892, %v3662
      %v3665 = vadd.f32 %v3639, %v3664
      %3666 = vrot.lane.b32.xlu0 %v3228, 18
      %v3667 = vpop.permute.xlu0 %3666
      %3668 = vrot.lane.b32.xlu0 %v3232, 18
      %v3669 = vpop.permute.xlu0 %3668
      %v3670 = vsel %vm917, %v3667, %v3669
      %v3671 = vsel %vm917, %v3669, %v3667
      %v3674 = vcombine.low %v3671, %v3670
      %v3676 = vunpack.c.l.s4 1966171168
      %v3677 = vunpack.c.0.s8 %v3676
      %v3678 = vlaneseq
      %v3679 = vshrl.u32 %v3678, 7
      %v3680 = vsub.s32 %v3677, %v3679
      %v3681 = vrot.slane %v3674, %v3680
      %v3683 = vunpack.c.l.s4 1966171168
      %v3684 = vunpack.c.0.s8 %v3683
      %v3685 = vlaneseq
      %v3686 = vshrl.u32 %v3685, 7
      %v3687 = vsub.s32 %v3684, %v3686
      %v3688 = vrot.slane %v3681, %v3687
      %v3690 = vmul.f32 %v921, %v3688
      %v3691 = vadd.f32 %v3665, %v3690
      %3692 = vrot.lane.b32.xlu0 %v3228, 2
      %v3693 = vpop.permute.xlu0 %3692
      %3694 = vrot.lane.b32.xlu0 %v3232, 2
      %v3695 = vpop.permute.xlu0 %3694
      %v3696 = vsel %vm946, %v3693, %v3695
      %v3697 = vsel %vm946, %v3695, %v3693
      %v3698 = vmul.f32 %v949, %v3697
      %v3699 = vmul.f32 %v949, %v3696
      %v3702 = vcombine.low %v3698, %v3699
      %v3704 = vunpack.c.l.s4 1966171168
      %v3705 = vunpack.c.0.s8 %v3704
      %v3706 = vlaneseq
      %v3707 = vshrl.u32 %v3706, 7
      %v3708 = vsub.s32 %v3705, %v3707
      %v3709 = vrot.slane %v3702, %v3708
      %v3711 = vunpack.c.l.s4 1966171168
      %v3712 = vunpack.c.0.s8 %v3711
      %v3713 = vlaneseq
      %v3714 = vshrl.u32 %v3713, 7
      %v3715 = vsub.s32 %v3712, %v3714
      %v3716 = vrot.slane %v3709, %v3715
      %v3718 = vadd.f32 %v3691, %v3716
      %3719 = vrot.lane.b32.xlu0 %v3228, 114
      %v3720 = vpop.permute.xlu0 %3719
      %3721 = vrot.lane.b32.xlu0 %v3232, 114
      %v3722 = vpop.permute.xlu0 %3721
      %v3723 = vsel %vm975, %v3720, %v3722
      %v3724 = vsel %vm975, %v3722, %v3720
      %v3727 = vcombine.low %v3723, %v3724
      %v3729 = vunpack.c.l.s4 1966171168
      %v3730 = vunpack.c.0.s8 %v3729
      %v3731 = vlaneseq
      %v3732 = vshrl.u32 %v3731, 7
      %v3733 = vsub.s32 %v3730, %v3732
      %v3734 = vrot.slane %v3727, %v3733
      %v3736 = vunpack.c.l.s4 1966171168
      %v3737 = vunpack.c.0.s8 %v3736
      %v3738 = vlaneseq
      %v3739 = vshrl.u32 %v3738, 7
      %v3740 = vsub.s32 %v3737, %v3739
      %v3741 = vrot.slane %v3734, %v3740
      %v3743 = vmul.f32 %v979, %v3741
      %v3744 = vadd.f32 %v3718, %v3743
      %3745 = vrot.lane.b32.xlu0 %v3228, 98
      %v3746 = vpop.permute.xlu0 %3745
      %3747 = vrot.lane.b32.xlu0 %v3232, 98
      %v3748 = vpop.permute.xlu0 %3747
      %v3749 = vsel %vm1004, %v3746, %v3748
      %v3750 = vsel %vm1004, %v3748, %v3746
      %v3753 = vcombine.low %v3749, %v3750
      %v3755 = vunpack.c.l.s4 1966171168
      %v3756 = vunpack.c.0.s8 %v3755
      %v3757 = vlaneseq
      %v3758 = vshrl.u32 %v3757, 7
      %v3759 = vsub.s32 %v3756, %v3758
      %v3760 = vrot.slane %v3753, %v3759
      %v3762 = vunpack.c.l.s4 1966171168
      %v3763 = vunpack.c.0.s8 %v3762
      %v3764 = vlaneseq
      %v3765 = vshrl.u32 %v3764, 7
      %v3766 = vsub.s32 %v3763, %v3765
      %v3767 = vrot.slane %v3760, %v3766
      %v3769 = vmul.f32 %v1008, %v3767
      %v3770 = vadd.f32 %v3744, %v3769
      %3771 = vrot.lane.b32.xlu0 %v3228, 82
      %v3772 = vpop.permute.xlu0 %3771
      %3773 = vrot.lane.b32.xlu0 %v3232, 82
      %v3774 = vpop.permute.xlu0 %3773
      %v3775 = vsel %vm1033, %v3772, %v3774
      %v3776 = vsel %vm1033, %v3774, %v3772
      %v3779 = vcombine.low %v3775, %v3776
      %v3781 = vunpack.c.l.s4 1966171168
      %v3782 = vunpack.c.0.s8 %v3781
      %v3783 = vlaneseq
      %v3784 = vshrl.u32 %v3783, 7
      %v3785 = vsub.s32 %v3782, %v3784
      %v3786 = vrot.slane %v3779, %v3785
      %v3788 = vunpack.c.l.s4 1966171168
      %v3789 = vunpack.c.0.s8 %v3788
      %v3790 = vlaneseq
      %v3791 = vshrl.u32 %v3790, 7
      %v3792 = vsub.s32 %v3789, %v3791
      %v3793 = vrot.slane %v3786, %v3792
      %v3795 = vmul.f32 %v1037, %v3793
      %v3796 = vadd.f32 %v3770, %v3795
      %3797 = vrot.lane.b32.xlu0 %v3422, 50
      %v3798 = vpop.permute.xlu0 %3797
      %3799 = vrot.lane.b32.xlu0 %v3426, 50
      %v3800 = vpop.permute.xlu0 %3799
      %v3801 = vsel %vm859, %v3798, %v3800
      %v3802 = vsel %vm859, %v3800, %v3798
      %v3805 = vcombine.low %v3802, %v3801
      %v3807 = vunpack.c.l.s4 1966171168
      %v3808 = vunpack.c.0.s8 %v3807
      %v3809 = vlaneseq
      %v3810 = vshrl.u32 %v3809, 7
      %v3811 = vsub.s32 %v3808, %v3810
      %v3812 = vrot.slane %v3805, %v3811
      %v3814 = vunpack.c.l.s4 1966171168
      %v3815 = vunpack.c.0.s8 %v3814
      %v3816 = vlaneseq
      %v3817 = vshrl.u32 %v3816, 7
      %v3818 = vsub.s32 %v3815, %v3817
      %v3819 = vrot.slane %v3812, %v3818
      %v3821 = vmul.f32 %v1065, %v3819
      %v3822 = vadd.f32 %v3796, %v3821
      %3823 = vrot.lane.b32.xlu0 %v3422, 34
      %v3824 = vpop.permute.xlu0 %3823
      %3825 = vrot.lane.b32.xlu0 %v3426, 34
      %v3826 = vpop.permute.xlu0 %3825
      %v3827 = vsel %vm888, %v3824, %v3826
      %v3828 = vsel %vm888, %v3826, %v3824
      %v3831 = vcombine.low %v3828, %v3827
      %v3833 = vunpack.c.l.s4 1966171168
      %v3834 = vunpack.c.0.s8 %v3833
      %v3835 = vlaneseq
      %v3836 = vshrl.u32 %v3835, 7
      %v3837 = vsub.s32 %v3834, %v3836
      %v3838 = vrot.slane %v3831, %v3837
      %v3840 = vunpack.c.l.s4 1966171168
      %v3841 = vunpack.c.0.s8 %v3840
      %v3842 = vlaneseq
      %v3843 = vshrl.u32 %v3842, 7
      %v3844 = vsub.s32 %v3841, %v3843
      %v3845 = vrot.slane %v3838, %v3844
      %v3847 = vmul.f32 %v1093, %v3845
      %v3848 = vadd.f32 %v3822, %v3847
      %3849 = vrot.lane.b32.xlu0 %v3422, 18
      %v3850 = vpop.permute.xlu0 %3849
      %3851 = vrot.lane.b32.xlu0 %v3426, 18
      %v3852 = vpop.permute.xlu0 %3851
      %v3853 = vsel %vm917, %v3850, %v3852
      %v3854 = vsel %vm917, %v3852, %v3850
      %v3857 = vcombine.low %v3854, %v3853
      %v3859 = vunpack.c.l.s4 1966171168
      %v3860 = vunpack.c.0.s8 %v3859
      %v3861 = vlaneseq
      %v3862 = vshrl.u32 %v3861, 7
      %v3863 = vsub.s32 %v3860, %v3862
      %v3864 = vrot.slane %v3857, %v3863
      %v3866 = vunpack.c.l.s4 1966171168
      %v3867 = vunpack.c.0.s8 %v3866
      %v3868 = vlaneseq
      %v3869 = vshrl.u32 %v3868, 7
      %v3870 = vsub.s32 %v3867, %v3869
      %v3871 = vrot.slane %v3864, %v3870
      %v3873 = vmul.f32 %v1121, %v3871
      %v3874 = vadd.f32 %v3848, %v3873
      %3875 = vrot.lane.b32.xlu0 %v3422, 2
      %v3876 = vpop.permute.xlu0 %3875
      %3877 = vrot.lane.b32.xlu0 %v3426, 2
      %v3878 = vpop.permute.xlu0 %3877
      %v3879 = vsel %vm946, %v3876, %v3878
      %v3880 = vsel %vm946, %v3878, %v3876
      %v3881 = vmul.f32 %v1148, %v3880
      %v3882 = vmul.f32 %v1148, %v3879
      %v3885 = vcombine.low %v3881, %v3882
      %v3887 = vunpack.c.l.s4 1966171168
      %v3888 = vunpack.c.0.s8 %v3887
      %v3889 = vlaneseq
      %v3890 = vshrl.u32 %v3889, 7
      %v3891 = vsub.s32 %v3888, %v3890
      %v3892 = vrot.slane %v3885, %v3891
      %v3894 = vunpack.c.l.s4 1966171168
      %v3895 = vunpack.c.0.s8 %v3894
      %v3896 = vlaneseq
      %v3897 = vshrl.u32 %v3896, 7
      %v3898 = vsub.s32 %v3895, %v3897
      %v3899 = vrot.slane %v3892, %v3898
      %v3901 = vadd.f32 %v3874, %v3899
      %3902 = vrot.lane.b32.xlu0 %v3422, 114
      %v3903 = vpop.permute.xlu0 %3902
      %3904 = vrot.lane.b32.xlu0 %v3426, 114
      %v3905 = vpop.permute.xlu0 %3904
      %v3906 = vsel %vm975, %v3903, %v3905
      %v3907 = vsel %vm975, %v3905, %v3903
      %v3910 = vcombine.low %v3906, %v3907
      %v3912 = vunpack.c.l.s4 1966171168
      %v3913 = vunpack.c.0.s8 %v3912
      %v3914 = vlaneseq
      %v3915 = vshrl.u32 %v3914, 7
      %v3916 = vsub.s32 %v3913, %v3915
      %v3917 = vrot.slane %v3910, %v3916
      %v3919 = vunpack.c.l.s4 1966171168
      %v3920 = vunpack.c.0.s8 %v3919
      %v3921 = vlaneseq
      %v3922 = vshrl.u32 %v3921, 7
      %v3923 = vsub.s32 %v3920, %v3922
      %v3924 = vrot.slane %v3917, %v3923
      %v3926 = vmul.f32 %v1177, %v3924
      %v3927 = vadd.f32 %v3901, %v3926
      %3928 = vrot.lane.b32.xlu0 %v3422, 98
      %v3929 = vpop.permute.xlu0 %3928
      %3930 = vrot.lane.b32.xlu0 %v3426, 98
      %v3931 = vpop.permute.xlu0 %3930
      %v3932 = vsel %vm1004, %v3929, %v3931
      %v3933 = vsel %vm1004, %v3931, %v3929
      %v3936 = vcombine.low %v3932, %v3933
      %v3938 = vunpack.c.l.s4 1966171168
      %v3939 = vunpack.c.0.s8 %v3938
      %v3940 = vlaneseq
      %v3941 = vshrl.u32 %v3940, 7
      %v3942 = vsub.s32 %v3939, %v3941
      %v3943 = vrot.slane %v3936, %v3942
      %v3945 = vunpack.c.l.s4 1966171168
      %v3946 = vunpack.c.0.s8 %v3945
      %v3947 = vlaneseq
      %v3948 = vshrl.u32 %v3947, 7
      %v3949 = vsub.s32 %v3946, %v3948
      %v3950 = vrot.slane %v3943, %v3949
      %v3952 = vmul.f32 %v1205, %v3950
      %v3953 = vadd.f32 %v3927, %v3952
      %3954 = vrot.lane.b32.xlu0 %v3422, 82
      %v3955 = vpop.permute.xlu0 %3954
      %3956 = vrot.lane.b32.xlu0 %v3426, 82
      %v3957 = vpop.permute.xlu0 %3956
      %v3958 = vsel %vm1033, %v3955, %v3957
      %v3959 = vsel %vm1033, %v3957, %v3955
      %v3962 = vcombine.low %v3958, %v3959
      %v3964 = vunpack.c.l.s4 1966171168
      %v3965 = vunpack.c.0.s8 %v3964
      %v3966 = vlaneseq
      %v3967 = vshrl.u32 %v3966, 7
      %v3968 = vsub.s32 %v3965, %v3967
      %v3969 = vrot.slane %v3962, %v3968
      %v3971 = vunpack.c.l.s4 1966171168
      %v3972 = vunpack.c.0.s8 %v3971
      %v3973 = vlaneseq
      %v3974 = vshrl.u32 %v3973, 7
      %v3975 = vsub.s32 %v3972, %v3974
      %v3976 = vrot.slane %v3969, %v3975
      %v3978 = vmul.f32 %v1233, %v3976
      %v3979 = vadd.f32 %v3953, %v3978
      %v3980 = vmul.f32 %v317, %v3979
      %v3981 = vadd.f32 %v3613, %v3980
      %3982 = vrot.lane.b32.xlu0 %v3228, 49
      %v3983 = vpop.permute.xlu0 %3982
      %3984 = vrot.lane.b32.xlu0 %v3232, 49
      %v3985 = vpop.permute.xlu0 %3984
      %v3986 = vsel %vm1260, %v3983, %v3985
      %v3987 = vsel %vm1260, %v3985, %v3983
      %v3990 = vcombine.low %v3987, %v3986
      %v3992 = vunpack.c.l.s4 1966171168
      %v3993 = vunpack.c.0.s8 %v3992
      %v3994 = vlaneseq
      %v3995 = vshrl.u32 %v3994, 7
      %v3996 = vsub.s32 %v3993, %v3995
      %v3997 = vrot.slane %v3990, %v3996
      %v3999 = vunpack.c.l.s4 1966171168
      %v4000 = vunpack.c.0.s8 %v3999
      %v4001 = vlaneseq
      %v4002 = vshrl.u32 %v4001, 7
      %v4003 = vsub.s32 %v4000, %v4002
      %v4004 = vrot.slane %v3997, %v4003
      %v4006 = vmul.f32 %v1264, %v4004
      %v4007 = vadd.f32 %v4006, 0.0
      %4008 = vrot.lane.b32.xlu0 %v3228, 33
      %v4009 = vpop.permute.xlu0 %4008
      %4010 = vrot.lane.b32.xlu0 %v3232, 33
      %v4011 = vpop.permute.xlu0 %4010
      %v4012 = vsel %vm1289, %v4009, %v4011
      %v4013 = vsel %vm1289, %v4011, %v4009
      %v4016 = vcombine.low %v4013, %v4012
      %v4018 = vunpack.c.l.s4 1966171168
      %v4019 = vunpack.c.0.s8 %v4018
      %v4020 = vlaneseq
      %v4021 = vshrl.u32 %v4020, 7
      %v4022 = vsub.s32 %v4019, %v4021
      %v4023 = vrot.slane %v4016, %v4022
      %v4025 = vunpack.c.l.s4 1966171168
      %v4026 = vunpack.c.0.s8 %v4025
      %v4027 = vlaneseq
      %v4028 = vshrl.u32 %v4027, 7
      %v4029 = vsub.s32 %v4026, %v4028
      %v4030 = vrot.slane %v4023, %v4029
      %v4032 = vmul.f32 %v1293, %v4030
      %v4033 = vadd.f32 %v4007, %v4032
      %4034 = vrot.lane.b32.xlu0 %v3228, 17
      %v4035 = vpop.permute.xlu0 %4034
      %4036 = vrot.lane.b32.xlu0 %v3232, 17
      %v4037 = vpop.permute.xlu0 %4036
      %v4038 = vsel %vm1318, %v4035, %v4037
      %v4039 = vsel %vm1318, %v4037, %v4035
      %v4042 = vcombine.low %v4039, %v4038
      %v4044 = vunpack.c.l.s4 1966171168
      %v4045 = vunpack.c.0.s8 %v4044
      %v4046 = vlaneseq
      %v4047 = vshrl.u32 %v4046, 7
      %v4048 = vsub.s32 %v4045, %v4047
      %v4049 = vrot.slane %v4042, %v4048
      %v4051 = vunpack.c.l.s4 1966171168
      %v4052 = vunpack.c.0.s8 %v4051
      %v4053 = vlaneseq
      %v4054 = vshrl.u32 %v4053, 7
      %v4055 = vsub.s32 %v4052, %v4054
      %v4056 = vrot.slane %v4049, %v4055
      %v4058 = vmul.f32 %v1322, %v4056
      %v4059 = vadd.f32 %v4033, %v4058
      %4060 = vrot.lane.b32.xlu0 %v3228, 1
      %v4061 = vpop.permute.xlu0 %4060
      %4062 = vrot.lane.b32.xlu0 %v3232, 1
      %v4063 = vpop.permute.xlu0 %4062
      %v4064 = vsel %vm1347, %v4061, %v4063
      %v4065 = vsel %vm1347, %v4063, %v4061
      %v4066 = vmul.f32 %v1350, %v4065
      %v4067 = vmul.f32 %v1350, %v4064
      %v4070 = vcombine.low %v4066, %v4067
      %v4072 = vunpack.c.l.s4 1966171168
      %v4073 = vunpack.c.0.s8 %v4072
      %v4074 = vlaneseq
      %v4075 = vshrl.u32 %v4074, 7
      %v4076 = vsub.s32 %v4073, %v4075
      %v4077 = vrot.slane %v4070, %v4076
      %v4079 = vunpack.c.l.s4 1966171168
      %v4080 = vunpack.c.0.s8 %v4079
      %v4081 = vlaneseq
      %v4082 = vshrl.u32 %v4081, 7
      %v4083 = vsub.s32 %v4080, %v4082
      %v4084 = vrot.slane %v4077, %v4083
      %v4086 = vadd.f32 %v4059, %v4084
      %4087 = vrot.lane.b32.xlu0 %v3228, 113
      %v4088 = vpop.permute.xlu0 %4087
      %4089 = vrot.lane.b32.xlu0 %v3232, 113
      %v4090 = vpop.permute.xlu0 %4089
      %v4091 = vsel %vm1376, %v4088, %v4090
      %v4092 = vsel %vm1376, %v4090, %v4088
      %v4095 = vcombine.low %v4091, %v4092
      %v4097 = vunpack.c.l.s4 1966171168
      %v4098 = vunpack.c.0.s8 %v4097
      %v4099 = vlaneseq
      %v4100 = vshrl.u32 %v4099, 7
      %v4101 = vsub.s32 %v4098, %v4100
      %v4102 = vrot.slane %v4095, %v4101
      %v4104 = vunpack.c.l.s4 1966171168
      %v4105 = vunpack.c.0.s8 %v4104
      %v4106 = vlaneseq
      %v4107 = vshrl.u32 %v4106, 7
      %v4108 = vsub.s32 %v4105, %v4107
      %v4109 = vrot.slane %v4102, %v4108
      %v4111 = vmul.f32 %v1380, %v4109
      %v4112 = vadd.f32 %v4086, %v4111
      %4113 = vrot.lane.b32.xlu0 %v3228, 97
      %v4114 = vpop.permute.xlu0 %4113
      %4115 = vrot.lane.b32.xlu0 %v3232, 97
      %v4116 = vpop.permute.xlu0 %4115
      %v4117 = vsel %vm1405, %v4114, %v4116
      %v4118 = vsel %vm1405, %v4116, %v4114
      %v4121 = vcombine.low %v4117, %v4118
      %v4123 = vunpack.c.l.s4 1966171168
      %v4124 = vunpack.c.0.s8 %v4123
      %v4125 = vlaneseq
      %v4126 = vshrl.u32 %v4125, 7
      %v4127 = vsub.s32 %v4124, %v4126
      %v4128 = vrot.slane %v4121, %v4127
      %v4130 = vunpack.c.l.s4 1966171168
      %v4131 = vunpack.c.0.s8 %v4130
      %v4132 = vlaneseq
      %v4133 = vshrl.u32 %v4132, 7
      %v4134 = vsub.s32 %v4131, %v4133
      %v4135 = vrot.slane %v4128, %v4134
      %v4137 = vmul.f32 %v1409, %v4135
      %v4138 = vadd.f32 %v4112, %v4137
      %4139 = vrot.lane.b32.xlu0 %v3228, 81
      %v4140 = vpop.permute.xlu0 %4139
      %4141 = vrot.lane.b32.xlu0 %v3232, 81
      %v4142 = vpop.permute.xlu0 %4141
      %v4143 = vsel %vm1434, %v4140, %v4142
      %v4144 = vsel %vm1434, %v4142, %v4140
      %v4147 = vcombine.low %v4143, %v4144
      %v4149 = vunpack.c.l.s4 1966171168
      %v4150 = vunpack.c.0.s8 %v4149
      %v4151 = vlaneseq
      %v4152 = vshrl.u32 %v4151, 7
      %v4153 = vsub.s32 %v4150, %v4152
      %v4154 = vrot.slane %v4147, %v4153
      %v4156 = vunpack.c.l.s4 1966171168
      %v4157 = vunpack.c.0.s8 %v4156
      %v4158 = vlaneseq
      %v4159 = vshrl.u32 %v4158, 7
      %v4160 = vsub.s32 %v4157, %v4159
      %v4161 = vrot.slane %v4154, %v4160
      %v4163 = vmul.f32 %v1438, %v4161
      %v4164 = vadd.f32 %v4138, %v4163
      %4165 = vrot.lane.b32.xlu0 %v3422, 49
      %v4166 = vpop.permute.xlu0 %4165
      %4167 = vrot.lane.b32.xlu0 %v3426, 49
      %v4168 = vpop.permute.xlu0 %4167
      %v4169 = vsel %vm1260, %v4166, %v4168
      %v4170 = vsel %vm1260, %v4168, %v4166
      %v4173 = vcombine.low %v4170, %v4169
      %v4175 = vunpack.c.l.s4 1966171168
      %v4176 = vunpack.c.0.s8 %v4175
      %v4177 = vlaneseq
      %v4178 = vshrl.u32 %v4177, 7
      %v4179 = vsub.s32 %v4176, %v4178
      %v4180 = vrot.slane %v4173, %v4179
      %v4182 = vunpack.c.l.s4 1966171168
      %v4183 = vunpack.c.0.s8 %v4182
      %v4184 = vlaneseq
      %v4185 = vshrl.u32 %v4184, 7
      %v4186 = vsub.s32 %v4183, %v4185
      %v4187 = vrot.slane %v4180, %v4186
      %v4189 = vmul.f32 %v1466, %v4187
      %v4190 = vadd.f32 %v4164, %v4189
      %4191 = vrot.lane.b32.xlu0 %v3422, 33
      %v4192 = vpop.permute.xlu0 %4191
      %4193 = vrot.lane.b32.xlu0 %v3426, 33
      %v4194 = vpop.permute.xlu0 %4193
      %v4195 = vsel %vm1289, %v4192, %v4194
      %v4196 = vsel %vm1289, %v4194, %v4192
      %v4199 = vcombine.low %v4196, %v4195
      %v4201 = vunpack.c.l.s4 1966171168
      %v4202 = vunpack.c.0.s8 %v4201
      %v4203 = vlaneseq
      %v4204 = vshrl.u32 %v4203, 7
      %v4205 = vsub.s32 %v4202, %v4204
      %v4206 = vrot.slane %v4199, %v4205
      %v4208 = vunpack.c.l.s4 1966171168
      %v4209 = vunpack.c.0.s8 %v4208
      %v4210 = vlaneseq
      %v4211 = vshrl.u32 %v4210, 7
      %v4212 = vsub.s32 %v4209, %v4211
      %v4213 = vrot.slane %v4206, %v4212
      %v4215 = vmul.f32 %v1494, %v4213
      %v4216 = vadd.f32 %v4190, %v4215
      %4217 = vrot.lane.b32.xlu0 %v3422, 17
      %v4218 = vpop.permute.xlu0 %4217
      %4219 = vrot.lane.b32.xlu0 %v3426, 17
      %v4220 = vpop.permute.xlu0 %4219
      %v4221 = vsel %vm1318, %v4218, %v4220
      %v4222 = vsel %vm1318, %v4220, %v4218
      %v4225 = vcombine.low %v4222, %v4221
      %v4227 = vunpack.c.l.s4 1966171168
      %v4228 = vunpack.c.0.s8 %v4227
      %v4229 = vlaneseq
      %v4230 = vshrl.u32 %v4229, 7
      %v4231 = vsub.s32 %v4228, %v4230
      %v4232 = vrot.slane %v4225, %v4231
      %v4234 = vunpack.c.l.s4 1966171168
      %v4235 = vunpack.c.0.s8 %v4234
      %v4236 = vlaneseq
      %v4237 = vshrl.u32 %v4236, 7
      %v4238 = vsub.s32 %v4235, %v4237
      %v4239 = vrot.slane %v4232, %v4238
      %v4241 = vmul.f32 %v1522, %v4239
      %v4242 = vadd.f32 %v4216, %v4241
      %4243 = vrot.lane.b32.xlu0 %v3422, 1
      %v4244 = vpop.permute.xlu0 %4243
      %4245 = vrot.lane.b32.xlu0 %v3426, 1
      %v4246 = vpop.permute.xlu0 %4245
      %v4247 = vsel %vm1347, %v4244, %v4246
      %v4248 = vsel %vm1347, %v4246, %v4244
      %v4249 = vmul.f32 %v1549, %v4248
      %v4250 = vmul.f32 %v1549, %v4247
      %v4253 = vcombine.low %v4249, %v4250
      %v4255 = vunpack.c.l.s4 1966171168
      %v4256 = vunpack.c.0.s8 %v4255
      %v4257 = vlaneseq
      %v4258 = vshrl.u32 %v4257, 7
      %v4259 = vsub.s32 %v4256, %v4258
      %v4260 = vrot.slane %v4253, %v4259
      %v4262 = vunpack.c.l.s4 1966171168
      %v4263 = vunpack.c.0.s8 %v4262
      %v4264 = vlaneseq
      %v4265 = vshrl.u32 %v4264, 7
      %v4266 = vsub.s32 %v4263, %v4265
      %v4267 = vrot.slane %v4260, %v4266
      %v4269 = vadd.f32 %v4242, %v4267
      %4270 = vrot.lane.b32.xlu0 %v3422, 113
      %v4271 = vpop.permute.xlu0 %4270
      %4272 = vrot.lane.b32.xlu0 %v3426, 113
      %v4273 = vpop.permute.xlu0 %4272
      %v4274 = vsel %vm1376, %v4271, %v4273
      %v4275 = vsel %vm1376, %v4273, %v4271
      %v4278 = vcombine.low %v4274, %v4275
      %v4280 = vunpack.c.l.s4 1966171168
      %v4281 = vunpack.c.0.s8 %v4280
      %v4282 = vlaneseq
      %v4283 = vshrl.u32 %v4282, 7
      %v4284 = vsub.s32 %v4281, %v4283
      %v4285 = vrot.slane %v4278, %v4284
      %v4287 = vunpack.c.l.s4 1966171168
      %v4288 = vunpack.c.0.s8 %v4287
      %v4289 = vlaneseq
      %v4290 = vshrl.u32 %v4289, 7
      %v4291 = vsub.s32 %v4288, %v4290
      %v4292 = vrot.slane %v4285, %v4291
      %v4294 = vmul.f32 %v1578, %v4292
      %v4295 = vadd.f32 %v4269, %v4294
      %4296 = vrot.lane.b32.xlu0 %v3422, 97
      %v4297 = vpop.permute.xlu0 %4296
      %4298 = vrot.lane.b32.xlu0 %v3426, 97
      %v4299 = vpop.permute.xlu0 %4298
      %v4300 = vsel %vm1405, %v4297, %v4299
      %v4301 = vsel %vm1405, %v4299, %v4297
      %v4304 = vcombine.low %v4300, %v4301
      %v4306 = vunpack.c.l.s4 1966171168
      %v4307 = vunpack.c.0.s8 %v4306
      %v4308 = vlaneseq
      %v4309 = vshrl.u32 %v4308, 7
      %v4310 = vsub.s32 %v4307, %v4309
      %v4311 = vrot.slane %v4304, %v4310
      %v4313 = vunpack.c.l.s4 1966171168
      %v4314 = vunpack.c.0.s8 %v4313
      %v4315 = vlaneseq
      %v4316 = vshrl.u32 %v4315, 7
      %v4317 = vsub.s32 %v4314, %v4316
      %v4318 = vrot.slane %v4311, %v4317
      %v4320 = vmul.f32 %v1606, %v4318
      %v4321 = vadd.f32 %v4295, %v4320
      %4322 = vrot.lane.b32.xlu0 %v3422, 81
      %v4323 = vpop.permute.xlu0 %4322
      %4324 = vrot.lane.b32.xlu0 %v3426, 81
      %v4325 = vpop.permute.xlu0 %4324
      %v4326 = vsel %vm1434, %v4323, %v4325
      %v4327 = vsel %vm1434, %v4325, %v4323
      %v4330 = vcombine.low %v4326, %v4327
      %v4332 = vunpack.c.l.s4 1966171168
      %v4333 = vunpack.c.0.s8 %v4332
      %v4334 = vlaneseq
      %v4335 = vshrl.u32 %v4334, 7
      %v4336 = vsub.s32 %v4333, %v4335
      %v4337 = vrot.slane %v4330, %v4336
      %v4339 = vunpack.c.l.s4 1966171168
      %v4340 = vunpack.c.0.s8 %v4339
      %v4341 = vlaneseq
      %v4342 = vshrl.u32 %v4341, 7
      %v4343 = vsub.s32 %v4340, %v4342
      %v4344 = vrot.slane %v4337, %v4343
      %v4346 = vmul.f32 %v1634, %v4344
      %v4347 = vadd.f32 %v4321, %v4346
      %v4348 = vmul.f32 %v320, %v4347
      %v4349 = vadd.f32 %v3981, %v4348
      %4350 = vrot.lane.b32.xlu0 %v3228, 48
      %v4351 = vpop.permute.xlu0 %4350
      %4352 = vrot.lane.b32.xlu0 %v3232, 48
      %v4353 = vpop.permute.xlu0 %4352
      %v4354 = vsel %vm1661, %v4351, %v4353
      %v4355 = vsel %vm1661, %v4353, %v4351
      %v4358 = vcombine.low %v4355, %v4354
      %v4360 = vunpack.c.l.s4 1966171168
      %v4361 = vunpack.c.0.s8 %v4360
      %v4362 = vlaneseq
      %v4363 = vshrl.u32 %v4362, 7
      %v4364 = vsub.s32 %v4361, %v4363
      %v4365 = vrot.slane %v4358, %v4364
      %v4367 = vunpack.c.l.s4 1966171168
      %v4368 = vunpack.c.0.s8 %v4367
      %v4369 = vlaneseq
      %v4370 = vshrl.u32 %v4369, 7
      %v4371 = vsub.s32 %v4368, %v4370
      %v4372 = vrot.slane %v4365, %v4371
      %v4374 = vmul.f32 %v1665, %v4372
      %v4375 = vadd.f32 %v4374, 0.0
      %4376 = vrot.lane.b32.xlu0 %v3228, 32
      %v4377 = vpop.permute.xlu0 %4376
      %4378 = vrot.lane.b32.xlu0 %v3232, 32
      %v4379 = vpop.permute.xlu0 %4378
      %v4380 = vsel %vm1690, %v4377, %v4379
      %v4381 = vsel %vm1690, %v4379, %v4377
      %v4384 = vcombine.low %v4381, %v4380
      %v4386 = vunpack.c.l.s4 1966171168
      %v4387 = vunpack.c.0.s8 %v4386
      %v4388 = vlaneseq
      %v4389 = vshrl.u32 %v4388, 7
      %v4390 = vsub.s32 %v4387, %v4389
      %v4391 = vrot.slane %v4384, %v4390
      %v4393 = vunpack.c.l.s4 1966171168
      %v4394 = vunpack.c.0.s8 %v4393
      %v4395 = vlaneseq
      %v4396 = vshrl.u32 %v4395, 7
      %v4397 = vsub.s32 %v4394, %v4396
      %v4398 = vrot.slane %v4391, %v4397
      %v4400 = vmul.f32 %v1694, %v4398
      %v4401 = vadd.f32 %v4375, %v4400
      %4402 = vrot.lane.b32.xlu0 %v3228, 16
      %v4403 = vpop.permute.xlu0 %4402
      %4404 = vrot.lane.b32.xlu0 %v3232, 16
      %v4405 = vpop.permute.xlu0 %4404
      %v4406 = vsel %vm1719, %v4403, %v4405
      %v4407 = vsel %vm1719, %v4405, %v4403
      %v4410 = vcombine.low %v4407, %v4406
      %v4412 = vunpack.c.l.s4 1966171168
      %v4413 = vunpack.c.0.s8 %v4412
      %v4414 = vlaneseq
      %v4415 = vshrl.u32 %v4414, 7
      %v4416 = vsub.s32 %v4413, %v4415
      %v4417 = vrot.slane %v4410, %v4416
      %v4419 = vunpack.c.l.s4 1966171168
      %v4420 = vunpack.c.0.s8 %v4419
      %v4421 = vlaneseq
      %v4422 = vshrl.u32 %v4421, 7
      %v4423 = vsub.s32 %v4420, %v4422
      %v4424 = vrot.slane %v4417, %v4423
      %v4426 = vmul.f32 %v1723, %v4424
      %v4427 = vadd.f32 %v4401, %v4426
      %v4428 = vmul.f32 %v1744, %v3221
      %v4429 = vadd.f32 %v4427, %v4428
      %4430 = vrot.lane.b32.xlu0 %v3228, 112
      %v4431 = vpop.permute.xlu0 %4430
      %4432 = vrot.lane.b32.xlu0 %v3232, 112
      %v4433 = vpop.permute.xlu0 %4432
      %v4434 = vsel %vm1751, %v4431, %v4433
      %v4435 = vsel %vm1751, %v4433, %v4431
      %v4438 = vcombine.low %v4434, %v4435
      %v4440 = vunpack.c.l.s4 1966171168
      %v4441 = vunpack.c.0.s8 %v4440
      %v4442 = vlaneseq
      %v4443 = vshrl.u32 %v4442, 7
      %v4444 = vsub.s32 %v4441, %v4443
      %v4445 = vrot.slane %v4438, %v4444
      %v4447 = vunpack.c.l.s4 1966171168
      %v4448 = vunpack.c.0.s8 %v4447
      %v4449 = vlaneseq
      %v4450 = vshrl.u32 %v4449, 7
      %v4451 = vsub.s32 %v4448, %v4450
      %v4452 = vrot.slane %v4445, %v4451
      %v4454 = vmul.f32 %v1755, %v4452
      %v4455 = vadd.f32 %v4429, %v4454
      %4456 = vrot.lane.b32.xlu0 %v3228, 96
      %v4457 = vpop.permute.xlu0 %4456
      %4458 = vrot.lane.b32.xlu0 %v3232, 96
      %v4459 = vpop.permute.xlu0 %4458
      %v4460 = vsel %vm1780, %v4457, %v4459
      %v4461 = vsel %vm1780, %v4459, %v4457
      %v4464 = vcombine.low %v4460, %v4461
      %v4466 = vunpack.c.l.s4 1966171168
      %v4467 = vunpack.c.0.s8 %v4466
      %v4468 = vlaneseq
      %v4469 = vshrl.u32 %v4468, 7
      %v4470 = vsub.s32 %v4467, %v4469
      %v4471 = vrot.slane %v4464, %v4470
      %v4473 = vunpack.c.l.s4 1966171168
      %v4474 = vunpack.c.0.s8 %v4473
      %v4475 = vlaneseq
      %v4476 = vshrl.u32 %v4475, 7
      %v4477 = vsub.s32 %v4474, %v4476
      %v4478 = vrot.slane %v4471, %v4477
      %v4480 = vmul.f32 %v1784, %v4478
      %v4481 = vadd.f32 %v4455, %v4480
      %4482 = vrot.lane.b32.xlu0 %v3228, 80
      %v4483 = vpop.permute.xlu0 %4482
      %4484 = vrot.lane.b32.xlu0 %v3232, 80
      %v4485 = vpop.permute.xlu0 %4484
      %v4486 = vsel %vm1809, %v4483, %v4485
      %v4487 = vsel %vm1809, %v4485, %v4483
      %v4490 = vcombine.low %v4486, %v4487
      %v4492 = vunpack.c.l.s4 1966171168
      %v4493 = vunpack.c.0.s8 %v4492
      %v4494 = vlaneseq
      %v4495 = vshrl.u32 %v4494, 7
      %v4496 = vsub.s32 %v4493, %v4495
      %v4497 = vrot.slane %v4490, %v4496
      %v4499 = vunpack.c.l.s4 1966171168
      %v4500 = vunpack.c.0.s8 %v4499
      %v4501 = vlaneseq
      %v4502 = vshrl.u32 %v4501, 7
      %v4503 = vsub.s32 %v4500, %v4502
      %v4504 = vrot.slane %v4497, %v4503
      %v4506 = vmul.f32 %v1813, %v4504
      %v4507 = vadd.f32 %v4481, %v4506
      %4508 = vrot.lane.b32.xlu0 %v3422, 48
      %v4509 = vpop.permute.xlu0 %4508
      %4510 = vrot.lane.b32.xlu0 %v3426, 48
      %v4511 = vpop.permute.xlu0 %4510
      %v4512 = vsel %vm1661, %v4509, %v4511
      %v4513 = vsel %vm1661, %v4511, %v4509
      %v4516 = vcombine.low %v4513, %v4512
      %v4518 = vunpack.c.l.s4 1966171168
      %v4519 = vunpack.c.0.s8 %v4518
      %v4520 = vlaneseq
      %v4521 = vshrl.u32 %v4520, 7
      %v4522 = vsub.s32 %v4519, %v4521
      %v4523 = vrot.slane %v4516, %v4522
      %v4525 = vunpack.c.l.s4 1966171168
      %v4526 = vunpack.c.0.s8 %v4525
      %v4527 = vlaneseq
      %v4528 = vshrl.u32 %v4527, 7
      %v4529 = vsub.s32 %v4526, %v4528
      %v4530 = vrot.slane %v4523, %v4529
      %v4532 = vmul.f32 %v1841, %v4530
      %v4533 = vadd.f32 %v4507, %v4532
      %4534 = vrot.lane.b32.xlu0 %v3422, 32
      %v4535 = vpop.permute.xlu0 %4534
      %4536 = vrot.lane.b32.xlu0 %v3426, 32
      %v4537 = vpop.permute.xlu0 %4536
      %v4538 = vsel %vm1690, %v4535, %v4537
      %v4539 = vsel %vm1690, %v4537, %v4535
      %v4542 = vcombine.low %v4539, %v4538
      %v4544 = vunpack.c.l.s4 1966171168
      %v4545 = vunpack.c.0.s8 %v4544
      %v4546 = vlaneseq
      %v4547 = vshrl.u32 %v4546, 7
      %v4548 = vsub.s32 %v4545, %v4547
      %v4549 = vrot.slane %v4542, %v4548
      %v4551 = vunpack.c.l.s4 1966171168
      %v4552 = vunpack.c.0.s8 %v4551
      %v4553 = vlaneseq
      %v4554 = vshrl.u32 %v4553, 7
      %v4555 = vsub.s32 %v4552, %v4554
      %v4556 = vrot.slane %v4549, %v4555
      %v4558 = vmul.f32 %v1869, %v4556
      %v4559 = vadd.f32 %v4533, %v4558
      %4560 = vrot.lane.b32.xlu0 %v3422, 16
      %v4561 = vpop.permute.xlu0 %4560
      %4562 = vrot.lane.b32.xlu0 %v3426, 16
      %v4563 = vpop.permute.xlu0 %4562
      %v4564 = vsel %vm1719, %v4561, %v4563
      %v4565 = vsel %vm1719, %v4563, %v4561
      %v4568 = vcombine.low %v4565, %v4564
      %v4570 = vunpack.c.l.s4 1966171168
      %v4571 = vunpack.c.0.s8 %v4570
      %v4572 = vlaneseq
      %v4573 = vshrl.u32 %v4572, 7
      %v4574 = vsub.s32 %v4571, %v4573
      %v4575 = vrot.slane %v4568, %v4574
      %v4577 = vunpack.c.l.s4 1966171168
      %v4578 = vunpack.c.0.s8 %v4577
      %v4579 = vlaneseq
      %v4580 = vshrl.u32 %v4579, 7
      %v4581 = vsub.s32 %v4578, %v4580
      %v4582 = vrot.slane %v4575, %v4581
      %v4584 = vmul.f32 %v1897, %v4582
      %v4585 = vadd.f32 %v4559, %v4584
      %v4586 = vmul.f32 %v1918, %v3223
      %v4587 = vadd.f32 %v4585, %v4586
      %4588 = vrot.lane.b32.xlu0 %v3422, 112
      %v4589 = vpop.permute.xlu0 %4588
      %4590 = vrot.lane.b32.xlu0 %v3426, 112
      %v4591 = vpop.permute.xlu0 %4590
      %v4592 = vsel %vm1751, %v4589, %v4591
      %v4593 = vsel %vm1751, %v4591, %v4589
      %v4596 = vcombine.low %v4592, %v4593
      %v4598 = vunpack.c.l.s4 1966171168
      %v4599 = vunpack.c.0.s8 %v4598
      %v4600 = vlaneseq
      %v4601 = vshrl.u32 %v4600, 7
      %v4602 = vsub.s32 %v4599, %v4601
      %v4603 = vrot.slane %v4596, %v4602
      %v4605 = vunpack.c.l.s4 1966171168
      %v4606 = vunpack.c.0.s8 %v4605
      %v4607 = vlaneseq
      %v4608 = vshrl.u32 %v4607, 7
      %v4609 = vsub.s32 %v4606, %v4608
      %v4610 = vrot.slane %v4603, %v4609
      %v4612 = vmul.f32 %v1928, %v4610
      %v4613 = vadd.f32 %v4587, %v4612
      %4614 = vrot.lane.b32.xlu0 %v3422, 96
      %v4615 = vpop.permute.xlu0 %4614
      %4616 = vrot.lane.b32.xlu0 %v3426, 96
      %v4617 = vpop.permute.xlu0 %4616
      %v4618 = vsel %vm1780, %v4615, %v4617
      %v4619 = vsel %vm1780, %v4617, %v4615
      %v4622 = vcombine.low %v4618, %v4619
      %v4624 = vunpack.c.l.s4 1966171168
      %v4625 = vunpack.c.0.s8 %v4624
      %v4626 = vlaneseq
      %v4627 = vshrl.u32 %v4626, 7
      %v4628 = vsub.s32 %v4625, %v4627
      %v4629 = vrot.slane %v4622, %v4628
      %v4631 = vunpack.c.l.s4 1966171168
      %v4632 = vunpack.c.0.s8 %v4631
      %v4633 = vlaneseq
      %v4634 = vshrl.u32 %v4633, 7
      %v4635 = vsub.s32 %v4632, %v4634
      %v4636 = vrot.slane %v4629, %v4635
      %v4638 = vmul.f32 %v1956, %v4636
      %v4639 = vadd.f32 %v4613, %v4638
      %4640 = vrot.lane.b32.xlu0 %v3422, 80
      %v4641 = vpop.permute.xlu0 %4640
      %4642 = vrot.lane.b32.xlu0 %v3426, 80
      %v4643 = vpop.permute.xlu0 %4642
      %v4644 = vsel %vm1809, %v4641, %v4643
      %v4645 = vsel %vm1809, %v4643, %v4641
      %v4648 = vcombine.low %v4644, %v4645
      %v4650 = vunpack.c.l.s4 1966171168
      %v4651 = vunpack.c.0.s8 %v4650
      %v4652 = vlaneseq
      %v4653 = vshrl.u32 %v4652, 7
      %v4654 = vsub.s32 %v4651, %v4653
      %v4655 = vrot.slane %v4648, %v4654
      %v4657 = vunpack.c.l.s4 1966171168
      %v4658 = vunpack.c.0.s8 %v4657
      %v4659 = vlaneseq
      %v4660 = vshrl.u32 %v4659, 7
      %v4661 = vsub.s32 %v4658, %v4660
      %v4662 = vrot.slane %v4655, %v4661
      %v4664 = vmul.f32 %v1984, %v4662
      %v4665 = vadd.f32 %v4639, %v4664
      %v4666 = vadd.f32 %v4349, %v4665
      %4667 = vrot.lane.b32.xlu0 %v3228, 47
      %v4668 = vpop.permute.xlu0 %4667
      %4669 = vrot.lane.b32.xlu0 %v3232, 47
      %v4670 = vpop.permute.xlu0 %4669
      %v4671 = vsel %vm2010, %v4668, %v4670
      %v4672 = vsel %vm2010, %v4670, %v4668
      %v4675 = vcombine.low %v4672, %v4671
      %v4677 = vunpack.c.l.s4 1966171168
      %v4678 = vunpack.c.0.s8 %v4677
      %v4679 = vlaneseq
      %v4680 = vshrl.u32 %v4679, 7
      %v4681 = vsub.s32 %v4678, %v4680
      %v4682 = vrot.slane %v4675, %v4681
      %v4684 = vunpack.c.l.s4 1966171168
      %v4685 = vunpack.c.0.s8 %v4684
      %v4686 = vlaneseq
      %v4687 = vshrl.u32 %v4686, 7
      %v4688 = vsub.s32 %v4685, %v4687
      %v4689 = vrot.slane %v4682, %v4688
      %v4691 = vmul.f32 %v2014, %v4689
      %v4692 = vadd.f32 %v4691, 0.0
      %4693 = vrot.lane.b32.xlu0 %v3228, 31
      %v4694 = vpop.permute.xlu0 %4693
      %4695 = vrot.lane.b32.xlu0 %v3232, 31
      %v4696 = vpop.permute.xlu0 %4695
      %v4697 = vsel %vm2039, %v4694, %v4696
      %v4698 = vsel %vm2039, %v4696, %v4694
      %v4701 = vcombine.low %v4698, %v4697
      %v4703 = vunpack.c.l.s4 1966171168
      %v4704 = vunpack.c.0.s8 %v4703
      %v4705 = vlaneseq
      %v4706 = vshrl.u32 %v4705, 7
      %v4707 = vsub.s32 %v4704, %v4706
      %v4708 = vrot.slane %v4701, %v4707
      %v4710 = vunpack.c.l.s4 1966171168
      %v4711 = vunpack.c.0.s8 %v4710
      %v4712 = vlaneseq
      %v4713 = vshrl.u32 %v4712, 7
      %v4714 = vsub.s32 %v4711, %v4713
      %v4715 = vrot.slane %v4708, %v4714
      %v4717 = vmul.f32 %v2043, %v4715
      %v4718 = vadd.f32 %v4692, %v4717
      %4719 = vrot.lane.b32.xlu0 %v3228, 15
      %v4720 = vpop.permute.xlu0 %4719
      %4721 = vrot.lane.b32.xlu0 %v3232, 15
      %v4722 = vpop.permute.xlu0 %4721
      %v4723 = vsel %vm2068, %v4720, %v4722
      %v4724 = vsel %vm2068, %v4722, %v4720
      %v4727 = vcombine.low %v4724, %v4723
      %v4729 = vunpack.c.l.s4 1966171168
      %v4730 = vunpack.c.0.s8 %v4729
      %v4731 = vlaneseq
      %v4732 = vshrl.u32 %v4731, 7
      %v4733 = vsub.s32 %v4730, %v4732
      %v4734 = vrot.slane %v4727, %v4733
      %v4736 = vunpack.c.l.s4 1966171168
      %v4737 = vunpack.c.0.s8 %v4736
      %v4738 = vlaneseq
      %v4739 = vshrl.u32 %v4738, 7
      %v4740 = vsub.s32 %v4737, %v4739
      %v4741 = vrot.slane %v4734, %v4740
      %v4743 = vmul.f32 %v2072, %v4741
      %v4744 = vadd.f32 %v4718, %v4743
      %4745 = vrot.lane.b32.xlu0 %v3228, 127
      %v4746 = vpop.permute.xlu0 %4745
      %4747 = vrot.lane.b32.xlu0 %v3232, 127
      %v4748 = vpop.permute.xlu0 %4747
      %v4749 = vsel %vm2097, %v4746, %v4748
      %v4750 = vsel %vm2097, %v4748, %v4746
      %v4751 = vmul.f32 %v2100, %v4749
      %v4752 = vmul.f32 %v2100, %v4750
      %v4755 = vcombine.low %v4751, %v4752
      %v4757 = vunpack.c.l.s4 1966171168
      %v4758 = vunpack.c.0.s8 %v4757
      %v4759 = vlaneseq
      %v4760 = vshrl.u32 %v4759, 7
      %v4761 = vsub.s32 %v4758, %v4760
      %v4762 = vrot.slane %v4755, %v4761
      %v4764 = vunpack.c.l.s4 1966171168
      %v4765 = vunpack.c.0.s8 %v4764
      %v4766 = vlaneseq
      %v4767 = vshrl.u32 %v4766, 7
      %v4768 = vsub.s32 %v4765, %v4767
      %v4769 = vrot.slane %v4762, %v4768
      %v4771 = vadd.f32 %v4744, %v4769
      %4772 = vrot.lane.b32.xlu0 %v3228, 111
      %v4773 = vpop.permute.xlu0 %4772
      %4774 = vrot.lane.b32.xlu0 %v3232, 111
      %v4775 = vpop.permute.xlu0 %4774
      %v4776 = vsel %vm2126, %v4773, %v4775
      %v4777 = vsel %vm2126, %v4775, %v4773
      %v4780 = vcombine.low %v4776, %v4777
      %v4782 = vunpack.c.l.s4 1966171168
      %v4783 = vunpack.c.0.s8 %v4782
      %v4784 = vlaneseq
      %v4785 = vshrl.u32 %v4784, 7
      %v4786 = vsub.s32 %v4783, %v4785
      %v4787 = vrot.slane %v4780, %v4786
      %v4789 = vunpack.c.l.s4 1966171168
      %v4790 = vunpack.c.0.s8 %v4789
      %v4791 = vlaneseq
      %v4792 = vshrl.u32 %v4791, 7
      %v4793 = vsub.s32 %v4790, %v4792
      %v4794 = vrot.slane %v4787, %v4793
      %v4796 = vmul.f32 %v2130, %v4794
      %v4797 = vadd.f32 %v4771, %v4796
      %4798 = vrot.lane.b32.xlu0 %v3228, 95
      %v4799 = vpop.permute.xlu0 %4798
      %4800 = vrot.lane.b32.xlu0 %v3232, 95
      %v4801 = vpop.permute.xlu0 %4800
      %v4802 = vsel %vm2155, %v4799, %v4801
      %v4803 = vsel %vm2155, %v4801, %v4799
      %v4806 = vcombine.low %v4802, %v4803
      %v4808 = vunpack.c.l.s4 1966171168
      %v4809 = vunpack.c.0.s8 %v4808
      %v4810 = vlaneseq
      %v4811 = vshrl.u32 %v4810, 7
      %v4812 = vsub.s32 %v4809, %v4811
      %v4813 = vrot.slane %v4806, %v4812
      %v4815 = vunpack.c.l.s4 1966171168
      %v4816 = vunpack.c.0.s8 %v4815
      %v4817 = vlaneseq
      %v4818 = vshrl.u32 %v4817, 7
      %v4819 = vsub.s32 %v4816, %v4818
      %v4820 = vrot.slane %v4813, %v4819
      %v4822 = vmul.f32 %v2159, %v4820
      %v4823 = vadd.f32 %v4797, %v4822
      %4824 = vrot.lane.b32.xlu0 %v3228, 79
      %v4825 = vpop.permute.xlu0 %4824
      %4826 = vrot.lane.b32.xlu0 %v3232, 79
      %v4827 = vpop.permute.xlu0 %4826
      %v4828 = vsel %vm2184, %v4825, %v4827
      %v4829 = vsel %vm2184, %v4827, %v4825
      %v4832 = vcombine.low %v4828, %v4829
      %v4834 = vunpack.c.l.s4 1966171168
      %v4835 = vunpack.c.0.s8 %v4834
      %v4836 = vlaneseq
      %v4837 = vshrl.u32 %v4836, 7
      %v4838 = vsub.s32 %v4835, %v4837
      %v4839 = vrot.slane %v4832, %v4838
      %v4841 = vunpack.c.l.s4 1966171168
      %v4842 = vunpack.c.0.s8 %v4841
      %v4843 = vlaneseq
      %v4844 = vshrl.u32 %v4843, 7
      %v4845 = vsub.s32 %v4842, %v4844
      %v4846 = vrot.slane %v4839, %v4845
      %v4848 = vmul.f32 %v2188, %v4846
      %v4849 = vadd.f32 %v4823, %v4848
      %4850 = vrot.lane.b32.xlu0 %v3422, 47
      %v4851 = vpop.permute.xlu0 %4850
      %4852 = vrot.lane.b32.xlu0 %v3426, 47
      %v4853 = vpop.permute.xlu0 %4852
      %v4854 = vsel %vm2010, %v4851, %v4853
      %v4855 = vsel %vm2010, %v4853, %v4851
      %v4858 = vcombine.low %v4855, %v4854
      %v4860 = vunpack.c.l.s4 1966171168
      %v4861 = vunpack.c.0.s8 %v4860
      %v4862 = vlaneseq
      %v4863 = vshrl.u32 %v4862, 7
      %v4864 = vsub.s32 %v4861, %v4863
      %v4865 = vrot.slane %v4858, %v4864
      %v4867 = vunpack.c.l.s4 1966171168
      %v4868 = vunpack.c.0.s8 %v4867
      %v4869 = vlaneseq
      %v4870 = vshrl.u32 %v4869, 7
      %v4871 = vsub.s32 %v4868, %v4870
      %v4872 = vrot.slane %v4865, %v4871
      %v4874 = vmul.f32 %v2216, %v4872
      %v4875 = vadd.f32 %v4849, %v4874
      %4876 = vrot.lane.b32.xlu0 %v3422, 31
      %v4877 = vpop.permute.xlu0 %4876
      %4878 = vrot.lane.b32.xlu0 %v3426, 31
      %v4879 = vpop.permute.xlu0 %4878
      %v4880 = vsel %vm2039, %v4877, %v4879
      %v4881 = vsel %vm2039, %v4879, %v4877
      %v4884 = vcombine.low %v4881, %v4880
      %v4886 = vunpack.c.l.s4 1966171168
      %v4887 = vunpack.c.0.s8 %v4886
      %v4888 = vlaneseq
      %v4889 = vshrl.u32 %v4888, 7
      %v4890 = vsub.s32 %v4887, %v4889
      %v4891 = vrot.slane %v4884, %v4890
      %v4893 = vunpack.c.l.s4 1966171168
      %v4894 = vunpack.c.0.s8 %v4893
      %v4895 = vlaneseq
      %v4896 = vshrl.u32 %v4895, 7
      %v4897 = vsub.s32 %v4894, %v4896
      %v4898 = vrot.slane %v4891, %v4897
      %v4900 = vmul.f32 %v2244, %v4898
      %v4901 = vadd.f32 %v4875, %v4900
      %4902 = vrot.lane.b32.xlu0 %v3422, 15
      %v4903 = vpop.permute.xlu0 %4902
      %4904 = vrot.lane.b32.xlu0 %v3426, 15
      %v4905 = vpop.permute.xlu0 %4904
      %v4906 = vsel %vm2068, %v4903, %v4905
      %v4907 = vsel %vm2068, %v4905, %v4903
      %v4910 = vcombine.low %v4907, %v4906
      %v4912 = vunpack.c.l.s4 1966171168
      %v4913 = vunpack.c.0.s8 %v4912
      %v4914 = vlaneseq
      %v4915 = vshrl.u32 %v4914, 7
      %v4916 = vsub.s32 %v4913, %v4915
      %v4917 = vrot.slane %v4910, %v4916
      %v4919 = vunpack.c.l.s4 1966171168
      %v4920 = vunpack.c.0.s8 %v4919
      %v4921 = vlaneseq
      %v4922 = vshrl.u32 %v4921, 7
      %v4923 = vsub.s32 %v4920, %v4922
      %v4924 = vrot.slane %v4917, %v4923
      %v4926 = vmul.f32 %v2272, %v4924
      %v4927 = vadd.f32 %v4901, %v4926
      %4928 = vrot.lane.b32.xlu0 %v3422, 127
      %v4929 = vpop.permute.xlu0 %4928
      %4930 = vrot.lane.b32.xlu0 %v3426, 127
      %v4931 = vpop.permute.xlu0 %4930
      %v4932 = vsel %vm2097, %v4929, %v4931
      %v4933 = vsel %vm2097, %v4931, %v4929
      %v4934 = vmul.f32 %v2299, %v4932
      %v4935 = vmul.f32 %v2299, %v4933
      %v4938 = vcombine.low %v4934, %v4935
      %v4940 = vunpack.c.l.s4 1966171168
      %v4941 = vunpack.c.0.s8 %v4940
      %v4942 = vlaneseq
      %v4943 = vshrl.u32 %v4942, 7
      %v4944 = vsub.s32 %v4941, %v4943
      %v4945 = vrot.slane %v4938, %v4944
      %v4947 = vunpack.c.l.s4 1966171168
      %v4948 = vunpack.c.0.s8 %v4947
      %v4949 = vlaneseq
      %v4950 = vshrl.u32 %v4949, 7
      %v4951 = vsub.s32 %v4948, %v4950
      %v4952 = vrot.slane %v4945, %v4951
      %v4954 = vadd.f32 %v4927, %v4952
      %4955 = vrot.lane.b32.xlu0 %v3422, 111
      %v4956 = vpop.permute.xlu0 %4955
      %4957 = vrot.lane.b32.xlu0 %v3426, 111
      %v4958 = vpop.permute.xlu0 %4957
      %v4959 = vsel %vm2126, %v4956, %v4958
      %v4960 = vsel %vm2126, %v4958, %v4956
      %v4963 = vcombine.low %v4959, %v4960
      %v4965 = vunpack.c.l.s4 1966171168
      %v4966 = vunpack.c.0.s8 %v4965
      %v4967 = vlaneseq
      %v4968 = vshrl.u32 %v4967, 7
      %v4969 = vsub.s32 %v4966, %v4968
      %v4970 = vrot.slane %v4963, %v4969
      %v4972 = vunpack.c.l.s4 1966171168
      %v4973 = vunpack.c.0.s8 %v4972
      %v4974 = vlaneseq
      %v4975 = vshrl.u32 %v4974, 7
      %v4976 = vsub.s32 %v4973, %v4975
      %v4977 = vrot.slane %v4970, %v4976
      %v4979 = vmul.f32 %v2328, %v4977
      %v4980 = vadd.f32 %v4954, %v4979
      %4981 = vrot.lane.b32.xlu0 %v3422, 95
      %v4982 = vpop.permute.xlu0 %4981
      %4983 = vrot.lane.b32.xlu0 %v3426, 95
      %v4984 = vpop.permute.xlu0 %4983
      %v4985 = vsel %vm2155, %v4982, %v4984
      %v4986 = vsel %vm2155, %v4984, %v4982
      %v4989 = vcombine.low %v4985, %v4986
      %v4991 = vunpack.c.l.s4 1966171168
      %v4992 = vunpack.c.0.s8 %v4991
      %v4993 = vlaneseq
      %v4994 = vshrl.u32 %v4993, 7
      %v4995 = vsub.s32 %v4992, %v4994
      %v4996 = vrot.slane %v4989, %v4995
      %v4998 = vunpack.c.l.s4 1966171168
      %v4999 = vunpack.c.0.s8 %v4998
      %v5000 = vlaneseq
      %v5001 = vshrl.u32 %v5000, 7
      %v5002 = vsub.s32 %v4999, %v5001
      %v5003 = vrot.slane %v4996, %v5002
      %v5005 = vmul.f32 %v2356, %v5003
      %v5006 = vadd.f32 %v4980, %v5005
      %5007 = vrot.lane.b32.xlu0 %v3422, 79
      %v5008 = vpop.permute.xlu0 %5007
      %5009 = vrot.lane.b32.xlu0 %v3426, 79
      %v5010 = vpop.permute.xlu0 %5009
      %v5011 = vsel %vm2184, %v5008, %v5010
      %v5012 = vsel %vm2184, %v5010, %v5008
      %v5015 = vcombine.low %v5011, %v5012
      %v5017 = vunpack.c.l.s4 1966171168
      %v5018 = vunpack.c.0.s8 %v5017
      %v5019 = vlaneseq
      %v5020 = vshrl.u32 %v5019, 7
      %v5021 = vsub.s32 %v5018, %v5020
      %v5022 = vrot.slane %v5015, %v5021
      %v5024 = vunpack.c.l.s4 1966171168
      %v5025 = vunpack.c.0.s8 %v5024
      %v5026 = vlaneseq
      %v5027 = vshrl.u32 %v5026, 7
      %v5028 = vsub.s32 %v5025, %v5027
      %v5029 = vrot.slane %v5022, %v5028
      %v5031 = vmul.f32 %v2384, %v5029
      %v5032 = vadd.f32 %v5006, %v5031
      %v5033 = vmul.f32 %v323, %v5032
      %v5034 = vadd.f32 %v4666, %v5033
      %5035 = vrot.lane.b32.xlu0 %v3228, 46
      %v5036 = vpop.permute.xlu0 %5035
      %5037 = vrot.lane.b32.xlu0 %v3232, 46
      %v5038 = vpop.permute.xlu0 %5037
      %v5039 = vsel %vm2411, %v5036, %v5038
      %v5040 = vsel %vm2411, %v5038, %v5036
      %v5043 = vcombine.low %v5040, %v5039
      %v5045 = vunpack.c.l.s4 1966171168
      %v5046 = vunpack.c.0.s8 %v5045
      %v5047 = vlaneseq
      %v5048 = vshrl.u32 %v5047, 7
      %v5049 = vsub.s32 %v5046, %v5048
      %v5050 = vrot.slane %v5043, %v5049
      %v5052 = vunpack.c.l.s4 1966171168
      %v5053 = vunpack.c.0.s8 %v5052
      %v5054 = vlaneseq
      %v5055 = vshrl.u32 %v5054, 7
      %v5056 = vsub.s32 %v5053, %v5055
      %v5057 = vrot.slane %v5050, %v5056
      %v5059 = vmul.f32 %v2415, %v5057
      %v5060 = vadd.f32 %v5059, 0.0
      %5061 = vrot.lane.b32.xlu0 %v3228, 30
      %v5062 = vpop.permute.xlu0 %5061
      %5063 = vrot.lane.b32.xlu0 %v3232, 30
      %v5064 = vpop.permute.xlu0 %5063
      %v5065 = vsel %vm2440, %v5062, %v5064
      %v5066 = vsel %vm2440, %v5064, %v5062
      %v5069 = vcombine.low %v5066, %v5065
      %v5071 = vunpack.c.l.s4 1966171168
      %v5072 = vunpack.c.0.s8 %v5071
      %v5073 = vlaneseq
      %v5074 = vshrl.u32 %v5073, 7
      %v5075 = vsub.s32 %v5072, %v5074
      %v5076 = vrot.slane %v5069, %v5075
      %v5078 = vunpack.c.l.s4 1966171168
      %v5079 = vunpack.c.0.s8 %v5078
      %v5080 = vlaneseq
      %v5081 = vshrl.u32 %v5080, 7
      %v5082 = vsub.s32 %v5079, %v5081
      %v5083 = vrot.slane %v5076, %v5082
      %v5085 = vmul.f32 %v2444, %v5083
      %v5086 = vadd.f32 %v5060, %v5085
      %5087 = vrot.lane.b32.xlu0 %v3228, 14
      %v5088 = vpop.permute.xlu0 %5087
      %5089 = vrot.lane.b32.xlu0 %v3232, 14
      %v5090 = vpop.permute.xlu0 %5089
      %v5091 = vsel %vm2469, %v5088, %v5090
      %v5092 = vsel %vm2469, %v5090, %v5088
      %v5095 = vcombine.low %v5092, %v5091
      %v5097 = vunpack.c.l.s4 1966171168
      %v5098 = vunpack.c.0.s8 %v5097
      %v5099 = vlaneseq
      %v5100 = vshrl.u32 %v5099, 7
      %v5101 = vsub.s32 %v5098, %v5100
      %v5102 = vrot.slane %v5095, %v5101
      %v5104 = vunpack.c.l.s4 1966171168
      %v5105 = vunpack.c.0.s8 %v5104
      %v5106 = vlaneseq
      %v5107 = vshrl.u32 %v5106, 7
      %v5108 = vsub.s32 %v5105, %v5107
      %v5109 = vrot.slane %v5102, %v5108
      %v5111 = vmul.f32 %v2473, %v5109
      %v5112 = vadd.f32 %v5086, %v5111
      %5113 = vrot.lane.b32.xlu0 %v3228, 126
      %v5114 = vpop.permute.xlu0 %5113
      %5115 = vrot.lane.b32.xlu0 %v3232, 126
      %v5116 = vpop.permute.xlu0 %5115
      %v5117 = vsel %vm2498, %v5114, %v5116
      %v5118 = vsel %vm2498, %v5116, %v5114
      %v5119 = vmul.f32 %v2501, %v5117
      %v5120 = vmul.f32 %v2501, %v5118
      %v5123 = vcombine.low %v5119, %v5120
      %v5125 = vunpack.c.l.s4 1966171168
      %v5126 = vunpack.c.0.s8 %v5125
      %v5127 = vlaneseq
      %v5128 = vshrl.u32 %v5127, 7
      %v5129 = vsub.s32 %v5126, %v5128
      %v5130 = vrot.slane %v5123, %v5129
      %v5132 = vunpack.c.l.s4 1966171168
      %v5133 = vunpack.c.0.s8 %v5132
      %v5134 = vlaneseq
      %v5135 = vshrl.u32 %v5134, 7
      %v5136 = vsub.s32 %v5133, %v5135
      %v5137 = vrot.slane %v5130, %v5136
      %v5139 = vadd.f32 %v5112, %v5137
      %5140 = vrot.lane.b32.xlu0 %v3228, 110
      %v5141 = vpop.permute.xlu0 %5140
      %5142 = vrot.lane.b32.xlu0 %v3232, 110
      %v5143 = vpop.permute.xlu0 %5142
      %v5144 = vsel %vm2527, %v5141, %v5143
      %v5145 = vsel %vm2527, %v5143, %v5141
      %v5148 = vcombine.low %v5144, %v5145
      %v5150 = vunpack.c.l.s4 1966171168
      %v5151 = vunpack.c.0.s8 %v5150
      %v5152 = vlaneseq
      %v5153 = vshrl.u32 %v5152, 7
      %v5154 = vsub.s32 %v5151, %v5153
      %v5155 = vrot.slane %v5148, %v5154
      %v5157 = vunpack.c.l.s4 1966171168
      %v5158 = vunpack.c.0.s8 %v5157
      %v5159 = vlaneseq
      %v5160 = vshrl.u32 %v5159, 7
      %v5161 = vsub.s32 %v5158, %v5160
      %v5162 = vrot.slane %v5155, %v5161
      %v5164 = vmul.f32 %v2531, %v5162
      %v5165 = vadd.f32 %v5139, %v5164
      %5166 = vrot.lane.b32.xlu0 %v3228, 94
      %v5167 = vpop.permute.xlu0 %5166
      %5168 = vrot.lane.b32.xlu0 %v3232, 94
      %v5169 = vpop.permute.xlu0 %5168
      %v5170 = vsel %vm2556, %v5167, %v5169
      %v5171 = vsel %vm2556, %v5169, %v5167
      %v5174 = vcombine.low %v5170, %v5171
      %v5176 = vunpack.c.l.s4 1966171168
      %v5177 = vunpack.c.0.s8 %v5176
      %v5178 = vlaneseq
      %v5179 = vshrl.u32 %v5178, 7
      %v5180 = vsub.s32 %v5177, %v5179
      %v5181 = vrot.slane %v5174, %v5180
      %v5183 = vunpack.c.l.s4 1966171168
      %v5184 = vunpack.c.0.s8 %v5183
      %v5185 = vlaneseq
      %v5186 = vshrl.u32 %v5185, 7
      %v5187 = vsub.s32 %v5184, %v5186
      %v5188 = vrot.slane %v5181, %v5187
      %v5190 = vmul.f32 %v2560, %v5188
      %v5191 = vadd.f32 %v5165, %v5190
      %5192 = vrot.lane.b32.xlu0 %v3228, 78
      %v5193 = vpop.permute.xlu0 %5192
      %5194 = vrot.lane.b32.xlu0 %v3232, 78
      %v5195 = vpop.permute.xlu0 %5194
      %v5196 = vsel %vm2585, %v5193, %v5195
      %v5197 = vsel %vm2585, %v5195, %v5193
      %v5200 = vcombine.low %v5196, %v5197
      %v5202 = vunpack.c.l.s4 1966171168
      %v5203 = vunpack.c.0.s8 %v5202
      %v5204 = vlaneseq
      %v5205 = vshrl.u32 %v5204, 7
      %v5206 = vsub.s32 %v5203, %v5205
      %v5207 = vrot.slane %v5200, %v5206
      %v5209 = vunpack.c.l.s4 1966171168
      %v5210 = vunpack.c.0.s8 %v5209
      %v5211 = vlaneseq
      %v5212 = vshrl.u32 %v5211, 7
      %v5213 = vsub.s32 %v5210, %v5212
      %v5214 = vrot.slane %v5207, %v5213
      %v5216 = vmul.f32 %v2589, %v5214
      %v5217 = vadd.f32 %v5191, %v5216
      %5218 = vrot.lane.b32.xlu0 %v3422, 46
      %v5219 = vpop.permute.xlu0 %5218
      %5220 = vrot.lane.b32.xlu0 %v3426, 46
      %v5221 = vpop.permute.xlu0 %5220
      %v5222 = vsel %vm2411, %v5219, %v5221
      %v5223 = vsel %vm2411, %v5221, %v5219
      %v5226 = vcombine.low %v5223, %v5222
      %v5228 = vunpack.c.l.s4 1966171168
      %v5229 = vunpack.c.0.s8 %v5228
      %v5230 = vlaneseq
      %v5231 = vshrl.u32 %v5230, 7
      %v5232 = vsub.s32 %v5229, %v5231
      %v5233 = vrot.slane %v5226, %v5232
      %v5235 = vunpack.c.l.s4 1966171168
      %v5236 = vunpack.c.0.s8 %v5235
      %v5237 = vlaneseq
      %v5238 = vshrl.u32 %v5237, 7
      %v5239 = vsub.s32 %v5236, %v5238
      %v5240 = vrot.slane %v5233, %v5239
      %v5242 = vmul.f32 %v2617, %v5240
      %v5243 = vadd.f32 %v5217, %v5242
      %5244 = vrot.lane.b32.xlu0 %v3422, 30
      %v5245 = vpop.permute.xlu0 %5244
      %5246 = vrot.lane.b32.xlu0 %v3426, 30
      %v5247 = vpop.permute.xlu0 %5246
      %v5248 = vsel %vm2440, %v5245, %v5247
      %v5249 = vsel %vm2440, %v5247, %v5245
      %v5252 = vcombine.low %v5249, %v5248
      %v5254 = vunpack.c.l.s4 1966171168
      %v5255 = vunpack.c.0.s8 %v5254
      %v5256 = vlaneseq
      %v5257 = vshrl.u32 %v5256, 7
      %v5258 = vsub.s32 %v5255, %v5257
      %v5259 = vrot.slane %v5252, %v5258
      %v5261 = vunpack.c.l.s4 1966171168
      %v5262 = vunpack.c.0.s8 %v5261
      %v5263 = vlaneseq
      %v5264 = vshrl.u32 %v5263, 7
      %v5265 = vsub.s32 %v5262, %v5264
      %v5266 = vrot.slane %v5259, %v5265
      %v5268 = vmul.f32 %v2645, %v5266
      %v5269 = vadd.f32 %v5243, %v5268
      %5270 = vrot.lane.b32.xlu0 %v3422, 14
      %v5271 = vpop.permute.xlu0 %5270
      %5272 = vrot.lane.b32.xlu0 %v3426, 14
      %v5273 = vpop.permute.xlu0 %5272
      %v5274 = vsel %vm2469, %v5271, %v5273
      %v5275 = vsel %vm2469, %v5273, %v5271
      %v5278 = vcombine.low %v5275, %v5274
      %v5280 = vunpack.c.l.s4 1966171168
      %v5281 = vunpack.c.0.s8 %v5280
      %v5282 = vlaneseq
      %v5283 = vshrl.u32 %v5282, 7
      %v5284 = vsub.s32 %v5281, %v5283
      %v5285 = vrot.slane %v5278, %v5284
      %v5287 = vunpack.c.l.s4 1966171168
      %v5288 = vunpack.c.0.s8 %v5287
      %v5289 = vlaneseq
      %v5290 = vshrl.u32 %v5289, 7
      %v5291 = vsub.s32 %v5288, %v5290
      %v5292 = vrot.slane %v5285, %v5291
      %v5294 = vmul.f32 %v2673, %v5292
      %v5295 = vadd.f32 %v5269, %v5294
      %5296 = vrot.lane.b32.xlu0 %v3422, 126
      %v5297 = vpop.permute.xlu0 %5296
      %5298 = vrot.lane.b32.xlu0 %v3426, 126
      %v5299 = vpop.permute.xlu0 %5298
      %v5300 = vsel %vm2498, %v5297, %v5299
      %v5301 = vsel %vm2498, %v5299, %v5297
      %v5302 = vmul.f32 %v2700, %v5300
      %v5303 = vmul.f32 %v2700, %v5301
      %v5306 = vcombine.low %v5302, %v5303
      %v5308 = vunpack.c.l.s4 1966171168
      %v5309 = vunpack.c.0.s8 %v5308
      %v5310 = vlaneseq
      %v5311 = vshrl.u32 %v5310, 7
      %v5312 = vsub.s32 %v5309, %v5311
      %v5313 = vrot.slane %v5306, %v5312
      %v5315 = vunpack.c.l.s4 1966171168
      %v5316 = vunpack.c.0.s8 %v5315
      %v5317 = vlaneseq
      %v5318 = vshrl.u32 %v5317, 7
      %v5319 = vsub.s32 %v5316, %v5318
      %v5320 = vrot.slane %v5313, %v5319
      %v5322 = vadd.f32 %v5295, %v5320
      %5323 = vrot.lane.b32.xlu0 %v3422, 110
      %v5324 = vpop.permute.xlu0 %5323
      %5325 = vrot.lane.b32.xlu0 %v3426, 110
      %v5326 = vpop.permute.xlu0 %5325
      %v5327 = vsel %vm2527, %v5324, %v5326
      %v5328 = vsel %vm2527, %v5326, %v5324
      %v5331 = vcombine.low %v5327, %v5328
      %v5333 = vunpack.c.l.s4 1966171168
      %v5334 = vunpack.c.0.s8 %v5333
      %v5335 = vlaneseq
      %v5336 = vshrl.u32 %v5335, 7
      %v5337 = vsub.s32 %v5334, %v5336
      %v5338 = vrot.slane %v5331, %v5337
      %v5340 = vunpack.c.l.s4 1966171168
      %v5341 = vunpack.c.0.s8 %v5340
      %v5342 = vlaneseq
      %v5343 = vshrl.u32 %v5342, 7
      %v5344 = vsub.s32 %v5341, %v5343
      %v5345 = vrot.slane %v5338, %v5344
      %v5347 = vmul.f32 %v2729, %v5345
      %v5348 = vadd.f32 %v5322, %v5347
      %5349 = vrot.lane.b32.xlu0 %v3422, 94
      %v5350 = vpop.permute.xlu0 %5349
      %5351 = vrot.lane.b32.xlu0 %v3426, 94
      %v5352 = vpop.permute.xlu0 %5351
      %v5353 = vsel %vm2556, %v5350, %v5352
      %v5354 = vsel %vm2556, %v5352, %v5350
      %v5357 = vcombine.low %v5353, %v5354
      %v5359 = vunpack.c.l.s4 1966171168
      %v5360 = vunpack.c.0.s8 %v5359
      %v5361 = vlaneseq
      %v5362 = vshrl.u32 %v5361, 7
      %v5363 = vsub.s32 %v5360, %v5362
      %v5364 = vrot.slane %v5357, %v5363
      %v5366 = vunpack.c.l.s4 1966171168
      %v5367 = vunpack.c.0.s8 %v5366
      %v5368 = vlaneseq
      %v5369 = vshrl.u32 %v5368, 7
      %v5370 = vsub.s32 %v5367, %v5369
      %v5371 = vrot.slane %v5364, %v5370
      %v5373 = vmul.f32 %v2757, %v5371
      %v5374 = vadd.f32 %v5348, %v5373
      %5375 = vrot.lane.b32.xlu0 %v3422, 78
      %v5376 = vpop.permute.xlu0 %5375
      %5377 = vrot.lane.b32.xlu0 %v3426, 78
      %v5378 = vpop.permute.xlu0 %5377
      %v5379 = vsel %vm2585, %v5376, %v5378
      %v5380 = vsel %vm2585, %v5378, %v5376
      %v5383 = vcombine.low %v5379, %v5380
      %v5385 = vunpack.c.l.s4 1966171168
      %v5386 = vunpack.c.0.s8 %v5385
      %v5387 = vlaneseq
      %v5388 = vshrl.u32 %v5387, 7
      %v5389 = vsub.s32 %v5386, %v5388
      %v5390 = vrot.slane %v5383, %v5389
      %v5392 = vunpack.c.l.s4 1966171168
      %v5393 = vunpack.c.0.s8 %v5392
      %v5394 = vlaneseq
      %v5395 = vshrl.u32 %v5394, 7
      %v5396 = vsub.s32 %v5393, %v5395
      %v5397 = vrot.slane %v5390, %v5396
      %v5399 = vmul.f32 %v2785, %v5397
      %v5400 = vadd.f32 %v5374, %v5399
      %v5401 = vmul.f32 %v326, %v5400
      %v5402 = vadd.f32 %v5034, %v5401
      %5403 = vrot.lane.b32.xlu0 %v3228, 45
      %v5404 = vpop.permute.xlu0 %5403
      %5405 = vrot.lane.b32.xlu0 %v3232, 45
      %v5406 = vpop.permute.xlu0 %5405
      %v5407 = vsel %vm2812, %v5404, %v5406
      %v5408 = vsel %vm2812, %v5406, %v5404
      %v5411 = vcombine.low %v5408, %v5407
      %v5413 = vunpack.c.l.s4 1966171168
      %v5414 = vunpack.c.0.s8 %v5413
      %v5415 = vlaneseq
      %v5416 = vshrl.u32 %v5415, 7
      %v5417 = vsub.s32 %v5414, %v5416
      %v5418 = vrot.slane %v5411, %v5417
      %v5420 = vunpack.c.l.s4 1966171168
      %v5421 = vunpack.c.0.s8 %v5420
      %v5422 = vlaneseq
      %v5423 = vshrl.u32 %v5422, 7
      %v5424 = vsub.s32 %v5421, %v5423
      %v5425 = vrot.slane %v5418, %v5424
      %v5427 = vmul.f32 %v2816, %v5425
      %v5428 = vadd.f32 %v5427, 0.0
      %5429 = vrot.lane.b32.xlu0 %v3228, 29
      %v5430 = vpop.permute.xlu0 %5429
      %5431 = vrot.lane.b32.xlu0 %v3232, 29
      %v5432 = vpop.permute.xlu0 %5431
      %v5433 = vsel %vm2841, %v5430, %v5432
      %v5434 = vsel %vm2841, %v5432, %v5430
      %v5437 = vcombine.low %v5434, %v5433
      %v5439 = vunpack.c.l.s4 1966171168
      %v5440 = vunpack.c.0.s8 %v5439
      %v5441 = vlaneseq
      %v5442 = vshrl.u32 %v5441, 7
      %v5443 = vsub.s32 %v5440, %v5442
      %v5444 = vrot.slane %v5437, %v5443
      %v5446 = vunpack.c.l.s4 1966171168
      %v5447 = vunpack.c.0.s8 %v5446
      %v5448 = vlaneseq
      %v5449 = vshrl.u32 %v5448, 7
      %v5450 = vsub.s32 %v5447, %v5449
      %v5451 = vrot.slane %v5444, %v5450
      %v5453 = vmul.f32 %v2845, %v5451
      %v5454 = vadd.f32 %v5428, %v5453
      %5455 = vrot.lane.b32.xlu0 %v3228, 13
      %v5456 = vpop.permute.xlu0 %5455
      %5457 = vrot.lane.b32.xlu0 %v3232, 13
      %v5458 = vpop.permute.xlu0 %5457
      %v5459 = vsel %vm2870, %v5456, %v5458
      %v5460 = vsel %vm2870, %v5458, %v5456
      %v5463 = vcombine.low %v5460, %v5459
      %v5465 = vunpack.c.l.s4 1966171168
      %v5466 = vunpack.c.0.s8 %v5465
      %v5467 = vlaneseq
      %v5468 = vshrl.u32 %v5467, 7
      %v5469 = vsub.s32 %v5466, %v5468
      %v5470 = vrot.slane %v5463, %v5469
      %v5472 = vunpack.c.l.s4 1966171168
      %v5473 = vunpack.c.0.s8 %v5472
      %v5474 = vlaneseq
      %v5475 = vshrl.u32 %v5474, 7
      %v5476 = vsub.s32 %v5473, %v5475
      %v5477 = vrot.slane %v5470, %v5476
      %v5479 = vmul.f32 %v2874, %v5477
      %v5480 = vadd.f32 %v5454, %v5479
      %5481 = vrot.lane.b32.xlu0 %v3228, 125
      %v5482 = vpop.permute.xlu0 %5481
      %5483 = vrot.lane.b32.xlu0 %v3232, 125
      %v5484 = vpop.permute.xlu0 %5483
      %v5485 = vsel %vm2899, %v5482, %v5484
      %v5486 = vsel %vm2899, %v5484, %v5482
      %v5487 = vmul.f32 %v2902, %v5485
      %v5488 = vmul.f32 %v2902, %v5486
      %v5491 = vcombine.low %v5487, %v5488
      %v5493 = vunpack.c.l.s4 1966171168
      %v5494 = vunpack.c.0.s8 %v5493
      %v5495 = vlaneseq
      %v5496 = vshrl.u32 %v5495, 7
      %v5497 = vsub.s32 %v5494, %v5496
      %v5498 = vrot.slane %v5491, %v5497
      %v5500 = vunpack.c.l.s4 1966171168
      %v5501 = vunpack.c.0.s8 %v5500
      %v5502 = vlaneseq
      %v5503 = vshrl.u32 %v5502, 7
      %v5504 = vsub.s32 %v5501, %v5503
      %v5505 = vrot.slane %v5498, %v5504
      %v5507 = vadd.f32 %v5480, %v5505
      %5508 = vrot.lane.b32.xlu0 %v3228, 109
      %v5509 = vpop.permute.xlu0 %5508
      %5510 = vrot.lane.b32.xlu0 %v3232, 109
      %v5511 = vpop.permute.xlu0 %5510
      %v5512 = vsel %vm2928, %v5509, %v5511
      %v5513 = vsel %vm2928, %v5511, %v5509
      %v5516 = vcombine.low %v5512, %v5513
      %v5518 = vunpack.c.l.s4 1966171168
      %v5519 = vunpack.c.0.s8 %v5518
      %v5520 = vlaneseq
      %v5521 = vshrl.u32 %v5520, 7
      %v5522 = vsub.s32 %v5519, %v5521
      %v5523 = vrot.slane %v5516, %v5522
      %v5525 = vunpack.c.l.s4 1966171168
      %v5526 = vunpack.c.0.s8 %v5525
      %v5527 = vlaneseq
      %v5528 = vshrl.u32 %v5527, 7
      %v5529 = vsub.s32 %v5526, %v5528
      %v5530 = vrot.slane %v5523, %v5529
      %v5532 = vmul.f32 %v2932, %v5530
      %v5533 = vadd.f32 %v5507, %v5532
      %5534 = vrot.lane.b32.xlu0 %v3228, 93
      %v5535 = vpop.permute.xlu0 %5534
      %5536 = vrot.lane.b32.xlu0 %v3232, 93
      %v5537 = vpop.permute.xlu0 %5536
      %v5538 = vsel %vm2957, %v5535, %v5537
      %v5539 = vsel %vm2957, %v5537, %v5535
      %v5542 = vcombine.low %v5538, %v5539
      %v5544 = vunpack.c.l.s4 1966171168
      %v5545 = vunpack.c.0.s8 %v5544
      %v5546 = vlaneseq
      %v5547 = vshrl.u32 %v5546, 7
      %v5548 = vsub.s32 %v5545, %v5547
      %v5549 = vrot.slane %v5542, %v5548
      %v5551 = vunpack.c.l.s4 1966171168
      %v5552 = vunpack.c.0.s8 %v5551
      %v5553 = vlaneseq
      %v5554 = vshrl.u32 %v5553, 7
      %v5555 = vsub.s32 %v5552, %v5554
      %v5556 = vrot.slane %v5549, %v5555
      %v5558 = vmul.f32 %v2961, %v5556
      %v5559 = vadd.f32 %v5533, %v5558
      %5560 = vrot.lane.b32.xlu0 %v3228, 77
      %v5561 = vpop.permute.xlu0 %5560
      %5562 = vrot.lane.b32.xlu0 %v3232, 77
      %v5563 = vpop.permute.xlu0 %5562
      %v5564 = vsel %vm2986, %v5561, %v5563
      %v5565 = vsel %vm2986, %v5563, %v5561
      %v5568 = vcombine.low %v5564, %v5565
      %v5570 = vunpack.c.l.s4 1966171168
      %v5571 = vunpack.c.0.s8 %v5570
      %v5572 = vlaneseq
      %v5573 = vshrl.u32 %v5572, 7
      %v5574 = vsub.s32 %v5571, %v5573
      %v5575 = vrot.slane %v5568, %v5574
      %v5577 = vunpack.c.l.s4 1966171168
      %v5578 = vunpack.c.0.s8 %v5577
      %v5579 = vlaneseq
      %v5580 = vshrl.u32 %v5579, 7
      %v5581 = vsub.s32 %v5578, %v5580
      %v5582 = vrot.slane %v5575, %v5581
      %v5584 = vmul.f32 %v2990, %v5582
      %v5585 = vadd.f32 %v5559, %v5584
      %5586 = vrot.lane.b32.xlu0 %v3422, 45
      %v5587 = vpop.permute.xlu0 %5586
      %5588 = vrot.lane.b32.xlu0 %v3426, 45
      %v5589 = vpop.permute.xlu0 %5588
      %v5590 = vsel %vm2812, %v5587, %v5589
      %v5591 = vsel %vm2812, %v5589, %v5587
      %v5594 = vcombine.low %v5591, %v5590
      %v5596 = vunpack.c.l.s4 1966171168
      %v5597 = vunpack.c.0.s8 %v5596
      %v5598 = vlaneseq
      %v5599 = vshrl.u32 %v5598, 7
      %v5600 = vsub.s32 %v5597, %v5599
      %v5601 = vrot.slane %v5594, %v5600
      %v5603 = vunpack.c.l.s4 1966171168
      %v5604 = vunpack.c.0.s8 %v5603
      %v5605 = vlaneseq
      %v5606 = vshrl.u32 %v5605, 7
      %v5607 = vsub.s32 %v5604, %v5606
      %v5608 = vrot.slane %v5601, %v5607
      %v5610 = vmul.f32 %v3018, %v5608
      %v5611 = vadd.f32 %v5585, %v5610
      %5612 = vrot.lane.b32.xlu0 %v3422, 29
      %v5613 = vpop.permute.xlu0 %5612
      %5614 = vrot.lane.b32.xlu0 %v3426, 29
      %v5615 = vpop.permute.xlu0 %5614
      %v5616 = vsel %vm2841, %v5613, %v5615
      %v5617 = vsel %vm2841, %v5615, %v5613
      %v5620 = vcombine.low %v5617, %v5616
      %v5622 = vunpack.c.l.s4 1966171168
      %v5623 = vunpack.c.0.s8 %v5622
      %v5624 = vlaneseq
      %v5625 = vshrl.u32 %v5624, 7
      %v5626 = vsub.s32 %v5623, %v5625
      %v5627 = vrot.slane %v5620, %v5626
      %v5629 = vunpack.c.l.s4 1966171168
      %v5630 = vunpack.c.0.s8 %v5629
      %v5631 = vlaneseq
      %v5632 = vshrl.u32 %v5631, 7
      %v5633 = vsub.s32 %v5630, %v5632
      %v5634 = vrot.slane %v5627, %v5633
      %v5636 = vmul.f32 %v3046, %v5634
      %v5637 = vadd.f32 %v5611, %v5636
      %5638 = vrot.lane.b32.xlu0 %v3422, 13
      %v5639 = vpop.permute.xlu0 %5638
      %5640 = vrot.lane.b32.xlu0 %v3426, 13
      %v5641 = vpop.permute.xlu0 %5640
      %v5642 = vsel %vm2870, %v5639, %v5641
      %v5643 = vsel %vm2870, %v5641, %v5639
      %v5646 = vcombine.low %v5643, %v5642
      %v5648 = vunpack.c.l.s4 1966171168
      %v5649 = vunpack.c.0.s8 %v5648
      %v5650 = vlaneseq
      %v5651 = vshrl.u32 %v5650, 7
      %v5652 = vsub.s32 %v5649, %v5651
      %v5653 = vrot.slane %v5646, %v5652
      %v5655 = vunpack.c.l.s4 1966171168
      %v5656 = vunpack.c.0.s8 %v5655
      %v5657 = vlaneseq
      %v5658 = vshrl.u32 %v5657, 7
      %v5659 = vsub.s32 %v5656, %v5658
      %v5660 = vrot.slane %v5653, %v5659
      %v5662 = vmul.f32 %v3074, %v5660
      %v5663 = vadd.f32 %v5637, %v5662
      %5664 = vrot.lane.b32.xlu0 %v3422, 125
      %v5665 = vpop.permute.xlu0 %5664
      %5666 = vrot.lane.b32.xlu0 %v3426, 125
      %v5667 = vpop.permute.xlu0 %5666
      %v5668 = vsel %vm2899, %v5665, %v5667
      %v5669 = vsel %vm2899, %v5667, %v5665
      %v5670 = vmul.f32 %v3101, %v5668
      %v5671 = vmul.f32 %v3101, %v5669
      %v5674 = vcombine.low %v5670, %v5671
      %v5676 = vunpack.c.l.s4 1966171168
      %v5677 = vunpack.c.0.s8 %v5676
      %v5678 = vlaneseq
      %v5679 = vshrl.u32 %v5678, 7
      %v5680 = vsub.s32 %v5677, %v5679
      %v5681 = vrot.slane %v5674, %v5680
      %v5683 = vunpack.c.l.s4 1966171168
      %v5684 = vunpack.c.0.s8 %v5683
      %v5685 = vlaneseq
      %v5686 = vshrl.u32 %v5685, 7
      %v5687 = vsub.s32 %v5684, %v5686
      %v5688 = vrot.slane %v5681, %v5687
      %v5690 = vadd.f32 %v5663, %v5688
      %5691 = vrot.lane.b32.xlu0 %v3422, 109
      %v5692 = vpop.permute.xlu0 %5691
      %5693 = vrot.lane.b32.xlu0 %v3426, 109
      %v5694 = vpop.permute.xlu0 %5693
      %v5695 = vsel %vm2928, %v5692, %v5694
      %v5696 = vsel %vm2928, %v5694, %v5692
      %v5699 = vcombine.low %v5695, %v5696
      %v5701 = vunpack.c.l.s4 1966171168
      %v5702 = vunpack.c.0.s8 %v5701
      %v5703 = vlaneseq
      %v5704 = vshrl.u32 %v5703, 7
      %v5705 = vsub.s32 %v5702, %v5704
      %v5706 = vrot.slane %v5699, %v5705
      %v5708 = vunpack.c.l.s4 1966171168
      %v5709 = vunpack.c.0.s8 %v5708
      %v5710 = vlaneseq
      %v5711 = vshrl.u32 %v5710, 7
      %v5712 = vsub.s32 %v5709, %v5711
      %v5713 = vrot.slane %v5706, %v5712
      %v5715 = vmul.f32 %v3130, %v5713
      %v5716 = vadd.f32 %v5690, %v5715
      %5717 = vrot.lane.b32.xlu0 %v3422, 93
      %v5718 = vpop.permute.xlu0 %5717
      %5719 = vrot.lane.b32.xlu0 %v3426, 93
      %v5720 = vpop.permute.xlu0 %5719
      %v5721 = vsel %vm2957, %v5718, %v5720
      %v5722 = vsel %vm2957, %v5720, %v5718
      %v5725 = vcombine.low %v5721, %v5722
      %v5727 = vunpack.c.l.s4 1966171168
      %v5728 = vunpack.c.0.s8 %v5727
      %v5729 = vlaneseq
      %v5730 = vshrl.u32 %v5729, 7
      %v5731 = vsub.s32 %v5728, %v5730
      %v5732 = vrot.slane %v5725, %v5731
      %v5734 = vunpack.c.l.s4 1966171168
      %v5735 = vunpack.c.0.s8 %v5734
      %v5736 = vlaneseq
      %v5737 = vshrl.u32 %v5736, 7
      %v5738 = vsub.s32 %v5735, %v5737
      %v5739 = vrot.slane %v5732, %v5738
      %v5741 = vmul.f32 %v3158, %v5739
      %v5742 = vadd.f32 %v5716, %v5741
      %5743 = vrot.lane.b32.xlu0 %v3422, 77
      %v5744 = vpop.permute.xlu0 %5743
      %5745 = vrot.lane.b32.xlu0 %v3426, 77
      %v5746 = vpop.permute.xlu0 %5745
      %v5747 = vsel %vm2986, %v5744, %v5746
      %v5748 = vsel %vm2986, %v5746, %v5744
      %v5751 = vcombine.low %v5747, %v5748
      %v5753 = vunpack.c.l.s4 1966171168
      %v5754 = vunpack.c.0.s8 %v5753
      %v5755 = vlaneseq
      %v5756 = vshrl.u32 %v5755, 7
      %v5757 = vsub.s32 %v5754, %v5756
      %v5758 = vrot.slane %v5751, %v5757
      %v5760 = vunpack.c.l.s4 1966171168
      %v5761 = vunpack.c.0.s8 %v5760
      %v5762 = vlaneseq
      %v5763 = vshrl.u32 %v5762, 7
      %v5764 = vsub.s32 %v5761, %v5763
      %v5765 = vrot.slane %v5758, %v5764
      %v5767 = vmul.f32 %v3186, %v5765
      %v5768 = vadd.f32 %v5742, %v5767
      %v5769 = vmul.f32 %v329, %v5768
      %v5770 = vadd.f32 %v5402, %v5769
      %v5771 = vxor.u32 %v5770, 2147483648
      %v5772 = vmul.f32 %v5771, 1.442695
      %v5773 = vpow.pop %v5772
      %v5774 = vadd.f32 %v5773, 1.0
      %v5775 = vrcp.pop %v5774
      %v5776 = vmul.f32 1.0, %v5775
      %s5777 = scalar_lea.vmem [#allocation9], 2
      %5778 = vst.msk [vmem:[%s5777] sm:$0x3] %vm3218, %v5776
    $region37: #{tpu_custom_call.1} parent=1 // pred_fallthru
      _
    // Predicated region
    $region38: #{tpu_custom_call.1} parent=1 // pred_check
      _
    $region39: #{tpu_custom_call.1} parent=1 // pred_check_branch
      %5780 = sbr.rel (0) target = $region41
    $region40: #{tpu_custom_call.1} parent=1 // pred_region
      %s5782 = ssub.s32 64, 64
      %5783 = vsyncadd [#allocation6], %s5782
      %s5784 = sshll.u32 [#allocation9], 4
      %s5785 = int_to_ptr.vmem [resolvable:$true] %s5784
      %5790 = dma.vmem_to_hbm [thread:$0]  %s5785, 64, %s4, [#allocation6], 32, 32, 2
    $region41: #{tpu_custom_call.1} parent=1 // pred_fallthru
      _
    // Predicated region
    $region42: #{tpu_custom_call.1} parent=1 // pred_check
      _
    $region43: #{tpu_custom_call.1} parent=1 // pred_check_branch
      %5792 = sbr.rel (0) target = $region45
    $region44: #{tpu_custom_call.1} parent=1 // pred_region
      %5793 = dma.done [#allocation6], 64
    $region45: #{tpu_custom_call.1} parent=1 // pred_fallthru
      _
    %5794 = vsyncpa [#allocation5], 1
    %5795 = vsyncpa [#allocation6], 1
    %5796 = vsyncpa [#allocation7], 1

</llo_original>
